<compile_context>
chip_gen: v6e
topology: v6e:2x2x1
jax: 0.10.0
libtpu: 0.0.40
codegen_flags: <defaults>
</compile_context>

<pallas_src>
import jax
import jax.numpy as jnp
import numpy as np
from jax.experimental import pallas as pl
from jax.experimental.pallas import tpu as pltpu

LANES = 128


def _round_up(a, b):
    return (a + b - 1) // b * b


# ---------------------------------------------------------------------------
# Static geometry for the fused kernel (conv stack 8/4 -> 4/2 -> 3/1).
# Every conv output is kept in "full-width" row-major form (row = i*BJ + j,
# BJ = W/8); invalid columns are garbage that is provably never consumed by a
# valid downstream output.
# ---------------------------------------------------------------------------
def _geometry(in_h, in_w, channels):
    assert in_h % 8 == 0 and in_w % 8 == 0, "input H and W must be multiples of 8"
    bi, bj = in_h // 8, in_w // 8                  # 8x8-pixel macro-block grid
    oh1, ow1 = in_h // 4 - 1, in_w // 4 - 1        # conv1 output (17, 23)
    oh2, ow2 = (oh1 - 4) // 2 + 1, (ow1 - 4) // 2 + 1   # conv2 output (7, 10)
    oh3, ow3 = oh2 - 2, ow2 - 2                         # conv3 output (5, 8)
    g3 = _round_up((oh3 - 1) * bj + ow3, 8)        # conv3 rows      (56)
    g2 = _round_up(2 * bj + 2 + g3, 8)             # conv2 rows      (88)
    g1 = _round_up(bj + 1 + g2, 8)                 # conv1 phase rows (104)
    p1 = _round_up(bj + 1 + g1, 8)                 # padded input-plane rows (120)
    return dict(BI=bi, BJ=bj, P_VALID=bi * bj, P1=p1, G1=g1, G2=g2, G3=g3,
                OH3=oh3, OW3=ow3, F_IN=16 * channels)


# ---------------------------------------------------------------------------
# The fused kernel: one grid step == one image, everything VMEM-resident.
# ---------------------------------------------------------------------------
def _make_fused_kernel(geom):
    BJ, G1, G2, G3 = geom["BJ"], geom["G1"], geom["G2"], geom["G3"]
    OH3, OW3 = geom["OH3"], geom["OW3"]

    def kernel(x_ref, w1_ref, b1_ref, w2_ref, b2_ref, w3_ref, b3_ref,
               l1w_ref, l1b_ref, qw_ref, qb_ref, o_ref):
        # Four space-to-depth phase planes of the raw image, (P1, 16*C) bf16 each.
        xs = [x_ref[0, k] for k in range(4)]

        # conv1 (8x8 / stride 4) == 2x2 block-conv on 4x4 macro-block features.
        # One shifted-GEMM accumulation per conv2-input phase (dh, dw).
        phase_out = []
        for dh in (0, 1):
            for dw in (0, 1):
                acc = None
                for a in (0, 1):
                    for b in (0, 1):
                        ph, al = (dh + a) % 2, (dh + a) // 2
                        pw, be = (dw + b) % 2, (dw + b) // 2
                        src = xs[2 * ph + pw]
                        sh = al * BJ + be
                        d = jnp.dot(src[sh:sh + G1, :], w1_ref[a, b],
                                    preferred_element_type=jnp.float32)
                        acc = d if acc is None else acc + d
                phase_out.append(jnp.maximum(acc + b1_ref[...], 0.0))
        # conv2 input: the 4 phases concatenated along channels -> (G1, 128).
        z = jnp.concatenate(phase_out, axis=-1).astype(jnp.bfloat16)

        # conv2 (4x4 / stride 2) == 2x2 block-conv on the phase-packed activation.
        acc2 = None
        for a2 in (0, 1):
            for b2 in (0, 1):
                sh = a2 * BJ + b2
                d = jnp.dot(z[sh:sh + G2, :], w2_ref[a2, b2],
                            preferred_element_type=jnp.float32)
                acc2 = d if acc2 is None else acc2 + d
        y2 = jnp.maximum(acc2 + b2_ref[...], 0.0).astype(jnp.bfloat16)   # (G2, 64)

        # conv3 (3x3 / stride 1): plain shift-and-matmul.
        acc3 = None
        for kp in range(3):
            for kq in range(3):
                sh = kp * BJ + kq
                d = jnp.dot(y2[sh:sh + G3, :], w3_ref[kp, kq],
                            preferred_element_type=jnp.float32)
                acc3 = d if acc3 is None else acc3 + d
        y3 = jnp.maximum(acc3 + b3_ref[...], 0.0)                         # (G3, 64) f32

        # Flatten the valid (i3, j3) positions to one lane-dense (1, 2560) row
        # (l1 weight rows are pre-permuted to this (i3, j3, c) order).
        rows = [y3[i3 * BJ + j3:i3 * BJ + j3 + 1, :]
                for i3 in range(OH3) for j3 in range(OW3)]
        flat = jnp.concatenate(rows, axis=-1).astype(jnp.bfloat16)

        # Fused MLP head (W1 is VMEM-resident for the whole call; f32 accumulation).
        h = jnp.dot(flat, l1w_ref[...], preferred_element_type=jnp.float32)
        h = jnp.maximum(h + l1b_ref[...], 0.0).astype(jnp.bfloat16)
        qv = jnp.dot(h, qw_ref[...], preferred_element_type=jnp.float32)
        o_ref[...] = (qv + qb_ref[...]).reshape(1, 1, LANES)

    return kernel


# ---------------------------------------------------------------------------
# SoftQNetwork forward (Pallas path)
# ---------------------------------------------------------------------------
def soft_q_forward(prep, x, num_actions):
    """x: (N, C, H, W) raw pixels; returns (N, num_actions) f32."""
    g = prep["geom"]
    n, c, in_h, in_w = x.shape
    # One-time space-to-depth of the raw input into 4 stride-phase planes of
    # 4x4 macro blocks (cheap XLA glue on the ~100 KB input; everything else
    # happens inside the single fused kernel).
    xr = x.reshape(n, c, g["BI"], 2, 4, g["BJ"], 2, 4)
    xr = jnp.transpose(xr, (0, 3, 6, 2, 5, 4, 7, 1))   # (n, ph, pw, Bi, Bj, i4, j4, c)
    planes = xr.reshape(n, 4, g["P_VALID"], g["F_IN"])
    planes = jnp.pad(planes, ((0, 0), (0, 0), (0, g["P1"] - g["P_VALID"]), (0, 0)))
    planes = planes.astype(jnp.bfloat16)

    weight_keys = ("w1", "b1", "w2", "b2", "w3", "b3", "l1_w", "l1_b", "q_w", "q_b")
    weight_bytes = sum(int(prep[k].size) * prep[k].dtype.itemsize for k in weight_keys)
    k1 = g["F_IN"]
    flops = 2 * n * (16 * g["G1"] * k1 * 32 + 4 * g["G2"] * 128 * 64
                     + 9 * g["G3"] * 64 * 64
                     + prep["l1_w"].shape[0] * prep["l1_w"].shape[1]
                     + prep["q_w"].shape[0] * prep["q_w"].shape[1])
    cost = pl.CostEstimate(flops=flops, transcendentals=0,
                           bytes_accessed=weight_bytes + planes.size * 2 + n * LANES * 4)

    out = pl.pallas_call(
        _make_fused_kernel(g),
        out_shape=jax.ShapeDtypeStruct((n, 1, LANES), jnp.float32),
        grid=(n,),
        in_specs=[
            pl.BlockSpec((1, 4, g["P1"], g["F_IN"]), lambda i: (i, 0, 0, 0)),
            pl.BlockSpec(prep["w1"].shape, lambda i: (0, 0, 0, 0)),
            pl.BlockSpec(prep["b1"].shape, lambda i: (0, 0)),
            pl.BlockSpec(prep["w2"].shape, lambda i: (0, 0, 0, 0)),
            pl.BlockSpec(prep["b2"].shape, lambda i: (0, 0)),
            pl.BlockSpec(prep["w3"].shape, lambda i: (0, 0, 0, 0)),
            pl.BlockSpec(prep["b3"].shape, lambda i: (0, 0)),
            pl.BlockSpec(prep["l1_w"].shape, lambda i: (0, 0)),
            pl.BlockSpec(prep["l1_b"].shape, lambda i: (0, 0)),
            pl.BlockSpec(prep["q_w"].shape, lambda i: (0, 0)),
            pl.BlockSpec(prep["q_b"].shape, lambda i: (0, 0)),
        ],
        out_specs=pl.BlockSpec((1, 1, LANES), lambda i: (i, 0, 0)),
        compiler_params=pltpu.CompilerParams(
            dimension_semantics=("parallel",),
            vmem_limit_bytes=32 * 1024 * 1024,
        ),
        cost_estimate=cost,
    )(planes, prep["w1"], prep["b1"], prep["w2"], prep["b2"],
      prep["w3"], prep["b3"], prep["l1_w"], prep["l1_b"],
      prep["q_w"], prep["q_b"])
    return out[:, 0, :num_actions]


# ---------------------------------------------------------------------------
# One-time parameter transforms (quadrant layout, row permutations, bf16,
# 1/255 fold, lane-dense action head).
# ---------------------------------------------------------------------------
def prepare_params(params, channels, in_h, in_w, num_actions):
    geom = _geometry(in_h, in_w, channels)
    f32, bf16 = jnp.float32, jnp.bfloat16

    # conv1 (8x8, s4): fold 1/255, 2x2 quadrants of 4x4 blocks, features (i4, j4, c).
    w1 = params["c1_w"].astype(f32) * (1.0 / 255.0)              # (32, C, 8, 8)
    w1 = w1.reshape(32, channels, 2, 4, 2, 4)                    # (o, c, a, i4, b, j4)
    w1 = jnp.transpose(w1, (2, 4, 3, 5, 1, 0))                   # (a, b, i4, j4, c, o)
    w1 = w1.reshape(2, 2, 16 * channels, 32).astype(bf16)
    b1 = params["c1_b"].astype(f32).reshape(1, 32)

    # conv2 (4x4, s2): quadrants (a2, b2), rows ordered (dh, dw, c1) to match the
    # in-kernel phase concatenation of conv1 outputs.
    w2 = params["c2_w"].astype(f32).reshape(64, 32, 2, 2, 2, 2)  # (o, c, a2, dh, b2, dw)
    w2 = jnp.transpose(w2, (2, 4, 3, 5, 1, 0))                   # (a2, b2, dh, dw, c, o)
    w2 = w2.reshape(2, 2, 128, 64).astype(bf16)
    b2 = params["c2_b"].astype(f32).reshape(1, 64)

    # conv3 (3x3, s1)
    w3 = jnp.transpose(params["c3_w"].astype(f32), (2, 3, 1, 0)).astype(bf16)  # (3,3,64,64)
    b3 = params["c3_b"].astype(f32).reshape(1, 64)

    # Linear(2560, 512): permute rows from PyTorch's NCHW flatten order (c, i3, j3)
    # to the kernel's (i3, j3, c) order.
    oh3, ow3 = geom["OH3"], geom["OW3"]
    c3_out = params["c3_w"].shape[0]
    assert params["l1_w"].shape[0] == c3_out * oh3 * ow3, "flatten width mismatch"
    hid = params["l1_w"].shape[1]
    lw = params["l1_w"].astype(f32).reshape(c3_out, oh3, ow3, hid)
    lw = jnp.transpose(lw, (1, 2, 0, 3)).reshape(c3_out * oh3 * ow3, hid).astype(bf16)
    l1_b = params["l1_b"].astype(f32).reshape(1, hid)

    # Action head: zero-pad the action dim to a lane-dense 128 (exact).
    assert num_actions <= LANES
    q_w = jnp.pad(params["q_w"].astype(f32),
                  ((0, 0), (0, LANES - num_actions))).astype(bf16)
    q_b = jnp.pad(params["q_b"].astype(f32), (0, LANES - num_actions)).reshape(1, LANES)

    return dict(geom=geom, w1=w1, b1=b1, w2=w2, b2=b2, w3=w3, b3=b3,
                l1_w=lw, l1_b=l1_b, q_w=q_w, q_b=q_b)


# ---------------------------------------------------------------------------
# Deterministic parameter init (shapes from the module; synthetic values)
# ---------------------------------------------------------------------------
def init_params(key, channels, num_actions):
    ks = jax.random.split(key, 5)
    # TODO(synk): orthogonal / kaiming / xavier inits not reproduced exactly;
    # deterministic scaled-normal weights with zero biases are used instead.
    return {
        "c1_w": 0.05 * jax.random.normal(ks[0], (32, channels, 8, 8), jnp.float32),
        "c1_b": jnp.zeros((32,), jnp.float32),
        "c2_w": 0.05 * jax.random.normal(ks[1], (64, 32, 4, 4), jnp.float32),
        "c2_b": jnp.zeros((64,), jnp.float32),
        "c3_w": 0.05 * jax.random.normal(ks[2], (64, 64, 3, 3), jnp.float32),
        "c3_b": jnp.zeros((64,), jnp.float32),
        "l1_w": 0.03 * jax.random.normal(ks[3], (2560, 512), jnp.float32),
        "l1_b": jnp.zeros((512,), jnp.float32),
        "q_w": 0.03 * jax.random.normal(ks[4], (512, num_actions), jnp.float32),
        "q_b": jnp.zeros((num_actions,), jnp.float32),
    }


# ---------------------------------------------------------------------------
# Pure-JAX f32 reference (uses the original, untransformed parameters)
# ---------------------------------------------------------------------------
def reference_forward(params, x):
    h = x.astype(jnp.float32) / 255.0

    def conv(h, w, b, s):
        y = jax.lax.conv_general_dilated(h, w, (s, s), "VALID")   # NCHW / OIHW / NCHW
        return jax.nn.relu(y + b.reshape(1, -1, 1, 1))

    h = conv(h, params["c1_w"], params["c1_b"], 4)
    h = conv(h, params["c2_w"], params["c2_b"], 2)
    h = conv(h, params["c3_w"], params["c3_b"], 1)
    h = h.reshape(h.shape[0], -1)
    h = jax.nn.relu(h @ params["l1_w"] + params["l1_b"])
    return h @ params["q_w"] + params["q_b"]


if __name__ == "__main__":
    # The module's Linear(2560, 512) fixes the input spatial size to 72x96.
    batch, channels, H, W = 2, 4, 72, 96
    num_actions = 3

    key = jax.random.PRNGKey(0)
    k_x, k_p = jax.random.split(key)
    x = jax.random.uniform(k_x, (batch, channels, H, W), jnp.float32, 0.0, 255.0)

    params = init_params(k_p, channels, num_actions)
    prep = prepare_params(params, channels, H, W, num_actions)

    fwd = jax.jit(lambda inp: soft_q_forward(prep, inp, num_actions))
    q = jax.block_until_ready(fwd(x))
    assert q.shape == (batch, num_actions), q.shape

    q_ref = jax.block_until_ready(reference_forward(params, x))
    # bf16 MXU inputs -> slightly relaxed tolerance vs. the f32 reference.
    np.testing.assert_allclose(np.asarray(q), np.asarray(q_ref), rtol=2e-2, atol=2e-2)

    print("KERNEL_OK")
</pallas_src>

<mosaic_0001>
module attributes {stable_mosaic.version = 11 : i64} {
  func.func @kernel(%arg0: i32, %arg1: memref<1x4x120x64xbf16, #tpu.memory_space<vmem>>, %arg2: memref<2x2x64x32xbf16, #tpu.memory_space<vmem>>, %arg3: memref<1x32xf32, #tpu.memory_space<vmem>>, %arg4: memref<2x2x128x64xbf16, #tpu.memory_space<vmem>>, %arg5: memref<1x64xf32, #tpu.memory_space<vmem>>, %arg6: memref<3x3x64x64xbf16, #tpu.memory_space<vmem>>, %arg7: memref<1x64xf32, #tpu.memory_space<vmem>>, %arg8: memref<2560x512xbf16, #tpu.memory_space<vmem>>, %arg9: memref<1x512xf32, #tpu.memory_space<vmem>>, %arg10: memref<512x128xbf16, #tpu.memory_space<vmem>>, %arg11: memref<1x128xf32, #tpu.memory_space<vmem>>, %arg12: memref<1x1x128xf32, #tpu.memory_space<vmem>>) attributes {dimension_semantics = [#tpu.dimension_semantics<parallel>], iteration_bounds = array<i64: 2>, scalar_prefetch = 0 : i64, scratch_operands = 0 : i64, tpu.core_type = #tpu.core_type<tc>, window_params = [{transform_indices = @transform_0, window_bounds = array<i64: 1, 4, 120, 64>}, {pipeline_mode = #tpu.pipeline_mode<synchronous>, transform_indices = @transform_1, window_bounds = array<i64: 2, 2, 64, 32>}, {pipeline_mode = #tpu.pipeline_mode<synchronous>, transform_indices = @transform_2, window_bounds = array<i64: 1, 32>}, {pipeline_mode = #tpu.pipeline_mode<synchronous>, transform_indices = @transform_3, window_bounds = array<i64: 2, 2, 128, 64>}, {pipeline_mode = #tpu.pipeline_mode<synchronous>, transform_indices = @transform_4, window_bounds = array<i64: 1, 64>}, {pipeline_mode = #tpu.pipeline_mode<synchronous>, transform_indices = @transform_5, window_bounds = array<i64: 3, 3, 64, 64>}, {pipeline_mode = #tpu.pipeline_mode<synchronous>, transform_indices = @transform_6, window_bounds = array<i64: 1, 64>}, {pipeline_mode = #tpu.pipeline_mode<synchronous>, transform_indices = @transform_7, window_bounds = array<i64: 2560, 512>}, {pipeline_mode = #tpu.pipeline_mode<synchronous>, transform_indices = @transform_8, window_bounds = array<i64: 1, 512>}, {pipeline_mode = #tpu.pipeline_mode<synchronous>, transform_indices = @transform_9, window_bounds = array<i64: 512, 128>}, {pipeline_mode = #tpu.pipeline_mode<synchronous>, transform_indices = @transform_10, window_bounds = array<i64: 1, 128>}, {transform_indices = @transform_11, window_bounds = array<i64: 1, 1, 128>}]} {
    %c0 = arith.constant 0 : index
    %c0_0 = arith.constant 0 : index
    %c0_1 = arith.constant 0 : index
    %c0_2 = arith.constant 0 : index
    %0 = vector.load %arg1[%c0, %c0_0, %c0_1, %c0_2] : memref<1x4x120x64xbf16, #tpu.memory_space<vmem>>, vector<1x1x120x64xbf16>
    %1 = vector.shape_cast %0 : vector<1x1x120x64xbf16> to vector<120x64xbf16>
    %c0_3 = arith.constant 0 : index
    %c1 = arith.constant 1 : index
    %c0_4 = arith.constant 0 : index
    %c0_5 = arith.constant 0 : index
    %2 = vector.load %arg1[%c0_3, %c1, %c0_4, %c0_5] : memref<1x4x120x64xbf16, #tpu.memory_space<vmem>>, vector<1x1x120x64xbf16>
    %3 = vector.shape_cast %2 : vector<1x1x120x64xbf16> to vector<120x64xbf16>
    %c0_6 = arith.constant 0 : index
    %c2 = arith.constant 2 : index
    %c0_7 = arith.constant 0 : index
    %c0_8 = arith.constant 0 : index
    %4 = vector.load %arg1[%c0_6, %c2, %c0_7, %c0_8] : memref<1x4x120x64xbf16, #tpu.memory_space<vmem>>, vector<1x1x120x64xbf16>
    %5 = vector.shape_cast %4 : vector<1x1x120x64xbf16> to vector<120x64xbf16>
    %c0_9 = arith.constant 0 : index
    %c3 = arith.constant 3 : index
    %c0_10 = arith.constant 0 : index
    %c0_11 = arith.constant 0 : index
    %6 = vector.load %arg1[%c0_9, %c3, %c0_10, %c0_11] : memref<1x4x120x64xbf16, #tpu.memory_space<vmem>>, vector<1x1x120x64xbf16>
    %7 = vector.shape_cast %6 : vector<1x1x120x64xbf16> to vector<120x64xbf16>
    %8 = vector.extract_strided_slice %1 {offsets = [0, 0], sizes = [104, 64], strides = [1, 1]} : vector<120x64xbf16> to vector<104x64xbf16>
    %c0_12 = arith.constant 0 : index
    %c0_13 = arith.constant 0 : index
    %c0_14 = arith.constant 0 : index
    %c0_15 = arith.constant 0 : index
    %9 = vector.load %arg2[%c0_12, %c0_13, %c0_14, %c0_15] : memref<2x2x64x32xbf16, #tpu.memory_space<vmem>>, vector<1x1x64x32xbf16>
    %10 = vector.shape_cast %9 : vector<1x1x64x32xbf16> to vector<64x32xbf16>
    %cst = arith.constant dense<0.000000e+00> : vector<104x32xf32>
    %11 = tpu.matmul %8, %10, %cst {dimension_numbers = #tpu.dot_dimension_numbers<[1], [0], [0], [1], [0, 0, 1, 1], [], []>} : vector<104x64xbf16>, vector<64x32xbf16>, vector<104x32xf32> -> vector<104x32xf32>
    %12 = vector.extract_strided_slice %3 {offsets = [0, 0], sizes = [104, 64], strides = [1, 1]} : vector<120x64xbf16> to vector<104x64xbf16>
    %c0_16 = arith.constant 0 : index
    %c1_17 = arith.constant 1 : index
    %c0_18 = arith.constant 0 : index
    %c0_19 = arith.constant 0 : index
    %13 = vector.load %arg2[%c0_16, %c1_17, %c0_18, %c0_19] : memref<2x2x64x32xbf16, #tpu.memory_space<vmem>>, vector<1x1x64x32xbf16>
    %14 = vector.shape_cast %13 : vector<1x1x64x32xbf16> to vector<64x32xbf16>
    %cst_20 = arith.constant dense<0.000000e+00> : vector<104x32xf32>
    %15 = tpu.matmul %12, %14, %cst_20 {dimension_numbers = #tpu.dot_dimension_numbers<[1], [0], [0], [1], [0, 0, 1, 1], [], []>} : vector<104x64xbf16>, vector<64x32xbf16>, vector<104x32xf32> -> vector<104x32xf32>
    %16 = arith.addf %11, %15 : vector<104x32xf32>
    %17 = vector.extract_strided_slice %5 {offsets = [0, 0], sizes = [104, 64], strides = [1, 1]} : vector<120x64xbf16> to vector<104x64xbf16>
    %c1_21 = arith.constant 1 : index
    %c0_22 = arith.constant 0 : index
    %c0_23 = arith.constant 0 : index
    %c0_24 = arith.constant 0 : index
    %18 = vector.load %arg2[%c1_21, %c0_22, %c0_23, %c0_24] : memref<2x2x64x32xbf16, #tpu.memory_space<vmem>>, vector<1x1x64x32xbf16>
    %19 = vector.shape_cast %18 : vector<1x1x64x32xbf16> to vector<64x32xbf16>
    %cst_25 = arith.constant dense<0.000000e+00> : vector<104x32xf32>
    %20 = tpu.matmul %17, %19, %cst_25 {dimension_numbers = #tpu.dot_dimension_numbers<[1], [0], [0], [1], [0, 0, 1, 1], [], []>} : vector<104x64xbf16>, vector<64x32xbf16>, vector<104x32xf32> -> vector<104x32xf32>
    %21 = arith.addf %16, %20 : vector<104x32xf32>
    %22 = vector.extract_strided_slice %7 {offsets = [0, 0], sizes = [104, 64], strides = [1, 1]} : vector<120x64xbf16> to vector<104x64xbf16>
    %c1_26 = arith.constant 1 : index
    %c1_27 = arith.constant 1 : index
    %c0_28 = arith.constant 0 : index
    %c0_29 = arith.constant 0 : index
    %23 = vector.load %arg2[%c1_26, %c1_27, %c0_28, %c0_29] : memref<2x2x64x32xbf16, #tpu.memory_space<vmem>>, vector<1x1x64x32xbf16>
    %24 = vector.shape_cast %23 : vector<1x1x64x32xbf16> to vector<64x32xbf16>
    %cst_30 = arith.constant dense<0.000000e+00> : vector<104x32xf32>
    %25 = tpu.matmul %22, %24, %cst_30 {dimension_numbers = #tpu.dot_dimension_numbers<[1], [0], [0], [1], [0, 0, 1, 1], [], []>} : vector<104x64xbf16>, vector<64x32xbf16>, vector<104x32xf32> -> vector<104x32xf32>
    %26 = arith.addf %21, %25 : vector<104x32xf32>
    %c0_31 = arith.constant 0 : index
    %c0_32 = arith.constant 0 : index
    %27 = vector.load %arg3[%c0_31, %c0_32] : memref<1x32xf32, #tpu.memory_space<vmem>>, vector<1x32xf32>
    %28 = vector.broadcast %27 : vector<1x32xf32> to vector<104x32xf32>
    %29 = arith.addf %26, %28 : vector<104x32xf32>
    %cst_33 = arith.constant 0.000000e+00 : f32
    %30 = vector.broadcast %cst_33 : f32 to vector<104x32xf32>
    %31 = arith.maximumf %29, %30 : vector<104x32xf32>
    %32 = vector.extract_strided_slice %3 {offsets = [0, 0], sizes = [104, 64], strides = [1, 1]} : vector<120x64xbf16> to vector<104x64xbf16>
    %c0_34 = arith.constant 0 : index
    %c0_35 = arith.constant 0 : index
    %c0_36 = arith.constant 0 : index
    %c0_37 = arith.constant 0 : index
    %33 = vector.load %arg2[%c0_34, %c0_35, %c0_36, %c0_37] : memref<2x2x64x32xbf16, #tpu.memory_space<vmem>>, vector<1x1x64x32xbf16>
    %34 = vector.shape_cast %33 : vector<1x1x64x32xbf16> to vector<64x32xbf16>
    %cst_38 = arith.constant dense<0.000000e+00> : vector<104x32xf32>
    %35 = tpu.matmul %32, %34, %cst_38 {dimension_numbers = #tpu.dot_dimension_numbers<[1], [0], [0], [1], [0, 0, 1, 1], [], []>} : vector<104x64xbf16>, vector<64x32xbf16>, vector<104x32xf32> -> vector<104x32xf32>
    %36 = vector.extract_strided_slice %1 {offsets = [1, 0], sizes = [104, 64], strides = [1, 1]} : vector<120x64xbf16> to vector<104x64xbf16>
    %c0_39 = arith.constant 0 : index
    %c1_40 = arith.constant 1 : index
    %c0_41 = arith.constant 0 : index
    %c0_42 = arith.constant 0 : index
    %37 = vector.load %arg2[%c0_39, %c1_40, %c0_41, %c0_42] : memref<2x2x64x32xbf16, #tpu.memory_space<vmem>>, vector<1x1x64x32xbf16>
    %38 = vector.shape_cast %37 : vector<1x1x64x32xbf16> to vector<64x32xbf16>
    %cst_43 = arith.constant dense<0.000000e+00> : vector<104x32xf32>
    %39 = tpu.matmul %36, %38, %cst_43 {dimension_numbers = #tpu.dot_dimension_numbers<[1], [0], [0], [1], [0, 0, 1, 1], [], []>} : vector<104x64xbf16>, vector<64x32xbf16>, vector<104x32xf32> -> vector<104x32xf32>
    %40 = arith.addf %35, %39 : vector<104x32xf32>
    %41 = vector.extract_strided_slice %7 {offsets = [0, 0], sizes = [104, 64], strides = [1, 1]} : vector<120x64xbf16> to vector<104x64xbf16>
    %c1_44 = arith.constant 1 : index
    %c0_45 = arith.constant 0 : index
    %c0_46 = arith.constant 0 : index
    %c0_47 = arith.constant 0 : index
    %42 = vector.load %arg2[%c1_44, %c0_45, %c0_46, %c0_47] : memref<2x2x64x32xbf16, #tpu.memory_space<vmem>>, vector<1x1x64x32xbf16>
    %43 = vector.shape_cast %42 : vector<1x1x64x32xbf16> to vector<64x32xbf16>
    %cst_48 = arith.constant dense<0.000000e+00> : vector<104x32xf32>
    %44 = tpu.matmul %41, %43, %cst_48 {dimension_numbers = #tpu.dot_dimension_numbers<[1], [0], [0], [1], [0, 0, 1, 1], [], []>} : vector<104x64xbf16>, vector<64x32xbf16>, vector<104x32xf32> -> vector<104x32xf32>
    %45 = arith.addf %40, %44 : vector<104x32xf32>
    %46 = vector.extract_strided_slice %5 {offsets = [1, 0], sizes = [104, 64], strides = [1, 1]} : vector<120x64xbf16> to vector<104x64xbf16>
    %c1_49 = arith.constant 1 : index
    %c1_50 = arith.constant 1 : index
    %c0_51 = arith.constant 0 : index
    %c0_52 = arith.constant 0 : index
    %47 = vector.load %arg2[%c1_49, %c1_50, %c0_51, %c0_52] : memref<2x2x64x32xbf16, #tpu.memory_space<vmem>>, vector<1x1x64x32xbf16>
    %48 = vector.shape_cast %47 : vector<1x1x64x32xbf16> to vector<64x32xbf16>
    %cst_53 = arith.constant dense<0.000000e+00> : vector<104x32xf32>
    %49 = tpu.matmul %46, %48, %cst_53 {dimension_numbers = #tpu.dot_dimension_numbers<[1], [0], [0], [1], [0, 0, 1, 1], [], []>} : vector<104x64xbf16>, vector<64x32xbf16>, vector<104x32xf32> -> vector<104x32xf32>
    %50 = arith.addf %45, %49 : vector<104x32xf32>
    %c0_54 = arith.constant 0 : index
    %c0_55 = arith.constant 0 : index
    %51 = vector.load %arg3[%c0_54, %c0_55] : memref<1x32xf32, #tpu.memory_space<vmem>>, vector<1x32xf32>
    %52 = vector.broadcast %51 : vector<1x32xf32> to vector<104x32xf32>
    %53 = arith.addf %50, %52 : vector<104x32xf32>
    %cst_56 = arith.constant 0.000000e+00 : f32
    %54 = vector.broadcast %cst_56 : f32 to vector<104x32xf32>
    %55 = arith.maximumf %53, %54 : vector<104x32xf32>
    %56 = vector.extract_strided_slice %5 {offsets = [0, 0], sizes = [104, 64], strides = [1, 1]} : vector<120x64xbf16> to vector<104x64xbf16>
    %c0_57 = arith.constant 0 : index
    %c0_58 = arith.constant 0 : index
    %c0_59 = arith.constant 0 : index
    %c0_60 = arith.constant 0 : index
    %57 = vector.load %arg2[%c0_57, %c0_58, %c0_59, %c0_60] : memref<2x2x64x32xbf16, #tpu.memory_space<vmem>>, vector<1x1x64x32xbf16>
    %58 = vector.shape_cast %57 : vector<1x1x64x32xbf16> to vector<64x32xbf16>
    %cst_61 = arith.constant dense<0.000000e+00> : vector<104x32xf32>
    %59 = tpu.matmul %56, %58, %cst_61 {dimension_numbers = #tpu.dot_dimension_numbers<[1], [0], [0], [1], [0, 0, 1, 1], [], []>} : vector<104x64xbf16>, vector<64x32xbf16>, vector<104x32xf32> -> vector<104x32xf32>
    %60 = vector.extract_strided_slice %7 {offsets = [0, 0], sizes = [104, 64], strides = [1, 1]} : vector<120x64xbf16> to vector<104x64xbf16>
    %c0_62 = arith.constant 0 : index
    %c1_63 = arith.constant 1 : index
    %c0_64 = arith.constant 0 : index
    %c0_65 = arith.constant 0 : index
    %61 = vector.load %arg2[%c0_62, %c1_63, %c0_64, %c0_65] : memref<2x2x64x32xbf16, #tpu.memory_space<vmem>>, vector<1x1x64x32xbf16>
    %62 = vector.shape_cast %61 : vector<1x1x64x32xbf16> to vector<64x32xbf16>
    %cst_66 = arith.constant dense<0.000000e+00> : vector<104x32xf32>
    %63 = tpu.matmul %60, %62, %cst_66 {dimension_numbers = #tpu.dot_dimension_numbers<[1], [0], [0], [1], [0, 0, 1, 1], [], []>} : vector<104x64xbf16>, vector<64x32xbf16>, vector<104x32xf32> -> vector<104x32xf32>
    %64 = arith.addf %59, %63 : vector<104x32xf32>
    %65 = vector.extract_strided_slice %1 {offsets = [12, 0], sizes = [104, 64], strides = [1, 1]} : vector<120x64xbf16> to vector<104x64xbf16>
    %c1_67 = arith.constant 1 : index
    %c0_68 = arith.constant 0 : index
    %c0_69 = arith.constant 0 : index
    %c0_70 = arith.constant 0 : index
    %66 = vector.load %arg2[%c1_67, %c0_68, %c0_69, %c0_70] : memref<2x2x64x32xbf16, #tpu.memory_space<vmem>>, vector<1x1x64x32xbf16>
    %67 = vector.shape_cast %66 : vector<1x1x64x32xbf16> to vector<64x32xbf16>
    %cst_71 = arith.constant dense<0.000000e+00> : vector<104x32xf32>
    %68 = tpu.matmul %65, %67, %cst_71 {dimension_numbers = #tpu.dot_dimension_numbers<[1], [0], [0], [1], [0, 0, 1, 1], [], []>} : vector<104x64xbf16>, vector<64x32xbf16>, vector<104x32xf32> -> vector<104x32xf32>
    %69 = arith.addf %64, %68 : vector<104x32xf32>
    %70 = vector.extract_strided_slice %3 {offsets = [12, 0], sizes = [104, 64], strides = [1, 1]} : vector<120x64xbf16> to vector<104x64xbf16>
    %c1_72 = arith.constant 1 : index
    %c1_73 = arith.constant 1 : index
    %c0_74 = arith.constant 0 : index
    %c0_75 = arith.constant 0 : index
    %71 = vector.load %arg2[%c1_72, %c1_73, %c0_74, %c0_75] : memref<2x2x64x32xbf16, #tpu.memory_space<vmem>>, vector<1x1x64x32xbf16>
    %72 = vector.shape_cast %71 : vector<1x1x64x32xbf16> to vector<64x32xbf16>
    %cst_76 = arith.constant dense<0.000000e+00> : vector<104x32xf32>
    %73 = tpu.matmul %70, %72, %cst_76 {dimension_numbers = #tpu.dot_dimension_numbers<[1], [0], [0], [1], [0, 0, 1, 1], [], []>} : vector<104x64xbf16>, vector<64x32xbf16>, vector<104x32xf32> -> vector<104x32xf32>
    %74 = arith.addf %69, %73 : vector<104x32xf32>
    %c0_77 = arith.constant 0 : index
    %c0_78 = arith.constant 0 : index
    %75 = vector.load %arg3[%c0_77, %c0_78] : memref<1x32xf32, #tpu.memory_space<vmem>>, vector<1x32xf32>
    %76 = vector.broadcast %75 : vector<1x32xf32> to vector<104x32xf32>
    %77 = arith.addf %74, %76 : vector<104x32xf32>
    %cst_79 = arith.constant 0.000000e+00 : f32
    %78 = vector.broadcast %cst_79 : f32 to vector<104x32xf32>
    %79 = arith.maximumf %77, %78 : vector<104x32xf32>
    %80 = vector.extract_strided_slice %7 {offsets = [0, 0], sizes = [104, 64], strides = [1, 1]} : vector<120x64xbf16> to vector<104x64xbf16>
    %c0_80 = arith.constant 0 : index
    %c0_81 = arith.constant 0 : index
    %c0_82 = arith.constant 0 : index
    %c0_83 = arith.constant 0 : index
    %81 = vector.load %arg2[%c0_80, %c0_81, %c0_82, %c0_83] : memref<2x2x64x32xbf16, #tpu.memory_space<vmem>>, vector<1x1x64x32xbf16>
    %82 = vector.shape_cast %81 : vector<1x1x64x32xbf16> to vector<64x32xbf16>
    %cst_84 = arith.constant dense<0.000000e+00> : vector<104x32xf32>
    %83 = tpu.matmul %80, %82, %cst_84 {dimension_numbers = #tpu.dot_dimension_numbers<[1], [0], [0], [1], [0, 0, 1, 1], [], []>} : vector<104x64xbf16>, vector<64x32xbf16>, vector<104x32xf32> -> vector<104x32xf32>
    %84 = vector.extract_strided_slice %5 {offsets = [1, 0], sizes = [104, 64], strides = [1, 1]} : vector<120x64xbf16> to vector<104x64xbf16>
    %c0_85 = arith.constant 0 : index
    %c1_86 = arith.constant 1 : index
    %c0_87 = arith.constant 0 : index
    %c0_88 = arith.constant 0 : index
    %85 = vector.load %arg2[%c0_85, %c1_86, %c0_87, %c0_88] : memref<2x2x64x32xbf16, #tpu.memory_space<vmem>>, vector<1x1x64x32xbf16>
    %86 = vector.shape_cast %85 : vector<1x1x64x32xbf16> to vector<64x32xbf16>
    %cst_89 = arith.constant dense<0.000000e+00> : vector<104x32xf32>
    %87 = tpu.matmul %84, %86, %cst_89 {dimension_numbers = #tpu.dot_dimension_numbers<[1], [0], [0], [1], [0, 0, 1, 1], [], []>} : vector<104x64xbf16>, vector<64x32xbf16>, vector<104x32xf32> -> vector<104x32xf32>
    %88 = arith.addf %83, %87 : vector<104x32xf32>
    %89 = vector.extract_strided_slice %3 {offsets = [12, 0], sizes = [104, 64], strides = [1, 1]} : vector<120x64xbf16> to vector<104x64xbf16>
    %c1_90 = arith.constant 1 : index
    %c0_91 = arith.constant 0 : index
    %c0_92 = arith.constant 0 : index
    %c0_93 = arith.constant 0 : index
    %90 = vector.load %arg2[%c1_90, %c0_91, %c0_92, %c0_93] : memref<2x2x64x32xbf16, #tpu.memory_space<vmem>>, vector<1x1x64x32xbf16>
    %91 = vector.shape_cast %90 : vector<1x1x64x32xbf16> to vector<64x32xbf16>
    %cst_94 = arith.constant dense<0.000000e+00> : vector<104x32xf32>
    %92 = tpu.matmul %89, %91, %cst_94 {dimension_numbers = #tpu.dot_dimension_numbers<[1], [0], [0], [1], [0, 0, 1, 1], [], []>} : vector<104x64xbf16>, vector<64x32xbf16>, vector<104x32xf32> -> vector<104x32xf32>
    %93 = arith.addf %88, %92 : vector<104x32xf32>
    %94 = vector.extract_strided_slice %1 {offsets = [13, 0], sizes = [104, 64], strides = [1, 1]} : vector<120x64xbf16> to vector<104x64xbf16>
    %c1_95 = arith.constant 1 : index
    %c1_96 = arith.constant 1 : index
    %c0_97 = arith.constant 0 : index
    %c0_98 = arith.constant 0 : index
    %95 = vector.load %arg2[%c1_95, %c1_96, %c0_97, %c0_98] : memref<2x2x64x32xbf16, #tpu.memory_space<vmem>>, vector<1x1x64x32xbf16>
    %96 = vector.shape_cast %95 : vector<1x1x64x32xbf16> to vector<64x32xbf16>
    %cst_99 = arith.constant dense<0.000000e+00> : vector<104x32xf32>
    %97 = tpu.matmul %94, %96, %cst_99 {dimension_numbers = #tpu.dot_dimension_numbers<[1], [0], [0], [1], [0, 0, 1, 1], [], []>} : vector<104x64xbf16>, vector<64x32xbf16>, vector<104x32xf32> -> vector<104x32xf32>
    %98 = arith.addf %93, %97 : vector<104x32xf32>
    %c0_100 = arith.constant 0 : index
    %c0_101 = arith.constant 0 : index
    %99 = vector.load %arg3[%c0_100, %c0_101] : memref<1x32xf32, #tpu.memory_space<vmem>>, vector<1x32xf32>
    %100 = vector.broadcast %99 : vector<1x32xf32> to vector<104x32xf32>
    %101 = arith.addf %98, %100 : vector<104x32xf32>
    %cst_102 = arith.constant 0.000000e+00 : f32
    %102 = vector.broadcast %cst_102 : f32 to vector<104x32xf32>
    %103 = arith.maximumf %101, %102 : vector<104x32xf32>
    %104 = tpu.concatenate %31, %55, %79, %103 in 1 : vector<104x32xf32>, vector<104x32xf32>, vector<104x32xf32>, vector<104x32xf32> -> vector<104x128xf32>
    %105 = arith.truncf %104 : vector<104x128xf32> to vector<104x128xbf16>
    %106 = vector.extract_strided_slice %105 {offsets = [0, 0], sizes = [88, 128], strides = [1, 1]} : vector<104x128xbf16> to vector<88x128xbf16>
    %c0_103 = arith.constant 0 : index
    %c0_104 = arith.constant 0 : index
    %c0_105 = arith.constant 0 : index
    %c0_106 = arith.constant 0 : index
    %107 = vector.load %arg4[%c0_103, %c0_104, %c0_105, %c0_106] : memref<2x2x128x64xbf16, #tpu.memory_space<vmem>>, vector<1x1x128x64xbf16>
    %108 = vector.shape_cast %107 : vector<1x1x128x64xbf16> to vector<128x64xbf16>
    %cst_107 = arith.constant dense<0.000000e+00> : vector<88x64xf32>
    %109 = tpu.matmul %106, %108, %cst_107 {dimension_numbers = #tpu.dot_dimension_numbers<[1], [0], [0], [1], [0, 0, 1, 1], [], []>} : vector<88x128xbf16>, vector<128x64xbf16>, vector<88x64xf32> -> vector<88x64xf32>
    %110 = vector.extract_strided_slice %105 {offsets = [1, 0], sizes = [88, 128], strides = [1, 1]} : vector<104x128xbf16> to vector<88x128xbf16>
    %c0_108 = arith.constant 0 : index
    %c1_109 = arith.constant 1 : index
    %c0_110 = arith.constant 0 : index
    %c0_111 = arith.constant 0 : index
    %111 = vector.load %arg4[%c0_108, %c1_109, %c0_110, %c0_111] : memref<2x2x128x64xbf16, #tpu.memory_space<vmem>>, vector<1x1x128x64xbf16>
    %112 = vector.shape_cast %111 : vector<1x1x128x64xbf16> to vector<128x64xbf16>
    %cst_112 = arith.constant dense<0.000000e+00> : vector<88x64xf32>
    %113 = tpu.matmul %110, %112, %cst_112 {dimension_numbers = #tpu.dot_dimension_numbers<[1], [0], [0], [1], [0, 0, 1, 1], [], []>} : vector<88x128xbf16>, vector<128x64xbf16>, vector<88x64xf32> -> vector<88x64xf32>
    %114 = arith.addf %109, %113 : vector<88x64xf32>
    %115 = vector.extract_strided_slice %105 {offsets = [12, 0], sizes = [88, 128], strides = [1, 1]} : vector<104x128xbf16> to vector<88x128xbf16>
    %c1_113 = arith.constant 1 : index
    %c0_114 = arith.constant 0 : index
    %c0_115 = arith.constant 0 : index
    %c0_116 = arith.constant 0 : index
    %116 = vector.load %arg4[%c1_113, %c0_114, %c0_115, %c0_116] : memref<2x2x128x64xbf16, #tpu.memory_space<vmem>>, vector<1x1x128x64xbf16>
    %117 = vector.shape_cast %116 : vector<1x1x128x64xbf16> to vector<128x64xbf16>
    %cst_117 = arith.constant dense<0.000000e+00> : vector<88x64xf32>
    %118 = tpu.matmul %115, %117, %cst_117 {dimension_numbers = #tpu.dot_dimension_numbers<[1], [0], [0], [1], [0, 0, 1, 1], [], []>} : vector<88x128xbf16>, vector<128x64xbf16>, vector<88x64xf32> -> vector<88x64xf32>
    %119 = arith.addf %114, %118 : vector<88x64xf32>
    %120 = vector.extract_strided_slice %105 {offsets = [13, 0], sizes = [88, 128], strides = [1, 1]} : vector<104x128xbf16> to vector<88x128xbf16>
    %c1_118 = arith.constant 1 : index
    %c1_119 = arith.constant 1 : index
    %c0_120 = arith.constant 0 : index
    %c0_121 = arith.constant 0 : index
    %121 = vector.load %arg4[%c1_118, %c1_119, %c0_120, %c0_121] : memref<2x2x128x64xbf16, #tpu.memory_space<vmem>>, vector<1x1x128x64xbf16>
    %122 = vector.shape_cast %121 : vector<1x1x128x64xbf16> to vector<128x64xbf16>
    %cst_122 = arith.constant dense<0.000000e+00> : vector<88x64xf32>
    %123 = tpu.matmul %120, %122, %cst_122 {dimension_numbers = #tpu.dot_dimension_numbers<[1], [0], [0], [1], [0, 0, 1, 1], [], []>} : vector<88x128xbf16>, vector<128x64xbf16>, vector<88x64xf32> -> vector<88x64xf32>
    %124 = arith.addf %119, %123 : vector<88x64xf32>
    %c0_123 = arith.constant 0 : index
    %c0_124 = arith.constant 0 : index
    %125 = vector.load %arg5[%c0_123, %c0_124] : memref<1x64xf32, #tpu.memory_space<vmem>>, vector<1x64xf32>
    %126 = vector.broadcast %125 : vector<1x64xf32> to vector<88x64xf32>
    %127 = arith.addf %124, %126 : vector<88x64xf32>
    %cst_125 = arith.constant 0.000000e+00 : f32
    %128 = vector.broadcast %cst_125 : f32 to vector<88x64xf32>
    %129 = arith.maximumf %127, %128 : vector<88x64xf32>
    %130 = arith.truncf %129 : vector<88x64xf32> to vector<88x64xbf16>
    %131 = vector.extract_strided_slice %130 {offsets = [0, 0], sizes = [56, 64], strides = [1, 1]} : vector<88x64xbf16> to vector<56x64xbf16>
    %c0_126 = arith.constant 0 : index
    %c0_127 = arith.constant 0 : index
    %c0_128 = arith.constant 0 : index
    %c0_129 = arith.constant 0 : index
    %132 = vector.load %arg6[%c0_126, %c0_127, %c0_128, %c0_129] : memref<3x3x64x64xbf16, #tpu.memory_space<vmem>>, vector<1x1x64x64xbf16>
    %133 = vector.shape_cast %132 : vector<1x1x64x64xbf16> to vector<64x64xbf16>
    %cst_130 = arith.constant dense<0.000000e+00> : vector<56x64xf32>
    %134 = tpu.matmul %131, %133, %cst_130 {dimension_numbers = #tpu.dot_dimension_numbers<[1], [0], [0], [1], [0, 0, 1, 1], [], []>} : vector<56x64xbf16>, vector<64x64xbf16>, vector<56x64xf32> -> vector<56x64xf32>
    %135 = vector.extract_strided_slice %130 {offsets = [1, 0], sizes = [56, 64], strides = [1, 1]} : vector<88x64xbf16> to vector<56x64xbf16>
    %c0_131 = arith.constant 0 : index
    %c1_132 = arith.constant 1 : index
    %c0_133 = arith.constant 0 : index
    %c0_134 = arith.constant 0 : index
    %136 = vector.load %arg6[%c0_131, %c1_132, %c0_133, %c0_134] : memref<3x3x64x64xbf16, #tpu.memory_space<vmem>>, vector<1x1x64x64xbf16>
    %137 = vector.shape_cast %136 : vector<1x1x64x64xbf16> to vector<64x64xbf16>
    %cst_135 = arith.constant dense<0.000000e+00> : vector<56x64xf32>
    %138 = tpu.matmul %135, %137, %cst_135 {dimension_numbers = #tpu.dot_dimension_numbers<[1], [0], [0], [1], [0, 0, 1, 1], [], []>} : vector<56x64xbf16>, vector<64x64xbf16>, vector<56x64xf32> -> vector<56x64xf32>
    %139 = arith.addf %134, %138 : vector<56x64xf32>
    %140 = vector.extract_strided_slice %130 {offsets = [2, 0], sizes = [56, 64], strides = [1, 1]} : vector<88x64xbf16> to vector<56x64xbf16>
    %c0_136 = arith.constant 0 : index
    %c2_137 = arith.constant 2 : index
    %c0_138 = arith.constant 0 : index
    %c0_139 = arith.constant 0 : index
    %141 = vector.load %arg6[%c0_136, %c2_137, %c0_138, %c0_139] : memref<3x3x64x64xbf16, #tpu.memory_space<vmem>>, vector<1x1x64x64xbf16>
    %142 = vector.shape_cast %141 : vector<1x1x64x64xbf16> to vector<64x64xbf16>
    %cst_140 = arith.constant dense<0.000000e+00> : vector<56x64xf32>
    %143 = tpu.matmul %140, %142, %cst_140 {dimension_numbers = #tpu.dot_dimension_numbers<[1], [0], [0], [1], [0, 0, 1, 1], [], []>} : vector<56x64xbf16>, vector<64x64xbf16>, vector<56x64xf32> -> vector<56x64xf32>
    %144 = arith.addf %139, %143 : vector<56x64xf32>
    %145 = vector.extract_strided_slice %130 {offsets = [12, 0], sizes = [56, 64], strides = [1, 1]} : vector<88x64xbf16> to vector<56x64xbf16>
    %c1_141 = arith.constant 1 : index
    %c0_142 = arith.constant 0 : index
    %c0_143 = arith.constant 0 : index
    %c0_144 = arith.constant 0 : index
    %146 = vector.load %arg6[%c1_141, %c0_142, %c0_143, %c0_144] : memref<3x3x64x64xbf16, #tpu.memory_space<vmem>>, vector<1x1x64x64xbf16>
    %147 = vector.shape_cast %146 : vector<1x1x64x64xbf16> to vector<64x64xbf16>
    %cst_145 = arith.constant dense<0.000000e+00> : vector<56x64xf32>
    %148 = tpu.matmul %145, %147, %cst_145 {dimension_numbers = #tpu.dot_dimension_numbers<[1], [0], [0], [1], [0, 0, 1, 1], [], []>} : vector<56x64xbf16>, vector<64x64xbf16>, vector<56x64xf32> -> vector<56x64xf32>
    %149 = arith.addf %144, %148 : vector<56x64xf32>
    %150 = vector.extract_strided_slice %130 {offsets = [13, 0], sizes = [56, 64], strides = [1, 1]} : vector<88x64xbf16> to vector<56x64xbf16>
    %c1_146 = arith.constant 1 : index
    %c1_147 = arith.constant 1 : index
    %c0_148 = arith.constant 0 : index
    %c0_149 = arith.constant 0 : index
    %151 = vector.load %arg6[%c1_146, %c1_147, %c0_148, %c0_149] : memref<3x3x64x64xbf16, #tpu.memory_space<vmem>>, vector<1x1x64x64xbf16>
    %152 = vector.shape_cast %151 : vector<1x1x64x64xbf16> to vector<64x64xbf16>
    %cst_150 = arith.constant dense<0.000000e+00> : vector<56x64xf32>
    %153 = tpu.matmul %150, %152, %cst_150 {dimension_numbers = #tpu.dot_dimension_numbers<[1], [0], [0], [1], [0, 0, 1, 1], [], []>} : vector<56x64xbf16>, vector<64x64xbf16>, vector<56x64xf32> -> vector<56x64xf32>
    %154 = arith.addf %149, %153 : vector<56x64xf32>
    %155 = vector.extract_strided_slice %130 {offsets = [14, 0], sizes = [56, 64], strides = [1, 1]} : vector<88x64xbf16> to vector<56x64xbf16>
    %c1_151 = arith.constant 1 : index
    %c2_152 = arith.constant 2 : index
    %c0_153 = arith.constant 0 : index
    %c0_154 = arith.constant 0 : index
    %156 = vector.load %arg6[%c1_151, %c2_152, %c0_153, %c0_154] : memref<3x3x64x64xbf16, #tpu.memory_space<vmem>>, vector<1x1x64x64xbf16>
    %157 = vector.shape_cast %156 : vector<1x1x64x64xbf16> to vector<64x64xbf16>
    %cst_155 = arith.constant dense<0.000000e+00> : vector<56x64xf32>
    %158 = tpu.matmul %155, %157, %cst_155 {dimension_numbers = #tpu.dot_dimension_numbers<[1], [0], [0], [1], [0, 0, 1, 1], [], []>} : vector<56x64xbf16>, vector<64x64xbf16>, vector<56x64xf32> -> vector<56x64xf32>
    %159 = arith.addf %154, %158 : vector<56x64xf32>
    %160 = vector.extract_strided_slice %130 {offsets = [24, 0], sizes = [56, 64], strides = [1, 1]} : vector<88x64xbf16> to vector<56x64xbf16>
    %c2_156 = arith.constant 2 : index
    %c0_157 = arith.constant 0 : index
    %c0_158 = arith.constant 0 : index
    %c0_159 = arith.constant 0 : index
    %161 = vector.load %arg6[%c2_156, %c0_157, %c0_158, %c0_159] : memref<3x3x64x64xbf16, #tpu.memory_space<vmem>>, vector<1x1x64x64xbf16>
    %162 = vector.shape_cast %161 : vector<1x1x64x64xbf16> to vector<64x64xbf16>
    %cst_160 = arith.constant dense<0.000000e+00> : vector<56x64xf32>
    %163 = tpu.matmul %160, %162, %cst_160 {dimension_numbers = #tpu.dot_dimension_numbers<[1], [0], [0], [1], [0, 0, 1, 1], [], []>} : vector<56x64xbf16>, vector<64x64xbf16>, vector<56x64xf32> -> vector<56x64xf32>
    %164 = arith.addf %159, %163 : vector<56x64xf32>
    %165 = vector.extract_strided_slice %130 {offsets = [25, 0], sizes = [56, 64], strides = [1, 1]} : vector<88x64xbf16> to vector<56x64xbf16>
    %c2_161 = arith.constant 2 : index
    %c1_162 = arith.constant 1 : index
    %c0_163 = arith.constant 0 : index
    %c0_164 = arith.constant 0 : index
    %166 = vector.load %arg6[%c2_161, %c1_162, %c0_163, %c0_164] : memref<3x3x64x64xbf16, #tpu.memory_space<vmem>>, vector<1x1x64x64xbf16>
    %167 = vector.shape_cast %166 : vector<1x1x64x64xbf16> to vector<64x64xbf16>
    %cst_165 = arith.constant dense<0.000000e+00> : vector<56x64xf32>
    %168 = tpu.matmul %165, %167, %cst_165 {dimension_numbers = #tpu.dot_dimension_numbers<[1], [0], [0], [1], [0, 0, 1, 1], [], []>} : vector<56x64xbf16>, vector<64x64xbf16>, vector<56x64xf32> -> vector<56x64xf32>
    %169 = arith.addf %164, %168 : vector<56x64xf32>
    %170 = vector.extract_strided_slice %130 {offsets = [26, 0], sizes = [56, 64], strides = [1, 1]} : vector<88x64xbf16> to vector<56x64xbf16>
    %c2_166 = arith.constant 2 : index
    %c2_167 = arith.constant 2 : index
    %c0_168 = arith.constant 0 : index
    %c0_169 = arith.constant 0 : index
    %171 = vector.load %arg6[%c2_166, %c2_167, %c0_168, %c0_169] : memref<3x3x64x64xbf16, #tpu.memory_space<vmem>>, vector<1x1x64x64xbf16>
    %172 = vector.shape_cast %171 : vector<1x1x64x64xbf16> to vector<64x64xbf16>
    %cst_170 = arith.constant dense<0.000000e+00> : vector<56x64xf32>
    %173 = tpu.matmul %170, %172, %cst_170 {dimension_numbers = #tpu.dot_dimension_numbers<[1], [0], [0], [1], [0, 0, 1, 1], [], []>} : vector<56x64xbf16>, vector<64x64xbf16>, vector<56x64xf32> -> vector<56x64xf32>
    %174 = arith.addf %169, %173 : vector<56x64xf32>
    %c0_171 = arith.constant 0 : index
    %c0_172 = arith.constant 0 : index
    %175 = vector.load %arg7[%c0_171, %c0_172] : memref<1x64xf32, #tpu.memory_space<vmem>>, vector<1x64xf32>
    %176 = vector.broadcast %175 : vector<1x64xf32> to vector<56x64xf32>
    %177 = arith.addf %174, %176 : vector<56x64xf32>
    %cst_173 = arith.constant 0.000000e+00 : f32
    %178 = vector.broadcast %cst_173 : f32 to vector<56x64xf32>
    %179 = arith.maximumf %177, %178 : vector<56x64xf32>
    %180 = vector.extract_strided_slice %179 {offsets = [0, 0], sizes = [1, 64], strides = [1, 1]} : vector<56x64xf32> to vector<1x64xf32>
    %181 = vector.extract_strided_slice %179 {offsets = [1, 0], sizes = [1, 64], strides = [1, 1]} : vector<56x64xf32> to vector<1x64xf32>
    %182 = vector.extract_strided_slice %179 {offsets = [2, 0], sizes = [1, 64], strides = [1, 1]} : vector<56x64xf32> to vector<1x64xf32>
    %183 = vector.extract_strided_slice %179 {offsets = [3, 0], sizes = [1, 64], strides = [1, 1]} : vector<56x64xf32> to vector<1x64xf32>
    %184 = vector.extract_strided_slice %179 {offsets = [4, 0], sizes = [1, 64], strides = [1, 1]} : vector<56x64xf32> to vector<1x64xf32>
    %185 = vector.extract_strided_slice %179 {offsets = [5, 0], sizes = [1, 64], strides = [1, 1]} : vector<56x64xf32> to vector<1x64xf32>
    %186 = vector.extract_strided_slice %179 {offsets = [6, 0], sizes = [1, 64], strides = [1, 1]} : vector<56x64xf32> to vector<1x64xf32>
    %187 = vector.extract_strided_slice %179 {offsets = [7, 0], sizes = [1, 64], strides = [1, 1]} : vector<56x64xf32> to vector<1x64xf32>
    %188 = vector.extract_strided_slice %179 {offsets = [12, 0], sizes = [1, 64], strides = [1, 1]} : vector<56x64xf32> to vector<1x64xf32>
    %189 = vector.extract_strided_slice %179 {offsets = [13, 0], sizes = [1, 64], strides = [1, 1]} : vector<56x64xf32> to vector<1x64xf32>
    %190 = vector.extract_strided_slice %179 {offsets = [14, 0], sizes = [1, 64], strides = [1, 1]} : vector<56x64xf32> to vector<1x64xf32>
    %191 = vector.extract_strided_slice %179 {offsets = [15, 0], sizes = [1, 64], strides = [1, 1]} : vector<56x64xf32> to vector<1x64xf32>
    %192 = vector.extract_strided_slice %179 {offsets = [16, 0], sizes = [1, 64], strides = [1, 1]} : vector<56x64xf32> to vector<1x64xf32>
    %193 = vector.extract_strided_slice %179 {offsets = [17, 0], sizes = [1, 64], strides = [1, 1]} : vector<56x64xf32> to vector<1x64xf32>
    %194 = vector.extract_strided_slice %179 {offsets = [18, 0], sizes = [1, 64], strides = [1, 1]} : vector<56x64xf32> to vector<1x64xf32>
    %195 = vector.extract_strided_slice %179 {offsets = [19, 0], sizes = [1, 64], strides = [1, 1]} : vector<56x64xf32> to vector<1x64xf32>
    %196 = vector.extract_strided_slice %179 {offsets = [24, 0], sizes = [1, 64], strides = [1, 1]} : vector<56x64xf32> to vector<1x64xf32>
    %197 = vector.extract_strided_slice %179 {offsets = [25, 0], sizes = [1, 64], strides = [1, 1]} : vector<56x64xf32> to vector<1x64xf32>
    %198 = vector.extract_strided_slice %179 {offsets = [26, 0], sizes = [1, 64], strides = [1, 1]} : vector<56x64xf32> to vector<1x64xf32>
    %199 = vector.extract_strided_slice %179 {offsets = [27, 0], sizes = [1, 64], strides = [1, 1]} : vector<56x64xf32> to vector<1x64xf32>
    %200 = vector.extract_strided_slice %179 {offsets = [28, 0], sizes = [1, 64], strides = [1, 1]} : vector<56x64xf32> to vector<1x64xf32>
    %201 = vector.extract_strided_slice %179 {offsets = [29, 0], sizes = [1, 64], strides = [1, 1]} : vector<56x64xf32> to vector<1x64xf32>
    %202 = vector.extract_strided_slice %179 {offsets = [30, 0], sizes = [1, 64], strides = [1, 1]} : vector<56x64xf32> to vector<1x64xf32>
    %203 = vector.extract_strided_slice %179 {offsets = [31, 0], sizes = [1, 64], strides = [1, 1]} : vector<56x64xf32> to vector<1x64xf32>
    %204 = vector.extract_strided_slice %179 {offsets = [36, 0], sizes = [1, 64], strides = [1, 1]} : vector<56x64xf32> to vector<1x64xf32>
    %205 = vector.extract_strided_slice %179 {offsets = [37, 0], sizes = [1, 64], strides = [1, 1]} : vector<56x64xf32> to vector<1x64xf32>
    %206 = vector.extract_strided_slice %179 {offsets = [38, 0], sizes = [1, 64], strides = [1, 1]} : vector<56x64xf32> to vector<1x64xf32>
    %207 = vector.extract_strided_slice %179 {offsets = [39, 0], sizes = [1, 64], strides = [1, 1]} : vector<56x64xf32> to vector<1x64xf32>
    %208 = vector.extract_strided_slice %179 {offsets = [40, 0], sizes = [1, 64], strides = [1, 1]} : vector<56x64xf32> to vector<1x64xf32>
    %209 = vector.extract_strided_slice %179 {offsets = [41, 0], sizes = [1, 64], strides = [1, 1]} : vector<56x64xf32> to vector<1x64xf32>
    %210 = vector.extract_strided_slice %179 {offsets = [42, 0], sizes = [1, 64], strides = [1, 1]} : vector<56x64xf32> to vector<1x64xf32>
    %211 = vector.extract_strided_slice %179 {offsets = [43, 0], sizes = [1, 64], strides = [1, 1]} : vector<56x64xf32> to vector<1x64xf32>
    %212 = vector.extract_strided_slice %179 {offsets = [48, 0], sizes = [1, 64], strides = [1, 1]} : vector<56x64xf32> to vector<1x64xf32>
    %213 = vector.extract_strided_slice %179 {offsets = [49, 0], sizes = [1, 64], strides = [1, 1]} : vector<56x64xf32> to vector<1x64xf32>
    %214 = vector.extract_strided_slice %179 {offsets = [50, 0], sizes = [1, 64], strides = [1, 1]} : vector<56x64xf32> to vector<1x64xf32>
    %215 = vector.extract_strided_slice %179 {offsets = [51, 0], sizes = [1, 64], strides = [1, 1]} : vector<56x64xf32> to vector<1x64xf32>
    %216 = vector.extract_strided_slice %179 {offsets = [52, 0], sizes = [1, 64], strides = [1, 1]} : vector<56x64xf32> to vector<1x64xf32>
    %217 = vector.extract_strided_slice %179 {offsets = [53, 0], sizes = [1, 64], strides = [1, 1]} : vector<56x64xf32> to vector<1x64xf32>
    %218 = vector.extract_strided_slice %179 {offsets = [54, 0], sizes = [1, 64], strides = [1, 1]} : vector<56x64xf32> to vector<1x64xf32>
    %219 = vector.extract_strided_slice %179 {offsets = [55, 0], sizes = [1, 64], strides = [1, 1]} : vector<56x64xf32> to vector<1x64xf32>
    %220 = tpu.concatenate %180, %181, %182, %183, %184, %185, %186, %187, %188, %189, %190, %191, %192, %193, %194, %195 in 1 : vector<1x64xf32>, vector<1x64xf32>, vector<1x64xf32>, vector<1x64xf32>, vector<1x64xf32>, vector<1x64xf32>, vector<1x64xf32>, vector<1x64xf32>, vector<1x64xf32>, vector<1x64xf32>, vector<1x64xf32>, vector<1x64xf32>, vector<1x64xf32>, vector<1x64xf32>, vector<1x64xf32>, vector<1x64xf32> -> vector<1x1024xf32>
    %221 = tpu.concatenate %196, %197, %198, %199, %200, %201, %202, %203, %204, %205, %206, %207, %208, %209, %210, %211 in 1 : vector<1x64xf32>, vector<1x64xf32>, vector<1x64xf32>, vector<1x64xf32>, vector<1x64xf32>, vector<1x64xf32>, vector<1x64xf32>, vector<1x64xf32>, vector<1x64xf32>, vector<1x64xf32>, vector<1x64xf32>, vector<1x64xf32>, vector<1x64xf32>, vector<1x64xf32>, vector<1x64xf32>, vector<1x64xf32> -> vector<1x1024xf32>
    %222 = tpu.concatenate %212, %213, %214, %215, %216, %217, %218, %219 in 1 : vector<1x64xf32>, vector<1x64xf32>, vector<1x64xf32>, vector<1x64xf32>, vector<1x64xf32>, vector<1x64xf32>, vector<1x64xf32>, vector<1x64xf32> -> vector<1x512xf32>
    %223 = tpu.concatenate %220, %221, %222 in 1 : vector<1x1024xf32>, vector<1x1024xf32>, vector<1x512xf32> -> vector<1x2560xf32>
    %224 = arith.truncf %223 : vector<1x2560xf32> to vector<1x2560xbf16>
    %c0_174 = arith.constant 0 : index
    %c0_175 = arith.constant 0 : index
    %225 = vector.load %arg8[%c0_174, %c0_175] : memref<2560x512xbf16, #tpu.memory_space<vmem>>, vector<2560x512xbf16>
    %cst_176 = arith.constant dense<0.000000e+00> : vector<1x512xf32>
    %226 = tpu.matmul %224, %225, %cst_176 {dimension_numbers = #tpu.dot_dimension_numbers<[1], [0], [0], [1], [0, 0, 1, 1], [], []>} : vector<1x2560xbf16>, vector<2560x512xbf16>, vector<1x512xf32> -> vector<1x512xf32>
    %c0_177 = arith.constant 0 : index
    %c0_178 = arith.constant 0 : index
    %227 = vector.load %arg9[%c0_177, %c0_178] : memref<1x512xf32, #tpu.memory_space<vmem>>, vector<1x512xf32>
    %228 = arith.addf %226, %227 : vector<1x512xf32>
    %cst_179 = arith.constant 0.000000e+00 : f32
    %229 = vector.broadcast %cst_179 : f32 to vector<1x512xf32>
    %230 = arith.maximumf %228, %229 : vector<1x512xf32>
    %231 = arith.truncf %230 : vector<1x512xf32> to vector<1x512xbf16>
    %c0_180 = arith.constant 0 : index
    %c0_181 = arith.constant 0 : index
    %232 = vector.load %arg10[%c0_180, %c0_181] : memref<512x128xbf16, #tpu.memory_space<vmem>>, vector<512x128xbf16>
    %cst_182 = arith.constant dense<0.000000e+00> : vector<1x128xf32>
    %233 = tpu.matmul %231, %232, %cst_182 {dimension_numbers = #tpu.dot_dimension_numbers<[1], [0], [0], [1], [0, 0, 1, 1], [], []>} : vector<1x512xbf16>, vector<512x128xbf16>, vector<1x128xf32> -> vector<1x128xf32>
    %c0_183 = arith.constant 0 : index
    %c0_184 = arith.constant 0 : index
    %234 = vector.load %arg11[%c0_183, %c0_184] : memref<1x128xf32, #tpu.memory_space<vmem>>, vector<1x128xf32>
    %235 = arith.addf %233, %234 : vector<1x128xf32>
    %236 = vector.shape_cast %235 : vector<1x128xf32> to vector<1x1x128xf32>
    %c0_185 = arith.constant 0 : index
    %c0_186 = arith.constant 0 : index
    %c0_187 = arith.constant 0 : index
    %237 = vector.load %arg12[%c0_185, %c0_186, %c0_187] : memref<1x1x128xf32, #tpu.memory_space<vmem>>, vector<1x1x128xf32>
    tpu.vector_store %arg12[%c0_185, %c0_186, %c0_187], %236 {strides = array<i32>} : memref<1x1x128xf32, #tpu.memory_space<vmem>>, vector<1x1x128xf32>,
    return
  }
  func.func @transform_0(%arg0: i32) -> (i32, i32, i32, i32) {
    %c0_i32 = arith.constant 0 : i32
    %c0_i32_0 = arith.constant 0 : i32
    %c0_i32_1 = arith.constant 0 : i32
    %c0_i32_2 = arith.constant 0 : i32
    return %arg0, %c0_i32, %c0_i32_0, %c0_i32_1 : i32, i32, i32, i32
  }
  func.func @transform_1(%arg0: i32) -> (i32, i32, i32, i32) {
    %c0_i32 = arith.constant 0 : i32
    %c0_i32_0 = arith.constant 0 : i32
    %c0_i32_1 = arith.constant 0 : i32
    %c0_i32_2 = arith.constant 0 : i32
    %c0_i32_3 = arith.constant 0 : i32
    return %c0_i32, %c0_i32_0, %c0_i32_1, %c0_i32_2 : i32, i32, i32, i32
  }
  func.func @transform_2(%arg0: i32) -> (i32, i32) {
    %c0_i32 = arith.constant 0 : i32
    %c0_i32_0 = arith.constant 0 : i32
    %c0_i32_1 = arith.constant 0 : i32
    return %c0_i32, %c0_i32_0 : i32, i32
  }
  func.func @transform_3(%arg0: i32) -> (i32, i32, i32, i32) {
    %c0_i32 = arith.constant 0 : i32
    %c0_i32_0 = arith.constant 0 : i32
    %c0_i32_1 = arith.constant 0 : i32
    %c0_i32_2 = arith.constant 0 : i32
    %c0_i32_3 = arith.constant 0 : i32
    return %c0_i32, %c0_i32_0, %c0_i32_1, %c0_i32_2 : i32, i32, i32, i32
  }
  func.func @transform_4(%arg0: i32) -> (i32, i32) {
    %c0_i32 = arith.constant 0 : i32
    %c0_i32_0 = arith.constant 0 : i32
    %c0_i32_1 = arith.constant 0 : i32
    return %c0_i32, %c0_i32_0 : i32, i32
  }
  func.func @transform_5(%arg0: i32) -> (i32, i32, i32, i32) {
    %c0_i32 = arith.constant 0 : i32
    %c0_i32_0 = arith.constant 0 : i32
    %c0_i32_1 = arith.constant 0 : i32
    %c0_i32_2 = arith.constant 0 : i32
    %c0_i32_3 = arith.constant 0 : i32
    return %c0_i32, %c0_i32_0, %c0_i32_1, %c0_i32_2 : i32, i32, i32, i32
  }
  func.func @transform_6(%arg0: i32) -> (i32, i32) {
    %c0_i32 = arith.constant 0 : i32
    %c0_i32_0 = arith.constant 0 : i32
    %c0_i32_1 = arith.constant 0 : i32
    return %c0_i32, %c0_i32_0 : i32, i32
  }
  func.func @transform_7(%arg0: i32) -> (i32, i32) {
    %c0_i32 = arith.constant 0 : i32
    %c0_i32_0 = arith.constant 0 : i32
    %c0_i32_1 = arith.constant 0 : i32
    return %c0_i32, %c0_i32_0 : i32, i32
  }
  func.func @transform_8(%arg0: i32) -> (i32, i32) {
    %c0_i32 = arith.constant 0 : i32
    %c0_i32_0 = arith.constant 0 : i32
    %c0_i32_1 = arith.constant 0 : i32
    return %c0_i32, %c0_i32_0 : i32, i32
  }
  func.func @transform_9(%arg0: i32) -> (i32, i32) {
    %c0_i32 = arith.constant 0 : i32
    %c0_i32_0 = arith.constant 0 : i32
    %c0_i32_1 = arith.constant 0 : i32
    return %c0_i32, %c0_i32_0 : i32, i32
  }
  func.func @transform_10(%arg0: i32) -> (i32, i32) {
    %c0_i32 = arith.constant 0 : i32
    %c0_i32_0 = arith.constant 0 : i32
    %c0_i32_1 = arith.constant 0 : i32
    return %c0_i32, %c0_i32_0 : i32, i32
  }
  func.func @transform_11(%arg0: i32) -> (i32, i32, i32) {
    %c0_i32 = arith.constant 0 : i32
    %c0_i32_0 = arith.constant 0 : i32
    %c0_i32_1 = arith.constant 0 : i32
    return %arg0, %c0_i32, %c0_i32_0 : i32, i32, i32
  }
}

</mosaic_0001>

<llo_original>
// kernel: _lambda_.1
$region0: #{_lambda_.1}
  #allocation0 [shape = 'u32[]', space=smem, size = 0x4, offset = 0x4, fixed_abs, tag = 'smem constant byte address 0x4 - core index']
  #allocation1 [shape = 'u32[144,128]{1,0:T(1,128)}', space=vmem, size = 0x12000, scoped, tag = 'internal scratch']
  %s0 = inlined_call_operand.vmem [shape: bf16[2,4,120,64], index: 0, kind: input, shape index: {}]
  %s1 = inlined_call_operand.vmem [shape: bf16[2,2,64,32], index: 1, kind: input, shape index: {}]
  %s2 = inlined_call_operand.vmem [shape: f32[1,32], index: 2, kind: input, shape index: {}]
  %s3 = inlined_call_operand.vmem [shape: bf16[2,2,128,64], index: 3, kind: input, shape index: {}]
  %s4 = inlined_call_operand.vmem [shape: f32[1,64], index: 4, kind: input, shape index: {}, may-alias: {4,6}]
  %s5 = inlined_call_operand.vmem [shape: bf16[3,3,64,64], index: 5, kind: input, shape index: {}]
  %s6 = inlined_call_operand.vmem [shape: f32[1,64], index: 6, kind: input, shape index: {}, may-alias: {4,6}]
  %s7 = inlined_call_operand.vmem [shape: bf16[2560,512], index: 7, kind: input, shape index: {}]
  %s8 = inlined_call_operand.vmem [shape: f32[1,512], index: 8, kind: input, shape index: {}]
  %s9 = inlined_call_operand.vmem [shape: bf16[512,128], index: 9, kind: input, shape index: {}]
  %s10 = inlined_call_operand.vmem [shape: f32[1,128], index: 10, kind: input, shape index: {}]
  %s11 = inlined_call_operand.hbm [shape: f32[2,1,128], index: 11, kind: output, shape index: {}]
  %s12 = sld [smem:[#allocation0]]
  $region77: #{_lambda_.1} parent=0
    _
  %s14 = ssub.s32 1, %s12
  %s15 = scalar_select 0, %s14, %s12
  $region1: #{_lambda_.1} parent=0
    #allocation2 [shape = 'u8[1024]{0}', space=vmem, size = 0x400, scoped, tag = 'output window, operand 0']
    #allocation3 [shape = 's32[2]{0}', space=sflag, size = 0x8, scoped, tag = 'scoped memory for _lambda_.1']
    %16 = vsyncpa [#allocation3], 0
    %s17 = scalar_lea.sflag [#allocation3], 1
    %18 = vsyncpa %s17, 0
    loop: start=0, step=1, limit=4
    $region2: #{_lambda_.1} parent=1 // loop_pre_header
      _
    $region3: #{_lambda_.1} parent=1 // loop_header
      %s20 = sphi 0, %s24
      %p21 = scmp.ge.s32.totalorder %s20, 4
      %s30 = sphi 0, %s32
      %s33 = sphi 0, %s30
      %s34 = sphi 0, %s33
      %s50 = sphi 0, %s34
      %s54 = sphi 0, %s54
      %s56 = sphi 0, %s54
      %s57 = sphi 0, %s56
      %s71 = sphi 0, %s57
      %s75 = sphi 0, %s75
      %s77 = sphi 0, %s75
      %s78 = sphi 0, %s77
      %s92 = sphi 0, %s78
      %s96 = sphi 0, %s96
      %s98 = sphi 0, %s96
      %s99 = sphi 0, %s98
      %s113 = sphi 0, %s99
      %s117 = sphi 0, %s117
      %s119 = sphi 0, %s117
      %s120 = sphi 0, %s119
      %s134 = sphi 0, %s120
      %s138 = sphi 0, %s138
      %s140 = sphi 0, %s138
      %s141 = sphi 0, %s140
      %s155 = sphi 0, %s141
      %s159 = sphi 0, %s159
      %s161 = sphi 0, %s159
      %s162 = sphi 0, %s161
      %s176 = sphi 0, %s162
      %s180 = sphi 0, %s180
      %s182 = sphi 0, %s180
      %s183 = sphi 0, %s182
      %s197 = sphi 0, %s183
      %s201 = sphi 0, %s201
      %s203 = sphi 0, %s201
      %s204 = sphi 0, %s203
      %s218 = sphi 0, %s204
      %s222 = sphi 0, %s222
      %s224 = sphi 0, %s222
      %s225 = sphi 0, %s224
      %s239 = sphi 0, %s225
      %s243 = sphi 0, %s243
      %s245 = sphi 0, %s243
      %s246 = sphi 0, %s245
      %s260 = sphi 0, %s246
      %s266 = sphi 0, %s268
      %s269 = sphi 0, %s266
      %s270 = sphi 0, %s269
      %s286 = sphi 0, %s270
    $region4: #{_lambda_.1} parent=1 // loop_header_branch
      %23 = sbr.rel (%p21) target = $region8
    $region5: #{_lambda_.1} parent=1 // loop_body
      %s25 = ssub.s32 %s20, 1
      %s26 = ssub.s32 %s20, 2
      %s27 = sadd.s32 %s20, 1
      %s28 = ssub.s32 %s20, %s27
      %p29 = scmp.eq.s32.totalorder %s28, 0
      %s31 = sadd.s32 %s30, 1
      %s32 = scalar_select %p29, %s30, %s31
      %p35 = pneg %p29
      %p36 = scmp.eq.s32.totalorder %s20, 1
      %p37 = por %p35, %p36
      %p38 = scmp.ne.s32.totalorder %s30, %s33
      %p39 = scmp.eq.s32.totalorder %s20, 0
      %p40 = por %p38, %p39
      %p41 = scmp.ne.s32.totalorder %s30, %s33
      %p42 = scmp.eq.s32.totalorder %s25, 1
      %p43 = por %p41, %p42
      %p44 = scmp.ne.s32.totalorder %s33, %s34
      %p45 = scmp.eq.s32.totalorder %s25, 0
      %p46 = por %p44, %p45
      %p47 = scmp.ne.s32.totalorder %s33, %s34
      %p48 = scmp.eq.s32.totalorder %s26, 1
      %p49 = por %p47, %p48
      %p51 = scmp.ne.s32.totalorder %s34, %s50
      %p52 = scmp.eq.s32.totalorder %s26, 0
      %p53 = por %p51, %p52
      %s55 = sadd.s32 %s54, 1
      %p58 = scmp.eq.s32.totalorder %s20, 1
      %p59 = scmp.ne.s32.totalorder %s54, %s56
      %p60 = scmp.eq.s32.totalorder %s20, 0
      %p61 = por %p59, %p60
      %p62 = scmp.ne.s32.totalorder %s54, %s56
      %p63 = scmp.eq.s32.totalorder %s25, 1
      %p64 = por %p62, %p63
      %p65 = scmp.ne.s32.totalorder %s56, %s57
      %p66 = scmp.eq.s32.totalorder %s25, 0
      %p67 = por %p65, %p66
      %p68 = scmp.ne.s32.totalorder %s56, %s57
      %p69 = scmp.eq.s32.totalorder %s26, 1
      %p70 = por %p68, %p69
      %p72 = scmp.ne.s32.totalorder %s57, %s71
      %p73 = scmp.eq.s32.totalorder %s26, 0
      %p74 = por %p72, %p73
      %s76 = sadd.s32 %s75, 1
      %p79 = scmp.eq.s32.totalorder %s20, 1
      %p80 = scmp.ne.s32.totalorder %s75, %s77
      %p81 = scmp.eq.s32.totalorder %s20, 0
      %p82 = por %p80, %p81
      %p83 = scmp.ne.s32.totalorder %s75, %s77
      %p84 = scmp.eq.s32.totalorder %s25, 1
      %p85 = por %p83, %p84
      %p86 = scmp.ne.s32.totalorder %s77, %s78
      %p87 = scmp.eq.s32.totalorder %s25, 0
      %p88 = por %p86, %p87
      %p89 = scmp.ne.s32.totalorder %s77, %s78
      %p90 = scmp.eq.s32.totalorder %s26, 1
      %p91 = por %p89, %p90
      %p93 = scmp.ne.s32.totalorder %s78, %s92
      %p94 = scmp.eq.s32.totalorder %s26, 0
      %p95 = por %p93, %p94
      %s97 = sadd.s32 %s96, 1
      %p100 = scmp.eq.s32.totalorder %s20, 1
      %p101 = scmp.ne.s32.totalorder %s96, %s98
      %p102 = scmp.eq.s32.totalorder %s20, 0
      %p103 = por %p101, %p102
      %p104 = scmp.ne.s32.totalorder %s96, %s98
      %p105 = scmp.eq.s32.totalorder %s25, 1
      %p106 = por %p104, %p105
      %p107 = scmp.ne.s32.totalorder %s98, %s99
      %p108 = scmp.eq.s32.totalorder %s25, 0
      %p109 = por %p107, %p108
      %p110 = scmp.ne.s32.totalorder %s98, %s99
      %p111 = scmp.eq.s32.totalorder %s26, 1
      %p112 = por %p110, %p111
      %p114 = scmp.ne.s32.totalorder %s99, %s113
      %p115 = scmp.eq.s32.totalorder %s26, 0
      %p116 = por %p114, %p115
      %s118 = sadd.s32 %s117, 1
      %p121 = scmp.eq.s32.totalorder %s20, 1
      %p122 = scmp.ne.s32.totalorder %s117, %s119
      %p123 = scmp.eq.s32.totalorder %s20, 0
      %p124 = por %p122, %p123
      %p125 = scmp.ne.s32.totalorder %s117, %s119
      %p126 = scmp.eq.s32.totalorder %s25, 1
      %p127 = por %p125, %p126
      %p128 = scmp.ne.s32.totalorder %s119, %s120
      %p129 = scmp.eq.s32.totalorder %s25, 0
      %p130 = por %p128, %p129
      %p131 = scmp.ne.s32.totalorder %s119, %s120
      %p132 = scmp.eq.s32.totalorder %s26, 1
      %p133 = por %p131, %p132
      %p135 = scmp.ne.s32.totalorder %s120, %s134
      %p136 = scmp.eq.s32.totalorder %s26, 0
      %p137 = por %p135, %p136
      %s139 = sadd.s32 %s138, 1
      %p142 = scmp.eq.s32.totalorder %s20, 1
      %p143 = scmp.ne.s32.totalorder %s138, %s140
      %p144 = scmp.eq.s32.totalorder %s20, 0
      %p145 = por %p143, %p144
      %p146 = scmp.ne.s32.totalorder %s138, %s140
      %p147 = scmp.eq.s32.totalorder %s25, 1
      %p148 = por %p146, %p147
      %p149 = scmp.ne.s32.totalorder %s140, %s141
      %p150 = scmp.eq.s32.totalorder %s25, 0
      %p151 = por %p149, %p150
      %p152 = scmp.ne.s32.totalorder %s140, %s141
      %p153 = scmp.eq.s32.totalorder %s26, 1
      %p154 = por %p152, %p153
      %p156 = scmp.ne.s32.totalorder %s141, %s155
      %p157 = scmp.eq.s32.totalorder %s26, 0
      %p158 = por %p156, %p157
      %s160 = sadd.s32 %s159, 1
      %p163 = scmp.eq.s32.totalorder %s20, 1
      %p164 = scmp.ne.s32.totalorder %s159, %s161
      %p165 = scmp.eq.s32.totalorder %s20, 0
      %p166 = por %p164, %p165
      %p167 = scmp.ne.s32.totalorder %s159, %s161
      %p168 = scmp.eq.s32.totalorder %s25, 1
      %p169 = por %p167, %p168
      %p170 = scmp.ne.s32.totalorder %s161, %s162
      %p171 = scmp.eq.s32.totalorder %s25, 0
      %p172 = por %p170, %p171
      %p173 = scmp.ne.s32.totalorder %s161, %s162
      %p174 = scmp.eq.s32.totalorder %s26, 1
      %p175 = por %p173, %p174
      %p177 = scmp.ne.s32.totalorder %s162, %s176
      %p178 = scmp.eq.s32.totalorder %s26, 0
      %p179 = por %p177, %p178
      %s181 = sadd.s32 %s180, 1
      %p184 = scmp.eq.s32.totalorder %s20, 1
      %p185 = scmp.ne.s32.totalorder %s180, %s182
      %p186 = scmp.eq.s32.totalorder %s20, 0
      %p187 = por %p185, %p186
      %p188 = scmp.ne.s32.totalorder %s180, %s182
      %p189 = scmp.eq.s32.totalorder %s25, 1
      %p190 = por %p188, %p189
      %p191 = scmp.ne.s32.totalorder %s182, %s183
      %p192 = scmp.eq.s32.totalorder %s25, 0
      %p193 = por %p191, %p192
      %p194 = scmp.ne.s32.totalorder %s182, %s183
      %p195 = scmp.eq.s32.totalorder %s26, 1
      %p196 = por %p194, %p195
      %p198 = scmp.ne.s32.totalorder %s183, %s197
      %p199 = scmp.eq.s32.totalorder %s26, 0
      %p200 = por %p198, %p199
      %s202 = sadd.s32 %s201, 1
      %p205 = scmp.eq.s32.totalorder %s20, 1
      %p206 = scmp.ne.s32.totalorder %s201, %s203
      %p207 = scmp.eq.s32.totalorder %s20, 0
      %p208 = por %p206, %p207
      %p209 = scmp.ne.s32.totalorder %s201, %s203
      %p210 = scmp.eq.s32.totalorder %s25, 1
      %p211 = por %p209, %p210
      %p212 = scmp.ne.s32.totalorder %s203, %s204
      %p213 = scmp.eq.s32.totalorder %s25, 0
      %p214 = por %p212, %p213
      %p215 = scmp.ne.s32.totalorder %s203, %s204
      %p216 = scmp.eq.s32.totalorder %s26, 1
      %p217 = por %p215, %p216
      %p219 = scmp.ne.s32.totalorder %s204, %s218
      %p220 = scmp.eq.s32.totalorder %s26, 0
      %p221 = por %p219, %p220
      %s223 = sadd.s32 %s222, 1
      %p226 = scmp.eq.s32.totalorder %s20, 1
      %p227 = scmp.ne.s32.totalorder %s222, %s224
      %p228 = scmp.eq.s32.totalorder %s20, 0
      %p229 = por %p227, %p228
      %p230 = scmp.ne.s32.totalorder %s222, %s224
      %p231 = scmp.eq.s32.totalorder %s25, 1
      %p232 = por %p230, %p231
      %p233 = scmp.ne.s32.totalorder %s224, %s225
      %p234 = scmp.eq.s32.totalorder %s25, 0
      %p235 = por %p233, %p234
      %p236 = scmp.ne.s32.totalorder %s224, %s225
      %p237 = scmp.eq.s32.totalorder %s26, 1
      %p238 = por %p236, %p237
      %p240 = scmp.ne.s32.totalorder %s225, %s239
      %p241 = scmp.eq.s32.totalorder %s26, 0
      %p242 = por %p240, %p241
      %s244 = sadd.s32 %s243, 1
      %p247 = scmp.eq.s32.totalorder %s20, 1
      %p248 = scmp.ne.s32.totalorder %s243, %s245
      %p249 = scmp.eq.s32.totalorder %s20, 0
      %p250 = por %p248, %p249
      %p251 = scmp.ne.s32.totalorder %s243, %s245
      %p252 = scmp.eq.s32.totalorder %s25, 1
      %p253 = por %p251, %p252
      %p254 = scmp.ne.s32.totalorder %s245, %s246
      %p255 = scmp.eq.s32.totalorder %s25, 0
      %p256 = por %p254, %p255
      %p257 = scmp.ne.s32.totalorder %s245, %s246
      %p258 = scmp.eq.s32.totalorder %s26, 1
      %p259 = por %p257, %p258
      %p261 = scmp.ne.s32.totalorder %s246, %s260
      %p262 = scmp.eq.s32.totalorder %s26, 0
      %p263 = por %p261, %p262
      %s264 = ssub.s32 %s20, %s27
      %p265 = scmp.eq.s32.totalorder %s264, 0
      %s267 = sadd.s32 %s266, 1
      %s268 = scalar_select %p265, %s266, %s267
      %p271 = pneg %p265
      %p272 = scmp.eq.s32.totalorder %s20, 1
      %p273 = por %p271, %p272
      %p274 = scmp.ne.s32.totalorder %s266, %s269
      %p275 = scmp.eq.s32.totalorder %s20, 0
      %p276 = por %p274, %p275
      %p277 = scmp.ne.s32.totalorder %s266, %s269
      %p278 = scmp.eq.s32.totalorder %s25, 1
      %p279 = por %p277, %p278
      %p280 = scmp.ne.s32.totalorder %s269, %s270
      %p281 = scmp.eq.s32.totalorder %s25, 0
      %p282 = por %p280, %p281
      %p283 = scmp.ne.s32.totalorder %s269, %s270
      %p284 = scmp.eq.s32.totalorder %s26, 1
      %p285 = por %p283, %p284
      %p287 = scmp.ne.s32.totalorder %s270, %s286
      %p288 = scmp.eq.s32.totalorder %s26, 0
      %p289 = por %p287, %p288
      %p290 = scmp.le.s32.totalorder 1, %s20
      %p291 = scmp.lt.s32.totalorder %s20, 3
      %p292 = pnand %p290, %p291
      %p293 = pneg %p292
      // Predicated region
      $region9: #{_lambda_.1} parent=5 // pred_check
        _
      $region10: #{_lambda_.1} parent=5 // pred_check_branch
        %295 = sbr.rel (%p292) target = $region12
      $region11: #{_lambda_.1} parent=5 // pred_region
        %s296 = ssub.s32 %s20, 1
        // Predicated region
        $region13: #{_lambda_.1} parent=11 // pred_check
          %p297 = pneg %p67
        $region14: #{_lambda_.1} parent=11 // pred_check_branch
          %299 = sbr.rel (%p297) target = $region16
        $region15: #{_lambda_.1} parent=11 // pred_region
          _
        $region16: #{_lambda_.1} parent=11 // pred_fallthru
          _
        // Predicated region
        $region17: #{_lambda_.1} parent=11 // pred_check
          %p300 = pneg %p88
        $region18: #{_lambda_.1} parent=11 // pred_check_branch
          %302 = sbr.rel (%p300) target = $region20
        $region19: #{_lambda_.1} parent=11 // pred_region
          _
        $region20: #{_lambda_.1} parent=11 // pred_fallthru
          _
        // Predicated region
        $region21: #{_lambda_.1} parent=11 // pred_check
          %p303 = pneg %p109
        $region22: #{_lambda_.1} parent=11 // pred_check_branch
          %305 = sbr.rel (%p303) target = $region24
        $region23: #{_lambda_.1} parent=11 // pred_region
          _
        $region24: #{_lambda_.1} parent=11 // pred_fallthru
          _
        // Predicated region
        $region25: #{_lambda_.1} parent=11 // pred_check
          %p306 = pneg %p130
        $region26: #{_lambda_.1} parent=11 // pred_check_branch
          %308 = sbr.rel (%p306) target = $region28
        $region27: #{_lambda_.1} parent=11 // pred_region
          _
        $region28: #{_lambda_.1} parent=11 // pred_fallthru
          _
        // Predicated region
        $region29: #{_lambda_.1} parent=11 // pred_check
          %p309 = pneg %p151
        $region30: #{_lambda_.1} parent=11 // pred_check_branch
          %311 = sbr.rel (%p309) target = $region32
        $region31: #{_lambda_.1} parent=11 // pred_region
          _
        $region32: #{_lambda_.1} parent=11 // pred_fallthru
          _
        // Predicated region
        $region33: #{_lambda_.1} parent=11 // pred_check
          %p312 = pneg %p172
        $region34: #{_lambda_.1} parent=11 // pred_check_branch
          %314 = sbr.rel (%p312) target = $region36
        $region35: #{_lambda_.1} parent=11 // pred_region
          _
        $region36: #{_lambda_.1} parent=11 // pred_fallthru
          _
        // Predicated region
        $region37: #{_lambda_.1} parent=11 // pred_check
          %p315 = pneg %p193
        $region38: #{_lambda_.1} parent=11 // pred_check_branch
          %317 = sbr.rel (%p315) target = $region40
        $region39: #{_lambda_.1} parent=11 // pred_region
          _
        $region40: #{_lambda_.1} parent=11 // pred_fallthru
          _
        // Predicated region
        $region41: #{_lambda_.1} parent=11 // pred_check
          %p318 = pneg %p214
        $region42: #{_lambda_.1} parent=11 // pred_check_branch
          %320 = sbr.rel (%p318) target = $region44
        $region43: #{_lambda_.1} parent=11 // pred_region
          _
        $region44: #{_lambda_.1} parent=11 // pred_fallthru
          _
        // Predicated region
        $region45: #{_lambda_.1} parent=11 // pred_check
          %p321 = pneg %p235
        $region46: #{_lambda_.1} parent=11 // pred_check_branch
          %323 = sbr.rel (%p321) target = $region48
        $region47: #{_lambda_.1} parent=11 // pred_region
          _
        $region48: #{_lambda_.1} parent=11 // pred_fallthru
          _
        // Predicated region
        $region49: #{_lambda_.1} parent=11 // pred_check
          %p324 = pneg %p256
        $region50: #{_lambda_.1} parent=11 // pred_check_branch
          %326 = sbr.rel (%p324) target = $region52
        $region51: #{_lambda_.1} parent=11 // pred_region
          _
        $region52: #{_lambda_.1} parent=11 // pred_fallthru
          _
      $region12: #{_lambda_.1} parent=5 // pred_fallthru
        _
      %p327 = scmp.lt.s32.totalorder %s20, 2
      // Predicated region
      $region53: #{_lambda_.1} parent=5 // pred_check
        %p328 = pneg %p327
      $region54: #{_lambda_.1} parent=5 // pred_check_branch
        %330 = sbr.rel (%p328) target = $region56
      $region55: #{_lambda_.1} parent=5 // pred_region
        // Predicated region
        $region57: #{_lambda_.1} parent=55 // pred_check
          %p331 = pneg %p40
        $region58: #{_lambda_.1} parent=55 // pred_check_branch
          %333 = sbr.rel (%p331) target = $region60
        $region59: #{_lambda_.1} parent=55 // pred_region
          %p334 = scmp.lt.s32.totalorder %s20, 1
          %s335 = scalar_select %p334, %s20, 1
          %s336 = smul.addr %s335, 60
          %s337 = smul.addr %s336, 4
          %s338 = scalar_lea.vmem %s0, %s337
        $region60: #{_lambda_.1} parent=55 // pred_fallthru
          _
      $region56: #{_lambda_.1} parent=5 // pred_fallthru
        _
      %p339 = scmp.le.s32.totalorder 1, %s20
      %p340 = scmp.lt.s32.totalorder %s20, 3
      %p341 = pnand %p339, %p340
      %p342 = pneg %p341
      // Predicated region
      $region61: #{_lambda_.1} parent=5 // pred_check
        _
      $region62: #{_lambda_.1} parent=5 // pred_check_branch
        %344 = sbr.rel (%p341) target = $region64
      $region63: #{_lambda_.1} parent=5 // pred_region
        %s345 = ssub.s32 %s20, 1
        %p346 = scmp.lt.s32.totalorder %s25, 1
        %s347 = scalar_select %p346, %s25, 1
        %s348 = smul.addr %s347, 60
        %s349 = smul.addr %s348, 4
        %s350 = scalar_lea.vmem %s0, %s349
        %p351 = pneg %p46
        %p352 = pneg %p43
        %p353 = pneg %p67
        %p354 = pneg %p64
        %p355 = pneg %p88
        %p356 = pneg %p85
        %p357 = pneg %p109
        %p358 = pneg %p106
        %p359 = pneg %p130
        %p360 = pneg %p127
        %p361 = pneg %p151
        %p362 = pneg %p148
        %p363 = pneg %p172
        %p364 = pneg %p169
        %p365 = pneg %p193
        %p366 = pneg %p190
        %p367 = pneg %p214
        %p368 = pneg %p211
        %p369 = pneg %p235
        %p370 = pneg %p232
        %p371 = pneg %p256
        %p372 = pneg %p253
        %p373 = pneg %p282
        %p374 = pneg %p279
        %s375 = sand.u32 %s269, 1
        %s376 = scalar_lea.sflag [#allocation3], %s375
        %s377 = sand.u32 %s269, 1
        %s378 = scalar_lea.vmem [#allocation2], %s377
        %p379 = scmp.lt.s32.totalorder %s25, 1
        %s380 = scalar_select %p379, %s25, 1
        %s381 = smul.addr %s380, 60
        %s382 = smul.addr %s381, 4
        %s383 = scalar_lea.vmem %s0, %s382
        %v385 = vld [vmem:[%s383] sm:$0xf]
        %v386 = vld [vmem:[%s383 + $0x4] sm:$0xf]
        %v387 = vld [vmem:[%s383 + $0x8] sm:$0xf]
        %v388 = vld [vmem:[%s383 + $0xc] sm:$0xf]
        %v389 = vld [vmem:[%s383 + $0x10] sm:$0xf]
        %v390 = vld [vmem:[%s383 + $0x14] sm:$0xf]
        %v391 = vld [vmem:[%s383 + $0x18] sm:$0xf]
        %v392 = vld [vmem:[%s383 + $0x1c] sm:$0xf]
        %v393 = vld [vmem:[%s383 + $0x20] sm:$0xf]
        %v394 = vld [vmem:[%s383 + $0x24] sm:$0xf]
        %v395 = vld [vmem:[%s383 + $0x28] sm:$0xf]
        %v396 = vld [vmem:[%s383 + $0x2c] sm:$0xf]
        %v397 = vld [vmem:[%s383 + $0x30] sm:$0xf]
        %v398 = vld [vmem:[%s383 + $0x34] sm:$0xf]
        %v399 = vld [vmem:[%s383 + $0x38] sm:$0xf]
        %s400 = scalar_lea.vmem %s383, 60
        %v401 = vld [vmem:[%s400] sm:$0xf]
        %v402 = vld [vmem:[%s400 + $0x4] sm:$0xf]
        %v403 = vld [vmem:[%s400 + $0x8] sm:$0xf]
        %v404 = vld [vmem:[%s400 + $0xc] sm:$0xf]
        %v405 = vld [vmem:[%s400 + $0x10] sm:$0xf]
        %v406 = vld [vmem:[%s400 + $0x14] sm:$0xf]
        %v407 = vld [vmem:[%s400 + $0x18] sm:$0xf]
        %v408 = vld [vmem:[%s400 + $0x1c] sm:$0xf]
        %v409 = vld [vmem:[%s400 + $0x20] sm:$0xf]
        %v410 = vld [vmem:[%s400 + $0x24] sm:$0xf]
        %v411 = vld [vmem:[%s400 + $0x28] sm:$0xf]
        %v412 = vld [vmem:[%s400 + $0x2c] sm:$0xf]
        %v413 = vld [vmem:[%s400 + $0x30] sm:$0xf]
        %v414 = vld [vmem:[%s400 + $0x34] sm:$0xf]
        %v415 = vld [vmem:[%s400 + $0x38] sm:$0xf]
        %s416 = scalar_lea.vmem %s383, 120
        %v417 = vld [vmem:[%s416] sm:$0xf]
        %v418 = vld [vmem:[%s416 + $0x4] sm:$0xf]
        %v419 = vld [vmem:[%s416 + $0x8] sm:$0xf]
        %v420 = vld [vmem:[%s416 + $0xc] sm:$0xf]
        %v421 = vld [vmem:[%s416 + $0x10] sm:$0xf]
        %v422 = vld [vmem:[%s416 + $0x14] sm:$0xf]
        %v423 = vld [vmem:[%s416 + $0x18] sm:$0xf]
        %v424 = vld [vmem:[%s416 + $0x1c] sm:$0xf]
        %v425 = vld [vmem:[%s416 + $0x20] sm:$0xf]
        %v426 = vld [vmem:[%s416 + $0x24] sm:$0xf]
        %v427 = vld [vmem:[%s416 + $0x28] sm:$0xf]
        %v428 = vld [vmem:[%s416 + $0x2c] sm:$0xf]
        %v429 = vld [vmem:[%s416 + $0x30] sm:$0xf]
        %v430 = vld [vmem:[%s416 + $0x34] sm:$0xf]
        %s431 = scalar_lea.vmem %s383, 180
        %v432 = vld [vmem:[%s431] sm:$0xf]
        %v433 = vld [vmem:[%s431 + $0x4] sm:$0xf]
        %v434 = vld [vmem:[%s431 + $0x8] sm:$0xf]
        %v435 = vld [vmem:[%s431 + $0xc] sm:$0xf]
        %v436 = vld [vmem:[%s431 + $0x10] sm:$0xf]
        %v437 = vld [vmem:[%s431 + $0x14] sm:$0xf]
        %v438 = vld [vmem:[%s431 + $0x18] sm:$0xf]
        %v439 = vld [vmem:[%s431 + $0x1c] sm:$0xf]
        %v440 = vld [vmem:[%s431 + $0x20] sm:$0xf]
        %v441 = vld [vmem:[%s431 + $0x24] sm:$0xf]
        %v442 = vld [vmem:[%s431 + $0x28] sm:$0xf]
        %v443 = vld [vmem:[%s431 + $0x2c] sm:$0xf]
        %v444 = vld [vmem:[%s431 + $0x30] sm:$0xf]
        %v445 = vld [vmem:[%s1] sm:$0xf]
        %v446 = vld [vmem:[%s1 + $0x4] sm:$0xf]
        %v447 = vld [vmem:[%s1 + $0x8] sm:$0xf]
        %v448 = vld [vmem:[%s1 + $0xc] sm:$0xf]
        %v449 = vld [vmem:[%s1 + $0x10] sm:$0xf]
        %v450 = vld [vmem:[%s1 + $0x14] sm:$0xf]
        %v451 = vld [vmem:[%s1 + $0x18] sm:$0xf]
        %v452 = vld [vmem:[%s1 + $0x1c] sm:$0xf]
        %s453 = scalar_lea.vmem %s1, 32
        %v454 = vld [vmem:[%s453] sm:$0xf]
        %v455 = vld [vmem:[%s453 + $0x4] sm:$0xf]
        %v456 = vld [vmem:[%s453 + $0x8] sm:$0xf]
        %v457 = vld [vmem:[%s453 + $0xc] sm:$0xf]
        %v458 = vld [vmem:[%s453 + $0x10] sm:$0xf]
        %v459 = vld [vmem:[%s453 + $0x14] sm:$0xf]
        %v460 = vld [vmem:[%s453 + $0x18] sm:$0xf]
        %v461 = vld [vmem:[%s453 + $0x1c] sm:$0xf]
        %v475 = vunpack.c.l.b16 %v401
        %v476 = vunpack.c.l.b16 %v402
        %v477 = vunpack.c.l.b16 %v403
        %v478 = vunpack.c.l.b16 %v404
        %v479 = vunpack.c.l.b16 %v405
        %v480 = vunpack.c.l.b16 %v406
        %v481 = vunpack.c.l.b16 %v407
        %v482 = vunpack.c.l.b16 %v408
        %v483 = vunpack.c.l.b16 %v409
        %v484 = vunpack.c.l.b16 %v410
        %v485 = vunpack.c.l.b16 %v411
        %v486 = vunpack.c.l.b16 %v412
        %v487 = vunpack.c.l.b16 %v413
        %v488 = vpack.c.b16 %v476, %v475
        %v489 = vpack.c.b16 %v478, %v477
        %v490 = vpack.c.b16 %v480, %v479
        %v491 = vpack.c.b16 %v482, %v481
        %v492 = vpack.c.b16 %v484, %v483
        %v493 = vpack.c.b16 %v486, %v485
        %v494 = vpack.c.b16 %v487, %v487
        %v503 = vunpack.c.l.b16 %v454
        %v504 = vunpack.c.l.b16 %v455
        %v505 = vunpack.c.l.b16 %v456
        %v506 = vunpack.c.l.b16 %v457
        %v507 = vunpack.c.l.b16 %v458
        %v508 = vunpack.c.l.b16 %v459
        %v509 = vunpack.c.l.b16 %v460
        %v510 = vunpack.c.l.b16 %v461
        %v511 = vpack.c.b16 %v504, %v503
        %v512 = vpack.c.b16 %v506, %v505
        %v513 = vpack.c.b16 %v508, %v507
        %v514 = vpack.c.b16 %v510, %v509
        %vm519 = vcmask 523264
        %v521 = vsel %vm519, %v488, 0
        %v524 = vsel %vm519, %v489, 0
        %v527 = vsel %vm519, %v490, 0
        %v530 = vsel %vm519, %v491, 0
        %v533 = vsel %vm519, %v492, 0
        %v536 = vsel %vm519, %v493, 0
        %v539 = vsel %vm519, %v494, 0
        %541 = vmatprep.subr.bf16.mxu0 0
        %542 = vmatpush1.bf16.msra.mxu0 0
        %543 = vmatprep.subr.bf16.mxu0 0
        %544 = vmatpush1.bf16.msra.mxu0 0
        %545 = vmatprep.subr.bf16.mxu0 0
        %546 = vmatpush1.bf16.msra.mxu0 0
        %547 = vmatprep.subr.bf16.mxu0 0
        %548 = vmatpush1.bf16.msra.mxu0 0
        %549 = vmatprep.subr.bf16.mxu0 0
        %550 = vmatpush1.bf16.msra.mxu0 %v514
        %551 = vmatprep.subr.bf16.mxu0 0
        %552 = vmatpush1.bf16.msra.mxu0 %v513
        %553 = vmatprep.subr.bf16.mxu0 0
        %554 = vmatpush1.bf16.msra.mxu0 %v512
        %555 = vmatprep.subr.bf16.mxu0 0
        %556 = vmatpush1.bf16.msra.mxu0 %v511
        %557 = vmatprep.subr.bf16.mxu0 0
        %558 = vmatpush2.bf16.msra.mxu0 0
        %559 = vmatprep.subr.bf16.mxu0 0
        %560 = vmatpush2.bf16.msra.mxu0 0
        %561 = vmatprep.subr.bf16.mxu0 0
        %562 = vmatpush2.bf16.msra.mxu0 0
        %563 = vmatprep.subr.bf16.mxu0 0
        %564 = vmatpush2.bf16.msra.mxu0 0
        %565 = vmatprep.subr.bf16.mxu0 0
        %566 = vmatpush2.bf16.msra.mxu0 0
        %567 = vmatprep.subr.bf16.mxu0 0
        %568 = vmatpush2.bf16.msra.mxu0 0
        %569 = vmatprep.subr.bf16.mxu0 0
        %570 = vmatpush2.bf16.msra.mxu0 0
        %571 = vmatprep.subr.bf16.mxu0 0
        %572 = vmatpush2.bf16.msra.mxu0 0
        %573 = vmatprep.mubr.bf16.mxu0 0
        %574 = vmatmul.mubr.bf16.gmra.mxu0 %v521
        %v575 = vpop.f32.mrf.mxu0
        %v576 = vadd.f32 0.0, %v575
        %v577 = vpop.f32.mrf.mxu0
        %v578 = vpop.f32.mrf.mxu0
        %v579 = vadd.f32 0.0, %v578
        %v580 = vpop.f32.mrf.mxu0
        %581 = vmatprep.mubr.bf16.mxu0 0
        %582 = vmatmul.mubr.bf16.gmra.mxu0 %v524
        %v583 = vpop.f32.mrf.mxu0
        %v584 = vadd.f32 0.0, %v583
        %v585 = vpop.f32.mrf.mxu0
        %v586 = vpop.f32.mrf.mxu0
        %v587 = vadd.f32 0.0, %v586
        %v588 = vpop.f32.mrf.mxu0
        %589 = vmatprep.mubr.bf16.mxu0 0
        %590 = vmatmul.mubr.bf16.gmra.mxu0 %v527
        %v591 = vpop.f32.mrf.mxu0
        %v592 = vadd.f32 0.0, %v591
        %v593 = vpop.f32.mrf.mxu0
        %v594 = vpop.f32.mrf.mxu0
        %v595 = vadd.f32 0.0, %v594
        %v596 = vpop.f32.mrf.mxu0
        %597 = vmatprep.mubr.bf16.mxu0 0
        %598 = vmatmul.mubr.bf16.gmra.mxu0 %v530
        %v599 = vpop.f32.mrf.mxu0
        %v600 = vadd.f32 0.0, %v599
        %v601 = vpop.f32.mrf.mxu0
        %v602 = vpop.f32.mrf.mxu0
        %v603 = vadd.f32 0.0, %v602
        %v604 = vpop.f32.mrf.mxu0
        %605 = vmatprep.mubr.bf16.mxu0 0
        %606 = vmatmul.mubr.bf16.gmra.mxu0 %v533
        %v607 = vpop.f32.mrf.mxu0
        %v608 = vadd.f32 0.0, %v607
        %v609 = vpop.f32.mrf.mxu0
        %v610 = vpop.f32.mrf.mxu0
        %v611 = vadd.f32 0.0, %v610
        %v612 = vpop.f32.mrf.mxu0
        %613 = vmatprep.mubr.bf16.mxu0 0
        %614 = vmatmul.mubr.bf16.gmra.mxu0 %v536
        %v615 = vpop.f32.mrf.mxu0
        %v616 = vadd.f32 0.0, %v615
        %v617 = vpop.f32.mrf.mxu0
        %v618 = vpop.f32.mrf.mxu0
        %v619 = vadd.f32 0.0, %v618
        %v620 = vpop.f32.mrf.mxu0
        %621 = vmatprep.mubr.bf16.mxu0 0
        %622 = vmatmul.mubr.bf16.gmra.mxu0 %v539
        %v623 = vpop.f32.mrf.mxu0
        %v624 = vadd.f32 0.0, %v623
        %v625 = vpop.f32.mrf.mxu0
        %v626 = vpop.f32.mrf.mxu0
        %v627 = vpop.f32.mrf.mxu0
        %628 = vdwg.mxu0
        %v642 = vunpack.c.l.b16 %v385
        %v643 = vunpack.c.l.b16 %v386
        %v644 = vunpack.c.l.b16 %v387
        %v645 = vunpack.c.l.b16 %v388
        %v646 = vunpack.c.l.b16 %v389
        %v647 = vunpack.c.l.b16 %v390
        %v648 = vunpack.c.l.b16 %v391
        %v649 = vunpack.c.l.b16 %v392
        %v650 = vunpack.c.l.b16 %v393
        %v651 = vunpack.c.l.b16 %v394
        %v652 = vunpack.c.l.b16 %v395
        %v653 = vunpack.c.l.b16 %v396
        %v654 = vunpack.c.l.b16 %v397
        %v655 = vpack.c.b16 %v643, %v642
        %v656 = vpack.c.b16 %v645, %v644
        %v657 = vpack.c.b16 %v647, %v646
        %v658 = vpack.c.b16 %v649, %v648
        %v659 = vpack.c.b16 %v651, %v650
        %v660 = vpack.c.b16 %v653, %v652
        %v661 = vpack.c.b16 %v654, %v654
        %v670 = vunpack.c.l.b16 %v445
        %v671 = vunpack.c.l.b16 %v446
        %v672 = vunpack.c.l.b16 %v447
        %v673 = vunpack.c.l.b16 %v448
        %v674 = vunpack.c.l.b16 %v449
        %v675 = vunpack.c.l.b16 %v450
        %v676 = vunpack.c.l.b16 %v451
        %v677 = vunpack.c.l.b16 %v452
        %v678 = vpack.c.b16 %v671, %v670
        %v679 = vpack.c.b16 %v673, %v672
        %v680 = vpack.c.b16 %v675, %v674
        %v681 = vpack.c.b16 %v677, %v676
        %v687 = vsel %vm519, %v655, 0
        %v690 = vsel %vm519, %v656, 0
        %v693 = vsel %vm519, %v657, 0
        %v696 = vsel %vm519, %v658, 0
        %v699 = vsel %vm519, %v659, 0
        %v702 = vsel %vm519, %v660, 0
        %v705 = vsel %vm519, %v661, 0
        %707 = vmatprep.subr.bf16.mxu0 0
        %708 = vmatpush1.bf16.msra.mxu0 0
        %709 = vmatprep.subr.bf16.mxu0 0
        %710 = vmatpush1.bf16.msra.mxu0 0
        %711 = vmatprep.subr.bf16.mxu0 0
        %712 = vmatpush1.bf16.msra.mxu0 0
        %713 = vmatprep.subr.bf16.mxu0 0
        %714 = vmatpush1.bf16.msra.mxu0 0
        %715 = vmatprep.subr.bf16.mxu0 0
        %716 = vmatpush1.bf16.msra.mxu0 %v681
        %717 = vmatprep.subr.bf16.mxu0 0
        %718 = vmatpush1.bf16.msra.mxu0 %v680
        %719 = vmatprep.subr.bf16.mxu0 0
        %720 = vmatpush1.bf16.msra.mxu0 %v679
        %721 = vmatprep.subr.bf16.mxu0 0
        %722 = vmatpush1.bf16.msra.mxu0 %v678
        %723 = vmatprep.subr.bf16.mxu0 0
        %724 = vmatpush2.bf16.msra.mxu0 0
        %725 = vmatprep.subr.bf16.mxu0 0
        %726 = vmatpush2.bf16.msra.mxu0 0
        %727 = vmatprep.subr.bf16.mxu0 0
        %728 = vmatpush2.bf16.msra.mxu0 0
        %729 = vmatprep.subr.bf16.mxu0 0
        %730 = vmatpush2.bf16.msra.mxu0 0
        %731 = vmatprep.subr.bf16.mxu0 0
        %732 = vmatpush2.bf16.msra.mxu0 0
        %733 = vmatprep.subr.bf16.mxu0 0
        %734 = vmatpush2.bf16.msra.mxu0 0
        %735 = vmatprep.subr.bf16.mxu0 0
        %736 = vmatpush2.bf16.msra.mxu0 0
        %737 = vmatprep.subr.bf16.mxu0 0
        %738 = vmatpush2.bf16.msra.mxu0 0
        %739 = vmatprep.mubr.bf16.mxu0 0
        %740 = vmatmul.mubr.bf16.gmra.mxu0 %v687
        %v741 = vpop.f32.mrf.mxu0
        %v742 = vadd.f32 %v576, %v741
        %v743 = vpop.f32.mrf.mxu0
        %v744 = vpop.f32.mrf.mxu0
        %v745 = vadd.f32 %v579, %v744
        %v746 = vpop.f32.mrf.mxu0
        %747 = vmatprep.mubr.bf16.mxu0 0
        %748 = vmatmul.mubr.bf16.gmra.mxu0 %v690
        %v749 = vpop.f32.mrf.mxu0
        %v750 = vadd.f32 %v584, %v749
        %v751 = vpop.f32.mrf.mxu0
        %v752 = vpop.f32.mrf.mxu0
        %v753 = vadd.f32 %v587, %v752
        %v754 = vpop.f32.mrf.mxu0
        %755 = vmatprep.mubr.bf16.mxu0 0
        %756 = vmatmul.mubr.bf16.gmra.mxu0 %v693
        %v757 = vpop.f32.mrf.mxu0
        %v758 = vadd.f32 %v592, %v757
        %v759 = vpop.f32.mrf.mxu0
        %v760 = vpop.f32.mrf.mxu0
        %v761 = vadd.f32 %v595, %v760
        %v762 = vpop.f32.mrf.mxu0
        %763 = vmatprep.mubr.bf16.mxu0 0
        %764 = vmatmul.mubr.bf16.gmra.mxu0 %v696
        %v765 = vpop.f32.mrf.mxu0
        %v766 = vadd.f32 %v600, %v765
        %v767 = vpop.f32.mrf.mxu0
        %v768 = vpop.f32.mrf.mxu0
        %v769 = vadd.f32 %v603, %v768
        %v770 = vpop.f32.mrf.mxu0
        %771 = vmatprep.mubr.bf16.mxu0 0
        %772 = vmatmul.mubr.bf16.gmra.mxu0 %v699
        %v773 = vpop.f32.mrf.mxu0
        %v774 = vadd.f32 %v608, %v773
        %v775 = vpop.f32.mrf.mxu0
        %v776 = vpop.f32.mrf.mxu0
        %v777 = vadd.f32 %v611, %v776
        %v778 = vpop.f32.mrf.mxu0
        %779 = vmatprep.mubr.bf16.mxu0 0
        %780 = vmatmul.mubr.bf16.gmra.mxu0 %v702
        %v781 = vpop.f32.mrf.mxu0
        %v782 = vadd.f32 %v616, %v781
        %v783 = vpop.f32.mrf.mxu0
        %v784 = vpop.f32.mrf.mxu0
        %v785 = vadd.f32 %v619, %v784
        %v786 = vpop.f32.mrf.mxu0
        %787 = vmatprep.mubr.bf16.mxu0 0
        %788 = vmatmul.mubr.bf16.gmra.mxu0 %v705
        %v789 = vpop.f32.mrf.mxu0
        %v790 = vadd.f32 %v624, %v789
        %v791 = vpop.f32.mrf.mxu0
        %v792 = vpop.f32.mrf.mxu0
        %v793 = vpop.f32.mrf.mxu0
        %794 = vdwg.mxu0
        %s795 = scalar_lea.vmem %s1, 64
        %v796 = vld [vmem:[%s795] sm:$0xf]
        %v797 = vld [vmem:[%s795 + $0x4] sm:$0xf]
        %v798 = vld [vmem:[%s795 + $0x8] sm:$0xf]
        %v799 = vld [vmem:[%s795 + $0xc] sm:$0xf]
        %v800 = vld [vmem:[%s795 + $0x10] sm:$0xf]
        %v801 = vld [vmem:[%s795 + $0x14] sm:$0xf]
        %v802 = vld [vmem:[%s795 + $0x18] sm:$0xf]
        %v803 = vld [vmem:[%s795 + $0x1c] sm:$0xf]
        %v817 = vunpack.c.l.b16 %v417
        %v818 = vunpack.c.l.b16 %v418
        %v819 = vunpack.c.l.b16 %v419
        %v820 = vunpack.c.l.b16 %v420
        %v821 = vunpack.c.l.b16 %v421
        %v822 = vunpack.c.l.b16 %v422
        %v823 = vunpack.c.l.b16 %v423
        %v824 = vunpack.c.l.b16 %v424
        %v825 = vunpack.c.l.b16 %v425
        %v826 = vunpack.c.l.b16 %v426
        %v827 = vunpack.c.l.b16 %v427
        %v828 = vunpack.c.l.b16 %v428
        %v829 = vunpack.c.l.b16 %v429
        %v830 = vpack.c.b16 %v818, %v817
        %v831 = vpack.c.b16 %v820, %v819
        %v832 = vpack.c.b16 %v822, %v821
        %v833 = vpack.c.b16 %v824, %v823
        %v834 = vpack.c.b16 %v826, %v825
        %v835 = vpack.c.b16 %v828, %v827
        %v836 = vpack.c.b16 %v829, %v829
        %v845 = vunpack.c.l.b16 %v796
        %v846 = vunpack.c.l.b16 %v797
        %v847 = vunpack.c.l.b16 %v798
        %v848 = vunpack.c.l.b16 %v799
        %v849 = vunpack.c.l.b16 %v800
        %v850 = vunpack.c.l.b16 %v801
        %v851 = vunpack.c.l.b16 %v802
        %v852 = vunpack.c.l.b16 %v803
        %v853 = vpack.c.b16 %v846, %v845
        %v854 = vpack.c.b16 %v848, %v847
        %v855 = vpack.c.b16 %v850, %v849
        %v856 = vpack.c.b16 %v852, %v851
        %v862 = vsel %vm519, %v830, 0
        %v865 = vsel %vm519, %v831, 0
        %v868 = vsel %vm519, %v832, 0
        %v871 = vsel %vm519, %v833, 0
        %v874 = vsel %vm519, %v834, 0
        %v877 = vsel %vm519, %v835, 0
        %v880 = vsel %vm519, %v836, 0
        %882 = vmatprep.subr.bf16.mxu0 0
        %883 = vmatpush1.bf16.msra.mxu0 0
        %884 = vmatprep.subr.bf16.mxu0 0
        %885 = vmatpush1.bf16.msra.mxu0 0
        %886 = vmatprep.subr.bf16.mxu0 0
        %887 = vmatpush1.bf16.msra.mxu0 0
        %888 = vmatprep.subr.bf16.mxu0 0
        %889 = vmatpush1.bf16.msra.mxu0 0
        %890 = vmatprep.subr.bf16.mxu0 0
        %891 = vmatpush1.bf16.msra.mxu0 %v856
        %892 = vmatprep.subr.bf16.mxu0 0
        %893 = vmatpush1.bf16.msra.mxu0 %v855
        %894 = vmatprep.subr.bf16.mxu0 0
        %895 = vmatpush1.bf16.msra.mxu0 %v854
        %896 = vmatprep.subr.bf16.mxu0 0
        %897 = vmatpush1.bf16.msra.mxu0 %v853
        %898 = vmatprep.subr.bf16.mxu0 0
        %899 = vmatpush2.bf16.msra.mxu0 0
        %900 = vmatprep.subr.bf16.mxu0 0
        %901 = vmatpush2.bf16.msra.mxu0 0
        %902 = vmatprep.subr.bf16.mxu0 0
        %903 = vmatpush2.bf16.msra.mxu0 0
        %904 = vmatprep.subr.bf16.mxu0 0
        %905 = vmatpush2.bf16.msra.mxu0 0
        %906 = vmatprep.subr.bf16.mxu0 0
        %907 = vmatpush2.bf16.msra.mxu0 0
        %908 = vmatprep.subr.bf16.mxu0 0
        %909 = vmatpush2.bf16.msra.mxu0 0
        %910 = vmatprep.subr.bf16.mxu0 0
        %911 = vmatpush2.bf16.msra.mxu0 0
        %912 = vmatprep.subr.bf16.mxu0 0
        %913 = vmatpush2.bf16.msra.mxu0 0
        %914 = vmatprep.mubr.bf16.mxu0 0
        %915 = vmatmul.mubr.bf16.gmra.mxu0 %v862
        %v916 = vpop.f32.mrf.mxu0
        %v917 = vadd.f32 0.0, %v916
        %v918 = vpop.f32.mrf.mxu0
        %v919 = vpop.f32.mrf.mxu0
        %v920 = vadd.f32 0.0, %v919
        %v921 = vpop.f32.mrf.mxu0
        %922 = vmatprep.mubr.bf16.mxu0 0
        %923 = vmatmul.mubr.bf16.gmra.mxu0 %v865
        %v924 = vpop.f32.mrf.mxu0
        %v925 = vadd.f32 0.0, %v924
        %v926 = vpop.f32.mrf.mxu0
        %v927 = vpop.f32.mrf.mxu0
        %v928 = vadd.f32 0.0, %v927
        %v929 = vpop.f32.mrf.mxu0
        %930 = vmatprep.mubr.bf16.mxu0 0
        %931 = vmatmul.mubr.bf16.gmra.mxu0 %v868
        %v932 = vpop.f32.mrf.mxu0
        %v933 = vadd.f32 0.0, %v932
        %v934 = vpop.f32.mrf.mxu0
        %v935 = vpop.f32.mrf.mxu0
        %v936 = vadd.f32 0.0, %v935
        %v937 = vpop.f32.mrf.mxu0
        %938 = vmatprep.mubr.bf16.mxu0 0
        %939 = vmatmul.mubr.bf16.gmra.mxu0 %v871
        %v940 = vpop.f32.mrf.mxu0
        %v941 = vadd.f32 0.0, %v940
        %v942 = vpop.f32.mrf.mxu0
        %v943 = vpop.f32.mrf.mxu0
        %v944 = vadd.f32 0.0, %v943
        %v945 = vpop.f32.mrf.mxu0
        %946 = vmatprep.mubr.bf16.mxu0 0
        %947 = vmatmul.mubr.bf16.gmra.mxu0 %v874
        %v948 = vpop.f32.mrf.mxu0
        %v949 = vadd.f32 0.0, %v948
        %v950 = vpop.f32.mrf.mxu0
        %v951 = vpop.f32.mrf.mxu0
        %v952 = vadd.f32 0.0, %v951
        %v953 = vpop.f32.mrf.mxu0
        %954 = vmatprep.mubr.bf16.mxu0 0
        %955 = vmatmul.mubr.bf16.gmra.mxu0 %v877
        %v956 = vpop.f32.mrf.mxu0
        %v957 = vadd.f32 0.0, %v956
        %v958 = vpop.f32.mrf.mxu0
        %v959 = vpop.f32.mrf.mxu0
        %v960 = vadd.f32 0.0, %v959
        %v961 = vpop.f32.mrf.mxu0
        %962 = vmatprep.mubr.bf16.mxu0 0
        %963 = vmatmul.mubr.bf16.gmra.mxu0 %v880
        %v964 = vpop.f32.mrf.mxu0
        %v965 = vadd.f32 0.0, %v964
        %v966 = vpop.f32.mrf.mxu0
        %v967 = vpop.f32.mrf.mxu0
        %v968 = vpop.f32.mrf.mxu0
        %969 = vdwg.mxu0
        %v970 = vadd.f32 %v742, %v917
        %v971 = vadd.f32 %v745, %v920
        %v972 = vadd.f32 %v750, %v925
        %v973 = vadd.f32 %v753, %v928
        %v974 = vadd.f32 %v758, %v933
        %v975 = vadd.f32 %v761, %v936
        %v976 = vadd.f32 %v766, %v941
        %v977 = vadd.f32 %v769, %v944
        %v978 = vadd.f32 %v774, %v949
        %v979 = vadd.f32 %v777, %v952
        %v980 = vadd.f32 %v782, %v957
        %v981 = vadd.f32 %v785, %v960
        %v982 = vadd.f32 %v790, %v965
        %s983 = scalar_lea.vmem %s1, 96
        %v984 = vld [vmem:[%s983] sm:$0xf]
        %v985 = vld [vmem:[%s983 + $0x4] sm:$0xf]
        %v986 = vld [vmem:[%s983 + $0x8] sm:$0xf]
        %v987 = vld [vmem:[%s983 + $0xc] sm:$0xf]
        %v988 = vld [vmem:[%s983 + $0x10] sm:$0xf]
        %v989 = vld [vmem:[%s983 + $0x14] sm:$0xf]
        %v990 = vld [vmem:[%s983 + $0x18] sm:$0xf]
        %v991 = vld [vmem:[%s983 + $0x1c] sm:$0xf]
        %v1005 = vunpack.c.l.b16 %v432
        %v1006 = vunpack.c.l.b16 %v433
        %v1007 = vunpack.c.l.b16 %v434
        %v1008 = vunpack.c.l.b16 %v435
        %v1009 = vunpack.c.l.b16 %v436
        %v1010 = vunpack.c.l.b16 %v437
        %v1011 = vunpack.c.l.b16 %v438
        %v1012 = vunpack.c.l.b16 %v439
        %v1013 = vunpack.c.l.b16 %v440
        %v1014 = vunpack.c.l.b16 %v441
        %v1015 = vunpack.c.l.b16 %v442
        %v1016 = vunpack.c.l.b16 %v443
        %v1017 = vunpack.c.l.b16 %v444
        %v1018 = vpack.c.b16 %v1006, %v1005
        %v1019 = vpack.c.b16 %v1008, %v1007
        %v1020 = vpack.c.b16 %v1010, %v1009
        %v1021 = vpack.c.b16 %v1012, %v1011
        %v1022 = vpack.c.b16 %v1014, %v1013
        %v1023 = vpack.c.b16 %v1016, %v1015
        %v1024 = vpack.c.b16 %v1017, %v1017
        %v1033 = vunpack.c.l.b16 %v984
        %v1034 = vunpack.c.l.b16 %v985
        %v1035 = vunpack.c.l.b16 %v986
        %v1036 = vunpack.c.l.b16 %v987
        %v1037 = vunpack.c.l.b16 %v988
        %v1038 = vunpack.c.l.b16 %v989
        %v1039 = vunpack.c.l.b16 %v990
        %v1040 = vunpack.c.l.b16 %v991
        %v1041 = vpack.c.b16 %v1034, %v1033
        %v1042 = vpack.c.b16 %v1036, %v1035
        %v1043 = vpack.c.b16 %v1038, %v1037
        %v1044 = vpack.c.b16 %v1040, %v1039
        %v1050 = vsel %vm519, %v1018, 0
        %v1053 = vsel %vm519, %v1019, 0
        %v1056 = vsel %vm519, %v1020, 0
        %v1059 = vsel %vm519, %v1021, 0
        %v1062 = vsel %vm519, %v1022, 0
        %v1065 = vsel %vm519, %v1023, 0
        %v1068 = vsel %vm519, %v1024, 0
        %1070 = vmatprep.subr.bf16.mxu0 0
        %1071 = vmatpush1.bf16.msra.mxu0 0
        %1072 = vmatprep.subr.bf16.mxu0 0
        %1073 = vmatpush1.bf16.msra.mxu0 0
        %1074 = vmatprep.subr.bf16.mxu0 0
        %1075 = vmatpush1.bf16.msra.mxu0 0
        %1076 = vmatprep.subr.bf16.mxu0 0
        %1077 = vmatpush1.bf16.msra.mxu0 0
        %1078 = vmatprep.subr.bf16.mxu0 0
        %1079 = vmatpush1.bf16.msra.mxu0 %v1044
        %1080 = vmatprep.subr.bf16.mxu0 0
        %1081 = vmatpush1.bf16.msra.mxu0 %v1043
        %1082 = vmatprep.subr.bf16.mxu0 0
        %1083 = vmatpush1.bf16.msra.mxu0 %v1042
        %1084 = vmatprep.subr.bf16.mxu0 0
        %1085 = vmatpush1.bf16.msra.mxu0 %v1041
        %1086 = vmatprep.subr.bf16.mxu0 0
        %1087 = vmatpush2.bf16.msra.mxu0 0
        %1088 = vmatprep.subr.bf16.mxu0 0
        %1089 = vmatpush2.bf16.msra.mxu0 0
        %1090 = vmatprep.subr.bf16.mxu0 0
        %1091 = vmatpush2.bf16.msra.mxu0 0
        %1092 = vmatprep.subr.bf16.mxu0 0
        %1093 = vmatpush2.bf16.msra.mxu0 0
        %1094 = vmatprep.subr.bf16.mxu0 0
        %1095 = vmatpush2.bf16.msra.mxu0 0
        %1096 = vmatprep.subr.bf16.mxu0 0
        %1097 = vmatpush2.bf16.msra.mxu0 0
        %1098 = vmatprep.subr.bf16.mxu0 0
        %1099 = vmatpush2.bf16.msra.mxu0 0
        %1100 = vmatprep.subr.bf16.mxu0 0
        %1101 = vmatpush2.bf16.msra.mxu0 0
        %1102 = vmatprep.mubr.bf16.mxu0 0
        %1103 = vmatmul.mubr.bf16.gmra.mxu0 %v1050
        %v1104 = vpop.f32.mrf.mxu0
        %v1105 = vadd.f32 0.0, %v1104
        %v1106 = vpop.f32.mrf.mxu0
        %v1107 = vpop.f32.mrf.mxu0
        %v1108 = vadd.f32 0.0, %v1107
        %v1109 = vpop.f32.mrf.mxu0
        %1110 = vmatprep.mubr.bf16.mxu0 0
        %1111 = vmatmul.mubr.bf16.gmra.mxu0 %v1053
        %v1112 = vpop.f32.mrf.mxu0
        %v1113 = vadd.f32 0.0, %v1112
        %v1114 = vpop.f32.mrf.mxu0
        %v1115 = vpop.f32.mrf.mxu0
        %v1116 = vadd.f32 0.0, %v1115
        %v1117 = vpop.f32.mrf.mxu0
        %1118 = vmatprep.mubr.bf16.mxu0 0
        %1119 = vmatmul.mubr.bf16.gmra.mxu0 %v1056
        %v1120 = vpop.f32.mrf.mxu0
        %v1121 = vadd.f32 0.0, %v1120
        %v1122 = vpop.f32.mrf.mxu0
        %v1123 = vpop.f32.mrf.mxu0
        %v1124 = vadd.f32 0.0, %v1123
        %v1125 = vpop.f32.mrf.mxu0
        %1126 = vmatprep.mubr.bf16.mxu0 0
        %1127 = vmatmul.mubr.bf16.gmra.mxu0 %v1059
        %v1128 = vpop.f32.mrf.mxu0
        %v1129 = vadd.f32 0.0, %v1128
        %v1130 = vpop.f32.mrf.mxu0
        %v1131 = vpop.f32.mrf.mxu0
        %v1132 = vadd.f32 0.0, %v1131
        %v1133 = vpop.f32.mrf.mxu0
        %1134 = vmatprep.mubr.bf16.mxu0 0
        %1135 = vmatmul.mubr.bf16.gmra.mxu0 %v1062
        %v1136 = vpop.f32.mrf.mxu0
        %v1137 = vadd.f32 0.0, %v1136
        %v1138 = vpop.f32.mrf.mxu0
        %v1139 = vpop.f32.mrf.mxu0
        %v1140 = vadd.f32 0.0, %v1139
        %v1141 = vpop.f32.mrf.mxu0
        %1142 = vmatprep.mubr.bf16.mxu0 0
        %1143 = vmatmul.mubr.bf16.gmra.mxu0 %v1065
        %v1144 = vpop.f32.mrf.mxu0
        %v1145 = vadd.f32 0.0, %v1144
        %v1146 = vpop.f32.mrf.mxu0
        %v1147 = vpop.f32.mrf.mxu0
        %v1148 = vadd.f32 0.0, %v1147
        %v1149 = vpop.f32.mrf.mxu0
        %1150 = vmatprep.mubr.bf16.mxu0 0
        %1151 = vmatmul.mubr.bf16.gmra.mxu0 %v1068
        %v1152 = vpop.f32.mrf.mxu0
        %v1153 = vadd.f32 0.0, %v1152
        %v1154 = vpop.f32.mrf.mxu0
        %v1155 = vpop.f32.mrf.mxu0
        %v1156 = vpop.f32.mrf.mxu0
        %1157 = vdwg.mxu0
        %v1158 = vadd.f32 %v970, %v1105
        %v1159 = vadd.f32 %v971, %v1108
        %v1160 = vadd.f32 %v972, %v1113
        %v1161 = vadd.f32 %v973, %v1116
        %v1162 = vadd.f32 %v974, %v1121
        %v1163 = vadd.f32 %v975, %v1124
        %v1164 = vadd.f32 %v976, %v1129
        %v1165 = vadd.f32 %v977, %v1132
        %v1166 = vadd.f32 %v978, %v1137
        %v1167 = vadd.f32 %v979, %v1140
        %v1168 = vadd.f32 %v980, %v1145
        %v1169 = vadd.f32 %v981, %v1148
        %v1170 = vadd.f32 %v982, %v1153
        %v1171 = vld [vmem:[%s2] sm:$0x1]
        %v1173 = vlaneseq
        %v1174 = vshrl.u32 %v1173, 7
        %v1175 = vsub.s32 0, %v1174
        %v1176 = vrot.slane %v1171, %v1175
        %v1178 = vadd.f32 %v1158, %v1176
        %v1179 = vadd.f32 %v1159, %v1176
        %v1180 = vadd.f32 %v1160, %v1176
        %v1181 = vadd.f32 %v1161, %v1176
        %v1182 = vadd.f32 %v1162, %v1176
        %v1183 = vadd.f32 %v1163, %v1176
        %v1184 = vadd.f32 %v1164, %v1176
        %v1185 = vadd.f32 %v1165, %v1176
        %v1186 = vadd.f32 %v1166, %v1176
        %v1187 = vadd.f32 %v1167, %v1176
        %v1188 = vadd.f32 %v1168, %v1176
        %v1189 = vadd.f32 %v1169, %v1176
        %v1190 = vadd.f32 %v1170, %v1176
        %v1191 = vmax.f32 %v1178, 0.0
        %v1192 = vmax.f32 %v1179, 0.0
        %v1193 = vmax.f32 %v1180, 0.0
        %v1194 = vmax.f32 %v1181, 0.0
        %v1195 = vmax.f32 %v1182, 0.0
        %v1196 = vmax.f32 %v1183, 0.0
        %v1197 = vmax.f32 %v1184, 0.0
        %v1198 = vmax.f32 %v1185, 0.0
        %v1199 = vmax.f32 %v1186, 0.0
        %v1200 = vmax.f32 %v1187, 0.0
        %v1201 = vmax.f32 %v1188, 0.0
        %v1202 = vmax.f32 %v1189, 0.0
        %v1203 = vmax.f32 %v1190, 0.0
        %v1205 = vunpack.c.l.b16 %v398
        %v1206 = vpack.c.b16 %v1205, %v654
        %vm1207 = vsmask.f32 7424
        %v1208 = vshrl.u32 %v655, 16
        %v1210 = vshll.u32 %v655, 16
        %v1212 = vrot.slane %v1210, 1
        %v1213 = vor.u32 %v1208, %v1212
        %v1214 = vshll.u32 %v656, 16
        %v1216 = vrot.slane %v1214, 1
        %v1217 = vsel %vm1207, %v1213, %v1216
        %v1218 = vshrl.u32 %v656, 16
        %v1220 = vor.u32 %v1218, %v1216
        %v1221 = vshll.u32 %v657, 16
        %v1223 = vrot.slane %v1221, 1
        %v1224 = vsel %vm1207, %v1220, %v1223
        %v1225 = vshrl.u32 %v657, 16
        %v1227 = vor.u32 %v1225, %v1223
        %v1228 = vshll.u32 %v658, 16
        %v1230 = vrot.slane %v1228, 1
        %v1231 = vsel %vm1207, %v1227, %v1230
        %v1232 = vshrl.u32 %v658, 16
        %v1234 = vor.u32 %v1232, %v1230
        %v1235 = vshll.u32 %v659, 16
        %v1237 = vrot.slane %v1235, 1
        %v1238 = vsel %vm1207, %v1234, %v1237
        %v1239 = vshrl.u32 %v659, 16
        %v1241 = vor.u32 %v1239, %v1237
        %v1242 = vshll.u32 %v660, 16
        %v1244 = vrot.slane %v1242, 1
        %v1245 = vsel %vm1207, %v1241, %v1244
        %v1246 = vshrl.u32 %v660, 16
        %v1248 = vor.u32 %v1246, %v1244
        %v1250 = vshll.u32 %v1206, 16
        %v1252 = vrot.slane %v1250, 1
        %v1253 = vsel %vm1207, %v1248, %v1252
        %v1254 = vshrl.u32 %v1206, 16
        %v1256 = vor.u32 %v1254, %v1252
        %v1258 = vsel %vm519, %v1217, 0
        %v1261 = vsel %vm519, %v1224, 0
        %v1264 = vsel %vm519, %v1231, 0
        %v1267 = vsel %vm519, %v1238, 0
        %v1270 = vsel %vm519, %v1245, 0
        %v1273 = vsel %vm519, %v1253, 0
        %v1276 = vsel %vm519, %v1256, 0
        %1278 = vmatprep.subr.bf16.mxu0 0
        %1279 = vmatpush1.bf16.msra.mxu0 0
        %1280 = vmatprep.subr.bf16.mxu0 0
        %1281 = vmatpush1.bf16.msra.mxu0 0
        %1282 = vmatprep.subr.bf16.mxu0 0
        %1283 = vmatpush1.bf16.msra.mxu0 0
        %1284 = vmatprep.subr.bf16.mxu0 0
        %1285 = vmatpush1.bf16.msra.mxu0 0
        %1286 = vmatprep.subr.bf16.mxu0 0
        %1287 = vmatpush1.bf16.msra.mxu0 %v514
        %1288 = vmatprep.subr.bf16.mxu0 0
        %1289 = vmatpush1.bf16.msra.mxu0 %v513
        %1290 = vmatprep.subr.bf16.mxu0 0
        %1291 = vmatpush1.bf16.msra.mxu0 %v512
        %1292 = vmatprep.subr.bf16.mxu0 0
        %1293 = vmatpush1.bf16.msra.mxu0 %v511
        %1294 = vmatprep.subr.bf16.mxu0 0
        %1295 = vmatpush2.bf16.msra.mxu0 0
        %1296 = vmatprep.subr.bf16.mxu0 0
        %1297 = vmatpush2.bf16.msra.mxu0 0
        %1298 = vmatprep.subr.bf16.mxu0 0
        %1299 = vmatpush2.bf16.msra.mxu0 0
        %1300 = vmatprep.subr.bf16.mxu0 0
        %1301 = vmatpush2.bf16.msra.mxu0 0
        %1302 = vmatprep.subr.bf16.mxu0 0
        %1303 = vmatpush2.bf16.msra.mxu0 0
        %1304 = vmatprep.subr.bf16.mxu0 0
        %1305 = vmatpush2.bf16.msra.mxu0 0
        %1306 = vmatprep.subr.bf16.mxu0 0
        %1307 = vmatpush2.bf16.msra.mxu0 0
        %1308 = vmatprep.subr.bf16.mxu0 0
        %1309 = vmatpush2.bf16.msra.mxu0 0
        %1310 = vmatprep.mubr.bf16.mxu0 0
        %1311 = vmatmul.mubr.bf16.gmra.mxu0 %v1258
        %v1312 = vpop.f32.mrf.mxu0
        %v1313 = vadd.f32 0.0, %v1312
        %v1314 = vpop.f32.mrf.mxu0
        %v1315 = vpop.f32.mrf.mxu0
        %v1316 = vadd.f32 0.0, %v1315
        %v1317 = vpop.f32.mrf.mxu0
        %1318 = vmatprep.mubr.bf16.mxu0 0
        %1319 = vmatmul.mubr.bf16.gmra.mxu0 %v1261
        %v1320 = vpop.f32.mrf.mxu0
        %v1321 = vadd.f32 0.0, %v1320
        %v1322 = vpop.f32.mrf.mxu0
        %v1323 = vpop.f32.mrf.mxu0
        %v1324 = vadd.f32 0.0, %v1323
        %v1325 = vpop.f32.mrf.mxu0
        %1326 = vmatprep.mubr.bf16.mxu0 0
        %1327 = vmatmul.mubr.bf16.gmra.mxu0 %v1264
        %v1328 = vpop.f32.mrf.mxu0
        %v1329 = vadd.f32 0.0, %v1328
        %v1330 = vpop.f32.mrf.mxu0
        %v1331 = vpop.f32.mrf.mxu0
        %v1332 = vadd.f32 0.0, %v1331
        %v1333 = vpop.f32.mrf.mxu0
        %1334 = vmatprep.mubr.bf16.mxu0 0
        %1335 = vmatmul.mubr.bf16.gmra.mxu0 %v1267
        %v1336 = vpop.f32.mrf.mxu0
        %v1337 = vadd.f32 0.0, %v1336
        %v1338 = vpop.f32.mrf.mxu0
        %v1339 = vpop.f32.mrf.mxu0
        %v1340 = vadd.f32 0.0, %v1339
        %v1341 = vpop.f32.mrf.mxu0
        %1342 = vmatprep.mubr.bf16.mxu0 0
        %1343 = vmatmul.mubr.bf16.gmra.mxu0 %v1270
        %v1344 = vpop.f32.mrf.mxu0
        %v1345 = vadd.f32 0.0, %v1344
        %v1346 = vpop.f32.mrf.mxu0
        %v1347 = vpop.f32.mrf.mxu0
        %v1348 = vadd.f32 0.0, %v1347
        %v1349 = vpop.f32.mrf.mxu0
        %1350 = vmatprep.mubr.bf16.mxu0 0
        %1351 = vmatmul.mubr.bf16.gmra.mxu0 %v1273
        %v1352 = vpop.f32.mrf.mxu0
        %v1353 = vadd.f32 0.0, %v1352
        %v1354 = vpop.f32.mrf.mxu0
        %v1355 = vpop.f32.mrf.mxu0
        %v1356 = vadd.f32 0.0, %v1355
        %v1357 = vpop.f32.mrf.mxu0
        %1358 = vmatprep.mubr.bf16.mxu0 0
        %1359 = vmatmul.mubr.bf16.gmra.mxu0 %v1276
        %v1360 = vpop.f32.mrf.mxu0
        %v1361 = vadd.f32 0.0, %v1360
        %v1362 = vpop.f32.mrf.mxu0
        %v1363 = vpop.f32.mrf.mxu0
        %v1364 = vpop.f32.mrf.mxu0
        %1365 = vdwg.mxu0
        %1366 = vmatprep.subr.bf16.mxu0 0
        %1367 = vmatpush1.bf16.msra.mxu0 0
        %1368 = vmatprep.subr.bf16.mxu0 0
        %1369 = vmatpush1.bf16.msra.mxu0 0
        %1370 = vmatprep.subr.bf16.mxu0 0
        %1371 = vmatpush1.bf16.msra.mxu0 0
        %1372 = vmatprep.subr.bf16.mxu0 0
        %1373 = vmatpush1.bf16.msra.mxu0 0
        %1374 = vmatprep.subr.bf16.mxu0 0
        %1375 = vmatpush1.bf16.msra.mxu0 %v681
        %1376 = vmatprep.subr.bf16.mxu0 0
        %1377 = vmatpush1.bf16.msra.mxu0 %v680
        %1378 = vmatprep.subr.bf16.mxu0 0
        %1379 = vmatpush1.bf16.msra.mxu0 %v679
        %1380 = vmatprep.subr.bf16.mxu0 0
        %1381 = vmatpush1.bf16.msra.mxu0 %v678
        %1382 = vmatprep.subr.bf16.mxu0 0
        %1383 = vmatpush2.bf16.msra.mxu0 0
        %1384 = vmatprep.subr.bf16.mxu0 0
        %1385 = vmatpush2.bf16.msra.mxu0 0
        %1386 = vmatprep.subr.bf16.mxu0 0
        %1387 = vmatpush2.bf16.msra.mxu0 0
        %1388 = vmatprep.subr.bf16.mxu0 0
        %1389 = vmatpush2.bf16.msra.mxu0 0
        %1390 = vmatprep.subr.bf16.mxu0 0
        %1391 = vmatpush2.bf16.msra.mxu0 0
        %1392 = vmatprep.subr.bf16.mxu0 0
        %1393 = vmatpush2.bf16.msra.mxu0 0
        %1394 = vmatprep.subr.bf16.mxu0 0
        %1395 = vmatpush2.bf16.msra.mxu0 0
        %1396 = vmatprep.subr.bf16.mxu0 0
        %1397 = vmatpush2.bf16.msra.mxu0 0
        %1398 = vmatprep.mubr.bf16.mxu0 0
        %1399 = vmatmul.mubr.bf16.gmra.mxu0 %v521
        %v1400 = vpop.f32.mrf.mxu0
        %v1401 = vadd.f32 %v1313, %v1400
        %v1402 = vpop.f32.mrf.mxu0
        %v1403 = vpop.f32.mrf.mxu0
        %v1404 = vadd.f32 %v1316, %v1403
        %v1405 = vpop.f32.mrf.mxu0
        %1406 = vmatprep.mubr.bf16.mxu0 0
        %1407 = vmatmul.mubr.bf16.gmra.mxu0 %v524
        %v1408 = vpop.f32.mrf.mxu0
        %v1409 = vadd.f32 %v1321, %v1408
        %v1410 = vpop.f32.mrf.mxu0
        %v1411 = vpop.f32.mrf.mxu0
        %v1412 = vadd.f32 %v1324, %v1411
        %v1413 = vpop.f32.mrf.mxu0
        %1414 = vmatprep.mubr.bf16.mxu0 0
        %1415 = vmatmul.mubr.bf16.gmra.mxu0 %v527
        %v1416 = vpop.f32.mrf.mxu0
        %v1417 = vadd.f32 %v1329, %v1416
        %v1418 = vpop.f32.mrf.mxu0
        %v1419 = vpop.f32.mrf.mxu0
        %v1420 = vadd.f32 %v1332, %v1419
        %v1421 = vpop.f32.mrf.mxu0
        %1422 = vmatprep.mubr.bf16.mxu0 0
        %1423 = vmatmul.mubr.bf16.gmra.mxu0 %v530
        %v1424 = vpop.f32.mrf.mxu0
        %v1425 = vadd.f32 %v1337, %v1424
        %v1426 = vpop.f32.mrf.mxu0
        %v1427 = vpop.f32.mrf.mxu0
        %v1428 = vadd.f32 %v1340, %v1427
        %v1429 = vpop.f32.mrf.mxu0
        %1430 = vmatprep.mubr.bf16.mxu0 0
        %1431 = vmatmul.mubr.bf16.gmra.mxu0 %v533
        %v1432 = vpop.f32.mrf.mxu0
        %v1433 = vadd.f32 %v1345, %v1432
        %v1434 = vpop.f32.mrf.mxu0
        %v1435 = vpop.f32.mrf.mxu0
        %v1436 = vadd.f32 %v1348, %v1435
        %v1437 = vpop.f32.mrf.mxu0
        %1438 = vmatprep.mubr.bf16.mxu0 0
        %1439 = vmatmul.mubr.bf16.gmra.mxu0 %v536
        %v1440 = vpop.f32.mrf.mxu0
        %v1441 = vadd.f32 %v1353, %v1440
        %v1442 = vpop.f32.mrf.mxu0
        %v1443 = vpop.f32.mrf.mxu0
        %v1444 = vadd.f32 %v1356, %v1443
        %v1445 = vpop.f32.mrf.mxu0
        %1446 = vmatprep.mubr.bf16.mxu0 0
        %1447 = vmatmul.mubr.bf16.gmra.mxu0 %v539
        %v1448 = vpop.f32.mrf.mxu0
        %v1449 = vadd.f32 %v1361, %v1448
        %v1450 = vpop.f32.mrf.mxu0
        %v1451 = vpop.f32.mrf.mxu0
        %v1452 = vpop.f32.mrf.mxu0
        %1453 = vdwg.mxu0
        %1454 = vmatprep.subr.bf16.mxu0 0
        %1455 = vmatpush1.bf16.msra.mxu0 0
        %1456 = vmatprep.subr.bf16.mxu0 0
        %1457 = vmatpush1.bf16.msra.mxu0 0
        %1458 = vmatprep.subr.bf16.mxu0 0
        %1459 = vmatpush1.bf16.msra.mxu0 0
        %1460 = vmatprep.subr.bf16.mxu0 0
        %1461 = vmatpush1.bf16.msra.mxu0 0
        %1462 = vmatprep.subr.bf16.mxu0 0
        %1463 = vmatpush1.bf16.msra.mxu0 %v856
        %1464 = vmatprep.subr.bf16.mxu0 0
        %1465 = vmatpush1.bf16.msra.mxu0 %v855
        %1466 = vmatprep.subr.bf16.mxu0 0
        %1467 = vmatpush1.bf16.msra.mxu0 %v854
        %1468 = vmatprep.subr.bf16.mxu0 0
        %1469 = vmatpush1.bf16.msra.mxu0 %v853
        %1470 = vmatprep.subr.bf16.mxu0 0
        %1471 = vmatpush2.bf16.msra.mxu0 0
        %1472 = vmatprep.subr.bf16.mxu0 0
        %1473 = vmatpush2.bf16.msra.mxu0 0
        %1474 = vmatprep.subr.bf16.mxu0 0
        %1475 = vmatpush2.bf16.msra.mxu0 0
        %1476 = vmatprep.subr.bf16.mxu0 0
        %1477 = vmatpush2.bf16.msra.mxu0 0
        %1478 = vmatprep.subr.bf16.mxu0 0
        %1479 = vmatpush2.bf16.msra.mxu0 0
        %1480 = vmatprep.subr.bf16.mxu0 0
        %1481 = vmatpush2.bf16.msra.mxu0 0
        %1482 = vmatprep.subr.bf16.mxu0 0
        %1483 = vmatpush2.bf16.msra.mxu0 0
        %1484 = vmatprep.subr.bf16.mxu0 0
        %1485 = vmatpush2.bf16.msra.mxu0 0
        %1486 = vmatprep.mubr.bf16.mxu0 0
        %1487 = vmatmul.mubr.bf16.gmra.mxu0 %v1050
        %v1488 = vpop.f32.mrf.mxu0
        %v1489 = vadd.f32 0.0, %v1488
        %v1490 = vpop.f32.mrf.mxu0
        %v1491 = vpop.f32.mrf.mxu0
        %v1492 = vadd.f32 0.0, %v1491
        %v1493 = vpop.f32.mrf.mxu0
        %1494 = vmatprep.mubr.bf16.mxu0 0
        %1495 = vmatmul.mubr.bf16.gmra.mxu0 %v1053
        %v1496 = vpop.f32.mrf.mxu0
        %v1497 = vadd.f32 0.0, %v1496
        %v1498 = vpop.f32.mrf.mxu0
        %v1499 = vpop.f32.mrf.mxu0
        %v1500 = vadd.f32 0.0, %v1499
        %v1501 = vpop.f32.mrf.mxu0
        %1502 = vmatprep.mubr.bf16.mxu0 0
        %1503 = vmatmul.mubr.bf16.gmra.mxu0 %v1056
        %v1504 = vpop.f32.mrf.mxu0
        %v1505 = vadd.f32 0.0, %v1504
        %v1506 = vpop.f32.mrf.mxu0
        %v1507 = vpop.f32.mrf.mxu0
        %v1508 = vadd.f32 0.0, %v1507
        %v1509 = vpop.f32.mrf.mxu0
        %1510 = vmatprep.mubr.bf16.mxu0 0
        %1511 = vmatmul.mubr.bf16.gmra.mxu0 %v1059
        %v1512 = vpop.f32.mrf.mxu0
        %v1513 = vadd.f32 0.0, %v1512
        %v1514 = vpop.f32.mrf.mxu0
        %v1515 = vpop.f32.mrf.mxu0
        %v1516 = vadd.f32 0.0, %v1515
        %v1517 = vpop.f32.mrf.mxu0
        %1518 = vmatprep.mubr.bf16.mxu0 0
        %1519 = vmatmul.mubr.bf16.gmra.mxu0 %v1062
        %v1520 = vpop.f32.mrf.mxu0
        %v1521 = vadd.f32 0.0, %v1520
        %v1522 = vpop.f32.mrf.mxu0
        %v1523 = vpop.f32.mrf.mxu0
        %v1524 = vadd.f32 0.0, %v1523
        %v1525 = vpop.f32.mrf.mxu0
        %1526 = vmatprep.mubr.bf16.mxu0 0
        %1527 = vmatmul.mubr.bf16.gmra.mxu0 %v1065
        %v1528 = vpop.f32.mrf.mxu0
        %v1529 = vadd.f32 0.0, %v1528
        %v1530 = vpop.f32.mrf.mxu0
        %v1531 = vpop.f32.mrf.mxu0
        %v1532 = vadd.f32 0.0, %v1531
        %v1533 = vpop.f32.mrf.mxu0
        %1534 = vmatprep.mubr.bf16.mxu0 0
        %1535 = vmatmul.mubr.bf16.gmra.mxu0 %v1068
        %v1536 = vpop.f32.mrf.mxu0
        %v1537 = vadd.f32 0.0, %v1536
        %v1538 = vpop.f32.mrf.mxu0
        %v1539 = vpop.f32.mrf.mxu0
        %v1540 = vpop.f32.mrf.mxu0
        %1541 = vdwg.mxu0
        %v1542 = vadd.f32 %v1401, %v1489
        %v1543 = vadd.f32 %v1404, %v1492
        %v1544 = vadd.f32 %v1409, %v1497
        %v1545 = vadd.f32 %v1412, %v1500
        %v1546 = vadd.f32 %v1417, %v1505
        %v1547 = vadd.f32 %v1420, %v1508
        %v1548 = vadd.f32 %v1425, %v1513
        %v1549 = vadd.f32 %v1428, %v1516
        %v1550 = vadd.f32 %v1433, %v1521
        %v1551 = vadd.f32 %v1436, %v1524
        %v1552 = vadd.f32 %v1441, %v1529
        %v1553 = vadd.f32 %v1444, %v1532
        %v1554 = vadd.f32 %v1449, %v1537
        %v1556 = vunpack.c.l.b16 %v430
        %v1557 = vpack.c.b16 %v1556, %v829
        %v1558 = vshrl.u32 %v830, 16
        %v1560 = vshll.u32 %v830, 16
        %v1562 = vrot.slane %v1560, 1
        %v1563 = vor.u32 %v1558, %v1562
        %v1564 = vshll.u32 %v831, 16
        %v1566 = vrot.slane %v1564, 1
        %v1567 = vsel %vm1207, %v1563, %v1566
        %v1568 = vshrl.u32 %v831, 16
        %v1570 = vor.u32 %v1568, %v1566
        %v1571 = vshll.u32 %v832, 16
        %v1573 = vrot.slane %v1571, 1
        %v1574 = vsel %vm1207, %v1570, %v1573
        %v1575 = vshrl.u32 %v832, 16
        %v1577 = vor.u32 %v1575, %v1573
        %v1578 = vshll.u32 %v833, 16
        %v1580 = vrot.slane %v1578, 1
        %v1581 = vsel %vm1207, %v1577, %v1580
        %v1582 = vshrl.u32 %v833, 16
        %v1584 = vor.u32 %v1582, %v1580
        %v1585 = vshll.u32 %v834, 16
        %v1587 = vrot.slane %v1585, 1
        %v1588 = vsel %vm1207, %v1584, %v1587
        %v1589 = vshrl.u32 %v834, 16
        %v1591 = vor.u32 %v1589, %v1587
        %v1592 = vshll.u32 %v835, 16
        %v1594 = vrot.slane %v1592, 1
        %v1595 = vsel %vm1207, %v1591, %v1594
        %v1596 = vshrl.u32 %v835, 16
        %v1598 = vor.u32 %v1596, %v1594
        %v1600 = vshll.u32 %v1557, 16
        %v1602 = vrot.slane %v1600, 1
        %v1603 = vsel %vm1207, %v1598, %v1602
        %v1604 = vshrl.u32 %v1557, 16
        %v1606 = vor.u32 %v1604, %v1602
        %v1608 = vsel %vm519, %v1567, 0
        %v1611 = vsel %vm519, %v1574, 0
        %v1614 = vsel %vm519, %v1581, 0
        %v1617 = vsel %vm519, %v1588, 0
        %v1620 = vsel %vm519, %v1595, 0
        %v1623 = vsel %vm519, %v1603, 0
        %v1626 = vsel %vm519, %v1606, 0
        %1628 = vmatprep.subr.bf16.mxu0 0
        %1629 = vmatpush1.bf16.msra.mxu0 0
        %1630 = vmatprep.subr.bf16.mxu0 0
        %1631 = vmatpush1.bf16.msra.mxu0 0
        %1632 = vmatprep.subr.bf16.mxu0 0
        %1633 = vmatpush1.bf16.msra.mxu0 0
        %1634 = vmatprep.subr.bf16.mxu0 0
        %1635 = vmatpush1.bf16.msra.mxu0 0
        %1636 = vmatprep.subr.bf16.mxu0 0
        %1637 = vmatpush1.bf16.msra.mxu0 %v1044
        %1638 = vmatprep.subr.bf16.mxu0 0
        %1639 = vmatpush1.bf16.msra.mxu0 %v1043
        %1640 = vmatprep.subr.bf16.mxu0 0
        %1641 = vmatpush1.bf16.msra.mxu0 %v1042
        %1642 = vmatprep.subr.bf16.mxu0 0
        %1643 = vmatpush1.bf16.msra.mxu0 %v1041
        %1644 = vmatprep.subr.bf16.mxu0 0
        %1645 = vmatpush2.bf16.msra.mxu0 0
        %1646 = vmatprep.subr.bf16.mxu0 0
        %1647 = vmatpush2.bf16.msra.mxu0 0
        %1648 = vmatprep.subr.bf16.mxu0 0
        %1649 = vmatpush2.bf16.msra.mxu0 0
        %1650 = vmatprep.subr.bf16.mxu0 0
        %1651 = vmatpush2.bf16.msra.mxu0 0
        %1652 = vmatprep.subr.bf16.mxu0 0
        %1653 = vmatpush2.bf16.msra.mxu0 0
        %1654 = vmatprep.subr.bf16.mxu0 0
        %1655 = vmatpush2.bf16.msra.mxu0 0
        %1656 = vmatprep.subr.bf16.mxu0 0
        %1657 = vmatpush2.bf16.msra.mxu0 0
        %1658 = vmatprep.subr.bf16.mxu0 0
        %1659 = vmatpush2.bf16.msra.mxu0 0
        %1660 = vmatprep.mubr.bf16.mxu0 0
        %1661 = vmatmul.mubr.bf16.gmra.mxu0 %v1608
        %v1662 = vpop.f32.mrf.mxu0
        %v1663 = vadd.f32 0.0, %v1662
        %v1664 = vpop.f32.mrf.mxu0
        %v1665 = vpop.f32.mrf.mxu0
        %v1666 = vadd.f32 0.0, %v1665
        %v1667 = vpop.f32.mrf.mxu0
        %1668 = vmatprep.mubr.bf16.mxu0 0
        %1669 = vmatmul.mubr.bf16.gmra.mxu0 %v1611
        %v1670 = vpop.f32.mrf.mxu0
        %v1671 = vadd.f32 0.0, %v1670
        %v1672 = vpop.f32.mrf.mxu0
        %v1673 = vpop.f32.mrf.mxu0
        %v1674 = vadd.f32 0.0, %v1673
        %v1675 = vpop.f32.mrf.mxu0
        %1676 = vmatprep.mubr.bf16.mxu0 0
        %1677 = vmatmul.mubr.bf16.gmra.mxu0 %v1614
        %v1678 = vpop.f32.mrf.mxu0
        %v1679 = vadd.f32 0.0, %v1678
        %v1680 = vpop.f32.mrf.mxu0
        %v1681 = vpop.f32.mrf.mxu0
        %v1682 = vadd.f32 0.0, %v1681
        %v1683 = vpop.f32.mrf.mxu0
        %1684 = vmatprep.mubr.bf16.mxu0 0
        %1685 = vmatmul.mubr.bf16.gmra.mxu0 %v1617
        %v1686 = vpop.f32.mrf.mxu0
        %v1687 = vadd.f32 0.0, %v1686
        %v1688 = vpop.f32.mrf.mxu0
        %v1689 = vpop.f32.mrf.mxu0
        %v1690 = vadd.f32 0.0, %v1689
        %v1691 = vpop.f32.mrf.mxu0
        %1692 = vmatprep.mubr.bf16.mxu0 0
        %1693 = vmatmul.mubr.bf16.gmra.mxu0 %v1620
        %v1694 = vpop.f32.mrf.mxu0
        %v1695 = vadd.f32 0.0, %v1694
        %v1696 = vpop.f32.mrf.mxu0
        %v1697 = vpop.f32.mrf.mxu0
        %v1698 = vadd.f32 0.0, %v1697
        %v1699 = vpop.f32.mrf.mxu0
        %1700 = vmatprep.mubr.bf16.mxu0 0
        %1701 = vmatmul.mubr.bf16.gmra.mxu0 %v1623
        %v1702 = vpop.f32.mrf.mxu0
        %v1703 = vadd.f32 0.0, %v1702
        %v1704 = vpop.f32.mrf.mxu0
        %v1705 = vpop.f32.mrf.mxu0
        %v1706 = vadd.f32 0.0, %v1705
        %v1707 = vpop.f32.mrf.mxu0
        %1708 = vmatprep.mubr.bf16.mxu0 0
        %1709 = vmatmul.mubr.bf16.gmra.mxu0 %v1626
        %v1710 = vpop.f32.mrf.mxu0
        %v1711 = vadd.f32 0.0, %v1710
        %v1712 = vpop.f32.mrf.mxu0
        %v1713 = vpop.f32.mrf.mxu0
        %v1714 = vpop.f32.mrf.mxu0
        %1715 = vdwg.mxu0
        %v1716 = vadd.f32 %v1542, %v1663
        %v1717 = vadd.f32 %v1543, %v1666
        %v1718 = vadd.f32 %v1544, %v1671
        %v1719 = vadd.f32 %v1545, %v1674
        %v1720 = vadd.f32 %v1546, %v1679
        %v1721 = vadd.f32 %v1547, %v1682
        %v1722 = vadd.f32 %v1548, %v1687
        %v1723 = vadd.f32 %v1549, %v1690
        %v1724 = vadd.f32 %v1550, %v1695
        %v1725 = vadd.f32 %v1551, %v1698
        %v1726 = vadd.f32 %v1552, %v1703
        %v1727 = vadd.f32 %v1553, %v1706
        %v1728 = vadd.f32 %v1554, %v1711
        %v1729 = vadd.f32 %v1716, %v1176
        %v1730 = vadd.f32 %v1717, %v1176
        %v1731 = vadd.f32 %v1718, %v1176
        %v1732 = vadd.f32 %v1719, %v1176
        %v1733 = vadd.f32 %v1720, %v1176
        %v1734 = vadd.f32 %v1721, %v1176
        %v1735 = vadd.f32 %v1722, %v1176
        %v1736 = vadd.f32 %v1723, %v1176
        %v1737 = vadd.f32 %v1724, %v1176
        %v1738 = vadd.f32 %v1725, %v1176
        %v1739 = vadd.f32 %v1726, %v1176
        %v1740 = vadd.f32 %v1727, %v1176
        %v1741 = vadd.f32 %v1728, %v1176
        %v1742 = vmax.f32 %v1729, 0.0
        %v1743 = vmax.f32 %v1730, 0.0
        %v1744 = vmax.f32 %v1731, 0.0
        %v1745 = vmax.f32 %v1732, 0.0
        %v1746 = vmax.f32 %v1733, 0.0
        %v1747 = vmax.f32 %v1734, 0.0
        %v1748 = vmax.f32 %v1735, 0.0
        %v1749 = vmax.f32 %v1736, 0.0
        %v1750 = vmax.f32 %v1737, 0.0
        %v1751 = vmax.f32 %v1738, 0.0
        %v1752 = vmax.f32 %v1739, 0.0
        %v1753 = vmax.f32 %v1740, 0.0
        %v1754 = vmax.f32 %v1741, 0.0
        %1755 = vmatprep.subr.bf16.mxu0 0
        %1756 = vmatpush1.bf16.msra.mxu0 0
        %1757 = vmatprep.subr.bf16.mxu0 0
        %1758 = vmatpush1.bf16.msra.mxu0 0
        %1759 = vmatprep.subr.bf16.mxu0 0
        %1760 = vmatpush1.bf16.msra.mxu0 0
        %1761 = vmatprep.subr.bf16.mxu0 0
        %1762 = vmatpush1.bf16.msra.mxu0 0
        %1763 = vmatprep.subr.bf16.mxu0 0
        %1764 = vmatpush1.bf16.msra.mxu0 %v514
        %1765 = vmatprep.subr.bf16.mxu0 0
        %1766 = vmatpush1.bf16.msra.mxu0 %v513
        %1767 = vmatprep.subr.bf16.mxu0 0
        %1768 = vmatpush1.bf16.msra.mxu0 %v512
        %1769 = vmatprep.subr.bf16.mxu0 0
        %1770 = vmatpush1.bf16.msra.mxu0 %v511
        %1771 = vmatprep.subr.bf16.mxu0 0
        %1772 = vmatpush2.bf16.msra.mxu0 0
        %1773 = vmatprep.subr.bf16.mxu0 0
        %1774 = vmatpush2.bf16.msra.mxu0 0
        %1775 = vmatprep.subr.bf16.mxu0 0
        %1776 = vmatpush2.bf16.msra.mxu0 0
        %1777 = vmatprep.subr.bf16.mxu0 0
        %1778 = vmatpush2.bf16.msra.mxu0 0
        %1779 = vmatprep.subr.bf16.mxu0 0
        %1780 = vmatpush2.bf16.msra.mxu0 0
        %1781 = vmatprep.subr.bf16.mxu0 0
        %1782 = vmatpush2.bf16.msra.mxu0 0
        %1783 = vmatprep.subr.bf16.mxu0 0
        %1784 = vmatpush2.bf16.msra.mxu0 0
        %1785 = vmatprep.subr.bf16.mxu0 0
        %1786 = vmatpush2.bf16.msra.mxu0 0
        %1787 = vmatprep.mubr.bf16.mxu0 0
        %1788 = vmatmul.mubr.bf16.gmra.mxu0 %v1050
        %v1789 = vpop.f32.mrf.mxu0
        %v1790 = vadd.f32 0.0, %v1789
        %v1791 = vpop.f32.mrf.mxu0
        %v1792 = vpop.f32.mrf.mxu0
        %v1793 = vadd.f32 0.0, %v1792
        %v1794 = vpop.f32.mrf.mxu0
        %1795 = vmatprep.mubr.bf16.mxu0 0
        %1796 = vmatmul.mubr.bf16.gmra.mxu0 %v1053
        %v1797 = vpop.f32.mrf.mxu0
        %v1798 = vadd.f32 0.0, %v1797
        %v1799 = vpop.f32.mrf.mxu0
        %v1800 = vpop.f32.mrf.mxu0
        %v1801 = vadd.f32 0.0, %v1800
        %v1802 = vpop.f32.mrf.mxu0
        %1803 = vmatprep.mubr.bf16.mxu0 0
        %1804 = vmatmul.mubr.bf16.gmra.mxu0 %v1056
        %v1805 = vpop.f32.mrf.mxu0
        %v1806 = vadd.f32 0.0, %v1805
        %v1807 = vpop.f32.mrf.mxu0
        %v1808 = vpop.f32.mrf.mxu0
        %v1809 = vadd.f32 0.0, %v1808
        %v1810 = vpop.f32.mrf.mxu0
        %1811 = vmatprep.mubr.bf16.mxu0 0
        %1812 = vmatmul.mubr.bf16.gmra.mxu0 %v1059
        %v1813 = vpop.f32.mrf.mxu0
        %v1814 = vadd.f32 0.0, %v1813
        %v1815 = vpop.f32.mrf.mxu0
        %v1816 = vpop.f32.mrf.mxu0
        %v1817 = vadd.f32 0.0, %v1816
        %v1818 = vpop.f32.mrf.mxu0
        %1819 = vmatprep.mubr.bf16.mxu0 0
        %1820 = vmatmul.mubr.bf16.gmra.mxu0 %v1062
        %v1821 = vpop.f32.mrf.mxu0
        %v1822 = vadd.f32 0.0, %v1821
        %v1823 = vpop.f32.mrf.mxu0
        %v1824 = vpop.f32.mrf.mxu0
        %v1825 = vadd.f32 0.0, %v1824
        %v1826 = vpop.f32.mrf.mxu0
        %1827 = vmatprep.mubr.bf16.mxu0 0
        %1828 = vmatmul.mubr.bf16.gmra.mxu0 %v1065
        %v1829 = vpop.f32.mrf.mxu0
        %v1830 = vadd.f32 0.0, %v1829
        %v1831 = vpop.f32.mrf.mxu0
        %v1832 = vpop.f32.mrf.mxu0
        %v1833 = vadd.f32 0.0, %v1832
        %v1834 = vpop.f32.mrf.mxu0
        %1835 = vmatprep.mubr.bf16.mxu0 0
        %1836 = vmatmul.mubr.bf16.gmra.mxu0 %v1068
        %v1837 = vpop.f32.mrf.mxu0
        %v1838 = vadd.f32 0.0, %v1837
        %v1839 = vpop.f32.mrf.mxu0
        %v1840 = vpop.f32.mrf.mxu0
        %v1841 = vpop.f32.mrf.mxu0
        %1842 = vdwg.mxu0
        %1843 = vmatprep.subr.bf16.mxu0 0
        %1844 = vmatpush1.bf16.msra.mxu0 0
        %1845 = vmatprep.subr.bf16.mxu0 0
        %1846 = vmatpush1.bf16.msra.mxu0 0
        %1847 = vmatprep.subr.bf16.mxu0 0
        %1848 = vmatpush1.bf16.msra.mxu0 0
        %1849 = vmatprep.subr.bf16.mxu0 0
        %1850 = vmatpush1.bf16.msra.mxu0 0
        %1851 = vmatprep.subr.bf16.mxu0 0
        %1852 = vmatpush1.bf16.msra.mxu0 %v681
        %1853 = vmatprep.subr.bf16.mxu0 0
        %1854 = vmatpush1.bf16.msra.mxu0 %v680
        %1855 = vmatprep.subr.bf16.mxu0 0
        %1856 = vmatpush1.bf16.msra.mxu0 %v679
        %1857 = vmatprep.subr.bf16.mxu0 0
        %1858 = vmatpush1.bf16.msra.mxu0 %v678
        %1859 = vmatprep.subr.bf16.mxu0 0
        %1860 = vmatpush2.bf16.msra.mxu0 0
        %1861 = vmatprep.subr.bf16.mxu0 0
        %1862 = vmatpush2.bf16.msra.mxu0 0
        %1863 = vmatprep.subr.bf16.mxu0 0
        %1864 = vmatpush2.bf16.msra.mxu0 0
        %1865 = vmatprep.subr.bf16.mxu0 0
        %1866 = vmatpush2.bf16.msra.mxu0 0
        %1867 = vmatprep.subr.bf16.mxu0 0
        %1868 = vmatpush2.bf16.msra.mxu0 0
        %1869 = vmatprep.subr.bf16.mxu0 0
        %1870 = vmatpush2.bf16.msra.mxu0 0
        %1871 = vmatprep.subr.bf16.mxu0 0
        %1872 = vmatpush2.bf16.msra.mxu0 0
        %1873 = vmatprep.subr.bf16.mxu0 0
        %1874 = vmatpush2.bf16.msra.mxu0 0
        %1875 = vmatprep.mubr.bf16.mxu0 0
        %1876 = vmatmul.mubr.bf16.gmra.mxu0 %v862
        %v1877 = vpop.f32.mrf.mxu0
        %v1878 = vadd.f32 %v1790, %v1877
        %v1879 = vpop.f32.mrf.mxu0
        %v1880 = vpop.f32.mrf.mxu0
        %v1881 = vadd.f32 %v1793, %v1880
        %v1882 = vpop.f32.mrf.mxu0
        %1883 = vmatprep.mubr.bf16.mxu0 0
        %1884 = vmatmul.mubr.bf16.gmra.mxu0 %v865
        %v1885 = vpop.f32.mrf.mxu0
        %v1886 = vadd.f32 %v1798, %v1885
        %v1887 = vpop.f32.mrf.mxu0
        %v1888 = vpop.f32.mrf.mxu0
        %v1889 = vadd.f32 %v1801, %v1888
        %v1890 = vpop.f32.mrf.mxu0
        %1891 = vmatprep.mubr.bf16.mxu0 0
        %1892 = vmatmul.mubr.bf16.gmra.mxu0 %v868
        %v1893 = vpop.f32.mrf.mxu0
        %v1894 = vadd.f32 %v1806, %v1893
        %v1895 = vpop.f32.mrf.mxu0
        %v1896 = vpop.f32.mrf.mxu0
        %v1897 = vadd.f32 %v1809, %v1896
        %v1898 = vpop.f32.mrf.mxu0
        %1899 = vmatprep.mubr.bf16.mxu0 0
        %1900 = vmatmul.mubr.bf16.gmra.mxu0 %v871
        %v1901 = vpop.f32.mrf.mxu0
        %v1902 = vadd.f32 %v1814, %v1901
        %v1903 = vpop.f32.mrf.mxu0
        %v1904 = vpop.f32.mrf.mxu0
        %v1905 = vadd.f32 %v1817, %v1904
        %v1906 = vpop.f32.mrf.mxu0
        %1907 = vmatprep.mubr.bf16.mxu0 0
        %1908 = vmatmul.mubr.bf16.gmra.mxu0 %v874
        %v1909 = vpop.f32.mrf.mxu0
        %v1910 = vadd.f32 %v1822, %v1909
        %v1911 = vpop.f32.mrf.mxu0
        %v1912 = vpop.f32.mrf.mxu0
        %v1913 = vadd.f32 %v1825, %v1912
        %v1914 = vpop.f32.mrf.mxu0
        %1915 = vmatprep.mubr.bf16.mxu0 0
        %1916 = vmatmul.mubr.bf16.gmra.mxu0 %v877
        %v1917 = vpop.f32.mrf.mxu0
        %v1918 = vadd.f32 %v1830, %v1917
        %v1919 = vpop.f32.mrf.mxu0
        %v1920 = vpop.f32.mrf.mxu0
        %v1921 = vadd.f32 %v1833, %v1920
        %v1922 = vpop.f32.mrf.mxu0
        %1923 = vmatprep.mubr.bf16.mxu0 0
        %1924 = vmatmul.mubr.bf16.gmra.mxu0 %v880
        %v1925 = vpop.f32.mrf.mxu0
        %v1926 = vadd.f32 %v1838, %v1925
        %v1927 = vpop.f32.mrf.mxu0
        %v1928 = vpop.f32.mrf.mxu0
        %v1929 = vpop.f32.mrf.mxu0
        %1930 = vdwg.mxu0
        %v1932 = vunpack.c.l.b16 %v399
        %v1933 = vpack.c.b16 %v644, %v643
        %v1934 = vpack.c.b16 %v646, %v645
        %v1935 = vpack.c.b16 %v648, %v647
        %v1936 = vpack.c.b16 %v650, %v649
        %v1937 = vpack.c.b16 %v652, %v651
        %v1938 = vpack.c.b16 %v654, %v653
        %v1939 = vpack.c.b16 %v1932, %v1205
        %vm1940 = vcmask 1045504
        %v1941 = vrot.slane %v1933, 2
        %v1942 = vrot.slane %v1934, 2
        %v1943 = vsel %vm1940, %v1941, %v1942
        %v1944 = vrot.slane %v1935, 2
        %v1945 = vsel %vm1940, %v1942, %v1944
        %v1946 = vrot.slane %v1936, 2
        %v1947 = vsel %vm1940, %v1944, %v1946
        %v1948 = vrot.slane %v1937, 2
        %v1949 = vsel %vm1940, %v1946, %v1948
        %v1950 = vrot.slane %v1938, 2
        %v1951 = vsel %vm1940, %v1948, %v1950
        %v1952 = vrot.slane %v1939, 2
        %v1953 = vsel %vm1940, %v1950, %v1952
        %v1955 = vsel %vm519, %v1943, 0
        %v1958 = vsel %vm519, %v1945, 0
        %v1961 = vsel %vm519, %v1947, 0
        %v1964 = vsel %vm519, %v1949, 0
        %v1967 = vsel %vm519, %v1951, 0
        %v1970 = vsel %vm519, %v1953, 0
        %v1973 = vsel %vm519, %v1952, 0
        %1975 = vmatprep.subr.bf16.mxu0 0
        %1976 = vmatpush1.bf16.msra.mxu0 0
        %1977 = vmatprep.subr.bf16.mxu0 0
        %1978 = vmatpush1.bf16.msra.mxu0 0
        %1979 = vmatprep.subr.bf16.mxu0 0
        %1980 = vmatpush1.bf16.msra.mxu0 0
        %1981 = vmatprep.subr.bf16.mxu0 0
        %1982 = vmatpush1.bf16.msra.mxu0 0
        %1983 = vmatprep.subr.bf16.mxu0 0
        %1984 = vmatpush1.bf16.msra.mxu0 %v856
        %1985 = vmatprep.subr.bf16.mxu0 0
        %1986 = vmatpush1.bf16.msra.mxu0 %v855
        %1987 = vmatprep.subr.bf16.mxu0 0
        %1988 = vmatpush1.bf16.msra.mxu0 %v854
        %1989 = vmatprep.subr.bf16.mxu0 0
        %1990 = vmatpush1.bf16.msra.mxu0 %v853
        %1991 = vmatprep.subr.bf16.mxu0 0
        %1992 = vmatpush2.bf16.msra.mxu0 0
        %1993 = vmatprep.subr.bf16.mxu0 0
        %1994 = vmatpush2.bf16.msra.mxu0 0
        %1995 = vmatprep.subr.bf16.mxu0 0
        %1996 = vmatpush2.bf16.msra.mxu0 0
        %1997 = vmatprep.subr.bf16.mxu0 0
        %1998 = vmatpush2.bf16.msra.mxu0 0
        %1999 = vmatprep.subr.bf16.mxu0 0
        %2000 = vmatpush2.bf16.msra.mxu0 0
        %2001 = vmatprep.subr.bf16.mxu0 0
        %2002 = vmatpush2.bf16.msra.mxu0 0
        %2003 = vmatprep.subr.bf16.mxu0 0
        %2004 = vmatpush2.bf16.msra.mxu0 0
        %2005 = vmatprep.subr.bf16.mxu0 0
        %2006 = vmatpush2.bf16.msra.mxu0 0
        %2007 = vmatprep.mubr.bf16.mxu0 0
        %2008 = vmatmul.mubr.bf16.gmra.mxu0 %v1955
        %v2009 = vpop.f32.mrf.mxu0
        %v2010 = vadd.f32 0.0, %v2009
        %v2011 = vpop.f32.mrf.mxu0
        %v2012 = vpop.f32.mrf.mxu0
        %v2013 = vadd.f32 0.0, %v2012
        %v2014 = vpop.f32.mrf.mxu0
        %2015 = vmatprep.mubr.bf16.mxu0 0
        %2016 = vmatmul.mubr.bf16.gmra.mxu0 %v1958
        %v2017 = vpop.f32.mrf.mxu0
        %v2018 = vadd.f32 0.0, %v2017
        %v2019 = vpop.f32.mrf.mxu0
        %v2020 = vpop.f32.mrf.mxu0
        %v2021 = vadd.f32 0.0, %v2020
        %v2022 = vpop.f32.mrf.mxu0
        %2023 = vmatprep.mubr.bf16.mxu0 0
        %2024 = vmatmul.mubr.bf16.gmra.mxu0 %v1961
        %v2025 = vpop.f32.mrf.mxu0
        %v2026 = vadd.f32 0.0, %v2025
        %v2027 = vpop.f32.mrf.mxu0
        %v2028 = vpop.f32.mrf.mxu0
        %v2029 = vadd.f32 0.0, %v2028
        %v2030 = vpop.f32.mrf.mxu0
        %2031 = vmatprep.mubr.bf16.mxu0 0
        %2032 = vmatmul.mubr.bf16.gmra.mxu0 %v1964
        %v2033 = vpop.f32.mrf.mxu0
        %v2034 = vadd.f32 0.0, %v2033
        %v2035 = vpop.f32.mrf.mxu0
        %v2036 = vpop.f32.mrf.mxu0
        %v2037 = vadd.f32 0.0, %v2036
        %v2038 = vpop.f32.mrf.mxu0
        %2039 = vmatprep.mubr.bf16.mxu0 0
        %2040 = vmatmul.mubr.bf16.gmra.mxu0 %v1967
        %v2041 = vpop.f32.mrf.mxu0
        %v2042 = vadd.f32 0.0, %v2041
        %v2043 = vpop.f32.mrf.mxu0
        %v2044 = vpop.f32.mrf.mxu0
        %v2045 = vadd.f32 0.0, %v2044
        %v2046 = vpop.f32.mrf.mxu0
        %2047 = vmatprep.mubr.bf16.mxu0 0
        %2048 = vmatmul.mubr.bf16.gmra.mxu0 %v1970
        %v2049 = vpop.f32.mrf.mxu0
        %v2050 = vadd.f32 0.0, %v2049
        %v2051 = vpop.f32.mrf.mxu0
        %v2052 = vpop.f32.mrf.mxu0
        %v2053 = vadd.f32 0.0, %v2052
        %v2054 = vpop.f32.mrf.mxu0
        %2055 = vmatprep.mubr.bf16.mxu0 0
        %2056 = vmatmul.mubr.bf16.gmra.mxu0 %v1973
        %v2057 = vpop.f32.mrf.mxu0
        %v2058 = vadd.f32 0.0, %v2057
        %v2059 = vpop.f32.mrf.mxu0
        %v2060 = vpop.f32.mrf.mxu0
        %v2061 = vpop.f32.mrf.mxu0
        %2062 = vdwg.mxu0
        %v2063 = vadd.f32 %v1878, %v2010
        %v2064 = vadd.f32 %v1881, %v2013
        %v2065 = vadd.f32 %v1886, %v2018
        %v2066 = vadd.f32 %v1889, %v2021
        %v2067 = vadd.f32 %v1894, %v2026
        %v2068 = vadd.f32 %v1897, %v2029
        %v2069 = vadd.f32 %v1902, %v2034
        %v2070 = vadd.f32 %v1905, %v2037
        %v2071 = vadd.f32 %v1910, %v2042
        %v2072 = vadd.f32 %v1913, %v2045
        %v2073 = vadd.f32 %v1918, %v2050
        %v2074 = vadd.f32 %v1921, %v2053
        %v2075 = vadd.f32 %v1926, %v2058
        %v2078 = vunpack.c.l.b16 %v414
        %v2079 = vunpack.c.l.b16 %v415
        %v2080 = vpack.c.b16 %v477, %v476
        %v2081 = vpack.c.b16 %v479, %v478
        %v2082 = vpack.c.b16 %v481, %v480
        %v2083 = vpack.c.b16 %v483, %v482
        %v2084 = vpack.c.b16 %v485, %v484
        %v2085 = vpack.c.b16 %v487, %v486
        %v2086 = vpack.c.b16 %v2079, %v2078
        %v2087 = vrot.slane %v2080, 2
        %v2088 = vrot.slane %v2081, 2
        %v2089 = vsel %vm1940, %v2087, %v2088
        %v2090 = vrot.slane %v2082, 2
        %v2091 = vsel %vm1940, %v2088, %v2090
        %v2092 = vrot.slane %v2083, 2
        %v2093 = vsel %vm1940, %v2090, %v2092
        %v2094 = vrot.slane %v2084, 2
        %v2095 = vsel %vm1940, %v2092, %v2094
        %v2096 = vrot.slane %v2085, 2
        %v2097 = vsel %vm1940, %v2094, %v2096
        %v2098 = vrot.slane %v2086, 2
        %v2099 = vsel %vm1940, %v2096, %v2098
        %v2101 = vsel %vm519, %v2089, 0
        %v2104 = vsel %vm519, %v2091, 0
        %v2107 = vsel %vm519, %v2093, 0
        %v2110 = vsel %vm519, %v2095, 0
        %v2113 = vsel %vm519, %v2097, 0
        %v2116 = vsel %vm519, %v2099, 0
        %v2119 = vsel %vm519, %v2098, 0
        %2121 = vmatprep.subr.bf16.mxu0 0
        %2122 = vmatpush1.bf16.msra.mxu0 0
        %2123 = vmatprep.subr.bf16.mxu0 0
        %2124 = vmatpush1.bf16.msra.mxu0 0
        %2125 = vmatprep.subr.bf16.mxu0 0
        %2126 = vmatpush1.bf16.msra.mxu0 0
        %2127 = vmatprep.subr.bf16.mxu0 0
        %2128 = vmatpush1.bf16.msra.mxu0 0
        %2129 = vmatprep.subr.bf16.mxu0 0
        %2130 = vmatpush1.bf16.msra.mxu0 %v1044
        %2131 = vmatprep.subr.bf16.mxu0 0
        %2132 = vmatpush1.bf16.msra.mxu0 %v1043
        %2133 = vmatprep.subr.bf16.mxu0 0
        %2134 = vmatpush1.bf16.msra.mxu0 %v1042
        %2135 = vmatprep.subr.bf16.mxu0 0
        %2136 = vmatpush1.bf16.msra.mxu0 %v1041
        %2137 = vmatprep.subr.bf16.mxu0 0
        %2138 = vmatpush2.bf16.msra.mxu0 0
        %2139 = vmatprep.subr.bf16.mxu0 0
        %2140 = vmatpush2.bf16.msra.mxu0 0
        %2141 = vmatprep.subr.bf16.mxu0 0
        %2142 = vmatpush2.bf16.msra.mxu0 0
        %2143 = vmatprep.subr.bf16.mxu0 0
        %2144 = vmatpush2.bf16.msra.mxu0 0
        %2145 = vmatprep.subr.bf16.mxu0 0
        %2146 = vmatpush2.bf16.msra.mxu0 0
        %2147 = vmatprep.subr.bf16.mxu0 0
        %2148 = vmatpush2.bf16.msra.mxu0 0
        %2149 = vmatprep.subr.bf16.mxu0 0
        %2150 = vmatpush2.bf16.msra.mxu0 0
        %2151 = vmatprep.subr.bf16.mxu0 0
        %2152 = vmatpush2.bf16.msra.mxu0 0
        %2153 = vmatprep.mubr.bf16.mxu0 0
        %2154 = vmatmul.mubr.bf16.gmra.mxu0 %v2101
        %v2155 = vpop.f32.mrf.mxu0
        %v2156 = vadd.f32 0.0, %v2155
        %v2157 = vpop.f32.mrf.mxu0
        %v2158 = vpop.f32.mrf.mxu0
        %v2159 = vadd.f32 0.0, %v2158
        %v2160 = vpop.f32.mrf.mxu0
        %2161 = vmatprep.mubr.bf16.mxu0 0
        %2162 = vmatmul.mubr.bf16.gmra.mxu0 %v2104
        %v2163 = vpop.f32.mrf.mxu0
        %v2164 = vadd.f32 0.0, %v2163
        %v2165 = vpop.f32.mrf.mxu0
        %v2166 = vpop.f32.mrf.mxu0
        %v2167 = vadd.f32 0.0, %v2166
        %v2168 = vpop.f32.mrf.mxu0
        %2169 = vmatprep.mubr.bf16.mxu0 0
        %2170 = vmatmul.mubr.bf16.gmra.mxu0 %v2107
        %v2171 = vpop.f32.mrf.mxu0
        %v2172 = vadd.f32 0.0, %v2171
        %v2173 = vpop.f32.mrf.mxu0
        %v2174 = vpop.f32.mrf.mxu0
        %v2175 = vadd.f32 0.0, %v2174
        %v2176 = vpop.f32.mrf.mxu0
        %2177 = vmatprep.mubr.bf16.mxu0 0
        %2178 = vmatmul.mubr.bf16.gmra.mxu0 %v2110
        %v2179 = vpop.f32.mrf.mxu0
        %v2180 = vadd.f32 0.0, %v2179
        %v2181 = vpop.f32.mrf.mxu0
        %v2182 = vpop.f32.mrf.mxu0
        %v2183 = vadd.f32 0.0, %v2182
        %v2184 = vpop.f32.mrf.mxu0
        %2185 = vmatprep.mubr.bf16.mxu0 0
        %2186 = vmatmul.mubr.bf16.gmra.mxu0 %v2113
        %v2187 = vpop.f32.mrf.mxu0
        %v2188 = vadd.f32 0.0, %v2187
        %v2189 = vpop.f32.mrf.mxu0
        %v2190 = vpop.f32.mrf.mxu0
        %v2191 = vadd.f32 0.0, %v2190
        %v2192 = vpop.f32.mrf.mxu0
        %2193 = vmatprep.mubr.bf16.mxu0 0
        %2194 = vmatmul.mubr.bf16.gmra.mxu0 %v2116
        %v2195 = vpop.f32.mrf.mxu0
        %v2196 = vadd.f32 0.0, %v2195
        %v2197 = vpop.f32.mrf.mxu0
        %v2198 = vpop.f32.mrf.mxu0
        %v2199 = vadd.f32 0.0, %v2198
        %v2200 = vpop.f32.mrf.mxu0
        %2201 = vmatprep.mubr.bf16.mxu0 0
        %2202 = vmatmul.mubr.bf16.gmra.mxu0 %v2119
        %v2203 = vpop.f32.mrf.mxu0
        %v2204 = vadd.f32 0.0, %v2203
        %v2205 = vpop.f32.mrf.mxu0
        %v2206 = vpop.f32.mrf.mxu0
        %v2207 = vpop.f32.mrf.mxu0
        %2208 = vdwg.mxu0
        %v2209 = vadd.f32 %v2063, %v2156
        %v2210 = vadd.f32 %v2064, %v2159
        %v2211 = vadd.f32 %v2065, %v2164
        %v2212 = vadd.f32 %v2066, %v2167
        %v2213 = vadd.f32 %v2067, %v2172
        %v2214 = vadd.f32 %v2068, %v2175
        %v2215 = vadd.f32 %v2069, %v2180
        %v2216 = vadd.f32 %v2070, %v2183
        %v2217 = vadd.f32 %v2071, %v2188
        %v2218 = vadd.f32 %v2072, %v2191
        %v2219 = vadd.f32 %v2073, %v2196
        %v2220 = vadd.f32 %v2074, %v2199
        %v2221 = vadd.f32 %v2075, %v2204
        %v2222 = vadd.f32 %v2209, %v1176
        %v2223 = vadd.f32 %v2210, %v1176
        %v2224 = vadd.f32 %v2211, %v1176
        %v2225 = vadd.f32 %v2212, %v1176
        %v2226 = vadd.f32 %v2213, %v1176
        %v2227 = vadd.f32 %v2214, %v1176
        %v2228 = vadd.f32 %v2215, %v1176
        %v2229 = vadd.f32 %v2216, %v1176
        %v2230 = vadd.f32 %v2217, %v1176
        %v2231 = vadd.f32 %v2218, %v1176
        %v2232 = vadd.f32 %v2219, %v1176
        %v2233 = vadd.f32 %v2220, %v1176
        %v2234 = vadd.f32 %v2221, %v1176
        %v2235 = vmax.f32 %v2222, 0.0
        %v2236 = vmax.f32 %v2223, 0.0
        %v2237 = vmax.f32 %v2224, 0.0
        %v2238 = vmax.f32 %v2225, 0.0
        %v2239 = vmax.f32 %v2226, 0.0
        %v2240 = vmax.f32 %v2227, 0.0
        %v2241 = vmax.f32 %v2228, 0.0
        %v2242 = vmax.f32 %v2229, 0.0
        %v2243 = vmax.f32 %v2230, 0.0
        %v2244 = vmax.f32 %v2231, 0.0
        %v2245 = vmax.f32 %v2232, 0.0
        %v2246 = vmax.f32 %v2233, 0.0
        %v2247 = vmax.f32 %v2234, 0.0
        %2248 = vmatprep.subr.bf16.mxu0 0
        %2249 = vmatpush1.bf16.msra.mxu0 0
        %2250 = vmatprep.subr.bf16.mxu0 0
        %2251 = vmatpush1.bf16.msra.mxu0 0
        %2252 = vmatprep.subr.bf16.mxu0 0
        %2253 = vmatpush1.bf16.msra.mxu0 0
        %2254 = vmatprep.subr.bf16.mxu0 0
        %2255 = vmatpush1.bf16.msra.mxu0 0
        %2256 = vmatprep.subr.bf16.mxu0 0
        %2257 = vmatpush1.bf16.msra.mxu0 %v514
        %2258 = vmatprep.subr.bf16.mxu0 0
        %2259 = vmatpush1.bf16.msra.mxu0 %v513
        %2260 = vmatprep.subr.bf16.mxu0 0
        %2261 = vmatpush1.bf16.msra.mxu0 %v512
        %2262 = vmatprep.subr.bf16.mxu0 0
        %2263 = vmatpush1.bf16.msra.mxu0 %v511
        %2264 = vmatprep.subr.bf16.mxu0 0
        %2265 = vmatpush2.bf16.msra.mxu0 0
        %2266 = vmatprep.subr.bf16.mxu0 0
        %2267 = vmatpush2.bf16.msra.mxu0 0
        %2268 = vmatprep.subr.bf16.mxu0 0
        %2269 = vmatpush2.bf16.msra.mxu0 0
        %2270 = vmatprep.subr.bf16.mxu0 0
        %2271 = vmatpush2.bf16.msra.mxu0 0
        %2272 = vmatprep.subr.bf16.mxu0 0
        %2273 = vmatpush2.bf16.msra.mxu0 0
        %2274 = vmatprep.subr.bf16.mxu0 0
        %2275 = vmatpush2.bf16.msra.mxu0 0
        %2276 = vmatprep.subr.bf16.mxu0 0
        %2277 = vmatpush2.bf16.msra.mxu0 0
        %2278 = vmatprep.subr.bf16.mxu0 0
        %2279 = vmatpush2.bf16.msra.mxu0 0
        %2280 = vmatprep.mubr.bf16.mxu0 0
        %2281 = vmatmul.mubr.bf16.gmra.mxu0 %v1608
        %v2282 = vpop.f32.mrf.mxu0
        %v2283 = vadd.f32 0.0, %v2282
        %v2284 = vpop.f32.mrf.mxu0
        %v2285 = vpop.f32.mrf.mxu0
        %v2286 = vadd.f32 0.0, %v2285
        %v2287 = vpop.f32.mrf.mxu0
        %2288 = vmatprep.mubr.bf16.mxu0 0
        %2289 = vmatmul.mubr.bf16.gmra.mxu0 %v1611
        %v2290 = vpop.f32.mrf.mxu0
        %v2291 = vadd.f32 0.0, %v2290
        %v2292 = vpop.f32.mrf.mxu0
        %v2293 = vpop.f32.mrf.mxu0
        %v2294 = vadd.f32 0.0, %v2293
        %v2295 = vpop.f32.mrf.mxu0
        %2296 = vmatprep.mubr.bf16.mxu0 0
        %2297 = vmatmul.mubr.bf16.gmra.mxu0 %v1614
        %v2298 = vpop.f32.mrf.mxu0
        %v2299 = vadd.f32 0.0, %v2298
        %v2300 = vpop.f32.mrf.mxu0
        %v2301 = vpop.f32.mrf.mxu0
        %v2302 = vadd.f32 0.0, %v2301
        %v2303 = vpop.f32.mrf.mxu0
        %2304 = vmatprep.mubr.bf16.mxu0 0
        %2305 = vmatmul.mubr.bf16.gmra.mxu0 %v1617
        %v2306 = vpop.f32.mrf.mxu0
        %v2307 = vadd.f32 0.0, %v2306
        %v2308 = vpop.f32.mrf.mxu0
        %v2309 = vpop.f32.mrf.mxu0
        %v2310 = vadd.f32 0.0, %v2309
        %v2311 = vpop.f32.mrf.mxu0
        %2312 = vmatprep.mubr.bf16.mxu0 0
        %2313 = vmatmul.mubr.bf16.gmra.mxu0 %v1620
        %v2314 = vpop.f32.mrf.mxu0
        %v2315 = vadd.f32 0.0, %v2314
        %v2316 = vpop.f32.mrf.mxu0
        %v2317 = vpop.f32.mrf.mxu0
        %v2318 = vadd.f32 0.0, %v2317
        %v2319 = vpop.f32.mrf.mxu0
        %2320 = vmatprep.mubr.bf16.mxu0 0
        %2321 = vmatmul.mubr.bf16.gmra.mxu0 %v1623
        %v2322 = vpop.f32.mrf.mxu0
        %v2323 = vadd.f32 0.0, %v2322
        %v2324 = vpop.f32.mrf.mxu0
        %v2325 = vpop.f32.mrf.mxu0
        %v2326 = vadd.f32 0.0, %v2325
        %v2327 = vpop.f32.mrf.mxu0
        %2328 = vmatprep.mubr.bf16.mxu0 0
        %2329 = vmatmul.mubr.bf16.gmra.mxu0 %v1626
        %v2330 = vpop.f32.mrf.mxu0
        %v2331 = vadd.f32 0.0, %v2330
        %v2332 = vpop.f32.mrf.mxu0
        %v2333 = vpop.f32.mrf.mxu0
        %v2334 = vpop.f32.mrf.mxu0
        %2335 = vdwg.mxu0
        %2336 = vmatprep.subr.bf16.mxu0 0
        %2337 = vmatpush1.bf16.msra.mxu0 0
        %2338 = vmatprep.subr.bf16.mxu0 0
        %2339 = vmatpush1.bf16.msra.mxu0 0
        %2340 = vmatprep.subr.bf16.mxu0 0
        %2341 = vmatpush1.bf16.msra.mxu0 0
        %2342 = vmatprep.subr.bf16.mxu0 0
        %2343 = vmatpush1.bf16.msra.mxu0 0
        %2344 = vmatprep.subr.bf16.mxu0 0
        %2345 = vmatpush1.bf16.msra.mxu0 %v681
        %2346 = vmatprep.subr.bf16.mxu0 0
        %2347 = vmatpush1.bf16.msra.mxu0 %v680
        %2348 = vmatprep.subr.bf16.mxu0 0
        %2349 = vmatpush1.bf16.msra.mxu0 %v679
        %2350 = vmatprep.subr.bf16.mxu0 0
        %2351 = vmatpush1.bf16.msra.mxu0 %v678
        %2352 = vmatprep.subr.bf16.mxu0 0
        %2353 = vmatpush2.bf16.msra.mxu0 0
        %2354 = vmatprep.subr.bf16.mxu0 0
        %2355 = vmatpush2.bf16.msra.mxu0 0
        %2356 = vmatprep.subr.bf16.mxu0 0
        %2357 = vmatpush2.bf16.msra.mxu0 0
        %2358 = vmatprep.subr.bf16.mxu0 0
        %2359 = vmatpush2.bf16.msra.mxu0 0
        %2360 = vmatprep.subr.bf16.mxu0 0
        %2361 = vmatpush2.bf16.msra.mxu0 0
        %2362 = vmatprep.subr.bf16.mxu0 0
        %2363 = vmatpush2.bf16.msra.mxu0 0
        %2364 = vmatprep.subr.bf16.mxu0 0
        %2365 = vmatpush2.bf16.msra.mxu0 0
        %2366 = vmatprep.subr.bf16.mxu0 0
        %2367 = vmatpush2.bf16.msra.mxu0 0
        %2368 = vmatprep.mubr.bf16.mxu0 0
        %2369 = vmatmul.mubr.bf16.gmra.mxu0 %v1050
        %v2370 = vpop.f32.mrf.mxu0
        %v2371 = vadd.f32 %v2283, %v2370
        %v2372 = vpop.f32.mrf.mxu0
        %v2373 = vpop.f32.mrf.mxu0
        %v2374 = vadd.f32 %v2286, %v2373
        %v2375 = vpop.f32.mrf.mxu0
        %2376 = vmatprep.mubr.bf16.mxu0 0
        %2377 = vmatmul.mubr.bf16.gmra.mxu0 %v1053
        %v2378 = vpop.f32.mrf.mxu0
        %v2379 = vadd.f32 %v2291, %v2378
        %v2380 = vpop.f32.mrf.mxu0
        %v2381 = vpop.f32.mrf.mxu0
        %v2382 = vadd.f32 %v2294, %v2381
        %v2383 = vpop.f32.mrf.mxu0
        %2384 = vmatprep.mubr.bf16.mxu0 0
        %2385 = vmatmul.mubr.bf16.gmra.mxu0 %v1056
        %v2386 = vpop.f32.mrf.mxu0
        %v2387 = vadd.f32 %v2299, %v2386
        %v2388 = vpop.f32.mrf.mxu0
        %v2389 = vpop.f32.mrf.mxu0
        %v2390 = vadd.f32 %v2302, %v2389
        %v2391 = vpop.f32.mrf.mxu0
        %2392 = vmatprep.mubr.bf16.mxu0 0
        %2393 = vmatmul.mubr.bf16.gmra.mxu0 %v1059
        %v2394 = vpop.f32.mrf.mxu0
        %v2395 = vadd.f32 %v2307, %v2394
        %v2396 = vpop.f32.mrf.mxu0
        %v2397 = vpop.f32.mrf.mxu0
        %v2398 = vadd.f32 %v2310, %v2397
        %v2399 = vpop.f32.mrf.mxu0
        %2400 = vmatprep.mubr.bf16.mxu0 0
        %2401 = vmatmul.mubr.bf16.gmra.mxu0 %v1062
        %v2402 = vpop.f32.mrf.mxu0
        %v2403 = vadd.f32 %v2315, %v2402
        %v2404 = vpop.f32.mrf.mxu0
        %v2405 = vpop.f32.mrf.mxu0
        %v2406 = vadd.f32 %v2318, %v2405
        %v2407 = vpop.f32.mrf.mxu0
        %2408 = vmatprep.mubr.bf16.mxu0 0
        %2409 = vmatmul.mubr.bf16.gmra.mxu0 %v1065
        %v2410 = vpop.f32.mrf.mxu0
        %v2411 = vadd.f32 %v2323, %v2410
        %v2412 = vpop.f32.mrf.mxu0
        %v2413 = vpop.f32.mrf.mxu0
        %v2414 = vadd.f32 %v2326, %v2413
        %v2415 = vpop.f32.mrf.mxu0
        %2416 = vmatprep.mubr.bf16.mxu0 0
        %2417 = vmatmul.mubr.bf16.gmra.mxu0 %v1068
        %v2418 = vpop.f32.mrf.mxu0
        %v2419 = vadd.f32 %v2331, %v2418
        %v2420 = vpop.f32.mrf.mxu0
        %v2421 = vpop.f32.mrf.mxu0
        %v2422 = vpop.f32.mrf.mxu0
        %2423 = vdwg.mxu0
        %2424 = vmatprep.subr.bf16.mxu0 0
        %2425 = vmatpush1.bf16.msra.mxu0 0
        %2426 = vmatprep.subr.bf16.mxu0 0
        %2427 = vmatpush1.bf16.msra.mxu0 0
        %2428 = vmatprep.subr.bf16.mxu0 0
        %2429 = vmatpush1.bf16.msra.mxu0 0
        %2430 = vmatprep.subr.bf16.mxu0 0
        %2431 = vmatpush1.bf16.msra.mxu0 0
        %2432 = vmatprep.subr.bf16.mxu0 0
        %2433 = vmatpush1.bf16.msra.mxu0 %v856
        %2434 = vmatprep.subr.bf16.mxu0 0
        %2435 = vmatpush1.bf16.msra.mxu0 %v855
        %2436 = vmatprep.subr.bf16.mxu0 0
        %2437 = vmatpush1.bf16.msra.mxu0 %v854
        %2438 = vmatprep.subr.bf16.mxu0 0
        %2439 = vmatpush1.bf16.msra.mxu0 %v853
        %2440 = vmatprep.subr.bf16.mxu0 0
        %2441 = vmatpush2.bf16.msra.mxu0 0
        %2442 = vmatprep.subr.bf16.mxu0 0
        %2443 = vmatpush2.bf16.msra.mxu0 0
        %2444 = vmatprep.subr.bf16.mxu0 0
        %2445 = vmatpush2.bf16.msra.mxu0 0
        %2446 = vmatprep.subr.bf16.mxu0 0
        %2447 = vmatpush2.bf16.msra.mxu0 0
        %2448 = vmatprep.subr.bf16.mxu0 0
        %2449 = vmatpush2.bf16.msra.mxu0 0
        %2450 = vmatprep.subr.bf16.mxu0 0
        %2451 = vmatpush2.bf16.msra.mxu0 0
        %2452 = vmatprep.subr.bf16.mxu0 0
        %2453 = vmatpush2.bf16.msra.mxu0 0
        %2454 = vmatprep.subr.bf16.mxu0 0
        %2455 = vmatpush2.bf16.msra.mxu0 0
        %2456 = vmatprep.mubr.bf16.mxu0 0
        %2457 = vmatmul.mubr.bf16.gmra.mxu0 %v2101
        %v2458 = vpop.f32.mrf.mxu0
        %v2459 = vadd.f32 0.0, %v2458
        %v2460 = vpop.f32.mrf.mxu0
        %v2461 = vpop.f32.mrf.mxu0
        %v2462 = vadd.f32 0.0, %v2461
        %v2463 = vpop.f32.mrf.mxu0
        %2464 = vmatprep.mubr.bf16.mxu0 0
        %2465 = vmatmul.mubr.bf16.gmra.mxu0 %v2104
        %v2466 = vpop.f32.mrf.mxu0
        %v2467 = vadd.f32 0.0, %v2466
        %v2468 = vpop.f32.mrf.mxu0
        %v2469 = vpop.f32.mrf.mxu0
        %v2470 = vadd.f32 0.0, %v2469
        %v2471 = vpop.f32.mrf.mxu0
        %2472 = vmatprep.mubr.bf16.mxu0 0
        %2473 = vmatmul.mubr.bf16.gmra.mxu0 %v2107
        %v2474 = vpop.f32.mrf.mxu0
        %v2475 = vadd.f32 0.0, %v2474
        %v2476 = vpop.f32.mrf.mxu0
        %v2477 = vpop.f32.mrf.mxu0
        %v2478 = vadd.f32 0.0, %v2477
        %v2479 = vpop.f32.mrf.mxu0
        %2480 = vmatprep.mubr.bf16.mxu0 0
        %2481 = vmatmul.mubr.bf16.gmra.mxu0 %v2110
        %v2482 = vpop.f32.mrf.mxu0
        %v2483 = vadd.f32 0.0, %v2482
        %v2484 = vpop.f32.mrf.mxu0
        %v2485 = vpop.f32.mrf.mxu0
        %v2486 = vadd.f32 0.0, %v2485
        %v2487 = vpop.f32.mrf.mxu0
        %2488 = vmatprep.mubr.bf16.mxu0 0
        %2489 = vmatmul.mubr.bf16.gmra.mxu0 %v2113
        %v2490 = vpop.f32.mrf.mxu0
        %v2491 = vadd.f32 0.0, %v2490
        %v2492 = vpop.f32.mrf.mxu0
        %v2493 = vpop.f32.mrf.mxu0
        %v2494 = vadd.f32 0.0, %v2493
        %v2495 = vpop.f32.mrf.mxu0
        %2496 = vmatprep.mubr.bf16.mxu0 0
        %2497 = vmatmul.mubr.bf16.gmra.mxu0 %v2116
        %v2498 = vpop.f32.mrf.mxu0
        %v2499 = vadd.f32 0.0, %v2498
        %v2500 = vpop.f32.mrf.mxu0
        %v2501 = vpop.f32.mrf.mxu0
        %v2502 = vadd.f32 0.0, %v2501
        %v2503 = vpop.f32.mrf.mxu0
        %2504 = vmatprep.mubr.bf16.mxu0 0
        %2505 = vmatmul.mubr.bf16.gmra.mxu0 %v2119
        %v2506 = vpop.f32.mrf.mxu0
        %v2507 = vadd.f32 0.0, %v2506
        %v2508 = vpop.f32.mrf.mxu0
        %v2509 = vpop.f32.mrf.mxu0
        %v2510 = vpop.f32.mrf.mxu0
        %2511 = vdwg.mxu0
        %v2512 = vadd.f32 %v2371, %v2459
        %v2513 = vadd.f32 %v2374, %v2462
        %v2514 = vadd.f32 %v2379, %v2467
        %v2515 = vadd.f32 %v2382, %v2470
        %v2516 = vadd.f32 %v2387, %v2475
        %v2517 = vadd.f32 %v2390, %v2478
        %v2518 = vadd.f32 %v2395, %v2483
        %v2519 = vadd.f32 %v2398, %v2486
        %v2520 = vadd.f32 %v2403, %v2491
        %v2521 = vadd.f32 %v2406, %v2494
        %v2522 = vadd.f32 %v2411, %v2499
        %v2523 = vadd.f32 %v2414, %v2502
        %v2524 = vadd.f32 %v2419, %v2507
        %vm2525 = vsmask.f32 5376
        %v2527 = vshrl.u32 %v1933, 16
        %v2529 = vrot.slane %v2527, 2
        %v2530 = vshll.u32 %v1933, 16
        %v2532 = vrot.slane %v2530, 3
        %v2533 = vor.u32 %v2529, %v2532
        %v2535 = vshrl.u32 %v1934, 16
        %v2537 = vrot.slane %v2535, 2
        %v2538 = vshll.u32 %v1934, 16
        %v2540 = vrot.slane %v2538, 3
        %v2541 = vor.u32 %v2537, %v2540
        %v2542 = vsel %vm2525, %v2533, %v2541
        %v2544 = vshrl.u32 %v1935, 16
        %v2546 = vrot.slane %v2544, 2
        %v2547 = vshll.u32 %v1935, 16
        %v2549 = vrot.slane %v2547, 3
        %v2550 = vor.u32 %v2546, %v2549
        %v2551 = vsel %vm2525, %v2541, %v2550
        %v2553 = vshrl.u32 %v1936, 16
        %v2555 = vrot.slane %v2553, 2
        %v2556 = vshll.u32 %v1936, 16
        %v2558 = vrot.slane %v2556, 3
        %v2559 = vor.u32 %v2555, %v2558
        %v2560 = vsel %vm2525, %v2550, %v2559
        %v2562 = vshrl.u32 %v1937, 16
        %v2564 = vrot.slane %v2562, 2
        %v2565 = vshll.u32 %v1937, 16
        %v2567 = vrot.slane %v2565, 3
        %v2568 = vor.u32 %v2564, %v2567
        %v2569 = vsel %vm2525, %v2559, %v2568
        %v2571 = vshrl.u32 %v1938, 16
        %v2573 = vrot.slane %v2571, 2
        %v2574 = vshll.u32 %v1938, 16
        %v2576 = vrot.slane %v2574, 3
        %v2577 = vor.u32 %v2573, %v2576
        %v2578 = vsel %vm2525, %v2568, %v2577
        %v2580 = vshrl.u32 %v1939, 16
        %v2582 = vrot.slane %v2580, 2
        %v2583 = vshll.u32 %v1939, 16
        %v2585 = vrot.slane %v2583, 3
        %v2586 = vor.u32 %v2582, %v2585
        %v2587 = vsel %vm2525, %v2577, %v2586
        %v2589 = vsel %vm519, %v2542, 0
        %v2592 = vsel %vm519, %v2551, 0
        %v2595 = vsel %vm519, %v2560, 0
        %v2598 = vsel %vm519, %v2569, 0
        %v2601 = vsel %vm519, %v2578, 0
        %v2604 = vsel %vm519, %v2587, 0
        %v2607 = vsel %vm519, %v2586, 0
        %2609 = vmatprep.subr.bf16.mxu0 0
        %2610 = vmatpush1.bf16.msra.mxu0 0
        %2611 = vmatprep.subr.bf16.mxu0 0
        %2612 = vmatpush1.bf16.msra.mxu0 0
        %2613 = vmatprep.subr.bf16.mxu0 0
        %2614 = vmatpush1.bf16.msra.mxu0 0
        %2615 = vmatprep.subr.bf16.mxu0 0
        %2616 = vmatpush1.bf16.msra.mxu0 0
        %2617 = vmatprep.subr.bf16.mxu0 0
        %2618 = vmatpush1.bf16.msra.mxu0 %v1044
        %2619 = vmatprep.subr.bf16.mxu0 0
        %2620 = vmatpush1.bf16.msra.mxu0 %v1043
        %2621 = vmatprep.subr.bf16.mxu0 0
        %2622 = vmatpush1.bf16.msra.mxu0 %v1042
        %2623 = vmatprep.subr.bf16.mxu0 0
        %2624 = vmatpush1.bf16.msra.mxu0 %v1041
        %2625 = vmatprep.subr.bf16.mxu0 0
        %2626 = vmatpush2.bf16.msra.mxu0 0
        %2627 = vmatprep.subr.bf16.mxu0 0
        %2628 = vmatpush2.bf16.msra.mxu0 0
        %2629 = vmatprep.subr.bf16.mxu0 0
        %2630 = vmatpush2.bf16.msra.mxu0 0
        %2631 = vmatprep.subr.bf16.mxu0 0
        %2632 = vmatpush2.bf16.msra.mxu0 0
        %2633 = vmatprep.subr.bf16.mxu0 0
        %2634 = vmatpush2.bf16.msra.mxu0 0
        %2635 = vmatprep.subr.bf16.mxu0 0
        %2636 = vmatpush2.bf16.msra.mxu0 0
        %2637 = vmatprep.subr.bf16.mxu0 0
        %2638 = vmatpush2.bf16.msra.mxu0 0
        %2639 = vmatprep.subr.bf16.mxu0 0
        %2640 = vmatpush2.bf16.msra.mxu0 0
        %2641 = vmatprep.mubr.bf16.mxu0 0
        %2642 = vmatmul.mubr.bf16.gmra.mxu0 %v2589
        %v2643 = vpop.f32.mrf.mxu0
        %v2644 = vadd.f32 0.0, %v2643
        %v2645 = vpop.f32.mrf.mxu0
        %v2646 = vpop.f32.mrf.mxu0
        %v2647 = vadd.f32 0.0, %v2646
        %v2648 = vpop.f32.mrf.mxu0
        %2649 = vmatprep.mubr.bf16.mxu0 0
        %2650 = vmatmul.mubr.bf16.gmra.mxu0 %v2592
        %v2651 = vpop.f32.mrf.mxu0
        %v2652 = vadd.f32 0.0, %v2651
        %v2653 = vpop.f32.mrf.mxu0
        %v2654 = vpop.f32.mrf.mxu0
        %v2655 = vadd.f32 0.0, %v2654
        %v2656 = vpop.f32.mrf.mxu0
        %2657 = vmatprep.mubr.bf16.mxu0 0
        %2658 = vmatmul.mubr.bf16.gmra.mxu0 %v2595
        %v2659 = vpop.f32.mrf.mxu0
        %v2660 = vadd.f32 0.0, %v2659
        %v2661 = vpop.f32.mrf.mxu0
        %v2662 = vpop.f32.mrf.mxu0
        %v2663 = vadd.f32 0.0, %v2662
        %v2664 = vpop.f32.mrf.mxu0
        %2665 = vmatprep.mubr.bf16.mxu0 0
        %2666 = vmatmul.mubr.bf16.gmra.mxu0 %v2598
        %v2667 = vpop.f32.mrf.mxu0
        %v2668 = vadd.f32 0.0, %v2667
        %v2669 = vpop.f32.mrf.mxu0
        %v2670 = vpop.f32.mrf.mxu0
        %v2671 = vadd.f32 0.0, %v2670
        %v2672 = vpop.f32.mrf.mxu0
        %2673 = vmatprep.mubr.bf16.mxu0 0
        %2674 = vmatmul.mubr.bf16.gmra.mxu0 %v2601
        %v2675 = vpop.f32.mrf.mxu0
        %v2676 = vadd.f32 0.0, %v2675
        %v2677 = vpop.f32.mrf.mxu0
        %v2678 = vpop.f32.mrf.mxu0
        %v2679 = vadd.f32 0.0, %v2678
        %v2680 = vpop.f32.mrf.mxu0
        %2681 = vmatprep.mubr.bf16.mxu0 0
        %2682 = vmatmul.mubr.bf16.gmra.mxu0 %v2604
        %v2683 = vpop.f32.mrf.mxu0
        %v2684 = vadd.f32 0.0, %v2683
        %v2685 = vpop.f32.mrf.mxu0
        %v2686 = vpop.f32.mrf.mxu0
        %v2687 = vadd.f32 0.0, %v2686
        %v2688 = vpop.f32.mrf.mxu0
        %2689 = vmatprep.mubr.bf16.mxu0 0
        %2690 = vmatmul.mubr.bf16.gmra.mxu0 %v2607
        %v2691 = vpop.f32.mrf.mxu0
        %v2692 = vadd.f32 0.0, %v2691
        %v2693 = vpop.f32.mrf.mxu0
        %v2694 = vpop.f32.mrf.mxu0
        %v2695 = vpop.f32.mrf.mxu0
        %2696 = vdwg.mxu0
        %v2697 = vadd.f32 %v2512, %v2644
        %v2698 = vadd.f32 %v2513, %v2647
        %v2699 = vadd.f32 %v2514, %v2652
        %v2700 = vadd.f32 %v2515, %v2655
        %v2701 = vadd.f32 %v2516, %v2660
        %v2702 = vadd.f32 %v2517, %v2663
        %v2703 = vadd.f32 %v2518, %v2668
        %v2704 = vadd.f32 %v2519, %v2671
        %v2705 = vadd.f32 %v2520, %v2676
        %v2706 = vadd.f32 %v2521, %v2679
        %v2707 = vadd.f32 %v2522, %v2684
        %v2708 = vadd.f32 %v2523, %v2687
        %v2709 = vadd.f32 %v2524, %v2692
        %v2710 = vadd.f32 %v2697, %v1176
        %v2711 = vadd.f32 %v2698, %v1176
        %v2712 = vadd.f32 %v2699, %v1176
        %v2713 = vadd.f32 %v2700, %v1176
        %v2714 = vadd.f32 %v2701, %v1176
        %v2715 = vadd.f32 %v2702, %v1176
        %v2716 = vadd.f32 %v2703, %v1176
        %v2717 = vadd.f32 %v2704, %v1176
        %v2718 = vadd.f32 %v2705, %v1176
        %v2719 = vadd.f32 %v2706, %v1176
        %v2720 = vadd.f32 %v2707, %v1176
        %v2721 = vadd.f32 %v2708, %v1176
        %v2722 = vadd.f32 %v2709, %v1176
        %v2723 = vmax.f32 %v2710, 0.0
        %v2724 = vmax.f32 %v2711, 0.0
        %v2725 = vmax.f32 %v2712, 0.0
        %v2726 = vmax.f32 %v2713, 0.0
        %v2727 = vmax.f32 %v2714, 0.0
        %v2728 = vmax.f32 %v2715, 0.0
        %v2729 = vmax.f32 %v2716, 0.0
        %v2730 = vmax.f32 %v2717, 0.0
        %v2731 = vmax.f32 %v2718, 0.0
        %v2732 = vmax.f32 %v2719, 0.0
        %v2733 = vmax.f32 %v2720, 0.0
        %v2734 = vmax.f32 %v2721, 0.0
        %v2735 = vmax.f32 %v2722, 0.0
        %2749 = vrot.lane.b32.xlu0 %v1742, 32
        %v2750 = vpop.permute.xlu0 %2749
        %2751 = vrot.lane.b32.xlu0 %v1743, 32
        %v2752 = vpop.permute.xlu0 %2751
        %2753 = vrot.lane.b32.xlu0 %v1744, 32
        %v2754 = vpop.permute.xlu0 %2753
        %2755 = vrot.lane.b32.xlu0 %v1745, 32
        %v2756 = vpop.permute.xlu0 %2755
        %2757 = vrot.lane.b32.xlu0 %v1746, 32
        %v2758 = vpop.permute.xlu0 %2757
        %2759 = vrot.lane.b32.xlu0 %v1747, 32
        %v2760 = vpop.permute.xlu0 %2759
        %2761 = vrot.lane.b32.xlu0 %v1748, 32
        %v2762 = vpop.permute.xlu0 %2761
        %2763 = vrot.lane.b32.xlu0 %v1749, 32
        %v2764 = vpop.permute.xlu0 %2763
        %2765 = vrot.lane.b32.xlu0 %v1750, 32
        %v2766 = vpop.permute.xlu0 %2765
        %2767 = vrot.lane.b32.xlu0 %v1751, 32
        %v2768 = vpop.permute.xlu0 %2767
        %2769 = vrot.lane.b32.xlu0 %v1752, 32
        %v2770 = vpop.permute.xlu0 %2769
        %2771 = vrot.lane.b32.xlu0 %v1753, 32
        %v2772 = vpop.permute.xlu0 %2771
        %2773 = vrot.lane.b32.xlu0 %v1754, 32
        %v2774 = vpop.permute.xlu0 %2773
        %2801 = vrot.lane.b32.xlu0 %v2235, 64
        %v2802 = vpop.permute.xlu0 %2801
        %2803 = vrot.lane.b32.xlu0 %v2236, 64
        %v2804 = vpop.permute.xlu0 %2803
        %2805 = vrot.lane.b32.xlu0 %v2237, 64
        %v2806 = vpop.permute.xlu0 %2805
        %2807 = vrot.lane.b32.xlu0 %v2238, 64
        %v2808 = vpop.permute.xlu0 %2807
        %2809 = vrot.lane.b32.xlu0 %v2239, 64
        %v2810 = vpop.permute.xlu0 %2809
        %2811 = vrot.lane.b32.xlu0 %v2240, 64
        %v2812 = vpop.permute.xlu0 %2811
        %2813 = vrot.lane.b32.xlu0 %v2241, 64
        %v2814 = vpop.permute.xlu0 %2813
        %2815 = vrot.lane.b32.xlu0 %v2242, 64
        %v2816 = vpop.permute.xlu0 %2815
        %2817 = vrot.lane.b32.xlu0 %v2243, 64
        %v2818 = vpop.permute.xlu0 %2817
        %2819 = vrot.lane.b32.xlu0 %v2244, 64
        %v2820 = vpop.permute.xlu0 %2819
        %2821 = vrot.lane.b32.xlu0 %v2245, 64
        %v2822 = vpop.permute.xlu0 %2821
        %2823 = vrot.lane.b32.xlu0 %v2246, 64
        %v2824 = vpop.permute.xlu0 %2823
        %2825 = vrot.lane.b32.xlu0 %v2247, 64
        %v2826 = vpop.permute.xlu0 %2825
        %2853 = vrot.lane.b32.xlu0 %v2723, 96
        %v2854 = vpop.permute.xlu0 %2853
        %2855 = vrot.lane.b32.xlu0 %v2724, 96
        %v2856 = vpop.permute.xlu0 %2855
        %2857 = vrot.lane.b32.xlu0 %v2725, 96
        %v2858 = vpop.permute.xlu0 %2857
        %2859 = vrot.lane.b32.xlu0 %v2726, 96
        %v2860 = vpop.permute.xlu0 %2859
        %2861 = vrot.lane.b32.xlu0 %v2727, 96
        %v2862 = vpop.permute.xlu0 %2861
        %2863 = vrot.lane.b32.xlu0 %v2728, 96
        %v2864 = vpop.permute.xlu0 %2863
        %2865 = vrot.lane.b32.xlu0 %v2729, 96
        %v2866 = vpop.permute.xlu0 %2865
        %2867 = vrot.lane.b32.xlu0 %v2730, 96
        %v2868 = vpop.permute.xlu0 %2867
        %2869 = vrot.lane.b32.xlu0 %v2731, 96
        %v2870 = vpop.permute.xlu0 %2869
        %2871 = vrot.lane.b32.xlu0 %v2732, 96
        %v2872 = vpop.permute.xlu0 %2871
        %2873 = vrot.lane.b32.xlu0 %v2733, 96
        %v2874 = vpop.permute.xlu0 %2873
        %2875 = vrot.lane.b32.xlu0 %v2734, 96
        %v2876 = vpop.permute.xlu0 %2875
        %2877 = vrot.lane.b32.xlu0 %v2735, 96
        %v2878 = vpop.permute.xlu0 %2877
        %vm2892 = vcmask 261120
        %v2893 = vsel %vm2892, %v1191, %v2750
        %v2894 = vsel %vm2892, %v1192, %v2752
        %v2895 = vsel %vm2892, %v1193, %v2754
        %v2896 = vsel %vm2892, %v1194, %v2756
        %v2897 = vsel %vm2892, %v1195, %v2758
        %v2898 = vsel %vm2892, %v1196, %v2760
        %v2899 = vsel %vm2892, %v1197, %v2762
        %v2900 = vsel %vm2892, %v1198, %v2764
        %v2901 = vsel %vm2892, %v1199, %v2766
        %v2902 = vsel %vm2892, %v1200, %v2768
        %v2903 = vsel %vm2892, %v1201, %v2770
        %v2904 = vsel %vm2892, %v1202, %v2772
        %v2905 = vsel %vm2892, %v1203, %v2774
        %v2906 = vsel %vm519, %v2893, %v2802
        %v2907 = vsel %vm519, %v2894, %v2804
        %v2908 = vsel %vm519, %v2895, %v2806
        %v2909 = vsel %vm519, %v2896, %v2808
        %v2910 = vsel %vm519, %v2897, %v2810
        %v2911 = vsel %vm519, %v2898, %v2812
        %v2912 = vsel %vm519, %v2899, %v2814
        %v2913 = vsel %vm519, %v2900, %v2816
        %v2914 = vsel %vm519, %v2901, %v2818
        %v2915 = vsel %vm519, %v2902, %v2820
        %v2916 = vsel %vm519, %v2903, %v2822
        %v2917 = vsel %vm519, %v2904, %v2824
        %v2918 = vsel %vm519, %v2905, %v2826
        %vm2919 = vcmask 785408
        %v2920 = vsel %vm2919, %v2906, %v2854
        %v2921 = vsel %vm2919, %v2907, %v2856
        %v2922 = vsel %vm2919, %v2908, %v2858
        %v2923 = vsel %vm2919, %v2909, %v2860
        %v2924 = vsel %vm2919, %v2910, %v2862
        %v2925 = vsel %vm2919, %v2911, %v2864
        %v2926 = vsel %vm2919, %v2912, %v2866
        %v2927 = vsel %vm2919, %v2913, %v2868
        %v2928 = vsel %vm2919, %v2914, %v2870
        %v2929 = vsel %vm2919, %v2915, %v2872
        %v2930 = vsel %vm2919, %v2916, %v2874
        %v2931 = vsel %vm2919, %v2917, %v2876
        %v2932 = vsel %vm2919, %v2918, %v2878
        %v2933 = vpack.c.bf16 %v2921, %v2920
        %v2934 = vpack.c.bf16 %v2923, %v2922
        %v2935 = vpack.c.bf16 %v2925, %v2924
        %v2936 = vpack.c.bf16 %v2927, %v2926
        %v2937 = vpack.c.bf16 %v2929, %v2928
        %v2938 = vpack.c.bf16 %v2931, %v2930
        %v2939 = vpack.c.bf16 %v2932, %v2932
        %v2940 = vld [vmem:[%s3] sm:$0xf]
        %v2941 = vld [vmem:[%s3 + $0x4] sm:$0xf]
        %v2942 = vld [vmem:[%s3 + $0x8] sm:$0xf]
        %v2943 = vld [vmem:[%s3 + $0xc] sm:$0xf]
        %v2944 = vld [vmem:[%s3 + $0x10] sm:$0xf]
        %v2945 = vld [vmem:[%s3 + $0x14] sm:$0xf]
        %v2946 = vld [vmem:[%s3 + $0x18] sm:$0xf]
        %v2947 = vld [vmem:[%s3 + $0x1c] sm:$0xf]
        %v2948 = vld [vmem:[%s3 + $0x20] sm:$0xf]
        %v2949 = vld [vmem:[%s3 + $0x24] sm:$0xf]
        %v2950 = vld [vmem:[%s3 + $0x28] sm:$0xf]
        %v2951 = vld [vmem:[%s3 + $0x2c] sm:$0xf]
        %v2952 = vld [vmem:[%s3 + $0x30] sm:$0xf]
        %v2953 = vld [vmem:[%s3 + $0x34] sm:$0xf]
        %v2954 = vld [vmem:[%s3 + $0x38] sm:$0xf]
        %v2955 = vld [vmem:[%s3 + $0x3c] sm:$0xf]
        %s2956 = scalar_lea.vmem %s3, 64
        %v2957 = vld [vmem:[%s2956] sm:$0xf]
        %v2958 = vld [vmem:[%s2956 + $0x4] sm:$0xf]
        %v2959 = vld [vmem:[%s2956 + $0x8] sm:$0xf]
        %v2960 = vld [vmem:[%s2956 + $0xc] sm:$0xf]
        %v2961 = vld [vmem:[%s2956 + $0x10] sm:$0xf]
        %v2962 = vld [vmem:[%s2956 + $0x14] sm:$0xf]
        %v2963 = vld [vmem:[%s2956 + $0x18] sm:$0xf]
        %v2964 = vld [vmem:[%s2956 + $0x1c] sm:$0xf]
        %v2965 = vld [vmem:[%s2956 + $0x20] sm:$0xf]
        %v2966 = vld [vmem:[%s2956 + $0x24] sm:$0xf]
        %v2967 = vld [vmem:[%s2956 + $0x28] sm:$0xf]
        %v2968 = vld [vmem:[%s2956 + $0x2c] sm:$0xf]
        %v2969 = vld [vmem:[%s2956 + $0x30] sm:$0xf]
        %v2970 = vld [vmem:[%s2956 + $0x34] sm:$0xf]
        %v2971 = vld [vmem:[%s2956 + $0x38] sm:$0xf]
        %v2972 = vld [vmem:[%s2956 + $0x3c] sm:$0xf]
        %v2974 = vshrl.u32 %v2933, 16
        %v2976 = vshll.u32 %v2933, 16
        %v2978 = vrot.slane %v2976, 1
        %v2979 = vor.u32 %v2974, %v2978
        %v2981 = vshll.u32 %v2934, 16
        %v2983 = vrot.slane %v2981, 1
        %v2984 = vsel %vm1207, %v2979, %v2983
        %v2985 = vshrl.u32 %v2934, 16
        %v2987 = vor.u32 %v2985, %v2983
        %v2989 = vshll.u32 %v2935, 16
        %v2991 = vrot.slane %v2989, 1
        %v2992 = vsel %vm1207, %v2987, %v2991
        %v2993 = vshrl.u32 %v2935, 16
        %v2995 = vor.u32 %v2993, %v2991
        %v2997 = vshll.u32 %v2936, 16
        %v2999 = vrot.slane %v2997, 1
        %v3000 = vsel %vm1207, %v2995, %v2999
        %v3001 = vshrl.u32 %v2936, 16
        %v3003 = vor.u32 %v3001, %v2999
        %v3005 = vshll.u32 %v2937, 16
        %v3007 = vrot.slane %v3005, 1
        %v3008 = vsel %vm1207, %v3003, %v3007
        %v3009 = vshrl.u32 %v2937, 16
        %v3011 = vor.u32 %v3009, %v3007
        %v3013 = vshll.u32 %v2938, 16
        %v3015 = vrot.slane %v3013, 1
        %v3016 = vsel %vm1207, %v3011, %v3015
        %v3017 = vshrl.u32 %v2938, 16
        %v3019 = vor.u32 %v3017, %v3015
        %v3042 = vunpack.c.l.b16 %v2957
        %v3043 = vunpack.c.l.b16 %v2958
        %v3044 = vunpack.c.l.b16 %v2959
        %v3045 = vunpack.c.l.b16 %v2960
        %v3046 = vunpack.c.l.b16 %v2961
        %v3047 = vunpack.c.l.b16 %v2962
        %v3048 = vunpack.c.l.b16 %v2963
        %v3049 = vunpack.c.l.b16 %v2964
        %v3050 = vunpack.c.l.b16 %v2965
        %v3051 = vunpack.c.l.b16 %v2966
        %v3052 = vunpack.c.l.b16 %v2967
        %v3053 = vunpack.c.l.b16 %v2968
        %v3054 = vunpack.c.l.b16 %v2969
        %v3055 = vunpack.c.l.b16 %v2970
        %v3056 = vunpack.c.l.b16 %v2971
        %v3057 = vunpack.c.l.b16 %v2972
        %v3058 = vpack.c.b16 %v3043, %v3042
        %v3059 = vpack.c.b16 %v3045, %v3044
        %v3060 = vpack.c.b16 %v3047, %v3046
        %v3061 = vpack.c.b16 %v3049, %v3048
        %v3062 = vpack.c.b16 %v3051, %v3050
        %v3063 = vpack.c.b16 %v3053, %v3052
        %v3064 = vpack.c.b16 %v3055, %v3054
        %v3065 = vpack.c.b16 %v3057, %v3056
        %3074 = vmatprep.subr.bf16.mxu0 0
        %3075 = vmatpush1.bf16.msra.mxu0 %v3065
        %3076 = vmatprep.subr.bf16.mxu0 0
        %3077 = vmatpush1.bf16.msra.mxu0 %v3064
        %3078 = vmatprep.subr.bf16.mxu0 0
        %3079 = vmatpush1.bf16.msra.mxu0 %v3063
        %3080 = vmatprep.subr.bf16.mxu0 0
        %3081 = vmatpush1.bf16.msra.mxu0 %v3062
        %3082 = vmatprep.subr.bf16.mxu0 0
        %3083 = vmatpush1.bf16.msra.mxu0 %v3061
        %3084 = vmatprep.subr.bf16.mxu0 0
        %3085 = vmatpush1.bf16.msra.mxu0 %v3060
        %3086 = vmatprep.subr.bf16.mxu0 0
        %3087 = vmatpush1.bf16.msra.mxu0 %v3059
        %3088 = vmatprep.subr.bf16.mxu0 0
        %3089 = vmatpush1.bf16.msra.mxu0 %v3058
        %3090 = vmatprep.subr.bf16.mxu0 0
        %3091 = vmatpush2.bf16.msra.mxu0 0
        %3092 = vmatprep.subr.bf16.mxu0 0
        %3093 = vmatpush2.bf16.msra.mxu0 0
        %3094 = vmatprep.subr.bf16.mxu0 0
        %3095 = vmatpush2.bf16.msra.mxu0 0
        %3096 = vmatprep.subr.bf16.mxu0 0
        %3097 = vmatpush2.bf16.msra.mxu0 0
        %3098 = vmatprep.subr.bf16.mxu0 0
        %3099 = vmatpush2.bf16.msra.mxu0 0
        %3100 = vmatprep.subr.bf16.mxu0 0
        %3101 = vmatpush2.bf16.msra.mxu0 0
        %3102 = vmatprep.subr.bf16.mxu0 0
        %3103 = vmatpush2.bf16.msra.mxu0 0
        %3104 = vmatprep.subr.bf16.mxu0 0
        %3105 = vmatpush2.bf16.msra.mxu0 0
        %3106 = vmatprep.mubr.bf16.mxu0 0
        %3107 = vmatmul.mubr.bf16.gmra.mxu0 %v2984
        %v3108 = vpop.f32.mrf.mxu0
        %v3109 = vadd.f32 0.0, %v3108
        %v3110 = vpop.f32.mrf.mxu0
        %v3111 = vpop.f32.mrf.mxu0
        %v3112 = vadd.f32 0.0, %v3111
        %v3113 = vpop.f32.mrf.mxu0
        %3114 = vmatprep.mubr.bf16.mxu0 0
        %3115 = vmatmul.mubr.bf16.gmra.mxu0 %v2992
        %v3116 = vpop.f32.mrf.mxu0
        %v3117 = vadd.f32 0.0, %v3116
        %v3118 = vpop.f32.mrf.mxu0
        %v3119 = vpop.f32.mrf.mxu0
        %v3120 = vadd.f32 0.0, %v3119
        %v3121 = vpop.f32.mrf.mxu0
        %3122 = vmatprep.mubr.bf16.mxu0 0
        %3123 = vmatmul.mubr.bf16.gmra.mxu0 %v3000
        %v3124 = vpop.f32.mrf.mxu0
        %v3125 = vadd.f32 0.0, %v3124
        %v3126 = vpop.f32.mrf.mxu0
        %v3127 = vpop.f32.mrf.mxu0
        %v3128 = vadd.f32 0.0, %v3127
        %v3129 = vpop.f32.mrf.mxu0
        %3130 = vmatprep.mubr.bf16.mxu0 0
        %3131 = vmatmul.mubr.bf16.gmra.mxu0 %v3008
        %v3132 = vpop.f32.mrf.mxu0
        %v3133 = vadd.f32 0.0, %v3132
        %v3134 = vpop.f32.mrf.mxu0
        %v3135 = vpop.f32.mrf.mxu0
        %v3136 = vadd.f32 0.0, %v3135
        %v3137 = vpop.f32.mrf.mxu0
        %3138 = vmatprep.mubr.bf16.mxu0 0
        %3139 = vmatmul.mubr.bf16.gmra.mxu0 %v3016
        %v3140 = vpop.f32.mrf.mxu0
        %v3141 = vadd.f32 0.0, %v3140
        %v3142 = vpop.f32.mrf.mxu0
        %v3143 = vpop.f32.mrf.mxu0
        %v3144 = vadd.f32 0.0, %v3143
        %v3145 = vpop.f32.mrf.mxu0
        %3146 = vmatprep.mubr.bf16.mxu0 0
        %3147 = vmatmul.mubr.bf16.gmra.mxu0 %v3019
        %v3148 = vpop.f32.mrf.mxu0
        %v3149 = vadd.f32 0.0, %v3148
        %v3150 = vpop.f32.mrf.mxu0
        %v3151 = vpop.f32.mrf.mxu0
        %v3152 = vpop.f32.mrf.mxu0
        %3153 = vdwg.mxu0
        %v3170 = vunpack.c.l.b16 %v2940
        %v3171 = vunpack.c.l.b16 %v2941
        %v3172 = vunpack.c.l.b16 %v2942
        %v3173 = vunpack.c.l.b16 %v2943
        %v3174 = vunpack.c.l.b16 %v2944
        %v3175 = vunpack.c.l.b16 %v2945
        %v3176 = vunpack.c.l.b16 %v2946
        %v3177 = vunpack.c.l.b16 %v2947
        %v3178 = vunpack.c.l.b16 %v2948
        %v3179 = vunpack.c.l.b16 %v2949
        %v3180 = vunpack.c.l.b16 %v2950
        %v3181 = vunpack.c.l.b16 %v2951
        %v3182 = vunpack.c.l.b16 %v2952
        %v3183 = vunpack.c.l.b16 %v2953
        %v3184 = vunpack.c.l.b16 %v2954
        %v3185 = vunpack.c.l.b16 %v2955
        %v3186 = vpack.c.b16 %v3171, %v3170
        %v3187 = vpack.c.b16 %v3173, %v3172
        %v3188 = vpack.c.b16 %v3175, %v3174
        %v3189 = vpack.c.b16 %v3177, %v3176
        %v3190 = vpack.c.b16 %v3179, %v3178
        %v3191 = vpack.c.b16 %v3181, %v3180
        %v3192 = vpack.c.b16 %v3183, %v3182
        %v3193 = vpack.c.b16 %v3185, %v3184
        %3202 = vmatprep.subr.bf16.mxu0 0
        %3203 = vmatpush1.bf16.msra.mxu0 %v3193
        %3204 = vmatprep.subr.bf16.mxu0 0
        %3205 = vmatpush1.bf16.msra.mxu0 %v3192
        %3206 = vmatprep.subr.bf16.mxu0 0
        %3207 = vmatpush1.bf16.msra.mxu0 %v3191
        %3208 = vmatprep.subr.bf16.mxu0 0
        %3209 = vmatpush1.bf16.msra.mxu0 %v3190
        %3210 = vmatprep.subr.bf16.mxu0 0
        %3211 = vmatpush1.bf16.msra.mxu0 %v3189
        %3212 = vmatprep.subr.bf16.mxu0 0
        %3213 = vmatpush1.bf16.msra.mxu0 %v3188
        %3214 = vmatprep.subr.bf16.mxu0 0
        %3215 = vmatpush1.bf16.msra.mxu0 %v3187
        %3216 = vmatprep.subr.bf16.mxu0 0
        %3217 = vmatpush1.bf16.msra.mxu0 %v3186
        %3218 = vmatprep.subr.bf16.mxu0 0
        %3219 = vmatpush2.bf16.msra.mxu0 0
        %3220 = vmatprep.subr.bf16.mxu0 0
        %3221 = vmatpush2.bf16.msra.mxu0 0
        %3222 = vmatprep.subr.bf16.mxu0 0
        %3223 = vmatpush2.bf16.msra.mxu0 0
        %3224 = vmatprep.subr.bf16.mxu0 0
        %3225 = vmatpush2.bf16.msra.mxu0 0
        %3226 = vmatprep.subr.bf16.mxu0 0
        %3227 = vmatpush2.bf16.msra.mxu0 0
        %3228 = vmatprep.subr.bf16.mxu0 0
        %3229 = vmatpush2.bf16.msra.mxu0 0
        %3230 = vmatprep.subr.bf16.mxu0 0
        %3231 = vmatpush2.bf16.msra.mxu0 0
        %3232 = vmatprep.subr.bf16.mxu0 0
        %3233 = vmatpush2.bf16.msra.mxu0 0
        %3234 = vmatprep.mubr.bf16.mxu0 0
        %3235 = vmatmul.mubr.bf16.gmra.mxu0 %v2933
        %v3236 = vpop.f32.mrf.mxu0
        %v3237 = vadd.f32 %v3109, %v3236
        %v3238 = vpop.f32.mrf.mxu0
        %v3239 = vpop.f32.mrf.mxu0
        %v3240 = vadd.f32 %v3112, %v3239
        %v3241 = vpop.f32.mrf.mxu0
        %3242 = vmatprep.mubr.bf16.mxu0 0
        %3243 = vmatmul.mubr.bf16.gmra.mxu0 %v2934
        %v3244 = vpop.f32.mrf.mxu0
        %v3245 = vadd.f32 %v3117, %v3244
        %v3246 = vpop.f32.mrf.mxu0
        %v3247 = vpop.f32.mrf.mxu0
        %v3248 = vadd.f32 %v3120, %v3247
        %v3249 = vpop.f32.mrf.mxu0
        %3250 = vmatprep.mubr.bf16.mxu0 0
        %3251 = vmatmul.mubr.bf16.gmra.mxu0 %v2935
        %v3252 = vpop.f32.mrf.mxu0
        %v3253 = vadd.f32 %v3125, %v3252
        %v3254 = vpop.f32.mrf.mxu0
        %v3255 = vpop.f32.mrf.mxu0
        %v3256 = vadd.f32 %v3128, %v3255
        %v3257 = vpop.f32.mrf.mxu0
        %3258 = vmatprep.mubr.bf16.mxu0 0
        %3259 = vmatmul.mubr.bf16.gmra.mxu0 %v2936
        %v3260 = vpop.f32.mrf.mxu0
        %v3261 = vadd.f32 %v3133, %v3260
        %v3262 = vpop.f32.mrf.mxu0
        %v3263 = vpop.f32.mrf.mxu0
        %v3264 = vadd.f32 %v3136, %v3263
        %v3265 = vpop.f32.mrf.mxu0
        %3266 = vmatprep.mubr.bf16.mxu0 0
        %3267 = vmatmul.mubr.bf16.gmra.mxu0 %v2937
        %v3268 = vpop.f32.mrf.mxu0
        %v3269 = vadd.f32 %v3141, %v3268
        %v3270 = vpop.f32.mrf.mxu0
        %v3271 = vpop.f32.mrf.mxu0
        %v3272 = vadd.f32 %v3144, %v3271
        %v3273 = vpop.f32.mrf.mxu0
        %3274 = vmatprep.mubr.bf16.mxu0 0
        %3275 = vmatmul.mubr.bf16.gmra.mxu0 %v2938
        %v3276 = vpop.f32.mrf.mxu0
        %v3277 = vadd.f32 %v3149, %v3276
        %v3278 = vpop.f32.mrf.mxu0
        %v3279 = vpop.f32.mrf.mxu0
        %v3280 = vpop.f32.mrf.mxu0
        %3281 = vdwg.mxu0
        %s3282 = scalar_lea.vmem %s3, 128
        %v3283 = vld [vmem:[%s3282] sm:$0xf]
        %v3284 = vld [vmem:[%s3282 + $0x4] sm:$0xf]
        %v3285 = vld [vmem:[%s3282 + $0x8] sm:$0xf]
        %v3286 = vld [vmem:[%s3282 + $0xc] sm:$0xf]
        %v3287 = vld [vmem:[%s3282 + $0x10] sm:$0xf]
        %v3288 = vld [vmem:[%s3282 + $0x14] sm:$0xf]
        %v3289 = vld [vmem:[%s3282 + $0x18] sm:$0xf]
        %v3290 = vld [vmem:[%s3282 + $0x1c] sm:$0xf]
        %v3291 = vld [vmem:[%s3282 + $0x20] sm:$0xf]
        %v3292 = vld [vmem:[%s3282 + $0x24] sm:$0xf]
        %v3293 = vld [vmem:[%s3282 + $0x28] sm:$0xf]
        %v3294 = vld [vmem:[%s3282 + $0x2c] sm:$0xf]
        %v3295 = vld [vmem:[%s3282 + $0x30] sm:$0xf]
        %v3296 = vld [vmem:[%s3282 + $0x34] sm:$0xf]
        %v3297 = vld [vmem:[%s3282 + $0x38] sm:$0xf]
        %v3298 = vld [vmem:[%s3282 + $0x3c] sm:$0xf]
        %vm3306 = vcmask 1041408
        %v3307 = vrot.slane %v2933, 6
        %v3308 = vrot.slane %v2934, 6
        %v3309 = vsel %vm3306, %v3307, %v3308
        %v3310 = vrot.slane %v2935, 6
        %v3311 = vsel %vm3306, %v3308, %v3310
        %v3312 = vrot.slane %v2936, 6
        %v3313 = vsel %vm3306, %v3310, %v3312
        %v3314 = vrot.slane %v2937, 6
        %v3315 = vsel %vm3306, %v3312, %v3314
        %v3316 = vrot.slane %v2938, 6
        %v3317 = vsel %vm3306, %v3314, %v3316
        %v3318 = vrot.slane %v2939, 6
        %v3319 = vsel %vm3306, %v3316, %v3318
        %v3342 = vunpack.c.l.b16 %v3283
        %v3343 = vunpack.c.l.b16 %v3284
        %v3344 = vunpack.c.l.b16 %v3285
        %v3345 = vunpack.c.l.b16 %v3286
        %v3346 = vunpack.c.l.b16 %v3287
        %v3347 = vunpack.c.l.b16 %v3288
        %v3348 = vunpack.c.l.b16 %v3289
        %v3349 = vunpack.c.l.b16 %v3290
        %v3350 = vunpack.c.l.b16 %v3291
        %v3351 = vunpack.c.l.b16 %v3292
        %v3352 = vunpack.c.l.b16 %v3293
        %v3353 = vunpack.c.l.b16 %v3294
        %v3354 = vunpack.c.l.b16 %v3295
        %v3355 = vunpack.c.l.b16 %v3296
        %v3356 = vunpack.c.l.b16 %v3297
        %v3357 = vunpack.c.l.b16 %v3298
        %v3358 = vpack.c.b16 %v3343, %v3342
        %v3359 = vpack.c.b16 %v3345, %v3344
        %v3360 = vpack.c.b16 %v3347, %v3346
        %v3361 = vpack.c.b16 %v3349, %v3348
        %v3362 = vpack.c.b16 %v3351, %v3350
        %v3363 = vpack.c.b16 %v3353, %v3352
        %v3364 = vpack.c.b16 %v3355, %v3354
        %v3365 = vpack.c.b16 %v3357, %v3356
        %3374 = vmatprep.subr.bf16.mxu0 0
        %3375 = vmatpush1.bf16.msra.mxu0 %v3365
        %3376 = vmatprep.subr.bf16.mxu0 0
        %3377 = vmatpush1.bf16.msra.mxu0 %v3364
        %3378 = vmatprep.subr.bf16.mxu0 0
        %3379 = vmatpush1.bf16.msra.mxu0 %v3363
        %3380 = vmatprep.subr.bf16.mxu0 0
        %3381 = vmatpush1.bf16.msra.mxu0 %v3362
        %3382 = vmatprep.subr.bf16.mxu0 0
        %3383 = vmatpush1.bf16.msra.mxu0 %v3361
        %3384 = vmatprep.subr.bf16.mxu0 0
        %3385 = vmatpush1.bf16.msra.mxu0 %v3360
        %3386 = vmatprep.subr.bf16.mxu0 0
        %3387 = vmatpush1.bf16.msra.mxu0 %v3359
        %3388 = vmatprep.subr.bf16.mxu0 0
        %3389 = vmatpush1.bf16.msra.mxu0 %v3358
        %3390 = vmatprep.subr.bf16.mxu0 0
        %3391 = vmatpush2.bf16.msra.mxu0 0
        %3392 = vmatprep.subr.bf16.mxu0 0
        %3393 = vmatpush2.bf16.msra.mxu0 0
        %3394 = vmatprep.subr.bf16.mxu0 0
        %3395 = vmatpush2.bf16.msra.mxu0 0
        %3396 = vmatprep.subr.bf16.mxu0 0
        %3397 = vmatpush2.bf16.msra.mxu0 0
        %3398 = vmatprep.subr.bf16.mxu0 0
        %3399 = vmatpush2.bf16.msra.mxu0 0
        %3400 = vmatprep.subr.bf16.mxu0 0
        %3401 = vmatpush2.bf16.msra.mxu0 0
        %3402 = vmatprep.subr.bf16.mxu0 0
        %3403 = vmatpush2.bf16.msra.mxu0 0
        %3404 = vmatprep.subr.bf16.mxu0 0
        %3405 = vmatpush2.bf16.msra.mxu0 0
        %3406 = vmatprep.mubr.bf16.mxu0 0
        %3407 = vmatmul.mubr.bf16.gmra.mxu0 %v3309
        %v3408 = vpop.f32.mrf.mxu0
        %v3409 = vadd.f32 0.0, %v3408
        %v3410 = vpop.f32.mrf.mxu0
        %v3411 = vpop.f32.mrf.mxu0
        %v3412 = vadd.f32 0.0, %v3411
        %v3413 = vpop.f32.mrf.mxu0
        %3414 = vmatprep.mubr.bf16.mxu0 0
        %3415 = vmatmul.mubr.bf16.gmra.mxu0 %v3311
        %v3416 = vpop.f32.mrf.mxu0
        %v3417 = vadd.f32 0.0, %v3416
        %v3418 = vpop.f32.mrf.mxu0
        %v3419 = vpop.f32.mrf.mxu0
        %v3420 = vadd.f32 0.0, %v3419
        %v3421 = vpop.f32.mrf.mxu0
        %3422 = vmatprep.mubr.bf16.mxu0 0
        %3423 = vmatmul.mubr.bf16.gmra.mxu0 %v3313
        %v3424 = vpop.f32.mrf.mxu0
        %v3425 = vadd.f32 0.0, %v3424
        %v3426 = vpop.f32.mrf.mxu0
        %v3427 = vpop.f32.mrf.mxu0
        %v3428 = vadd.f32 0.0, %v3427
        %v3429 = vpop.f32.mrf.mxu0
        %3430 = vmatprep.mubr.bf16.mxu0 0
        %3431 = vmatmul.mubr.bf16.gmra.mxu0 %v3315
        %v3432 = vpop.f32.mrf.mxu0
        %v3433 = vadd.f32 0.0, %v3432
        %v3434 = vpop.f32.mrf.mxu0
        %v3435 = vpop.f32.mrf.mxu0
        %v3436 = vadd.f32 0.0, %v3435
        %v3437 = vpop.f32.mrf.mxu0
        %3438 = vmatprep.mubr.bf16.mxu0 0
        %3439 = vmatmul.mubr.bf16.gmra.mxu0 %v3317
        %v3440 = vpop.f32.mrf.mxu0
        %v3441 = vadd.f32 0.0, %v3440
        %v3442 = vpop.f32.mrf.mxu0
        %v3443 = vpop.f32.mrf.mxu0
        %v3444 = vadd.f32 0.0, %v3443
        %v3445 = vpop.f32.mrf.mxu0
        %3446 = vmatprep.mubr.bf16.mxu0 0
        %3447 = vmatmul.mubr.bf16.gmra.mxu0 %v3319
        %v3448 = vpop.f32.mrf.mxu0
        %v3449 = vadd.f32 0.0, %v3448
        %v3450 = vpop.f32.mrf.mxu0
        %v3451 = vpop.f32.mrf.mxu0
        %v3452 = vpop.f32.mrf.mxu0
        %3453 = vdwg.mxu0
        %v3454 = vadd.f32 %v3237, %v3409
        %v3455 = vadd.f32 %v3240, %v3412
        %v3456 = vadd.f32 %v3245, %v3417
        %v3457 = vadd.f32 %v3248, %v3420
        %v3458 = vadd.f32 %v3253, %v3425
        %v3459 = vadd.f32 %v3256, %v3428
        %v3460 = vadd.f32 %v3261, %v3433
        %v3461 = vadd.f32 %v3264, %v3436
        %v3462 = vadd.f32 %v3269, %v3441
        %v3463 = vadd.f32 %v3272, %v3444
        %v3464 = vadd.f32 %v3277, %v3449
        %s3465 = scalar_lea.vmem %s3, 192
        %v3466 = vld [vmem:[%s3465] sm:$0xf]
        %v3467 = vld [vmem:[%s3465 + $0x4] sm:$0xf]
        %v3468 = vld [vmem:[%s3465 + $0x8] sm:$0xf]
        %v3469 = vld [vmem:[%s3465 + $0xc] sm:$0xf]
        %v3470 = vld [vmem:[%s3465 + $0x10] sm:$0xf]
        %v3471 = vld [vmem:[%s3465 + $0x14] sm:$0xf]
        %v3472 = vld [vmem:[%s3465 + $0x18] sm:$0xf]
        %v3473 = vld [vmem:[%s3465 + $0x1c] sm:$0xf]
        %v3474 = vld [vmem:[%s3465 + $0x20] sm:$0xf]
        %v3475 = vld [vmem:[%s3465 + $0x24] sm:$0xf]
        %v3476 = vld [vmem:[%s3465 + $0x28] sm:$0xf]
        %v3477 = vld [vmem:[%s3465 + $0x2c] sm:$0xf]
        %v3478 = vld [vmem:[%s3465 + $0x30] sm:$0xf]
        %v3479 = vld [vmem:[%s3465 + $0x34] sm:$0xf]
        %v3480 = vld [vmem:[%s3465 + $0x38] sm:$0xf]
        %v3481 = vld [vmem:[%s3465 + $0x3c] sm:$0xf]
        %vm3482 = vsmask.f32 1280
        %v3483 = vrot.slane %v2974, 6
        %v3484 = vrot.slane %v2976, 7
        %v3485 = vor.u32 %v3483, %v3484
        %v3486 = vrot.slane %v2985, 6
        %v3487 = vrot.slane %v2981, 7
        %v3488 = vor.u32 %v3486, %v3487
        %v3489 = vsel %vm3482, %v3485, %v3488
        %v3490 = vrot.slane %v2993, 6
        %v3491 = vrot.slane %v2989, 7
        %v3492 = vor.u32 %v3490, %v3491
        %v3493 = vsel %vm3482, %v3488, %v3492
        %v3494 = vrot.slane %v3001, 6
        %v3495 = vrot.slane %v2997, 7
        %v3496 = vor.u32 %v3494, %v3495
        %v3497 = vsel %vm3482, %v3492, %v3496
        %v3498 = vrot.slane %v3009, 6
        %v3499 = vrot.slane %v3005, 7
        %v3500 = vor.u32 %v3498, %v3499
        %v3501 = vsel %vm3482, %v3496, %v3500
        %v3502 = vrot.slane %v3017, 6
        %v3503 = vrot.slane %v3013, 7
        %v3504 = vor.u32 %v3502, %v3503
        %v3505 = vsel %vm3482, %v3500, %v3504
        %v3507 = vshrl.u32 %v2939, 16
        %v3509 = vrot.slane %v3507, 6
        %v3510 = vshll.u32 %v2939, 16
        %v3512 = vrot.slane %v3510, 7
        %v3513 = vor.u32 %v3509, %v3512
        %v3514 = vsel %vm3482, %v3504, %v3513
        %v3537 = vunpack.c.l.b16 %v3466
        %v3538 = vunpack.c.l.b16 %v3467
        %v3539 = vunpack.c.l.b16 %v3468
        %v3540 = vunpack.c.l.b16 %v3469
        %v3541 = vunpack.c.l.b16 %v3470
        %v3542 = vunpack.c.l.b16 %v3471
        %v3543 = vunpack.c.l.b16 %v3472
        %v3544 = vunpack.c.l.b16 %v3473
        %v3545 = vunpack.c.l.b16 %v3474
        %v3546 = vunpack.c.l.b16 %v3475
        %v3547 = vunpack.c.l.b16 %v3476
        %v3548 = vunpack.c.l.b16 %v3477
        %v3549 = vunpack.c.l.b16 %v3478
        %v3550 = vunpack.c.l.b16 %v3479
        %v3551 = vunpack.c.l.b16 %v3480
        %v3552 = vunpack.c.l.b16 %v3481
        %v3553 = vpack.c.b16 %v3538, %v3537
        %v3554 = vpack.c.b16 %v3540, %v3539
        %v3555 = vpack.c.b16 %v3542, %v3541
        %v3556 = vpack.c.b16 %v3544, %v3543
        %v3557 = vpack.c.b16 %v3546, %v3545
        %v3558 = vpack.c.b16 %v3548, %v3547
        %v3559 = vpack.c.b16 %v3550, %v3549
        %v3560 = vpack.c.b16 %v3552, %v3551
        %3569 = vmatprep.subr.bf16.mxu0 0
        %3570 = vmatpush1.bf16.msra.mxu0 %v3560
        %3571 = vmatprep.subr.bf16.mxu0 0
        %3572 = vmatpush1.bf16.msra.mxu0 %v3559
        %3573 = vmatprep.subr.bf16.mxu0 0
        %3574 = vmatpush1.bf16.msra.mxu0 %v3558
        %3575 = vmatprep.subr.bf16.mxu0 0
        %3576 = vmatpush1.bf16.msra.mxu0 %v3557
        %3577 = vmatprep.subr.bf16.mxu0 0
        %3578 = vmatpush1.bf16.msra.mxu0 %v3556
        %3579 = vmatprep.subr.bf16.mxu0 0
        %3580 = vmatpush1.bf16.msra.mxu0 %v3555
        %3581 = vmatprep.subr.bf16.mxu0 0
        %3582 = vmatpush1.bf16.msra.mxu0 %v3554
        %3583 = vmatprep.subr.bf16.mxu0 0
        %3584 = vmatpush1.bf16.msra.mxu0 %v3553
        %3585 = vmatprep.subr.bf16.mxu0 0
        %3586 = vmatpush2.bf16.msra.mxu0 0
        %3587 = vmatprep.subr.bf16.mxu0 0
        %3588 = vmatpush2.bf16.msra.mxu0 0
        %3589 = vmatprep.subr.bf16.mxu0 0
        %3590 = vmatpush2.bf16.msra.mxu0 0
        %3591 = vmatprep.subr.bf16.mxu0 0
        %3592 = vmatpush2.bf16.msra.mxu0 0
        %3593 = vmatprep.subr.bf16.mxu0 0
        %3594 = vmatpush2.bf16.msra.mxu0 0
        %3595 = vmatprep.subr.bf16.mxu0 0
        %3596 = vmatpush2.bf16.msra.mxu0 0
        %3597 = vmatprep.subr.bf16.mxu0 0
        %3598 = vmatpush2.bf16.msra.mxu0 0
        %3599 = vmatprep.subr.bf16.mxu0 0
        %3600 = vmatpush2.bf16.msra.mxu0 0
        %3601 = vmatprep.mubr.bf16.mxu0 0
        %3602 = vmatmul.mubr.bf16.gmra.mxu0 %v3489
        %v3603 = vpop.f32.mrf.mxu0
        %v3604 = vadd.f32 0.0, %v3603
        %v3605 = vpop.f32.mrf.mxu0
        %v3606 = vpop.f32.mrf.mxu0
        %v3607 = vadd.f32 0.0, %v3606
        %v3608 = vpop.f32.mrf.mxu0
        %3609 = vmatprep.mubr.bf16.mxu0 0
        %3610 = vmatmul.mubr.bf16.gmra.mxu0 %v3493
        %v3611 = vpop.f32.mrf.mxu0
        %v3612 = vadd.f32 0.0, %v3611
        %v3613 = vpop.f32.mrf.mxu0
        %v3614 = vpop.f32.mrf.mxu0
        %v3615 = vadd.f32 0.0, %v3614
        %v3616 = vpop.f32.mrf.mxu0
        %3617 = vmatprep.mubr.bf16.mxu0 0
        %3618 = vmatmul.mubr.bf16.gmra.mxu0 %v3497
        %v3619 = vpop.f32.mrf.mxu0
        %v3620 = vadd.f32 0.0, %v3619
        %v3621 = vpop.f32.mrf.mxu0
        %v3622 = vpop.f32.mrf.mxu0
        %v3623 = vadd.f32 0.0, %v3622
        %v3624 = vpop.f32.mrf.mxu0
        %3625 = vmatprep.mubr.bf16.mxu0 0
        %3626 = vmatmul.mubr.bf16.gmra.mxu0 %v3501
        %v3627 = vpop.f32.mrf.mxu0
        %v3628 = vadd.f32 0.0, %v3627
        %v3629 = vpop.f32.mrf.mxu0
        %v3630 = vpop.f32.mrf.mxu0
        %v3631 = vadd.f32 0.0, %v3630
        %v3632 = vpop.f32.mrf.mxu0
        %3633 = vmatprep.mubr.bf16.mxu0 0
        %3634 = vmatmul.mubr.bf16.gmra.mxu0 %v3505
        %v3635 = vpop.f32.mrf.mxu0
        %v3636 = vadd.f32 0.0, %v3635
        %v3637 = vpop.f32.mrf.mxu0
        %v3638 = vpop.f32.mrf.mxu0
        %v3639 = vadd.f32 0.0, %v3638
        %v3640 = vpop.f32.mrf.mxu0
        %3641 = vmatprep.mubr.bf16.mxu0 0
        %3642 = vmatmul.mubr.bf16.gmra.mxu0 %v3514
        %v3643 = vpop.f32.mrf.mxu0
        %v3644 = vadd.f32 0.0, %v3643
        %v3645 = vpop.f32.mrf.mxu0
        %v3646 = vpop.f32.mrf.mxu0
        %v3647 = vpop.f32.mrf.mxu0
        %3648 = vdwg.mxu0
        %v3649 = vadd.f32 %v3454, %v3604
        %v3650 = vadd.f32 %v3455, %v3607
        %v3651 = vadd.f32 %v3456, %v3612
        %v3652 = vadd.f32 %v3457, %v3615
        %v3653 = vadd.f32 %v3458, %v3620
        %v3654 = vadd.f32 %v3459, %v3623
        %v3655 = vadd.f32 %v3460, %v3628
        %v3656 = vadd.f32 %v3461, %v3631
        %v3657 = vadd.f32 %v3462, %v3636
        %v3658 = vadd.f32 %v3463, %v3639
        %v3659 = vadd.f32 %v3464, %v3644
        %v3660 = vld [vmem:[%s4] sm:$0x1]
        %v3662 = vlaneseq
        %v3663 = vshrl.u32 %v3662, 7
        %v3664 = vsub.s32 0, %v3663
        %v3665 = vrot.slane %v3660, %v3664
        %v3667 = vadd.f32 %v3649, %v3665
        %v3668 = vadd.f32 %v3650, %v3665
        %v3669 = vadd.f32 %v3651, %v3665
        %v3670 = vadd.f32 %v3652, %v3665
        %v3671 = vadd.f32 %v3653, %v3665
        %v3672 = vadd.f32 %v3654, %v3665
        %v3673 = vadd.f32 %v3655, %v3665
        %v3674 = vadd.f32 %v3656, %v3665
        %v3675 = vadd.f32 %v3657, %v3665
        %v3676 = vadd.f32 %v3658, %v3665
        %v3677 = vadd.f32 %v3659, %v3665
        %v3678 = vmax.f32 %v3667, 0.0
        %v3679 = vmax.f32 %v3668, 0.0
        %v3680 = vmax.f32 %v3669, 0.0
        %v3681 = vmax.f32 %v3670, 0.0
        %v3682 = vmax.f32 %v3671, 0.0
        %v3683 = vmax.f32 %v3672, 0.0
        %v3684 = vmax.f32 %v3673, 0.0
        %v3685 = vmax.f32 %v3674, 0.0
        %v3686 = vmax.f32 %v3675, 0.0
        %v3687 = vmax.f32 %v3676, 0.0
        %v3688 = vmax.f32 %v3677, 0.0
        %v3689 = vpack.c.bf16 %v3679, %v3678
        %v3690 = vpack.c.bf16 %v3681, %v3680
        %v3691 = vpack.c.bf16 %v3683, %v3682
        %v3692 = vpack.c.bf16 %v3685, %v3684
        %v3693 = vpack.c.bf16 %v3687, %v3686
        %v3694 = vpack.c.bf16 %v3688, %v3688
        %v3695 = vld [vmem:[%s5] sm:$0xf]
        %v3696 = vld [vmem:[%s5 + $0x4] sm:$0xf]
        %v3697 = vld [vmem:[%s5 + $0x8] sm:$0xf]
        %v3698 = vld [vmem:[%s5 + $0xc] sm:$0xf]
        %v3699 = vld [vmem:[%s5 + $0x10] sm:$0xf]
        %v3700 = vld [vmem:[%s5 + $0x14] sm:$0xf]
        %v3701 = vld [vmem:[%s5 + $0x18] sm:$0xf]
        %v3702 = vld [vmem:[%s5 + $0x1c] sm:$0xf]
        %s3703 = scalar_lea.vmem %s5, 32
        %v3704 = vld [vmem:[%s3703] sm:$0xf]
        %v3705 = vld [vmem:[%s3703 + $0x4] sm:$0xf]
        %v3706 = vld [vmem:[%s3703 + $0x8] sm:$0xf]
        %v3707 = vld [vmem:[%s3703 + $0xc] sm:$0xf]
        %v3708 = vld [vmem:[%s3703 + $0x10] sm:$0xf]
        %v3709 = vld [vmem:[%s3703 + $0x14] sm:$0xf]
        %v3710 = vld [vmem:[%s3703 + $0x18] sm:$0xf]
        %v3711 = vld [vmem:[%s3703 + $0x1c] sm:$0xf]
        %v3713 = vshrl.u32 %v3689, 16
        %v3715 = vshll.u32 %v3689, 16
        %v3717 = vrot.slane %v3715, 1
        %v3718 = vor.u32 %v3713, %v3717
        %v3720 = vshll.u32 %v3690, 16
        %v3722 = vrot.slane %v3720, 1
        %v3723 = vsel %vm1207, %v3718, %v3722
        %v3724 = vshrl.u32 %v3690, 16
        %v3726 = vor.u32 %v3724, %v3722
        %v3728 = vshll.u32 %v3691, 16
        %v3730 = vrot.slane %v3728, 1
        %v3731 = vsel %vm1207, %v3726, %v3730
        %v3732 = vshrl.u32 %v3691, 16
        %v3734 = vor.u32 %v3732, %v3730
        %v3736 = vshll.u32 %v3692, 16
        %v3738 = vrot.slane %v3736, 1
        %v3739 = vsel %vm1207, %v3734, %v3738
        %v3740 = vshrl.u32 %v3692, 16
        %v3742 = vor.u32 %v3740, %v3738
        %v3751 = vunpack.c.l.b16 %v3704
        %v3752 = vunpack.c.l.b16 %v3705
        %v3753 = vunpack.c.l.b16 %v3706
        %v3754 = vunpack.c.l.b16 %v3707
        %v3755 = vunpack.c.l.b16 %v3708
        %v3756 = vunpack.c.l.b16 %v3709
        %v3757 = vunpack.c.l.b16 %v3710
        %v3758 = vunpack.c.l.b16 %v3711
        %v3759 = vpack.c.b16 %v3752, %v3751
        %v3760 = vpack.c.b16 %v3754, %v3753
        %v3761 = vpack.c.b16 %v3756, %v3755
        %v3762 = vpack.c.b16 %v3758, %v3757
        %v3768 = vsel %vm519, %v3723, 0
        %v3771 = vsel %vm519, %v3731, 0
        %v3774 = vsel %vm519, %v3739, 0
        %v3777 = vsel %vm519, %v3742, 0
        %3779 = vmatprep.subr.bf16.mxu0 0
        %3780 = vmatpush1.bf16.msra.mxu0 0
        %3781 = vmatprep.subr.bf16.mxu0 0
        %3782 = vmatpush1.bf16.msra.mxu0 0
        %3783 = vmatprep.subr.bf16.mxu0 0
        %3784 = vmatpush1.bf16.msra.mxu0 0
        %3785 = vmatprep.subr.bf16.mxu0 0
        %3786 = vmatpush1.bf16.msra.mxu0 0
        %3787 = vmatprep.subr.bf16.mxu0 0
        %3788 = vmatpush1.bf16.msra.mxu0 %v3762
        %3789 = vmatprep.subr.bf16.mxu0 0
        %3790 = vmatpush1.bf16.msra.mxu0 %v3761
        %3791 = vmatprep.subr.bf16.mxu0 0
        %3792 = vmatpush1.bf16.msra.mxu0 %v3760
        %3793 = vmatprep.subr.bf16.mxu0 0
        %3794 = vmatpush1.bf16.msra.mxu0 %v3759
        %3795 = vmatprep.subr.bf16.mxu0 0
        %3796 = vmatpush2.bf16.msra.mxu0 0
        %3797 = vmatprep.subr.bf16.mxu0 0
        %3798 = vmatpush2.bf16.msra.mxu0 0
        %3799 = vmatprep.subr.bf16.mxu0 0
        %3800 = vmatpush2.bf16.msra.mxu0 0
        %3801 = vmatprep.subr.bf16.mxu0 0
        %3802 = vmatpush2.bf16.msra.mxu0 0
        %3803 = vmatprep.subr.bf16.mxu0 0
        %3804 = vmatpush2.bf16.msra.mxu0 0
        %3805 = vmatprep.subr.bf16.mxu0 0
        %3806 = vmatpush2.bf16.msra.mxu0 0
        %3807 = vmatprep.subr.bf16.mxu0 0
        %3808 = vmatpush2.bf16.msra.mxu0 0
        %3809 = vmatprep.subr.bf16.mxu0 0
        %3810 = vmatpush2.bf16.msra.mxu0 0
        %3811 = vmatprep.mubr.bf16.mxu0 0
        %3812 = vmatmul.mubr.bf16.gmra.mxu0 %v3768
        %v3813 = vpop.f32.mrf.mxu0
        %v3814 = vadd.f32 0.0, %v3813
        %v3815 = vpop.f32.mrf.mxu0
        %v3816 = vpop.f32.mrf.mxu0
        %v3817 = vadd.f32 0.0, %v3816
        %v3818 = vpop.f32.mrf.mxu0
        %3819 = vmatprep.mubr.bf16.mxu0 0
        %3820 = vmatmul.mubr.bf16.gmra.mxu0 %v3771
        %v3821 = vpop.f32.mrf.mxu0
        %v3822 = vadd.f32 0.0, %v3821
        %v3823 = vpop.f32.mrf.mxu0
        %v3824 = vpop.f32.mrf.mxu0
        %v3825 = vadd.f32 0.0, %v3824
        %v3826 = vpop.f32.mrf.mxu0
        %3827 = vmatprep.mubr.bf16.mxu0 0
        %3828 = vmatmul.mubr.bf16.gmra.mxu0 %v3774
        %v3829 = vpop.f32.mrf.mxu0
        %v3830 = vadd.f32 0.0, %v3829
        %v3831 = vpop.f32.mrf.mxu0
        %v3832 = vpop.f32.mrf.mxu0
        %v3833 = vadd.f32 0.0, %v3832
        %v3834 = vpop.f32.mrf.mxu0
        %3835 = vmatprep.mubr.bf16.mxu0 0
        %3836 = vmatmul.mubr.bf16.gmra.mxu0 %v3777
        %v3837 = vpop.f32.mrf.mxu0
        %v3838 = vadd.f32 0.0, %v3837
        %v3839 = vpop.f32.mrf.mxu0
        %v3840 = vpop.f32.mrf.mxu0
        %v3841 = vpop.f32.mrf.mxu0
        %3842 = vdwg.mxu0
        %v3851 = vunpack.c.l.b16 %v3695
        %v3852 = vunpack.c.l.b16 %v3696
        %v3853 = vunpack.c.l.b16 %v3697
        %v3854 = vunpack.c.l.b16 %v3698
        %v3855 = vunpack.c.l.b16 %v3699
        %v3856 = vunpack.c.l.b16 %v3700
        %v3857 = vunpack.c.l.b16 %v3701
        %v3858 = vunpack.c.l.b16 %v3702
        %v3859 = vpack.c.b16 %v3852, %v3851
        %v3860 = vpack.c.b16 %v3854, %v3853
        %v3861 = vpack.c.b16 %v3856, %v3855
        %v3862 = vpack.c.b16 %v3858, %v3857
        %v3867 = vsel %vm519, %v3689, 0
        %v3869 = vsel %vm519, %v3690, 0
        %v3871 = vsel %vm519, %v3691, 0
        %v3873 = vsel %vm519, %v3692, 0
        %3875 = vmatprep.subr.bf16.mxu0 0
        %3876 = vmatpush1.bf16.msra.mxu0 0
        %3877 = vmatprep.subr.bf16.mxu0 0
        %3878 = vmatpush1.bf16.msra.mxu0 0
        %3879 = vmatprep.subr.bf16.mxu0 0
        %3880 = vmatpush1.bf16.msra.mxu0 0
        %3881 = vmatprep.subr.bf16.mxu0 0
        %3882 = vmatpush1.bf16.msra.mxu0 0
        %3883 = vmatprep.subr.bf16.mxu0 0
        %3884 = vmatpush1.bf16.msra.mxu0 %v3862
        %3885 = vmatprep.subr.bf16.mxu0 0
        %3886 = vmatpush1.bf16.msra.mxu0 %v3861
        %3887 = vmatprep.subr.bf16.mxu0 0
        %3888 = vmatpush1.bf16.msra.mxu0 %v3860
        %3889 = vmatprep.subr.bf16.mxu0 0
        %3890 = vmatpush1.bf16.msra.mxu0 %v3859
        %3891 = vmatprep.subr.bf16.mxu0 0
        %3892 = vmatpush2.bf16.msra.mxu0 0
        %3893 = vmatprep.subr.bf16.mxu0 0
        %3894 = vmatpush2.bf16.msra.mxu0 0
        %3895 = vmatprep.subr.bf16.mxu0 0
        %3896 = vmatpush2.bf16.msra.mxu0 0
        %3897 = vmatprep.subr.bf16.mxu0 0
        %3898 = vmatpush2.bf16.msra.mxu0 0
        %3899 = vmatprep.subr.bf16.mxu0 0
        %3900 = vmatpush2.bf16.msra.mxu0 0
        %3901 = vmatprep.subr.bf16.mxu0 0
        %3902 = vmatpush2.bf16.msra.mxu0 0
        %3903 = vmatprep.subr.bf16.mxu0 0
        %3904 = vmatpush2.bf16.msra.mxu0 0
        %3905 = vmatprep.subr.bf16.mxu0 0
        %3906 = vmatpush2.bf16.msra.mxu0 0
        %3907 = vmatprep.mubr.bf16.mxu0 0
        %3908 = vmatmul.mubr.bf16.gmra.mxu0 %v3867
        %v3909 = vpop.f32.mrf.mxu0
        %v3910 = vadd.f32 %v3814, %v3909
        %v3911 = vpop.f32.mrf.mxu0
        %v3912 = vpop.f32.mrf.mxu0
        %v3913 = vadd.f32 %v3817, %v3912
        %v3914 = vpop.f32.mrf.mxu0
        %3915 = vmatprep.mubr.bf16.mxu0 0
        %3916 = vmatmul.mubr.bf16.gmra.mxu0 %v3869
        %v3917 = vpop.f32.mrf.mxu0
        %v3918 = vadd.f32 %v3822, %v3917
        %v3919 = vpop.f32.mrf.mxu0
        %v3920 = vpop.f32.mrf.mxu0
        %v3921 = vadd.f32 %v3825, %v3920
        %v3922 = vpop.f32.mrf.mxu0
        %3923 = vmatprep.mubr.bf16.mxu0 0
        %3924 = vmatmul.mubr.bf16.gmra.mxu0 %v3871
        %v3925 = vpop.f32.mrf.mxu0
        %v3926 = vadd.f32 %v3830, %v3925
        %v3927 = vpop.f32.mrf.mxu0
        %v3928 = vpop.f32.mrf.mxu0
        %v3929 = vadd.f32 %v3833, %v3928
        %v3930 = vpop.f32.mrf.mxu0
        %3931 = vmatprep.mubr.bf16.mxu0 0
        %3932 = vmatmul.mubr.bf16.gmra.mxu0 %v3873
        %v3933 = vpop.f32.mrf.mxu0
        %v3934 = vadd.f32 %v3838, %v3933
        %v3935 = vpop.f32.mrf.mxu0
        %v3936 = vpop.f32.mrf.mxu0
        %v3937 = vpop.f32.mrf.mxu0
        %3938 = vdwg.mxu0
        %s3939 = scalar_lea.vmem %s5, 64
        %v3940 = vld [vmem:[%s3939] sm:$0xf]
        %v3941 = vld [vmem:[%s3939 + $0x4] sm:$0xf]
        %v3942 = vld [vmem:[%s3939 + $0x8] sm:$0xf]
        %v3943 = vld [vmem:[%s3939 + $0xc] sm:$0xf]
        %v3944 = vld [vmem:[%s3939 + $0x10] sm:$0xf]
        %v3945 = vld [vmem:[%s3939 + $0x14] sm:$0xf]
        %v3946 = vld [vmem:[%s3939 + $0x18] sm:$0xf]
        %v3947 = vld [vmem:[%s3939 + $0x1c] sm:$0xf]
        %vm3952 = vcmask 1046528
        %v3953 = vrot.slane %v3689, 1
        %v3954 = vrot.slane %v3690, 1
        %v3955 = vsel %vm3952, %v3953, %v3954
        %v3956 = vrot.slane %v3691, 1
        %v3957 = vsel %vm3952, %v3954, %v3956
        %v3958 = vrot.slane %v3692, 1
        %v3959 = vsel %vm3952, %v3956, %v3958
        %v3968 = vunpack.c.l.b16 %v3940
        %v3969 = vunpack.c.l.b16 %v3941
        %v3970 = vunpack.c.l.b16 %v3942
        %v3971 = vunpack.c.l.b16 %v3943
        %v3972 = vunpack.c.l.b16 %v3944
        %v3973 = vunpack.c.l.b16 %v3945
        %v3974 = vunpack.c.l.b16 %v3946
        %v3975 = vunpack.c.l.b16 %v3947
        %v3976 = vpack.c.b16 %v3969, %v3968
        %v3977 = vpack.c.b16 %v3971, %v3970
        %v3978 = vpack.c.b16 %v3973, %v3972
        %v3979 = vpack.c.b16 %v3975, %v3974
        %v3985 = vsel %vm519, %v3955, 0
        %v3988 = vsel %vm519, %v3957, 0
        %v3991 = vsel %vm519, %v3959, 0
        %v3994 = vsel %vm519, %v3958, 0
        %3996 = vmatprep.subr.bf16.mxu0 0
        %3997 = vmatpush1.bf16.msra.mxu0 0
        %3998 = vmatprep.subr.bf16.mxu0 0
        %3999 = vmatpush1.bf16.msra.mxu0 0
        %4000 = vmatprep.subr.bf16.mxu0 0
        %4001 = vmatpush1.bf16.msra.mxu0 0
        %4002 = vmatprep.subr.bf16.mxu0 0
        %4003 = vmatpush1.bf16.msra.mxu0 0
        %4004 = vmatprep.subr.bf16.mxu0 0
        %4005 = vmatpush1.bf16.msra.mxu0 %v3979
        %4006 = vmatprep.subr.bf16.mxu0 0
        %4007 = vmatpush1.bf16.msra.mxu0 %v3978
        %4008 = vmatprep.subr.bf16.mxu0 0
        %4009 = vmatpush1.bf16.msra.mxu0 %v3977
        %4010 = vmatprep.subr.bf16.mxu0 0
        %4011 = vmatpush1.bf16.msra.mxu0 %v3976
        %4012 = vmatprep.subr.bf16.mxu0 0
        %4013 = vmatpush2.bf16.msra.mxu0 0
        %4014 = vmatprep.subr.bf16.mxu0 0
        %4015 = vmatpush2.bf16.msra.mxu0 0
        %4016 = vmatprep.subr.bf16.mxu0 0
        %4017 = vmatpush2.bf16.msra.mxu0 0
        %4018 = vmatprep.subr.bf16.mxu0 0
        %4019 = vmatpush2.bf16.msra.mxu0 0
        %4020 = vmatprep.subr.bf16.mxu0 0
        %4021 = vmatpush2.bf16.msra.mxu0 0
        %4022 = vmatprep.subr.bf16.mxu0 0
        %4023 = vmatpush2.bf16.msra.mxu0 0
        %4024 = vmatprep.subr.bf16.mxu0 0
        %4025 = vmatpush2.bf16.msra.mxu0 0
        %4026 = vmatprep.subr.bf16.mxu0 0
        %4027 = vmatpush2.bf16.msra.mxu0 0
        %4028 = vmatprep.mubr.bf16.mxu0 0
        %4029 = vmatmul.mubr.bf16.gmra.mxu0 %v3985
        %v4030 = vpop.f32.mrf.mxu0
        %v4031 = vadd.f32 0.0, %v4030
        %v4032 = vpop.f32.mrf.mxu0
        %v4033 = vpop.f32.mrf.mxu0
        %v4034 = vadd.f32 0.0, %v4033
        %v4035 = vpop.f32.mrf.mxu0
        %4036 = vmatprep.mubr.bf16.mxu0 0
        %4037 = vmatmul.mubr.bf16.gmra.mxu0 %v3988
        %v4038 = vpop.f32.mrf.mxu0
        %v4039 = vadd.f32 0.0, %v4038
        %v4040 = vpop.f32.mrf.mxu0
        %v4041 = vpop.f32.mrf.mxu0
        %v4042 = vadd.f32 0.0, %v4041
        %v4043 = vpop.f32.mrf.mxu0
        %4044 = vmatprep.mubr.bf16.mxu0 0
        %4045 = vmatmul.mubr.bf16.gmra.mxu0 %v3991
        %v4046 = vpop.f32.mrf.mxu0
        %v4047 = vadd.f32 0.0, %v4046
        %v4048 = vpop.f32.mrf.mxu0
        %v4049 = vpop.f32.mrf.mxu0
        %v4050 = vadd.f32 0.0, %v4049
        %v4051 = vpop.f32.mrf.mxu0
        %4052 = vmatprep.mubr.bf16.mxu0 0
        %4053 = vmatmul.mubr.bf16.gmra.mxu0 %v3994
        %v4054 = vpop.f32.mrf.mxu0
        %v4055 = vadd.f32 0.0, %v4054
        %v4056 = vpop.f32.mrf.mxu0
        %v4057 = vpop.f32.mrf.mxu0
        %v4058 = vpop.f32.mrf.mxu0
        %4059 = vdwg.mxu0
        %v4060 = vadd.f32 %v3910, %v4031
        %v4061 = vadd.f32 %v3913, %v4034
        %v4062 = vadd.f32 %v3918, %v4039
        %v4063 = vadd.f32 %v3921, %v4042
        %v4064 = vadd.f32 %v3926, %v4047
        %v4065 = vadd.f32 %v3929, %v4050
        %v4066 = vadd.f32 %v3934, %v4055
        %s4067 = scalar_lea.vmem %s5, 96
        %v4068 = vld [vmem:[%s4067] sm:$0xf]
        %v4069 = vld [vmem:[%s4067 + $0x4] sm:$0xf]
        %v4070 = vld [vmem:[%s4067 + $0x8] sm:$0xf]
        %v4071 = vld [vmem:[%s4067 + $0xc] sm:$0xf]
        %v4072 = vld [vmem:[%s4067 + $0x10] sm:$0xf]
        %v4073 = vld [vmem:[%s4067 + $0x14] sm:$0xf]
        %v4074 = vld [vmem:[%s4067 + $0x18] sm:$0xf]
        %v4075 = vld [vmem:[%s4067 + $0x1c] sm:$0xf]
        %v4077 = vrot.slane %v3689, 6
        %v4078 = vrot.slane %v3690, 6
        %v4079 = vsel %vm3306, %v4077, %v4078
        %v4080 = vrot.slane %v3691, 6
        %v4081 = vsel %vm3306, %v4078, %v4080
        %v4082 = vrot.slane %v3692, 6
        %v4083 = vsel %vm3306, %v4080, %v4082
        %v4084 = vrot.slane %v3693, 6
        %v4085 = vsel %vm3306, %v4082, %v4084
        %v4094 = vunpack.c.l.b16 %v4068
        %v4095 = vunpack.c.l.b16 %v4069
        %v4096 = vunpack.c.l.b16 %v4070
        %v4097 = vunpack.c.l.b16 %v4071
        %v4098 = vunpack.c.l.b16 %v4072
        %v4099 = vunpack.c.l.b16 %v4073
        %v4100 = vunpack.c.l.b16 %v4074
        %v4101 = vunpack.c.l.b16 %v4075
        %v4102 = vpack.c.b16 %v4095, %v4094
        %v4103 = vpack.c.b16 %v4097, %v4096
        %v4104 = vpack.c.b16 %v4099, %v4098
        %v4105 = vpack.c.b16 %v4101, %v4100
        %v4111 = vsel %vm519, %v4079, 0
        %v4114 = vsel %vm519, %v4081, 0
        %v4117 = vsel %vm519, %v4083, 0
        %v4120 = vsel %vm519, %v4085, 0
        %4122 = vmatprep.subr.bf16.mxu0 0
        %4123 = vmatpush1.bf16.msra.mxu0 0
        %4124 = vmatprep.subr.bf16.mxu0 0
        %4125 = vmatpush1.bf16.msra.mxu0 0
        %4126 = vmatprep.subr.bf16.mxu0 0
        %4127 = vmatpush1.bf16.msra.mxu0 0
        %4128 = vmatprep.subr.bf16.mxu0 0
        %4129 = vmatpush1.bf16.msra.mxu0 0
        %4130 = vmatprep.subr.bf16.mxu0 0
        %4131 = vmatpush1.bf16.msra.mxu0 %v4105
        %4132 = vmatprep.subr.bf16.mxu0 0
        %4133 = vmatpush1.bf16.msra.mxu0 %v4104
        %4134 = vmatprep.subr.bf16.mxu0 0
        %4135 = vmatpush1.bf16.msra.mxu0 %v4103
        %4136 = vmatprep.subr.bf16.mxu0 0
        %4137 = vmatpush1.bf16.msra.mxu0 %v4102
        %4138 = vmatprep.subr.bf16.mxu0 0
        %4139 = vmatpush2.bf16.msra.mxu0 0
        %4140 = vmatprep.subr.bf16.mxu0 0
        %4141 = vmatpush2.bf16.msra.mxu0 0
        %4142 = vmatprep.subr.bf16.mxu0 0
        %4143 = vmatpush2.bf16.msra.mxu0 0
        %4144 = vmatprep.subr.bf16.mxu0 0
        %4145 = vmatpush2.bf16.msra.mxu0 0
        %4146 = vmatprep.subr.bf16.mxu0 0
        %4147 = vmatpush2.bf16.msra.mxu0 0
        %4148 = vmatprep.subr.bf16.mxu0 0
        %4149 = vmatpush2.bf16.msra.mxu0 0
        %4150 = vmatprep.subr.bf16.mxu0 0
        %4151 = vmatpush2.bf16.msra.mxu0 0
        %4152 = vmatprep.subr.bf16.mxu0 0
        %4153 = vmatpush2.bf16.msra.mxu0 0
        %4154 = vmatprep.mubr.bf16.mxu0 0
        %4155 = vmatmul.mubr.bf16.gmra.mxu0 %v4111
        %v4156 = vpop.f32.mrf.mxu0
        %v4157 = vadd.f32 0.0, %v4156
        %v4158 = vpop.f32.mrf.mxu0
        %v4159 = vpop.f32.mrf.mxu0
        %v4160 = vadd.f32 0.0, %v4159
        %v4161 = vpop.f32.mrf.mxu0
        %4162 = vmatprep.mubr.bf16.mxu0 0
        %4163 = vmatmul.mubr.bf16.gmra.mxu0 %v4114
        %v4164 = vpop.f32.mrf.mxu0
        %v4165 = vadd.f32 0.0, %v4164
        %v4166 = vpop.f32.mrf.mxu0
        %v4167 = vpop.f32.mrf.mxu0
        %v4168 = vadd.f32 0.0, %v4167
        %v4169 = vpop.f32.mrf.mxu0
        %4170 = vmatprep.mubr.bf16.mxu0 0
        %4171 = vmatmul.mubr.bf16.gmra.mxu0 %v4117
        %v4172 = vpop.f32.mrf.mxu0
        %v4173 = vadd.f32 0.0, %v4172
        %v4174 = vpop.f32.mrf.mxu0
        %v4175 = vpop.f32.mrf.mxu0
        %v4176 = vadd.f32 0.0, %v4175
        %v4177 = vpop.f32.mrf.mxu0
        %4178 = vmatprep.mubr.bf16.mxu0 0
        %4179 = vmatmul.mubr.bf16.gmra.mxu0 %v4120
        %v4180 = vpop.f32.mrf.mxu0
        %v4181 = vadd.f32 0.0, %v4180
        %v4182 = vpop.f32.mrf.mxu0
        %v4183 = vpop.f32.mrf.mxu0
        %v4184 = vpop.f32.mrf.mxu0
        %4185 = vdwg.mxu0
        %v4186 = vadd.f32 %v4060, %v4157
        %v4187 = vadd.f32 %v4061, %v4160
        %v4188 = vadd.f32 %v4062, %v4165
        %v4189 = vadd.f32 %v4063, %v4168
        %v4190 = vadd.f32 %v4064, %v4173
        %v4191 = vadd.f32 %v4065, %v4176
        %v4192 = vadd.f32 %v4066, %v4181
        %s4193 = scalar_lea.vmem %s5, 128
        %v4194 = vld [vmem:[%s4193] sm:$0xf]
        %v4195 = vld [vmem:[%s4193 + $0x4] sm:$0xf]
        %v4196 = vld [vmem:[%s4193 + $0x8] sm:$0xf]
        %v4197 = vld [vmem:[%s4193 + $0xc] sm:$0xf]
        %v4198 = vld [vmem:[%s4193 + $0x10] sm:$0xf]
        %v4199 = vld [vmem:[%s4193 + $0x14] sm:$0xf]
        %v4200 = vld [vmem:[%s4193 + $0x18] sm:$0xf]
        %v4201 = vld [vmem:[%s4193 + $0x1c] sm:$0xf]
        %v4202 = vrot.slane %v3713, 6
        %v4203 = vrot.slane %v3715, 7
        %v4204 = vor.u32 %v4202, %v4203
        %v4205 = vrot.slane %v3724, 6
        %v4206 = vrot.slane %v3720, 7
        %v4207 = vor.u32 %v4205, %v4206
        %v4208 = vsel %vm3482, %v4204, %v4207
        %v4209 = vrot.slane %v3732, 6
        %v4210 = vrot.slane %v3728, 7
        %v4211 = vor.u32 %v4209, %v4210
        %v4212 = vsel %vm3482, %v4207, %v4211
        %v4213 = vrot.slane %v3740, 6
        %v4214 = vrot.slane %v3736, 7
        %v4215 = vor.u32 %v4213, %v4214
        %v4216 = vsel %vm3482, %v4211, %v4215
        %v4218 = vshrl.u32 %v3693, 16
        %v4220 = vrot.slane %v4218, 6
        %v4221 = vshll.u32 %v3693, 16
        %v4223 = vrot.slane %v4221, 7
        %v4224 = vor.u32 %v4220, %v4223
        %v4225 = vsel %vm3482, %v4215, %v4224
        %v4234 = vunpack.c.l.b16 %v4194
        %v4235 = vunpack.c.l.b16 %v4195
        %v4236 = vunpack.c.l.b16 %v4196
        %v4237 = vunpack.c.l.b16 %v4197
        %v4238 = vunpack.c.l.b16 %v4198
        %v4239 = vunpack.c.l.b16 %v4199
        %v4240 = vunpack.c.l.b16 %v4200
        %v4241 = vunpack.c.l.b16 %v4201
        %v4242 = vpack.c.b16 %v4235, %v4234
        %v4243 = vpack.c.b16 %v4237, %v4236
        %v4244 = vpack.c.b16 %v4239, %v4238
        %v4245 = vpack.c.b16 %v4241, %v4240
        %v4251 = vsel %vm519, %v4208, 0
        %v4254 = vsel %vm519, %v4212, 0
        %v4257 = vsel %vm519, %v4216, 0
        %v4260 = vsel %vm519, %v4225, 0
        %4262 = vmatprep.subr.bf16.mxu0 0
        %4263 = vmatpush1.bf16.msra.mxu0 0
        %4264 = vmatprep.subr.bf16.mxu0 0
        %4265 = vmatpush1.bf16.msra.mxu0 0
        %4266 = vmatprep.subr.bf16.mxu0 0
        %4267 = vmatpush1.bf16.msra.mxu0 0
        %4268 = vmatprep.subr.bf16.mxu0 0
        %4269 = vmatpush1.bf16.msra.mxu0 0
        %4270 = vmatprep.subr.bf16.mxu0 0
        %4271 = vmatpush1.bf16.msra.mxu0 %v4245
        %4272 = vmatprep.subr.bf16.mxu0 0
        %4273 = vmatpush1.bf16.msra.mxu0 %v4244
        %4274 = vmatprep.subr.bf16.mxu0 0
        %4275 = vmatpush1.bf16.msra.mxu0 %v4243
        %4276 = vmatprep.subr.bf16.mxu0 0
        %4277 = vmatpush1.bf16.msra.mxu0 %v4242
        %4278 = vmatprep.subr.bf16.mxu0 0
        %4279 = vmatpush2.bf16.msra.mxu0 0
        %4280 = vmatprep.subr.bf16.mxu0 0
        %4281 = vmatpush2.bf16.msra.mxu0 0
        %4282 = vmatprep.subr.bf16.mxu0 0
        %4283 = vmatpush2.bf16.msra.mxu0 0
        %4284 = vmatprep.subr.bf16.mxu0 0
        %4285 = vmatpush2.bf16.msra.mxu0 0
        %4286 = vmatprep.subr.bf16.mxu0 0
        %4287 = vmatpush2.bf16.msra.mxu0 0
        %4288 = vmatprep.subr.bf16.mxu0 0
        %4289 = vmatpush2.bf16.msra.mxu0 0
        %4290 = vmatprep.subr.bf16.mxu0 0
        %4291 = vmatpush2.bf16.msra.mxu0 0
        %4292 = vmatprep.subr.bf16.mxu0 0
        %4293 = vmatpush2.bf16.msra.mxu0 0
        %4294 = vmatprep.mubr.bf16.mxu0 0
        %4295 = vmatmul.mubr.bf16.gmra.mxu0 %v4251
        %v4296 = vpop.f32.mrf.mxu0
        %v4297 = vadd.f32 0.0, %v4296
        %v4298 = vpop.f32.mrf.mxu0
        %v4299 = vpop.f32.mrf.mxu0
        %v4300 = vadd.f32 0.0, %v4299
        %v4301 = vpop.f32.mrf.mxu0
        %4302 = vmatprep.mubr.bf16.mxu0 0
        %4303 = vmatmul.mubr.bf16.gmra.mxu0 %v4254
        %v4304 = vpop.f32.mrf.mxu0
        %v4305 = vadd.f32 0.0, %v4304
        %v4306 = vpop.f32.mrf.mxu0
        %v4307 = vpop.f32.mrf.mxu0
        %v4308 = vadd.f32 0.0, %v4307
        %v4309 = vpop.f32.mrf.mxu0
        %4310 = vmatprep.mubr.bf16.mxu0 0
        %4311 = vmatmul.mubr.bf16.gmra.mxu0 %v4257
        %v4312 = vpop.f32.mrf.mxu0
        %v4313 = vadd.f32 0.0, %v4312
        %v4314 = vpop.f32.mrf.mxu0
        %v4315 = vpop.f32.mrf.mxu0
        %v4316 = vadd.f32 0.0, %v4315
        %v4317 = vpop.f32.mrf.mxu0
        %4318 = vmatprep.mubr.bf16.mxu0 0
        %4319 = vmatmul.mubr.bf16.gmra.mxu0 %v4260
        %v4320 = vpop.f32.mrf.mxu0
        %v4321 = vadd.f32 0.0, %v4320
        %v4322 = vpop.f32.mrf.mxu0
        %v4323 = vpop.f32.mrf.mxu0
        %v4324 = vpop.f32.mrf.mxu0
        %4325 = vdwg.mxu0
        %v4326 = vadd.f32 %v4186, %v4297
        %v4327 = vadd.f32 %v4187, %v4300
        %v4328 = vadd.f32 %v4188, %v4305
        %v4329 = vadd.f32 %v4189, %v4308
        %v4330 = vadd.f32 %v4190, %v4313
        %v4331 = vadd.f32 %v4191, %v4316
        %v4332 = vadd.f32 %v4192, %v4321
        %s4333 = scalar_lea.vmem %s5, 160
        %v4334 = vld [vmem:[%s4333] sm:$0xf]
        %v4335 = vld [vmem:[%s4333 + $0x4] sm:$0xf]
        %v4336 = vld [vmem:[%s4333 + $0x8] sm:$0xf]
        %v4337 = vld [vmem:[%s4333 + $0xc] sm:$0xf]
        %v4338 = vld [vmem:[%s4333 + $0x10] sm:$0xf]
        %v4339 = vld [vmem:[%s4333 + $0x14] sm:$0xf]
        %v4340 = vld [vmem:[%s4333 + $0x18] sm:$0xf]
        %v4341 = vld [vmem:[%s4333 + $0x1c] sm:$0xf]
        %vm4342 = vcmask 1040384
        %v4343 = vrot.slane %v3689, 7
        %v4344 = vrot.slane %v3690, 7
        %v4345 = vsel %vm4342, %v4343, %v4344
        %v4346 = vrot.slane %v3691, 7
        %v4347 = vsel %vm4342, %v4344, %v4346
        %v4348 = vrot.slane %v3692, 7
        %v4349 = vsel %vm4342, %v4346, %v4348
        %v4350 = vrot.slane %v3693, 7
        %v4351 = vsel %vm4342, %v4348, %v4350
        %v4360 = vunpack.c.l.b16 %v4334
        %v4361 = vunpack.c.l.b16 %v4335
        %v4362 = vunpack.c.l.b16 %v4336
        %v4363 = vunpack.c.l.b16 %v4337
        %v4364 = vunpack.c.l.b16 %v4338
        %v4365 = vunpack.c.l.b16 %v4339
        %v4366 = vunpack.c.l.b16 %v4340
        %v4367 = vunpack.c.l.b16 %v4341
        %v4368 = vpack.c.b16 %v4361, %v4360
        %v4369 = vpack.c.b16 %v4363, %v4362
        %v4370 = vpack.c.b16 %v4365, %v4364
        %v4371 = vpack.c.b16 %v4367, %v4366
        %v4377 = vsel %vm519, %v4345, 0
        %v4380 = vsel %vm519, %v4347, 0
        %v4383 = vsel %vm519, %v4349, 0
        %v4386 = vsel %vm519, %v4351, 0
        %4388 = vmatprep.subr.bf16.mxu0 0
        %4389 = vmatpush1.bf16.msra.mxu0 0
        %4390 = vmatprep.subr.bf16.mxu0 0
        %4391 = vmatpush1.bf16.msra.mxu0 0
        %4392 = vmatprep.subr.bf16.mxu0 0
        %4393 = vmatpush1.bf16.msra.mxu0 0
        %4394 = vmatprep.subr.bf16.mxu0 0
        %4395 = vmatpush1.bf16.msra.mxu0 0
        %4396 = vmatprep.subr.bf16.mxu0 0
        %4397 = vmatpush1.bf16.msra.mxu0 %v4371
        %4398 = vmatprep.subr.bf16.mxu0 0
        %4399 = vmatpush1.bf16.msra.mxu0 %v4370
        %4400 = vmatprep.subr.bf16.mxu0 0
        %4401 = vmatpush1.bf16.msra.mxu0 %v4369
        %4402 = vmatprep.subr.bf16.mxu0 0
        %4403 = vmatpush1.bf16.msra.mxu0 %v4368
        %4404 = vmatprep.subr.bf16.mxu0 0
        %4405 = vmatpush2.bf16.msra.mxu0 0
        %4406 = vmatprep.subr.bf16.mxu0 0
        %4407 = vmatpush2.bf16.msra.mxu0 0
        %4408 = vmatprep.subr.bf16.mxu0 0
        %4409 = vmatpush2.bf16.msra.mxu0 0
        %4410 = vmatprep.subr.bf16.mxu0 0
        %4411 = vmatpush2.bf16.msra.mxu0 0
        %4412 = vmatprep.subr.bf16.mxu0 0
        %4413 = vmatpush2.bf16.msra.mxu0 0
        %4414 = vmatprep.subr.bf16.mxu0 0
        %4415 = vmatpush2.bf16.msra.mxu0 0
        %4416 = vmatprep.subr.bf16.mxu0 0
        %4417 = vmatpush2.bf16.msra.mxu0 0
        %4418 = vmatprep.subr.bf16.mxu0 0
        %4419 = vmatpush2.bf16.msra.mxu0 0
        %4420 = vmatprep.mubr.bf16.mxu0 0
        %4421 = vmatmul.mubr.bf16.gmra.mxu0 %v4377
        %v4422 = vpop.f32.mrf.mxu0
        %v4423 = vadd.f32 0.0, %v4422
        %v4424 = vpop.f32.mrf.mxu0
        %v4425 = vpop.f32.mrf.mxu0
        %v4426 = vadd.f32 0.0, %v4425
        %v4427 = vpop.f32.mrf.mxu0
        %4428 = vmatprep.mubr.bf16.mxu0 0
        %4429 = vmatmul.mubr.bf16.gmra.mxu0 %v4380
        %v4430 = vpop.f32.mrf.mxu0
        %v4431 = vadd.f32 0.0, %v4430
        %v4432 = vpop.f32.mrf.mxu0
        %v4433 = vpop.f32.mrf.mxu0
        %v4434 = vadd.f32 0.0, %v4433
        %v4435 = vpop.f32.mrf.mxu0
        %4436 = vmatprep.mubr.bf16.mxu0 0
        %4437 = vmatmul.mubr.bf16.gmra.mxu0 %v4383
        %v4438 = vpop.f32.mrf.mxu0
        %v4439 = vadd.f32 0.0, %v4438
        %v4440 = vpop.f32.mrf.mxu0
        %v4441 = vpop.f32.mrf.mxu0
        %v4442 = vadd.f32 0.0, %v4441
        %v4443 = vpop.f32.mrf.mxu0
        %4444 = vmatprep.mubr.bf16.mxu0 0
        %4445 = vmatmul.mubr.bf16.gmra.mxu0 %v4386
        %v4446 = vpop.f32.mrf.mxu0
        %v4447 = vadd.f32 0.0, %v4446
        %v4448 = vpop.f32.mrf.mxu0
        %v4449 = vpop.f32.mrf.mxu0
        %v4450 = vpop.f32.mrf.mxu0
        %4451 = vdwg.mxu0
        %v4452 = vadd.f32 %v4326, %v4423
        %v4453 = vadd.f32 %v4327, %v4426
        %v4454 = vadd.f32 %v4328, %v4431
        %v4455 = vadd.f32 %v4329, %v4434
        %v4456 = vadd.f32 %v4330, %v4439
        %v4457 = vadd.f32 %v4331, %v4442
        %v4458 = vadd.f32 %v4332, %v4447
        %s4459 = scalar_lea.vmem %s5, 192
        %v4460 = vld [vmem:[%s4459] sm:$0xf]
        %v4461 = vld [vmem:[%s4459 + $0x4] sm:$0xf]
        %v4462 = vld [vmem:[%s4459 + $0x8] sm:$0xf]
        %v4463 = vld [vmem:[%s4459 + $0xc] sm:$0xf]
        %v4464 = vld [vmem:[%s4459 + $0x10] sm:$0xf]
        %v4465 = vld [vmem:[%s4459 + $0x14] sm:$0xf]
        %v4466 = vld [vmem:[%s4459 + $0x18] sm:$0xf]
        %v4467 = vld [vmem:[%s4459 + $0x1c] sm:$0xf]
        %vm4468 = vcmask 1043456
        %v4469 = vrot.slane %v3690, 4
        %v4470 = vrot.slane %v3691, 4
        %v4471 = vsel %vm4468, %v4469, %v4470
        %v4472 = vrot.slane %v3692, 4
        %v4473 = vsel %vm4468, %v4470, %v4472
        %v4474 = vrot.slane %v3693, 4
        %v4475 = vsel %vm4468, %v4472, %v4474
        %v4484 = vunpack.c.l.b16 %v4460
        %v4485 = vunpack.c.l.b16 %v4461
        %v4486 = vunpack.c.l.b16 %v4462
        %v4487 = vunpack.c.l.b16 %v4463
        %v4488 = vunpack.c.l.b16 %v4464
        %v4489 = vunpack.c.l.b16 %v4465
        %v4490 = vunpack.c.l.b16 %v4466
        %v4491 = vunpack.c.l.b16 %v4467
        %v4492 = vpack.c.b16 %v4485, %v4484
        %v4493 = vpack.c.b16 %v4487, %v4486
        %v4494 = vpack.c.b16 %v4489, %v4488
        %v4495 = vpack.c.b16 %v4491, %v4490
        %v4501 = vsel %vm519, %v4471, 0
        %v4504 = vsel %vm519, %v4473, 0
        %v4507 = vsel %vm519, %v4475, 0
        %v4510 = vsel %vm519, %v4474, 0
        %4512 = vmatprep.subr.bf16.mxu0 0
        %4513 = vmatpush1.bf16.msra.mxu0 0
        %4514 = vmatprep.subr.bf16.mxu0 0
        %4515 = vmatpush1.bf16.msra.mxu0 0
        %4516 = vmatprep.subr.bf16.mxu0 0
        %4517 = vmatpush1.bf16.msra.mxu0 0
        %4518 = vmatprep.subr.bf16.mxu0 0
        %4519 = vmatpush1.bf16.msra.mxu0 0
        %4520 = vmatprep.subr.bf16.mxu0 0
        %4521 = vmatpush1.bf16.msra.mxu0 %v4495
        %4522 = vmatprep.subr.bf16.mxu0 0
        %4523 = vmatpush1.bf16.msra.mxu0 %v4494
        %4524 = vmatprep.subr.bf16.mxu0 0
        %4525 = vmatpush1.bf16.msra.mxu0 %v4493
        %4526 = vmatprep.subr.bf16.mxu0 0
        %4527 = vmatpush1.bf16.msra.mxu0 %v4492
        %4528 = vmatprep.subr.bf16.mxu0 0
        %4529 = vmatpush2.bf16.msra.mxu0 0
        %4530 = vmatprep.subr.bf16.mxu0 0
        %4531 = vmatpush2.bf16.msra.mxu0 0
        %4532 = vmatprep.subr.bf16.mxu0 0
        %4533 = vmatpush2.bf16.msra.mxu0 0
        %4534 = vmatprep.subr.bf16.mxu0 0
        %4535 = vmatpush2.bf16.msra.mxu0 0
        %4536 = vmatprep.subr.bf16.mxu0 0
        %4537 = vmatpush2.bf16.msra.mxu0 0
        %4538 = vmatprep.subr.bf16.mxu0 0
        %4539 = vmatpush2.bf16.msra.mxu0 0
        %4540 = vmatprep.subr.bf16.mxu0 0
        %4541 = vmatpush2.bf16.msra.mxu0 0
        %4542 = vmatprep.subr.bf16.mxu0 0
        %4543 = vmatpush2.bf16.msra.mxu0 0
        %4544 = vmatprep.mubr.bf16.mxu0 0
        %4545 = vmatmul.mubr.bf16.gmra.mxu0 %v4501
        %v4546 = vpop.f32.mrf.mxu0
        %v4547 = vadd.f32 0.0, %v4546
        %v4548 = vpop.f32.mrf.mxu0
        %v4549 = vpop.f32.mrf.mxu0
        %v4550 = vadd.f32 0.0, %v4549
        %v4551 = vpop.f32.mrf.mxu0
        %4552 = vmatprep.mubr.bf16.mxu0 0
        %4553 = vmatmul.mubr.bf16.gmra.mxu0 %v4504
        %v4554 = vpop.f32.mrf.mxu0
        %v4555 = vadd.f32 0.0, %v4554
        %v4556 = vpop.f32.mrf.mxu0
        %v4557 = vpop.f32.mrf.mxu0
        %v4558 = vadd.f32 0.0, %v4557
        %v4559 = vpop.f32.mrf.mxu0
        %4560 = vmatprep.mubr.bf16.mxu0 0
        %4561 = vmatmul.mubr.bf16.gmra.mxu0 %v4507
        %v4562 = vpop.f32.mrf.mxu0
        %v4563 = vadd.f32 0.0, %v4562
        %v4564 = vpop.f32.mrf.mxu0
        %v4565 = vpop.f32.mrf.mxu0
        %v4566 = vadd.f32 0.0, %v4565
        %v4567 = vpop.f32.mrf.mxu0
        %4568 = vmatprep.mubr.bf16.mxu0 0
        %4569 = vmatmul.mubr.bf16.gmra.mxu0 %v4510
        %v4570 = vpop.f32.mrf.mxu0
        %v4571 = vadd.f32 0.0, %v4570
        %v4572 = vpop.f32.mrf.mxu0
        %v4573 = vpop.f32.mrf.mxu0
        %v4574 = vpop.f32.mrf.mxu0
        %4575 = vdwg.mxu0
        %v4576 = vadd.f32 %v4452, %v4547
        %v4577 = vadd.f32 %v4453, %v4550
        %v4578 = vadd.f32 %v4454, %v4555
        %v4579 = vadd.f32 %v4455, %v4558
        %v4580 = vadd.f32 %v4456, %v4563
        %v4581 = vadd.f32 %v4457, %v4566
        %v4582 = vadd.f32 %v4458, %v4571
        %s4583 = scalar_lea.vmem %s5, 224
        %v4584 = vld [vmem:[%s4583] sm:$0xf]
        %v4585 = vld [vmem:[%s4583 + $0x4] sm:$0xf]
        %v4586 = vld [vmem:[%s4583 + $0x8] sm:$0xf]
        %v4587 = vld [vmem:[%s4583 + $0xc] sm:$0xf]
        %v4588 = vld [vmem:[%s4583 + $0x10] sm:$0xf]
        %v4589 = vld [vmem:[%s4583 + $0x14] sm:$0xf]
        %v4590 = vld [vmem:[%s4583 + $0x18] sm:$0xf]
        %v4591 = vld [vmem:[%s4583 + $0x1c] sm:$0xf]
        %vm4592 = vsmask.f32 3328
        %v4593 = vrot.slane %v3724, 4
        %v4594 = vrot.slane %v3720, 5
        %v4595 = vor.u32 %v4593, %v4594
        %v4596 = vrot.slane %v3732, 4
        %v4597 = vrot.slane %v3728, 5
        %v4598 = vor.u32 %v4596, %v4597
        %v4599 = vsel %vm4592, %v4595, %v4598
        %v4600 = vrot.slane %v3740, 4
        %v4601 = vrot.slane %v3736, 5
        %v4602 = vor.u32 %v4600, %v4601
        %v4603 = vsel %vm4592, %v4598, %v4602
        %v4604 = vrot.slane %v4218, 4
        %v4605 = vrot.slane %v4221, 5
        %v4606 = vor.u32 %v4604, %v4605
        %v4607 = vsel %vm4592, %v4602, %v4606
        %v4609 = vshll.u32 %v3694, 16
        %v4611 = vrot.slane %v4609, 5
        %v4612 = vsel %vm4592, %v4606, %v4611
        %v4621 = vunpack.c.l.b16 %v4584
        %v4622 = vunpack.c.l.b16 %v4585
        %v4623 = vunpack.c.l.b16 %v4586
        %v4624 = vunpack.c.l.b16 %v4587
        %v4625 = vunpack.c.l.b16 %v4588
        %v4626 = vunpack.c.l.b16 %v4589
        %v4627 = vunpack.c.l.b16 %v4590
        %v4628 = vunpack.c.l.b16 %v4591
        %v4629 = vpack.c.b16 %v4622, %v4621
        %v4630 = vpack.c.b16 %v4624, %v4623
        %v4631 = vpack.c.b16 %v4626, %v4625
        %v4632 = vpack.c.b16 %v4628, %v4627
        %v4638 = vsel %vm519, %v4599, 0
        %v4641 = vsel %vm519, %v4603, 0
        %v4644 = vsel %vm519, %v4607, 0
        %v4647 = vsel %vm519, %v4612, 0
        %4649 = vmatprep.subr.bf16.mxu0 0
        %4650 = vmatpush1.bf16.msra.mxu0 0
        %4651 = vmatprep.subr.bf16.mxu0 0
        %4652 = vmatpush1.bf16.msra.mxu0 0
        %4653 = vmatprep.subr.bf16.mxu0 0
        %4654 = vmatpush1.bf16.msra.mxu0 0
        %4655 = vmatprep.subr.bf16.mxu0 0
        %4656 = vmatpush1.bf16.msra.mxu0 0
        %4657 = vmatprep.subr.bf16.mxu0 0
        %4658 = vmatpush1.bf16.msra.mxu0 %v4632
        %4659 = vmatprep.subr.bf16.mxu0 0
        %4660 = vmatpush1.bf16.msra.mxu0 %v4631
        %4661 = vmatprep.subr.bf16.mxu0 0
        %4662 = vmatpush1.bf16.msra.mxu0 %v4630
        %4663 = vmatprep.subr.bf16.mxu0 0
        %4664 = vmatpush1.bf16.msra.mxu0 %v4629
        %4665 = vmatprep.subr.bf16.mxu0 0
        %4666 = vmatpush2.bf16.msra.mxu0 0
        %4667 = vmatprep.subr.bf16.mxu0 0
        %4668 = vmatpush2.bf16.msra.mxu0 0
        %4669 = vmatprep.subr.bf16.mxu0 0
        %4670 = vmatpush2.bf16.msra.mxu0 0
        %4671 = vmatprep.subr.bf16.mxu0 0
        %4672 = vmatpush2.bf16.msra.mxu0 0
        %4673 = vmatprep.subr.bf16.mxu0 0
        %4674 = vmatpush2.bf16.msra.mxu0 0
        %4675 = vmatprep.subr.bf16.mxu0 0
        %4676 = vmatpush2.bf16.msra.mxu0 0
        %4677 = vmatprep.subr.bf16.mxu0 0
        %4678 = vmatpush2.bf16.msra.mxu0 0
        %4679 = vmatprep.subr.bf16.mxu0 0
        %4680 = vmatpush2.bf16.msra.mxu0 0
        %4681 = vmatprep.mubr.bf16.mxu0 0
        %4682 = vmatmul.mubr.bf16.gmra.mxu0 %v4638
        %v4683 = vpop.f32.mrf.mxu0
        %v4684 = vadd.f32 0.0, %v4683
        %v4685 = vpop.f32.mrf.mxu0
        %v4686 = vpop.f32.mrf.mxu0
        %v4687 = vadd.f32 0.0, %v4686
        %v4688 = vpop.f32.mrf.mxu0
        %4689 = vmatprep.mubr.bf16.mxu0 0
        %4690 = vmatmul.mubr.bf16.gmra.mxu0 %v4641
        %v4691 = vpop.f32.mrf.mxu0
        %v4692 = vadd.f32 0.0, %v4691
        %v4693 = vpop.f32.mrf.mxu0
        %v4694 = vpop.f32.mrf.mxu0
        %v4695 = vadd.f32 0.0, %v4694
        %v4696 = vpop.f32.mrf.mxu0
        %4697 = vmatprep.mubr.bf16.mxu0 0
        %4698 = vmatmul.mubr.bf16.gmra.mxu0 %v4644
        %v4699 = vpop.f32.mrf.mxu0
        %v4700 = vadd.f32 0.0, %v4699
        %v4701 = vpop.f32.mrf.mxu0
        %v4702 = vpop.f32.mrf.mxu0
        %v4703 = vadd.f32 0.0, %v4702
        %v4704 = vpop.f32.mrf.mxu0
        %4705 = vmatprep.mubr.bf16.mxu0 0
        %4706 = vmatmul.mubr.bf16.gmra.mxu0 %v4647
        %v4707 = vpop.f32.mrf.mxu0
        %v4708 = vadd.f32 0.0, %v4707
        %v4709 = vpop.f32.mrf.mxu0
        %v4710 = vpop.f32.mrf.mxu0
        %v4711 = vpop.f32.mrf.mxu0
        %4712 = vdwg.mxu0
        %v4713 = vadd.f32 %v4576, %v4684
        %v4714 = vadd.f32 %v4577, %v4687
        %v4715 = vadd.f32 %v4578, %v4692
        %v4716 = vadd.f32 %v4579, %v4695
        %v4717 = vadd.f32 %v4580, %v4700
        %v4718 = vadd.f32 %v4581, %v4703
        %v4719 = vadd.f32 %v4582, %v4708
        %s4720 = scalar_lea.vmem %s5, 256
        %v4721 = vld [vmem:[%s4720] sm:$0xf]
        %v4722 = vld [vmem:[%s4720 + $0x4] sm:$0xf]
        %v4723 = vld [vmem:[%s4720 + $0x8] sm:$0xf]
        %v4724 = vld [vmem:[%s4720 + $0xc] sm:$0xf]
        %v4725 = vld [vmem:[%s4720 + $0x10] sm:$0xf]
        %v4726 = vld [vmem:[%s4720 + $0x14] sm:$0xf]
        %v4727 = vld [vmem:[%s4720 + $0x18] sm:$0xf]
        %v4728 = vld [vmem:[%s4720 + $0x1c] sm:$0xf]
        %vm4730 = vcmask 1042432
        %v4731 = vrot.slane %v3690, 5
        %v4732 = vrot.slane %v3691, 5
        %v4733 = vsel %vm4730, %v4731, %v4732
        %v4734 = vrot.slane %v3692, 5
        %v4735 = vsel %vm4730, %v4732, %v4734
        %v4736 = vrot.slane %v3693, 5
        %v4737 = vsel %vm4730, %v4734, %v4736
        %v4738 = vrot.slane %v3694, 5
        %v4739 = vsel %vm4730, %v4736, %v4738
        %v4748 = vunpack.c.l.b16 %v4721
        %v4749 = vunpack.c.l.b16 %v4722
        %v4750 = vunpack.c.l.b16 %v4723
        %v4751 = vunpack.c.l.b16 %v4724
        %v4752 = vunpack.c.l.b16 %v4725
        %v4753 = vunpack.c.l.b16 %v4726
        %v4754 = vunpack.c.l.b16 %v4727
        %v4755 = vunpack.c.l.b16 %v4728
        %v4756 = vpack.c.b16 %v4749, %v4748
        %v4757 = vpack.c.b16 %v4751, %v4750
        %v4758 = vpack.c.b16 %v4753, %v4752
        %v4759 = vpack.c.b16 %v4755, %v4754
        %v4765 = vsel %vm519, %v4733, 0
        %v4768 = vsel %vm519, %v4735, 0
        %v4771 = vsel %vm519, %v4737, 0
        %v4774 = vsel %vm519, %v4739, 0
        %4776 = vmatprep.subr.bf16.mxu0 0
        %4777 = vmatpush1.bf16.msra.mxu0 0
        %4778 = vmatprep.subr.bf16.mxu0 0
        %4779 = vmatpush1.bf16.msra.mxu0 0
        %4780 = vmatprep.subr.bf16.mxu0 0
        %4781 = vmatpush1.bf16.msra.mxu0 0
        %4782 = vmatprep.subr.bf16.mxu0 0
        %4783 = vmatpush1.bf16.msra.mxu0 0
        %4784 = vmatprep.subr.bf16.mxu0 0
        %4785 = vmatpush1.bf16.msra.mxu0 %v4759
        %4786 = vmatprep.subr.bf16.mxu0 0
        %4787 = vmatpush1.bf16.msra.mxu0 %v4758
        %4788 = vmatprep.subr.bf16.mxu0 0
        %4789 = vmatpush1.bf16.msra.mxu0 %v4757
        %4790 = vmatprep.subr.bf16.mxu0 0
        %4791 = vmatpush1.bf16.msra.mxu0 %v4756
        %4792 = vmatprep.subr.bf16.mxu0 0
        %4793 = vmatpush2.bf16.msra.mxu0 0
        %4794 = vmatprep.subr.bf16.mxu0 0
        %4795 = vmatpush2.bf16.msra.mxu0 0
        %4796 = vmatprep.subr.bf16.mxu0 0
        %4797 = vmatpush2.bf16.msra.mxu0 0
        %4798 = vmatprep.subr.bf16.mxu0 0
        %4799 = vmatpush2.bf16.msra.mxu0 0
        %4800 = vmatprep.subr.bf16.mxu0 0
        %4801 = vmatpush2.bf16.msra.mxu0 0
        %4802 = vmatprep.subr.bf16.mxu0 0
        %4803 = vmatpush2.bf16.msra.mxu0 0
        %4804 = vmatprep.subr.bf16.mxu0 0
        %4805 = vmatpush2.bf16.msra.mxu0 0
        %4806 = vmatprep.subr.bf16.mxu0 0
        %4807 = vmatpush2.bf16.msra.mxu0 0
        %4808 = vmatprep.mubr.bf16.mxu0 0
        %4809 = vmatmul.mubr.bf16.gmra.mxu0 %v4765
        %v4810 = vpop.f32.mrf.mxu0
        %v4811 = vadd.f32 0.0, %v4810
        %v4812 = vpop.f32.mrf.mxu0
        %v4813 = vpop.f32.mrf.mxu0
        %v4814 = vadd.f32 0.0, %v4813
        %v4815 = vpop.f32.mrf.mxu0
        %4816 = vmatprep.mubr.bf16.mxu0 0
        %4817 = vmatmul.mubr.bf16.gmra.mxu0 %v4768
        %v4818 = vpop.f32.mrf.mxu0
        %v4819 = vadd.f32 0.0, %v4818
        %v4820 = vpop.f32.mrf.mxu0
        %v4821 = vpop.f32.mrf.mxu0
        %v4822 = vadd.f32 0.0, %v4821
        %v4823 = vpop.f32.mrf.mxu0
        %4824 = vmatprep.mubr.bf16.mxu0 0
        %4825 = vmatmul.mubr.bf16.gmra.mxu0 %v4771
        %v4826 = vpop.f32.mrf.mxu0
        %v4827 = vadd.f32 0.0, %v4826
        %v4828 = vpop.f32.mrf.mxu0
        %v4829 = vpop.f32.mrf.mxu0
        %v4830 = vadd.f32 0.0, %v4829
        %v4831 = vpop.f32.mrf.mxu0
        %4832 = vmatprep.mubr.bf16.mxu0 0
        %4833 = vmatmul.mubr.bf16.gmra.mxu0 %v4774
        %v4834 = vpop.f32.mrf.mxu0
        %v4835 = vadd.f32 0.0, %v4834
        %v4836 = vpop.f32.mrf.mxu0
        %v4837 = vpop.f32.mrf.mxu0
        %v4838 = vpop.f32.mrf.mxu0
        %4839 = vdwg.mxu0
        %v4840 = vadd.f32 %v4713, %v4811
        %v4841 = vadd.f32 %v4714, %v4814
        %v4842 = vadd.f32 %v4715, %v4819
        %v4843 = vadd.f32 %v4716, %v4822
        %v4844 = vadd.f32 %v4717, %v4827
        %v4845 = vadd.f32 %v4718, %v4830
        %v4846 = vadd.f32 %v4719, %v4835
        %v4847 = vld [vmem:[%s6] sm:$0x1]
        %v4849 = vlaneseq
        %v4850 = vshrl.u32 %v4849, 7
        %v4851 = vsub.s32 0, %v4850
        %v4852 = vrot.slane %v4847, %v4851
        %v4854 = vadd.f32 %v4840, %v4852
        %v4855 = vadd.f32 %v4841, %v4852
        %v4856 = vadd.f32 %v4842, %v4852
        %v4857 = vadd.f32 %v4843, %v4852
        %v4858 = vadd.f32 %v4844, %v4852
        %v4859 = vadd.f32 %v4845, %v4852
        %v4860 = vadd.f32 %v4846, %v4852
        %v4861 = vmax.f32 %v4854, 0.0
        %v4862 = vmax.f32 %v4855, 0.0
        %v4863 = vmax.f32 %v4856, 0.0
        %v4864 = vmax.f32 %v4857, 0.0
        %v4865 = vmax.f32 %v4858, 0.0
        %v4866 = vmax.f32 %v4859, 0.0
        %v4867 = vmax.f32 %v4860, 0.0
        %v4869 = vrot.slane %v4861, 1
        %4870 = vrot.lane.b32.xlu0 %v4869, 64
        %v4871 = vpop.permute.xlu0 %4870
        %v4873 = vrot.slane %v4861, 2
        %v4875 = vrot.slane %v4861, 3
        %4876 = vrot.lane.b32.xlu0 %v4875, 64
        %v4877 = vpop.permute.xlu0 %4876
        %v4879 = vrot.slane %v4861, 4
        %v4881 = vrot.slane %v4861, 5
        %4882 = vrot.lane.b32.xlu0 %v4881, 64
        %v4883 = vpop.permute.xlu0 %4882
        %v4885 = vrot.slane %v4861, 6
        %v4887 = vrot.slane %v4861, 7
        %4888 = vrot.lane.b32.xlu0 %v4887, 64
        %v4889 = vpop.permute.xlu0 %4888
        %v4892 = vrot.slane %v4862, 4
        %v4894 = vrot.slane %v4862, 5
        %4895 = vrot.lane.b32.xlu0 %v4894, 64
        %v4896 = vpop.permute.xlu0 %4895
        %v4898 = vrot.slane %v4862, 6
        %v4900 = vrot.slane %v4862, 7
        %4901 = vrot.lane.b32.xlu0 %v4900, 64
        %v4902 = vpop.permute.xlu0 %4901
        %v4905 = vrot.slane %v4863, 1
        %4906 = vrot.lane.b32.xlu0 %v4905, 64
        %v4907 = vpop.permute.xlu0 %4906
        %v4909 = vrot.slane %v4863, 2
        %v4911 = vrot.slane %v4863, 3
        %4912 = vrot.lane.b32.xlu0 %v4911, 64
        %v4913 = vpop.permute.xlu0 %4912
        %v4915 = vsel %vm519, %v4861, %v4871
        %v4916 = vsel %vm519, %v4873, %v4877
        %v4917 = vsel %vm519, %v4879, %v4883
        %v4918 = vsel %vm519, %v4885, %v4889
        %v4919 = vsel %vm519, %v4892, %v4896
        %v4920 = vsel %vm519, %v4898, %v4902
        %v4921 = vsel %vm519, %v4863, %v4907
        %v4922 = vsel %vm519, %v4909, %v4913
        %v4924 = vrot.slane %v4864, 1
        %4925 = vrot.lane.b32.xlu0 %v4924, 64
        %v4926 = vpop.permute.xlu0 %4925
        %v4928 = vrot.slane %v4864, 2
        %v4930 = vrot.slane %v4864, 3
        %4931 = vrot.lane.b32.xlu0 %v4930, 64
        %v4932 = vpop.permute.xlu0 %4931
        %v4934 = vrot.slane %v4864, 4
        %v4936 = vrot.slane %v4864, 5
        %4937 = vrot.lane.b32.xlu0 %v4936, 64
        %v4938 = vpop.permute.xlu0 %4937
        %v4940 = vrot.slane %v4864, 6
        %v4942 = vrot.slane %v4864, 7
        %4943 = vrot.lane.b32.xlu0 %v4942, 64
        %v4944 = vpop.permute.xlu0 %4943
        %v4947 = vrot.slane %v4865, 4
        %v4949 = vrot.slane %v4865, 5
        %4950 = vrot.lane.b32.xlu0 %v4949, 64
        %v4951 = vpop.permute.xlu0 %4950
        %v4953 = vrot.slane %v4865, 6
        %v4955 = vrot.slane %v4865, 7
        %4956 = vrot.lane.b32.xlu0 %v4955, 64
        %v4957 = vpop.permute.xlu0 %4956
        %v4960 = vrot.slane %v4866, 1
        %4961 = vrot.lane.b32.xlu0 %v4960, 64
        %v4962 = vpop.permute.xlu0 %4961
        %v4964 = vrot.slane %v4866, 2
        %v4966 = vrot.slane %v4866, 3
        %4967 = vrot.lane.b32.xlu0 %v4966, 64
        %v4968 = vpop.permute.xlu0 %4967
        %v4970 = vsel %vm519, %v4864, %v4926
        %v4971 = vsel %vm519, %v4928, %v4932
        %v4972 = vsel %vm519, %v4934, %v4938
        %v4973 = vsel %vm519, %v4940, %v4944
        %v4974 = vsel %vm519, %v4947, %v4951
        %v4975 = vsel %vm519, %v4953, %v4957
        %v4976 = vsel %vm519, %v4866, %v4962
        %v4977 = vsel %vm519, %v4964, %v4968
        %v4979 = vrot.slane %v4867, 1
        %4980 = vrot.lane.b32.xlu0 %v4979, 64
        %v4981 = vpop.permute.xlu0 %4980
        %v4983 = vrot.slane %v4867, 2
        %v4985 = vrot.slane %v4867, 3
        %4986 = vrot.lane.b32.xlu0 %v4985, 64
        %v4987 = vpop.permute.xlu0 %4986
        %v4989 = vrot.slane %v4867, 4
        %v4991 = vrot.slane %v4867, 5
        %4992 = vrot.lane.b32.xlu0 %v4991, 64
        %v4993 = vpop.permute.xlu0 %4992
        %v4995 = vrot.slane %v4867, 6
        %v4997 = vrot.slane %v4867, 7
        %4998 = vrot.lane.b32.xlu0 %v4997, 64
        %v4999 = vpop.permute.xlu0 %4998
        %v5001 = vsel %vm519, %v4867, %v4981
        %v5002 = vsel %vm519, %v4983, %v4987
        %v5003 = vsel %vm519, %v4989, %v4993
        %v5004 = vsel %vm519, %v4995, %v4999
        %v5005 = vpack.c.bf16 %v4915, %v4915
        %v5006 = vpack.c.bf16 %v4916, %v4916
        %v5007 = vpack.c.bf16 %v4917, %v4917
        %v5008 = vpack.c.bf16 %v4918, %v4918
        %v5009 = vpack.c.bf16 %v4919, %v4919
        %v5010 = vpack.c.bf16 %v4920, %v4920
        %v5011 = vpack.c.bf16 %v4921, %v4921
        %v5012 = vpack.c.bf16 %v4922, %v4922
        %v5013 = vpack.c.bf16 %v4970, %v4970
        %v5014 = vpack.c.bf16 %v4971, %v4971
        %v5015 = vpack.c.bf16 %v4972, %v4972
        %v5016 = vpack.c.bf16 %v4973, %v4973
        %v5017 = vpack.c.bf16 %v4974, %v4974
        %v5018 = vpack.c.bf16 %v4975, %v4975
        %v5019 = vpack.c.bf16 %v4976, %v4976
        %v5020 = vpack.c.bf16 %v4977, %v4977
        %v5021 = vpack.c.bf16 %v5001, %v5001
        %v5022 = vpack.c.bf16 %v5002, %v5002
        %v5023 = vpack.c.bf16 %v5003, %v5003
        %v5024 = vpack.c.bf16 %v5004, %v5004
        %v5025 = vld [vmem:[%s7] sm:$0xff]
        %v5026 = vld [vmem:[%s7 + $0x8] sm:$0xff]
        %v5027 = vld [vmem:[%s7 + $0x10] sm:$0xff]
        %v5028 = vld [vmem:[%s7 + $0x18] sm:$0xff]
        %v5029 = vld [vmem:[%s7 + $0x20] sm:$0xff]
        %v5030 = vld [vmem:[%s7 + $0x28] sm:$0xff]
        %v5031 = vld [vmem:[%s7 + $0x30] sm:$0xff]
        %v5032 = vld [vmem:[%s7 + $0x38] sm:$0xff]
        %v5033 = vld [vmem:[%s7 + $0x40] sm:$0xff]
        %v5034 = vld [vmem:[%s7 + $0x48] sm:$0xff]
        %v5035 = vld [vmem:[%s7 + $0x50] sm:$0xff]
        %v5036 = vld [vmem:[%s7 + $0x58] sm:$0xff]
        %v5037 = vld [vmem:[%s7 + $0x60] sm:$0xff]
        %v5038 = vld [vmem:[%s7 + $0x68] sm:$0xff]
        %v5039 = vld [vmem:[%s7 + $0x70] sm:$0xff]
        %v5040 = vld [vmem:[%s7 + $0x78] sm:$0xff]
        %v5041 = vld [vmem:[%s7 + $0x80] sm:$0xff]
        %v5042 = vld [vmem:[%s7 + $0x88] sm:$0xff]
        %v5043 = vld [vmem:[%s7 + $0x90] sm:$0xff]
        %v5044 = vld [vmem:[%s7 + $0x98] sm:$0xff]
        %v5045 = vld [vmem:[%s7 + $0xa0] sm:$0xff]
        %v5046 = vld [vmem:[%s7 + $0xa8] sm:$0xff]
        %v5047 = vld [vmem:[%s7 + $0xb0] sm:$0xff]
        %v5048 = vld [vmem:[%s7 + $0xb8] sm:$0xff]
        %v5049 = vld [vmem:[%s7 + $0xc0] sm:$0xff]
        %v5050 = vld [vmem:[%s7 + $0xc8] sm:$0xff]
        %v5051 = vld [vmem:[%s7 + $0xd0] sm:$0xff]
        %v5052 = vld [vmem:[%s7 + $0xd8] sm:$0xff]
        %v5053 = vld [vmem:[%s7 + $0xe0] sm:$0xff]
        %v5054 = vld [vmem:[%s7 + $0xe8] sm:$0xff]
        %v5055 = vld [vmem:[%s7 + $0xf0] sm:$0xff]
        %v5056 = vld [vmem:[%s7 + $0xf8] sm:$0xff]
        %v5057 = vld [vmem:[%s7 + $0x100] sm:$0xff]
        %v5058 = vld [vmem:[%s7 + $0x108] sm:$0xff]
        %v5059 = vld [vmem:[%s7 + $0x110] sm:$0xff]
        %v5060 = vld [vmem:[%s7 + $0x118] sm:$0xff]
        %v5061 = vld [vmem:[%s7 + $0x120] sm:$0xff]
        %v5062 = vld [vmem:[%s7 + $0x128] sm:$0xff]
        %v5063 = vld [vmem:[%s7 + $0x130] sm:$0xff]
        %v5064 = vld [vmem:[%s7 + $0x138] sm:$0xff]
        %v5065 = vld [vmem:[%s7 + $0x140] sm:$0xff]
        %v5066 = vld [vmem:[%s7 + $0x148] sm:$0xff]
        %v5067 = vld [vmem:[%s7 + $0x150] sm:$0xff]
        %v5068 = vld [vmem:[%s7 + $0x158] sm:$0xff]
        %v5069 = vld [vmem:[%s7 + $0x160] sm:$0xff]
        %v5070 = vld [vmem:[%s7 + $0x168] sm:$0xff]
        %v5071 = vld [vmem:[%s7 + $0x170] sm:$0xff]
        %v5072 = vld [vmem:[%s7 + $0x178] sm:$0xff]
        %v5073 = vld [vmem:[%s7 + $0x180] sm:$0xff]
        %v5074 = vld [vmem:[%s7 + $0x188] sm:$0xff]
        %v5075 = vld [vmem:[%s7 + $0x190] sm:$0xff]
        %v5076 = vld [vmem:[%s7 + $0x198] sm:$0xff]
        %v5077 = vld [vmem:[%s7 + $0x1a0] sm:$0xff]
        %v5078 = vld [vmem:[%s7 + $0x1a8] sm:$0xff]
        %v5079 = vld [vmem:[%s7 + $0x1b0] sm:$0xff]
        %v5080 = vld [vmem:[%s7 + $0x1b8] sm:$0xff]
        %v5081 = vld [vmem:[%s7 + $0x1c0] sm:$0xff]
        %v5082 = vld [vmem:[%s7 + $0x1c8] sm:$0xff]
        %v5083 = vld [vmem:[%s7 + $0x1d0] sm:$0xff]
        %v5084 = vld [vmem:[%s7 + $0x1d8] sm:$0xff]
        %v5085 = vld [vmem:[%s7 + $0x1e0] sm:$0xff]
        %v5086 = vld [vmem:[%s7 + $0x1e8] sm:$0xff]
        %v5087 = vld [vmem:[%s7 + $0x1f0] sm:$0xff]
        %v5088 = vld [vmem:[%s7 + $0x1f8] sm:$0xff]
        %v5089 = vld [vmem:[%s7 + $0x200] sm:$0xff]
        %v5090 = vld [vmem:[%s7 + $0x208] sm:$0xff]
        %v5091 = vld [vmem:[%s7 + $0x210] sm:$0xff]
        %v5092 = vld [vmem:[%s7 + $0x218] sm:$0xff]
        %v5093 = vld [vmem:[%s7 + $0x220] sm:$0xff]
        %v5094 = vld [vmem:[%s7 + $0x228] sm:$0xff]
        %v5095 = vld [vmem:[%s7 + $0x230] sm:$0xff]
        %v5096 = vld [vmem:[%s7 + $0x238] sm:$0xff]
        %v5097 = vld [vmem:[%s7 + $0x240] sm:$0xff]
        %v5098 = vld [vmem:[%s7 + $0x248] sm:$0xff]
        %v5099 = vld [vmem:[%s7 + $0x250] sm:$0xff]
        %v5100 = vld [vmem:[%s7 + $0x258] sm:$0xff]
        %v5101 = vld [vmem:[%s7 + $0x260] sm:$0xff]
        %v5102 = vld [vmem:[%s7 + $0x268] sm:$0xff]
        %v5103 = vld [vmem:[%s7 + $0x270] sm:$0xff]
        %v5104 = vld [vmem:[%s7 + $0x278] sm:$0xff]
        %v5105 = vld [vmem:[%s7 + $0x280] sm:$0xff]
        %v5106 = vld [vmem:[%s7 + $0x288] sm:$0xff]
        %v5107 = vld [vmem:[%s7 + $0x290] sm:$0xff]
        %v5108 = vld [vmem:[%s7 + $0x298] sm:$0xff]
        %v5109 = vld [vmem:[%s7 + $0x2a0] sm:$0xff]
        %v5110 = vld [vmem:[%s7 + $0x2a8] sm:$0xff]
        %v5111 = vld [vmem:[%s7 + $0x2b0] sm:$0xff]
        %v5112 = vld [vmem:[%s7 + $0x2b8] sm:$0xff]
        %v5113 = vld [vmem:[%s7 + $0x2c0] sm:$0xff]
        %v5114 = vld [vmem:[%s7 + $0x2c8] sm:$0xff]
        %v5115 = vld [vmem:[%s7 + $0x2d0] sm:$0xff]
        %v5116 = vld [vmem:[%s7 + $0x2d8] sm:$0xff]
        %v5117 = vld [vmem:[%s7 + $0x2e0] sm:$0xff]
        %v5118 = vld [vmem:[%s7 + $0x2e8] sm:$0xff]
        %v5119 = vld [vmem:[%s7 + $0x2f0] sm:$0xff]
        %v5120 = vld [vmem:[%s7 + $0x2f8] sm:$0xff]
        %v5121 = vld [vmem:[%s7 + $0x300] sm:$0xff]
        %v5122 = vld [vmem:[%s7 + $0x308] sm:$0xff]
        %v5123 = vld [vmem:[%s7 + $0x310] sm:$0xff]
        %v5124 = vld [vmem:[%s7 + $0x318] sm:$0xff]
        %v5125 = vld [vmem:[%s7 + $0x320] sm:$0xff]
        %v5126 = vld [vmem:[%s7 + $0x328] sm:$0xff]
        %v5127 = vld [vmem:[%s7 + $0x330] sm:$0xff]
        %v5128 = vld [vmem:[%s7 + $0x338] sm:$0xff]
        %v5129 = vld [vmem:[%s7 + $0x340] sm:$0xff]
        %v5130 = vld [vmem:[%s7 + $0x348] sm:$0xff]
        %v5131 = vld [vmem:[%s7 + $0x350] sm:$0xff]
        %v5132 = vld [vmem:[%s7 + $0x358] sm:$0xff]
        %v5133 = vld [vmem:[%s7 + $0x360] sm:$0xff]
        %v5134 = vld [vmem:[%s7 + $0x368] sm:$0xff]
        %v5135 = vld [vmem:[%s7 + $0x370] sm:$0xff]
        %v5136 = vld [vmem:[%s7 + $0x378] sm:$0xff]
        %v5137 = vld [vmem:[%s7 + $0x380] sm:$0xff]
        %v5138 = vld [vmem:[%s7 + $0x388] sm:$0xff]
        %v5139 = vld [vmem:[%s7 + $0x390] sm:$0xff]
        %v5140 = vld [vmem:[%s7 + $0x398] sm:$0xff]
        %v5141 = vld [vmem:[%s7 + $0x3a0] sm:$0xff]
        %v5142 = vld [vmem:[%s7 + $0x3a8] sm:$0xff]
        %v5143 = vld [vmem:[%s7 + $0x3b0] sm:$0xff]
        %v5144 = vld [vmem:[%s7 + $0x3b8] sm:$0xff]
        %v5145 = vld [vmem:[%s7 + $0x3c0] sm:$0xff]
        %v5146 = vld [vmem:[%s7 + $0x3c8] sm:$0xff]
        %v5147 = vld [vmem:[%s7 + $0x3d0] sm:$0xff]
        %v5148 = vld [vmem:[%s7 + $0x3d8] sm:$0xff]
        %v5149 = vld [vmem:[%s7 + $0x3e0] sm:$0xff]
        %v5150 = vld [vmem:[%s7 + $0x3e8] sm:$0xff]
        %v5151 = vld [vmem:[%s7 + $0x3f0] sm:$0xff]
        %v5152 = vld [vmem:[%s7 + $0x3f8] sm:$0xff]
        %v5153 = vld [vmem:[%s7 + $0x400] sm:$0xff]
        %v5154 = vld [vmem:[%s7 + $0x408] sm:$0xff]
        %v5155 = vld [vmem:[%s7 + $0x410] sm:$0xff]
        %v5156 = vld [vmem:[%s7 + $0x418] sm:$0xff]
        %v5157 = vld [vmem:[%s7 + $0x420] sm:$0xff]
        %v5158 = vld [vmem:[%s7 + $0x428] sm:$0xff]
        %v5159 = vld [vmem:[%s7 + $0x430] sm:$0xff]
        %v5160 = vld [vmem:[%s7 + $0x438] sm:$0xff]
        %v5161 = vld [vmem:[%s7 + $0x440] sm:$0xff]
        %v5162 = vld [vmem:[%s7 + $0x448] sm:$0xff]
        %v5163 = vld [vmem:[%s7 + $0x450] sm:$0xff]
        %v5164 = vld [vmem:[%s7 + $0x458] sm:$0xff]
        %v5165 = vld [vmem:[%s7 + $0x460] sm:$0xff]
        %v5166 = vld [vmem:[%s7 + $0x468] sm:$0xff]
        %v5167 = vld [vmem:[%s7 + $0x470] sm:$0xff]
        %v5168 = vld [vmem:[%s7 + $0x478] sm:$0xff]
        %v5169 = vld [vmem:[%s7 + $0x480] sm:$0xff]
        %v5170 = vld [vmem:[%s7 + $0x488] sm:$0xff]
        %v5171 = vld [vmem:[%s7 + $0x490] sm:$0xff]
        %v5172 = vld [vmem:[%s7 + $0x498] sm:$0xff]
        %v5173 = vld [vmem:[%s7 + $0x4a0] sm:$0xff]
        %v5174 = vld [vmem:[%s7 + $0x4a8] sm:$0xff]
        %v5175 = vld [vmem:[%s7 + $0x4b0] sm:$0xff]
        %v5176 = vld [vmem:[%s7 + $0x4b8] sm:$0xff]
        %v5177 = vld [vmem:[%s7 + $0x4c0] sm:$0xff]
        %v5178 = vld [vmem:[%s7 + $0x4c8] sm:$0xff]
        %v5179 = vld [vmem:[%s7 + $0x4d0] sm:$0xff]
        %v5180 = vld [vmem:[%s7 + $0x4d8] sm:$0xff]
        %v5181 = vld [vmem:[%s7 + $0x4e0] sm:$0xff]
        %v5182 = vld [vmem:[%s7 + $0x4e8] sm:$0xff]
        %v5183 = vld [vmem:[%s7 + $0x4f0] sm:$0xff]
        %v5184 = vld [vmem:[%s7 + $0x4f8] sm:$0xff]
        %v5185 = vld [vmem:[%s7 + $0x500] sm:$0xff]
        %v5186 = vld [vmem:[%s7 + $0x508] sm:$0xff]
        %v5187 = vld [vmem:[%s7 + $0x510] sm:$0xff]
        %v5188 = vld [vmem:[%s7 + $0x518] sm:$0xff]
        %v5189 = vld [vmem:[%s7 + $0x520] sm:$0xff]
        %v5190 = vld [vmem:[%s7 + $0x528] sm:$0xff]
        %v5191 = vld [vmem:[%s7 + $0x530] sm:$0xff]
        %v5192 = vld [vmem:[%s7 + $0x538] sm:$0xff]
        %v5193 = vld [vmem:[%s7 + $0x540] sm:$0xff]
        %v5194 = vld [vmem:[%s7 + $0x548] sm:$0xff]
        %v5195 = vld [vmem:[%s7 + $0x550] sm:$0xff]
        %v5196 = vld [vmem:[%s7 + $0x558] sm:$0xff]
        %v5197 = vld [vmem:[%s7 + $0x560] sm:$0xff]
        %v5198 = vld [vmem:[%s7 + $0x568] sm:$0xff]
        %v5199 = vld [vmem:[%s7 + $0x570] sm:$0xff]
        %v5200 = vld [vmem:[%s7 + $0x578] sm:$0xff]
        %v5201 = vld [vmem:[%s7 + $0x580] sm:$0xff]
        %v5202 = vld [vmem:[%s7 + $0x588] sm:$0xff]
        %v5203 = vld [vmem:[%s7 + $0x590] sm:$0xff]
        %v5204 = vld [vmem:[%s7 + $0x598] sm:$0xff]
        %v5205 = vld [vmem:[%s7 + $0x5a0] sm:$0xff]
        %v5206 = vld [vmem:[%s7 + $0x5a8] sm:$0xff]
        %v5207 = vld [vmem:[%s7 + $0x5b0] sm:$0xff]
        %v5208 = vld [vmem:[%s7 + $0x5b8] sm:$0xff]
        %v5209 = vld [vmem:[%s7 + $0x5c0] sm:$0xff]
        %v5210 = vld [vmem:[%s7 + $0x5c8] sm:$0xff]
        %v5211 = vld [vmem:[%s7 + $0x5d0] sm:$0xff]
        %v5212 = vld [vmem:[%s7 + $0x5d8] sm:$0xff]
        %v5213 = vld [vmem:[%s7 + $0x5e0] sm:$0xff]
        %v5214 = vld [vmem:[%s7 + $0x5e8] sm:$0xff]
        %v5215 = vld [vmem:[%s7 + $0x5f0] sm:$0xff]
        %v5216 = vld [vmem:[%s7 + $0x5f8] sm:$0xff]
        %v5217 = vld [vmem:[%s7 + $0x600] sm:$0xff]
        %v5218 = vld [vmem:[%s7 + $0x608] sm:$0xff]
        %v5219 = vld [vmem:[%s7 + $0x610] sm:$0xff]
        %v5220 = vld [vmem:[%s7 + $0x618] sm:$0xff]
        %v5221 = vld [vmem:[%s7 + $0x620] sm:$0xff]
        %v5222 = vld [vmem:[%s7 + $0x628] sm:$0xff]
        %v5223 = vld [vmem:[%s7 + $0x630] sm:$0xff]
        %v5224 = vld [vmem:[%s7 + $0x638] sm:$0xff]
        %v5225 = vld [vmem:[%s7 + $0x640] sm:$0xff]
        %v5226 = vld [vmem:[%s7 + $0x648] sm:$0xff]
        %v5227 = vld [vmem:[%s7 + $0x650] sm:$0xff]
        %v5228 = vld [vmem:[%s7 + $0x658] sm:$0xff]
        %v5229 = vld [vmem:[%s7 + $0x660] sm:$0xff]
        %v5230 = vld [vmem:[%s7 + $0x668] sm:$0xff]
        %v5231 = vld [vmem:[%s7 + $0x670] sm:$0xff]
        %v5232 = vld [vmem:[%s7 + $0x678] sm:$0xff]
        %v5233 = vld [vmem:[%s7 + $0x680] sm:$0xff]
        %v5234 = vld [vmem:[%s7 + $0x688] sm:$0xff]
        %v5235 = vld [vmem:[%s7 + $0x690] sm:$0xff]
        %v5236 = vld [vmem:[%s7 + $0x698] sm:$0xff]
        %v5237 = vld [vmem:[%s7 + $0x6a0] sm:$0xff]
        %v5238 = vld [vmem:[%s7 + $0x6a8] sm:$0xff]
        %v5239 = vld [vmem:[%s7 + $0x6b0] sm:$0xff]
        %v5240 = vld [vmem:[%s7 + $0x6b8] sm:$0xff]
        %v5241 = vld [vmem:[%s7 + $0x6c0] sm:$0xff]
        %v5242 = vld [vmem:[%s7 + $0x6c8] sm:$0xff]
        %v5243 = vld [vmem:[%s7 + $0x6d0] sm:$0xff]
        %v5244 = vld [vmem:[%s7 + $0x6d8] sm:$0xff]
        %v5245 = vld [vmem:[%s7 + $0x6e0] sm:$0xff]
        %v5246 = vld [vmem:[%s7 + $0x6e8] sm:$0xff]
        %v5247 = vld [vmem:[%s7 + $0x6f0] sm:$0xff]
        %v5248 = vld [vmem:[%s7 + $0x6f8] sm:$0xff]
        %v5249 = vld [vmem:[%s7 + $0x700] sm:$0xff]
        %v5250 = vld [vmem:[%s7 + $0x708] sm:$0xff]
        %v5251 = vld [vmem:[%s7 + $0x710] sm:$0xff]
        %v5252 = vld [vmem:[%s7 + $0x718] sm:$0xff]
        %v5253 = vld [vmem:[%s7 + $0x720] sm:$0xff]
        %v5254 = vld [vmem:[%s7 + $0x728] sm:$0xff]
        %v5255 = vld [vmem:[%s7 + $0x730] sm:$0xff]
        %v5256 = vld [vmem:[%s7 + $0x738] sm:$0xff]
        %v5257 = vld [vmem:[%s7 + $0x740] sm:$0xff]
        %v5258 = vld [vmem:[%s7 + $0x748] sm:$0xff]
        %v5259 = vld [vmem:[%s7 + $0x750] sm:$0xff]
        %v5260 = vld [vmem:[%s7 + $0x758] sm:$0xff]
        %v5261 = vld [vmem:[%s7 + $0x760] sm:$0xff]
        %v5262 = vld [vmem:[%s7 + $0x768] sm:$0xff]
        %v5263 = vld [vmem:[%s7 + $0x770] sm:$0xff]
        %v5264 = vld [vmem:[%s7 + $0x778] sm:$0xff]
        %v5265 = vld [vmem:[%s7 + $0x780] sm:$0xff]
        %v5266 = vld [vmem:[%s7 + $0x788] sm:$0xff]
        %v5267 = vld [vmem:[%s7 + $0x790] sm:$0xff]
        %v5268 = vld [vmem:[%s7 + $0x798] sm:$0xff]
        %v5269 = vld [vmem:[%s7 + $0x7a0] sm:$0xff]
        %v5270 = vld [vmem:[%s7 + $0x7a8] sm:$0xff]
        %v5271 = vld [vmem:[%s7 + $0x7b0] sm:$0xff]
        %v5272 = vld [vmem:[%s7 + $0x7b8] sm:$0xff]
        %v5273 = vld [vmem:[%s7 + $0x7c0] sm:$0xff]
        %v5274 = vld [vmem:[%s7 + $0x7c8] sm:$0xff]
        %v5275 = vld [vmem:[%s7 + $0x7d0] sm:$0xff]
        %v5276 = vld [vmem:[%s7 + $0x7d8] sm:$0xff]
        %v5277 = vld [vmem:[%s7 + $0x7e0] sm:$0xff]
        %v5278 = vld [vmem:[%s7 + $0x7e8] sm:$0xff]
        %v5279 = vld [vmem:[%s7 + $0x7f0] sm:$0xff]
        %v5280 = vld [vmem:[%s7 + $0x7f8] sm:$0xff]
        %v5281 = vld [vmem:[%s7 + $0x800] sm:$0xff]
        %v5282 = vld [vmem:[%s7 + $0x808] sm:$0xff]
        %v5283 = vld [vmem:[%s7 + $0x810] sm:$0xff]
        %v5284 = vld [vmem:[%s7 + $0x818] sm:$0xff]
        %v5285 = vld [vmem:[%s7 + $0x820] sm:$0xff]
        %v5286 = vld [vmem:[%s7 + $0x828] sm:$0xff]
        %v5287 = vld [vmem:[%s7 + $0x830] sm:$0xff]
        %v5288 = vld [vmem:[%s7 + $0x838] sm:$0xff]
        %v5289 = vld [vmem:[%s7 + $0x840] sm:$0xff]
        %v5290 = vld [vmem:[%s7 + $0x848] sm:$0xff]
        %v5291 = vld [vmem:[%s7 + $0x850] sm:$0xff]
        %v5292 = vld [vmem:[%s7 + $0x858] sm:$0xff]
        %v5293 = vld [vmem:[%s7 + $0x860] sm:$0xff]
        %v5294 = vld [vmem:[%s7 + $0x868] sm:$0xff]
        %v5295 = vld [vmem:[%s7 + $0x870] sm:$0xff]
        %v5296 = vld [vmem:[%s7 + $0x878] sm:$0xff]
        %v5297 = vld [vmem:[%s7 + $0x880] sm:$0xff]
        %v5298 = vld [vmem:[%s7 + $0x888] sm:$0xff]
        %v5299 = vld [vmem:[%s7 + $0x890] sm:$0xff]
        %v5300 = vld [vmem:[%s7 + $0x898] sm:$0xff]
        %v5301 = vld [vmem:[%s7 + $0x8a0] sm:$0xff]
        %v5302 = vld [vmem:[%s7 + $0x8a8] sm:$0xff]
        %v5303 = vld [vmem:[%s7 + $0x8b0] sm:$0xff]
        %v5304 = vld [vmem:[%s7 + $0x8b8] sm:$0xff]
        %v5305 = vld [vmem:[%s7 + $0x8c0] sm:$0xff]
        %v5306 = vld [vmem:[%s7 + $0x8c8] sm:$0xff]
        %v5307 = vld [vmem:[%s7 + $0x8d0] sm:$0xff]
        %v5308 = vld [vmem:[%s7 + $0x8d8] sm:$0xff]
        %v5309 = vld [vmem:[%s7 + $0x8e0] sm:$0xff]
        %v5310 = vld [vmem:[%s7 + $0x8e8] sm:$0xff]
        %v5311 = vld [vmem:[%s7 + $0x8f0] sm:$0xff]
        %v5312 = vld [vmem:[%s7 + $0x8f8] sm:$0xff]
        %v5313 = vld [vmem:[%s7 + $0x900] sm:$0xff]
        %v5314 = vld [vmem:[%s7 + $0x908] sm:$0xff]
        %v5315 = vld [vmem:[%s7 + $0x910] sm:$0xff]
        %v5316 = vld [vmem:[%s7 + $0x918] sm:$0xff]
        %v5317 = vld [vmem:[%s7 + $0x920] sm:$0xff]
        %v5318 = vld [vmem:[%s7 + $0x928] sm:$0xff]
        %v5319 = vld [vmem:[%s7 + $0x930] sm:$0xff]
        %v5320 = vld [vmem:[%s7 + $0x938] sm:$0xff]
        %v5321 = vld [vmem:[%s7 + $0x940] sm:$0xff]
        %v5322 = vld [vmem:[%s7 + $0x948] sm:$0xff]
        %v5323 = vld [vmem:[%s7 + $0x950] sm:$0xff]
        %v5324 = vld [vmem:[%s7 + $0x958] sm:$0xff]
        %v5325 = vld [vmem:[%s7 + $0x960] sm:$0xff]
        %v5326 = vld [vmem:[%s7 + $0x968] sm:$0xff]
        %v5327 = vld [vmem:[%s7 + $0x970] sm:$0xff]
        %v5328 = vld [vmem:[%s7 + $0x978] sm:$0xff]
        %v5329 = vld [vmem:[%s7 + $0x980] sm:$0xff]
        %v5330 = vld [vmem:[%s7 + $0x988] sm:$0xff]
        %v5331 = vld [vmem:[%s7 + $0x990] sm:$0xff]
        %v5332 = vld [vmem:[%s7 + $0x998] sm:$0xff]
        %v5333 = vld [vmem:[%s7 + $0x9a0] sm:$0xff]
        %v5334 = vld [vmem:[%s7 + $0x9a8] sm:$0xff]
        %v5335 = vld [vmem:[%s7 + $0x9b0] sm:$0xff]
        %v5336 = vld [vmem:[%s7 + $0x9b8] sm:$0xff]
        %v5337 = vld [vmem:[%s7 + $0x9c0] sm:$0xff]
        %v5338 = vld [vmem:[%s7 + $0x9c8] sm:$0xff]
        %v5339 = vld [vmem:[%s7 + $0x9d0] sm:$0xff]
        %v5340 = vld [vmem:[%s7 + $0x9d8] sm:$0xff]
        %v5341 = vld [vmem:[%s7 + $0x9e0] sm:$0xff]
        %v5342 = vld [vmem:[%s7 + $0x9e8] sm:$0xff]
        %v5343 = vld [vmem:[%s7 + $0x9f0] sm:$0xff]
        %v5344 = vld [vmem:[%s7 + $0x9f8] sm:$0xff]
        %v5345 = vld [vmem:[%s7 + $0xa00] sm:$0xff]
        %v5346 = vld [vmem:[%s7 + $0xa08] sm:$0xff]
        %v5347 = vld [vmem:[%s7 + $0xa10] sm:$0xff]
        %v5348 = vld [vmem:[%s7 + $0xa18] sm:$0xff]
        %v5349 = vld [vmem:[%s7 + $0xa20] sm:$0xff]
        %v5350 = vld [vmem:[%s7 + $0xa28] sm:$0xff]
        %v5351 = vld [vmem:[%s7 + $0xa30] sm:$0xff]
        %v5352 = vld [vmem:[%s7 + $0xa38] sm:$0xff]
        %v5353 = vld [vmem:[%s7 + $0xa40] sm:$0xff]
        %v5354 = vld [vmem:[%s7 + $0xa48] sm:$0xff]
        %v5355 = vld [vmem:[%s7 + $0xa50] sm:$0xff]
        %v5356 = vld [vmem:[%s7 + $0xa58] sm:$0xff]
        %v5357 = vld [vmem:[%s7 + $0xa60] sm:$0xff]
        %v5358 = vld [vmem:[%s7 + $0xa68] sm:$0xff]
        %v5359 = vld [vmem:[%s7 + $0xa70] sm:$0xff]
        %v5360 = vld [vmem:[%s7 + $0xa78] sm:$0xff]
        %v5361 = vld [vmem:[%s7 + $0xa80] sm:$0xff]
        %v5362 = vld [vmem:[%s7 + $0xa88] sm:$0xff]
        %v5363 = vld [vmem:[%s7 + $0xa90] sm:$0xff]
        %v5364 = vld [vmem:[%s7 + $0xa98] sm:$0xff]
        %v5365 = vld [vmem:[%s7 + $0xaa0] sm:$0xff]
        %v5366 = vld [vmem:[%s7 + $0xaa8] sm:$0xff]
        %v5367 = vld [vmem:[%s7 + $0xab0] sm:$0xff]
        %v5368 = vld [vmem:[%s7 + $0xab8] sm:$0xff]
        %v5369 = vld [vmem:[%s7 + $0xac0] sm:$0xff]
        %v5370 = vld [vmem:[%s7 + $0xac8] sm:$0xff]
        %v5371 = vld [vmem:[%s7 + $0xad0] sm:$0xff]
        %v5372 = vld [vmem:[%s7 + $0xad8] sm:$0xff]
        %v5373 = vld [vmem:[%s7 + $0xae0] sm:$0xff]
        %v5374 = vld [vmem:[%s7 + $0xae8] sm:$0xff]
        %v5375 = vld [vmem:[%s7 + $0xaf0] sm:$0xff]
        %v5376 = vld [vmem:[%s7 + $0xaf8] sm:$0xff]
        %v5377 = vld [vmem:[%s7 + $0xb00] sm:$0xff]
        %v5378 = vld [vmem:[%s7 + $0xb08] sm:$0xff]
        %v5379 = vld [vmem:[%s7 + $0xb10] sm:$0xff]
        %v5380 = vld [vmem:[%s7 + $0xb18] sm:$0xff]
        %v5381 = vld [vmem:[%s7 + $0xb20] sm:$0xff]
        %v5382 = vld [vmem:[%s7 + $0xb28] sm:$0xff]
        %v5383 = vld [vmem:[%s7 + $0xb30] sm:$0xff]
        %v5384 = vld [vmem:[%s7 + $0xb38] sm:$0xff]
        %v5385 = vld [vmem:[%s7 + $0xb40] sm:$0xff]
        %v5386 = vld [vmem:[%s7 + $0xb48] sm:$0xff]
        %v5387 = vld [vmem:[%s7 + $0xb50] sm:$0xff]
        %v5388 = vld [vmem:[%s7 + $0xb58] sm:$0xff]
        %v5389 = vld [vmem:[%s7 + $0xb60] sm:$0xff]
        %v5390 = vld [vmem:[%s7 + $0xb68] sm:$0xff]
        %v5391 = vld [vmem:[%s7 + $0xb70] sm:$0xff]
        %v5392 = vld [vmem:[%s7 + $0xb78] sm:$0xff]
        %v5393 = vld [vmem:[%s7 + $0xb80] sm:$0xff]
        %v5394 = vld [vmem:[%s7 + $0xb88] sm:$0xff]
        %v5395 = vld [vmem:[%s7 + $0xb90] sm:$0xff]
        %v5396 = vld [vmem:[%s7 + $0xb98] sm:$0xff]
        %v5397 = vld [vmem:[%s7 + $0xba0] sm:$0xff]
        %v5398 = vld [vmem:[%s7 + $0xba8] sm:$0xff]
        %v5399 = vld [vmem:[%s7 + $0xbb0] sm:$0xff]
        %v5400 = vld [vmem:[%s7 + $0xbb8] sm:$0xff]
        %v5401 = vld [vmem:[%s7 + $0xbc0] sm:$0xff]
        %v5402 = vld [vmem:[%s7 + $0xbc8] sm:$0xff]
        %v5403 = vld [vmem:[%s7 + $0xbd0] sm:$0xff]
        %v5404 = vld [vmem:[%s7 + $0xbd8] sm:$0xff]
        %v5405 = vld [vmem:[%s7 + $0xbe0] sm:$0xff]
        %v5406 = vld [vmem:[%s7 + $0xbe8] sm:$0xff]
        %v5407 = vld [vmem:[%s7 + $0xbf0] sm:$0xff]
        %v5408 = vld [vmem:[%s7 + $0xbf8] sm:$0xff]
        %v5409 = vld [vmem:[%s7 + $0xc00] sm:$0xff]
        %v5410 = vld [vmem:[%s7 + $0xc08] sm:$0xff]
        %v5411 = vld [vmem:[%s7 + $0xc10] sm:$0xff]
        %v5412 = vld [vmem:[%s7 + $0xc18] sm:$0xff]
        %v5413 = vld [vmem:[%s7 + $0xc20] sm:$0xff]
        %v5414 = vld [vmem:[%s7 + $0xc28] sm:$0xff]
        %v5415 = vld [vmem:[%s7 + $0xc30] sm:$0xff]
        %v5416 = vld [vmem:[%s7 + $0xc38] sm:$0xff]
        %v5417 = vld [vmem:[%s7 + $0xc40] sm:$0xff]
        %v5418 = vld [vmem:[%s7 + $0xc48] sm:$0xff]
        %v5419 = vld [vmem:[%s7 + $0xc50] sm:$0xff]
        %v5420 = vld [vmem:[%s7 + $0xc58] sm:$0xff]
        %v5421 = vld [vmem:[%s7 + $0xc60] sm:$0xff]
        %v5422 = vld [vmem:[%s7 + $0xc68] sm:$0xff]
        %v5423 = vld [vmem:[%s7 + $0xc70] sm:$0xff]
        %v5424 = vld [vmem:[%s7 + $0xc78] sm:$0xff]
        %v5425 = vld [vmem:[%s7 + $0xc80] sm:$0xff]
        %v5426 = vld [vmem:[%s7 + $0xc88] sm:$0xff]
        %v5427 = vld [vmem:[%s7 + $0xc90] sm:$0xff]
        %v5428 = vld [vmem:[%s7 + $0xc98] sm:$0xff]
        %v5429 = vld [vmem:[%s7 + $0xca0] sm:$0xff]
        %v5430 = vld [vmem:[%s7 + $0xca8] sm:$0xff]
        %v5431 = vld [vmem:[%s7 + $0xcb0] sm:$0xff]
        %v5432 = vld [vmem:[%s7 + $0xcb8] sm:$0xff]
        %v5433 = vld [vmem:[%s7 + $0xcc0] sm:$0xff]
        %v5434 = vld [vmem:[%s7 + $0xcc8] sm:$0xff]
        %v5435 = vld [vmem:[%s7 + $0xcd0] sm:$0xff]
        %v5436 = vld [vmem:[%s7 + $0xcd8] sm:$0xff]
        %v5437 = vld [vmem:[%s7 + $0xce0] sm:$0xff]
        %v5438 = vld [vmem:[%s7 + $0xce8] sm:$0xff]
        %v5439 = vld [vmem:[%s7 + $0xcf0] sm:$0xff]
        %v5440 = vld [vmem:[%s7 + $0xcf8] sm:$0xff]
        %v5441 = vld [vmem:[%s7 + $0xd00] sm:$0xff]
        %v5442 = vld [vmem:[%s7 + $0xd08] sm:$0xff]
        %v5443 = vld [vmem:[%s7 + $0xd10] sm:$0xff]
        %v5444 = vld [vmem:[%s7 + $0xd18] sm:$0xff]
        %v5445 = vld [vmem:[%s7 + $0xd20] sm:$0xff]
        %v5446 = vld [vmem:[%s7 + $0xd28] sm:$0xff]
        %v5447 = vld [vmem:[%s7 + $0xd30] sm:$0xff]
        %v5448 = vld [vmem:[%s7 + $0xd38] sm:$0xff]
        %v5449 = vld [vmem:[%s7 + $0xd40] sm:$0xff]
        %v5450 = vld [vmem:[%s7 + $0xd48] sm:$0xff]
        %v5451 = vld [vmem:[%s7 + $0xd50] sm:$0xff]
        %v5452 = vld [vmem:[%s7 + $0xd58] sm:$0xff]
        %v5453 = vld [vmem:[%s7 + $0xd60] sm:$0xff]
        %v5454 = vld [vmem:[%s7 + $0xd68] sm:$0xff]
        %v5455 = vld [vmem:[%s7 + $0xd70] sm:$0xff]
        %v5456 = vld [vmem:[%s7 + $0xd78] sm:$0xff]
        %v5457 = vld [vmem:[%s7 + $0xd80] sm:$0xff]
        %v5458 = vld [vmem:[%s7 + $0xd88] sm:$0xff]
        %v5459 = vld [vmem:[%s7 + $0xd90] sm:$0xff]
        %v5460 = vld [vmem:[%s7 + $0xd98] sm:$0xff]
        %v5461 = vld [vmem:[%s7 + $0xda0] sm:$0xff]
        %v5462 = vld [vmem:[%s7 + $0xda8] sm:$0xff]
        %v5463 = vld [vmem:[%s7 + $0xdb0] sm:$0xff]
        %v5464 = vld [vmem:[%s7 + $0xdb8] sm:$0xff]
        %v5465 = vld [vmem:[%s7 + $0xdc0] sm:$0xff]
        %v5466 = vld [vmem:[%s7 + $0xdc8] sm:$0xff]
        %v5467 = vld [vmem:[%s7 + $0xdd0] sm:$0xff]
        %v5468 = vld [vmem:[%s7 + $0xdd8] sm:$0xff]
        %v5469 = vld [vmem:[%s7 + $0xde0] sm:$0xff]
        %v5470 = vld [vmem:[%s7 + $0xde8] sm:$0xff]
        %v5471 = vld [vmem:[%s7 + $0xdf0] sm:$0xff]
        %v5472 = vld [vmem:[%s7 + $0xdf8] sm:$0xff]
        %v5473 = vld [vmem:[%s7 + $0xe00] sm:$0xff]
        %v5474 = vld [vmem:[%s7 + $0xe08] sm:$0xff]
        %v5475 = vld [vmem:[%s7 + $0xe10] sm:$0xff]
        %v5476 = vld [vmem:[%s7 + $0xe18] sm:$0xff]
        %v5477 = vld [vmem:[%s7 + $0xe20] sm:$0xff]
        %v5478 = vld [vmem:[%s7 + $0xe28] sm:$0xff]
        %v5479 = vld [vmem:[%s7 + $0xe30] sm:$0xff]
        %v5480 = vld [vmem:[%s7 + $0xe38] sm:$0xff]
        %v5481 = vld [vmem:[%s7 + $0xe40] sm:$0xff]
        %v5482 = vld [vmem:[%s7 + $0xe48] sm:$0xff]
        %v5483 = vld [vmem:[%s7 + $0xe50] sm:$0xff]
        %v5484 = vld [vmem:[%s7 + $0xe58] sm:$0xff]
        %v5485 = vld [vmem:[%s7 + $0xe60] sm:$0xff]
        %v5486 = vld [vmem:[%s7 + $0xe68] sm:$0xff]
        %v5487 = vld [vmem:[%s7 + $0xe70] sm:$0xff]
        %v5488 = vld [vmem:[%s7 + $0xe78] sm:$0xff]
        %v5489 = vld [vmem:[%s7 + $0xe80] sm:$0xff]
        %v5490 = vld [vmem:[%s7 + $0xe88] sm:$0xff]
        %v5491 = vld [vmem:[%s7 + $0xe90] sm:$0xff]
        %v5492 = vld [vmem:[%s7 + $0xe98] sm:$0xff]
        %v5493 = vld [vmem:[%s7 + $0xea0] sm:$0xff]
        %v5494 = vld [vmem:[%s7 + $0xea8] sm:$0xff]
        %v5495 = vld [vmem:[%s7 + $0xeb0] sm:$0xff]
        %v5496 = vld [vmem:[%s7 + $0xeb8] sm:$0xff]
        %v5497 = vld [vmem:[%s7 + $0xec0] sm:$0xff]
        %v5498 = vld [vmem:[%s7 + $0xec8] sm:$0xff]
        %v5499 = vld [vmem:[%s7 + $0xed0] sm:$0xff]
        %v5500 = vld [vmem:[%s7 + $0xed8] sm:$0xff]
        %v5501 = vld [vmem:[%s7 + $0xee0] sm:$0xff]
        %v5502 = vld [vmem:[%s7 + $0xee8] sm:$0xff]
        %v5503 = vld [vmem:[%s7 + $0xef0] sm:$0xff]
        %v5504 = vld [vmem:[%s7 + $0xef8] sm:$0xff]
        %v5505 = vld [vmem:[%s7 + $0xf00] sm:$0xff]
        %v5506 = vld [vmem:[%s7 + $0xf08] sm:$0xff]
        %v5507 = vld [vmem:[%s7 + $0xf10] sm:$0xff]
        %v5508 = vld [vmem:[%s7 + $0xf18] sm:$0xff]
        %v5509 = vld [vmem:[%s7 + $0xf20] sm:$0xff]
        %v5510 = vld [vmem:[%s7 + $0xf28] sm:$0xff]
        %v5511 = vld [vmem:[%s7 + $0xf30] sm:$0xff]
        %v5512 = vld [vmem:[%s7 + $0xf38] sm:$0xff]
        %v5513 = vld [vmem:[%s7 + $0xf40] sm:$0xff]
        %v5514 = vld [vmem:[%s7 + $0xf48] sm:$0xff]
        %v5515 = vld [vmem:[%s7 + $0xf50] sm:$0xff]
        %v5516 = vld [vmem:[%s7 + $0xf58] sm:$0xff]
        %v5517 = vld [vmem:[%s7 + $0xf60] sm:$0xff]
        %v5518 = vld [vmem:[%s7 + $0xf68] sm:$0xff]
        %v5519 = vld [vmem:[%s7 + $0xf70] sm:$0xff]
        %v5520 = vld [vmem:[%s7 + $0xf78] sm:$0xff]
        %v5521 = vld [vmem:[%s7 + $0xf80] sm:$0xff]
        %v5522 = vld [vmem:[%s7 + $0xf88] sm:$0xff]
        %v5523 = vld [vmem:[%s7 + $0xf90] sm:$0xff]
        %v5524 = vld [vmem:[%s7 + $0xf98] sm:$0xff]
        %v5525 = vld [vmem:[%s7 + $0xfa0] sm:$0xff]
        %v5526 = vld [vmem:[%s7 + $0xfa8] sm:$0xff]
        %v5527 = vld [vmem:[%s7 + $0xfb0] sm:$0xff]
        %v5528 = vld [vmem:[%s7 + $0xfb8] sm:$0xff]
        %v5529 = vld [vmem:[%s7 + $0xfc0] sm:$0xff]
        %v5530 = vld [vmem:[%s7 + $0xfc8] sm:$0xff]
        %v5531 = vld [vmem:[%s7 + $0xfd0] sm:$0xff]
        %v5532 = vld [vmem:[%s7 + $0xfd8] sm:$0xff]
        %v5533 = vld [vmem:[%s7 + $0xfe0] sm:$0xff]
        %v5534 = vld [vmem:[%s7 + $0xfe8] sm:$0xff]
        %v5535 = vld [vmem:[%s7 + $0xff0] sm:$0xff]
        %v5536 = vld [vmem:[%s7 + $0xff8] sm:$0xff]
        %v5537 = vld [vmem:[%s7 + $0x1000] sm:$0xff]
        %v5538 = vld [vmem:[%s7 + $0x1008] sm:$0xff]
        %v5539 = vld [vmem:[%s7 + $0x1010] sm:$0xff]
        %v5540 = vld [vmem:[%s7 + $0x1018] sm:$0xff]
        %v5541 = vld [vmem:[%s7 + $0x1020] sm:$0xff]
        %v5542 = vld [vmem:[%s7 + $0x1028] sm:$0xff]
        %v5543 = vld [vmem:[%s7 + $0x1030] sm:$0xff]
        %v5544 = vld [vmem:[%s7 + $0x1038] sm:$0xff]
        %v5545 = vld [vmem:[%s7 + $0x1040] sm:$0xff]
        %v5546 = vld [vmem:[%s7 + $0x1048] sm:$0xff]
        %v5547 = vld [vmem:[%s7 + $0x1050] sm:$0xff]
        %v5548 = vld [vmem:[%s7 + $0x1058] sm:$0xff]
        %v5549 = vld [vmem:[%s7 + $0x1060] sm:$0xff]
        %v5550 = vld [vmem:[%s7 + $0x1068] sm:$0xff]
        %v5551 = vld [vmem:[%s7 + $0x1070] sm:$0xff]
        %v5552 = vld [vmem:[%s7 + $0x1078] sm:$0xff]
        %v5553 = vld [vmem:[%s7 + $0x1080] sm:$0xff]
        %v5554 = vld [vmem:[%s7 + $0x1088] sm:$0xff]
        %v5555 = vld [vmem:[%s7 + $0x1090] sm:$0xff]
        %v5556 = vld [vmem:[%s7 + $0x1098] sm:$0xff]
        %v5557 = vld [vmem:[%s7 + $0x10a0] sm:$0xff]
        %v5558 = vld [vmem:[%s7 + $0x10a8] sm:$0xff]
        %v5559 = vld [vmem:[%s7 + $0x10b0] sm:$0xff]
        %v5560 = vld [vmem:[%s7 + $0x10b8] sm:$0xff]
        %v5561 = vld [vmem:[%s7 + $0x10c0] sm:$0xff]
        %v5562 = vld [vmem:[%s7 + $0x10c8] sm:$0xff]
        %v5563 = vld [vmem:[%s7 + $0x10d0] sm:$0xff]
        %v5564 = vld [vmem:[%s7 + $0x10d8] sm:$0xff]
        %v5565 = vld [vmem:[%s7 + $0x10e0] sm:$0xff]
        %v5566 = vld [vmem:[%s7 + $0x10e8] sm:$0xff]
        %v5567 = vld [vmem:[%s7 + $0x10f0] sm:$0xff]
        %v5568 = vld [vmem:[%s7 + $0x10f8] sm:$0xff]
        %v5569 = vld [vmem:[%s7 + $0x1100] sm:$0xff]
        %v5570 = vld [vmem:[%s7 + $0x1108] sm:$0xff]
        %v5571 = vld [vmem:[%s7 + $0x1110] sm:$0xff]
        %v5572 = vld [vmem:[%s7 + $0x1118] sm:$0xff]
        %v5573 = vld [vmem:[%s7 + $0x1120] sm:$0xff]
        %v5574 = vld [vmem:[%s7 + $0x1128] sm:$0xff]
        %v5575 = vld [vmem:[%s7 + $0x1130] sm:$0xff]
        %v5576 = vld [vmem:[%s7 + $0x1138] sm:$0xff]
        %v5577 = vld [vmem:[%s7 + $0x1140] sm:$0xff]
        %v5578 = vld [vmem:[%s7 + $0x1148] sm:$0xff]
        %v5579 = vld [vmem:[%s7 + $0x1150] sm:$0xff]
        %v5580 = vld [vmem:[%s7 + $0x1158] sm:$0xff]
        %v5581 = vld [vmem:[%s7 + $0x1160] sm:$0xff]
        %v5582 = vld [vmem:[%s7 + $0x1168] sm:$0xff]
        %v5583 = vld [vmem:[%s7 + $0x1170] sm:$0xff]
        %v5584 = vld [vmem:[%s7 + $0x1178] sm:$0xff]
        %v5585 = vld [vmem:[%s7 + $0x1180] sm:$0xff]
        %v5586 = vld [vmem:[%s7 + $0x1188] sm:$0xff]
        %v5587 = vld [vmem:[%s7 + $0x1190] sm:$0xff]
        %v5588 = vld [vmem:[%s7 + $0x1198] sm:$0xff]
        %v5589 = vld [vmem:[%s7 + $0x11a0] sm:$0xff]
        %v5590 = vld [vmem:[%s7 + $0x11a8] sm:$0xff]
        %v5591 = vld [vmem:[%s7 + $0x11b0] sm:$0xff]
        %v5592 = vld [vmem:[%s7 + $0x11b8] sm:$0xff]
        %v5593 = vld [vmem:[%s7 + $0x11c0] sm:$0xff]
        %v5594 = vld [vmem:[%s7 + $0x11c8] sm:$0xff]
        %v5595 = vld [vmem:[%s7 + $0x11d0] sm:$0xff]
        %v5596 = vld [vmem:[%s7 + $0x11d8] sm:$0xff]
        %v5597 = vld [vmem:[%s7 + $0x11e0] sm:$0xff]
        %v5598 = vld [vmem:[%s7 + $0x11e8] sm:$0xff]
        %v5599 = vld [vmem:[%s7 + $0x11f0] sm:$0xff]
        %v5600 = vld [vmem:[%s7 + $0x11f8] sm:$0xff]
        %v5601 = vld [vmem:[%s7 + $0x1200] sm:$0xff]
        %v5602 = vld [vmem:[%s7 + $0x1208] sm:$0xff]
        %v5603 = vld [vmem:[%s7 + $0x1210] sm:$0xff]
        %v5604 = vld [vmem:[%s7 + $0x1218] sm:$0xff]
        %v5605 = vld [vmem:[%s7 + $0x1220] sm:$0xff]
        %v5606 = vld [vmem:[%s7 + $0x1228] sm:$0xff]
        %v5607 = vld [vmem:[%s7 + $0x1230] sm:$0xff]
        %v5608 = vld [vmem:[%s7 + $0x1238] sm:$0xff]
        %v5609 = vld [vmem:[%s7 + $0x1240] sm:$0xff]
        %v5610 = vld [vmem:[%s7 + $0x1248] sm:$0xff]
        %v5611 = vld [vmem:[%s7 + $0x1250] sm:$0xff]
        %v5612 = vld [vmem:[%s7 + $0x1258] sm:$0xff]
        %v5613 = vld [vmem:[%s7 + $0x1260] sm:$0xff]
        %v5614 = vld [vmem:[%s7 + $0x1268] sm:$0xff]
        %v5615 = vld [vmem:[%s7 + $0x1270] sm:$0xff]
        %v5616 = vld [vmem:[%s7 + $0x1278] sm:$0xff]
        %v5617 = vld [vmem:[%s7 + $0x1280] sm:$0xff]
        %v5618 = vld [vmem:[%s7 + $0x1288] sm:$0xff]
        %v5619 = vld [vmem:[%s7 + $0x1290] sm:$0xff]
        %v5620 = vld [vmem:[%s7 + $0x1298] sm:$0xff]
        %v5621 = vld [vmem:[%s7 + $0x12a0] sm:$0xff]
        %v5622 = vld [vmem:[%s7 + $0x12a8] sm:$0xff]
        %v5623 = vld [vmem:[%s7 + $0x12b0] sm:$0xff]
        %v5624 = vld [vmem:[%s7 + $0x12b8] sm:$0xff]
        %v5625 = vld [vmem:[%s7 + $0x12c0] sm:$0xff]
        %v5626 = vld [vmem:[%s7 + $0x12c8] sm:$0xff]
        %v5627 = vld [vmem:[%s7 + $0x12d0] sm:$0xff]
        %v5628 = vld [vmem:[%s7 + $0x12d8] sm:$0xff]
        %v5629 = vld [vmem:[%s7 + $0x12e0] sm:$0xff]
        %v5630 = vld [vmem:[%s7 + $0x12e8] sm:$0xff]
        %v5631 = vld [vmem:[%s7 + $0x12f0] sm:$0xff]
        %v5632 = vld [vmem:[%s7 + $0x12f8] sm:$0xff]
        %v5633 = vld [vmem:[%s7 + $0x1300] sm:$0xff]
        %v5634 = vld [vmem:[%s7 + $0x1308] sm:$0xff]
        %v5635 = vld [vmem:[%s7 + $0x1310] sm:$0xff]
        %v5636 = vld [vmem:[%s7 + $0x1318] sm:$0xff]
        %v5637 = vld [vmem:[%s7 + $0x1320] sm:$0xff]
        %v5638 = vld [vmem:[%s7 + $0x1328] sm:$0xff]
        %v5639 = vld [vmem:[%s7 + $0x1330] sm:$0xff]
        %v5640 = vld [vmem:[%s7 + $0x1338] sm:$0xff]
        %v5641 = vld [vmem:[%s7 + $0x1340] sm:$0xff]
        %v5642 = vld [vmem:[%s7 + $0x1348] sm:$0xff]
        %v5643 = vld [vmem:[%s7 + $0x1350] sm:$0xff]
        %v5644 = vld [vmem:[%s7 + $0x1358] sm:$0xff]
        %v5645 = vld [vmem:[%s7 + $0x1360] sm:$0xff]
        %v5646 = vld [vmem:[%s7 + $0x1368] sm:$0xff]
        %v5647 = vld [vmem:[%s7 + $0x1370] sm:$0xff]
        %v5648 = vld [vmem:[%s7 + $0x1378] sm:$0xff]
        %v5649 = vld [vmem:[%s7 + $0x1380] sm:$0xff]
        %v5650 = vld [vmem:[%s7 + $0x1388] sm:$0xff]
        %v5651 = vld [vmem:[%s7 + $0x1390] sm:$0xff]
        %v5652 = vld [vmem:[%s7 + $0x1398] sm:$0xff]
        %v5653 = vld [vmem:[%s7 + $0x13a0] sm:$0xff]
        %v5654 = vld [vmem:[%s7 + $0x13a8] sm:$0xff]
        %v5655 = vld [vmem:[%s7 + $0x13b0] sm:$0xff]
        %v5656 = vld [vmem:[%s7 + $0x13b8] sm:$0xff]
        %v5657 = vld [vmem:[%s7 + $0x13c0] sm:$0xff]
        %v5658 = vld [vmem:[%s7 + $0x13c8] sm:$0xff]
        %v5659 = vld [vmem:[%s7 + $0x13d0] sm:$0xff]
        %v5660 = vld [vmem:[%s7 + $0x13d8] sm:$0xff]
        %v5661 = vld [vmem:[%s7 + $0x13e0] sm:$0xff]
        %v5662 = vld [vmem:[%s7 + $0x13e8] sm:$0xff]
        %v5663 = vld [vmem:[%s7 + $0x13f0] sm:$0xff]
        %v5664 = vld [vmem:[%s7 + $0x13f8] sm:$0xff]
        %v5665 = vld [vmem:[%s8] sm:$0xf]
        %v6306 = vunpack.c.l.b16 %v5025
        %v6307 = vunpack.c.h.b16 %v5025
        %v6308 = vunpack.c.l.b16 %v5026
        %v6309 = vunpack.c.h.b16 %v5026
        %v6310 = vunpack.c.l.b16 %v5027
        %v6311 = vunpack.c.h.b16 %v5027
        %v6312 = vunpack.c.l.b16 %v5028
        %v6313 = vunpack.c.h.b16 %v5028
        %v6314 = vunpack.c.l.b16 %v5029
        %v6315 = vunpack.c.h.b16 %v5029
        %v6316 = vunpack.c.l.b16 %v5030
        %v6317 = vunpack.c.h.b16 %v5030
        %v6318 = vunpack.c.l.b16 %v5031
        %v6319 = vunpack.c.h.b16 %v5031
        %v6320 = vunpack.c.l.b16 %v5032
        %v6321 = vunpack.c.h.b16 %v5032
        %v6322 = vunpack.c.l.b16 %v5033
        %v6323 = vunpack.c.h.b16 %v5033
        %v6324 = vunpack.c.l.b16 %v5034
        %v6325 = vunpack.c.h.b16 %v5034
        %v6326 = vunpack.c.l.b16 %v5035
        %v6327 = vunpack.c.h.b16 %v5035
        %v6328 = vunpack.c.l.b16 %v5036
        %v6329 = vunpack.c.h.b16 %v5036
        %v6330 = vunpack.c.l.b16 %v5037
        %v6331 = vunpack.c.h.b16 %v5037
        %v6332 = vunpack.c.l.b16 %v5038
        %v6333 = vunpack.c.h.b16 %v5038
        %v6334 = vunpack.c.l.b16 %v5039
        %v6335 = vunpack.c.h.b16 %v5039
        %v6336 = vunpack.c.l.b16 %v5040
        %v6337 = vunpack.c.h.b16 %v5040
        %v6338 = vunpack.c.l.b16 %v5041
        %v6339 = vunpack.c.h.b16 %v5041
        %v6340 = vunpack.c.l.b16 %v5042
        %v6341 = vunpack.c.h.b16 %v5042
        %v6342 = vunpack.c.l.b16 %v5043
        %v6343 = vunpack.c.h.b16 %v5043
        %v6344 = vunpack.c.l.b16 %v5044
        %v6345 = vunpack.c.h.b16 %v5044
        %v6346 = vunpack.c.l.b16 %v5045
        %v6347 = vunpack.c.h.b16 %v5045
        %v6348 = vunpack.c.l.b16 %v5046
        %v6349 = vunpack.c.h.b16 %v5046
        %v6350 = vunpack.c.l.b16 %v5047
        %v6351 = vunpack.c.h.b16 %v5047
        %v6352 = vunpack.c.l.b16 %v5048
        %v6353 = vunpack.c.h.b16 %v5048
        %v6354 = vunpack.c.l.b16 %v5049
        %v6355 = vunpack.c.h.b16 %v5049
        %v6356 = vunpack.c.l.b16 %v5050
        %v6357 = vunpack.c.h.b16 %v5050
        %v6358 = vunpack.c.l.b16 %v5051
        %v6359 = vunpack.c.h.b16 %v5051
        %v6360 = vunpack.c.l.b16 %v5052
        %v6361 = vunpack.c.h.b16 %v5052
        %v6362 = vunpack.c.l.b16 %v5053
        %v6363 = vunpack.c.h.b16 %v5053
        %v6364 = vunpack.c.l.b16 %v5054
        %v6365 = vunpack.c.h.b16 %v5054
        %v6366 = vunpack.c.l.b16 %v5055
        %v6367 = vunpack.c.h.b16 %v5055
        %v6368 = vunpack.c.l.b16 %v5056
        %v6369 = vunpack.c.h.b16 %v5056
        %v6370 = vunpack.c.l.b16 %v5057
        %v6371 = vunpack.c.h.b16 %v5057
        %v6372 = vunpack.c.l.b16 %v5058
        %v6373 = vunpack.c.h.b16 %v5058
        %v6374 = vunpack.c.l.b16 %v5059
        %v6375 = vunpack.c.h.b16 %v5059
        %v6376 = vunpack.c.l.b16 %v5060
        %v6377 = vunpack.c.h.b16 %v5060
        %v6378 = vunpack.c.l.b16 %v5061
        %v6379 = vunpack.c.h.b16 %v5061
        %v6380 = vunpack.c.l.b16 %v5062
        %v6381 = vunpack.c.h.b16 %v5062
        %v6382 = vunpack.c.l.b16 %v5063
        %v6383 = vunpack.c.h.b16 %v5063
        %v6384 = vunpack.c.l.b16 %v5064
        %v6385 = vunpack.c.h.b16 %v5064
        %v6386 = vunpack.c.l.b16 %v5065
        %v6387 = vunpack.c.h.b16 %v5065
        %v6388 = vunpack.c.l.b16 %v5066
        %v6389 = vunpack.c.h.b16 %v5066
        %v6390 = vunpack.c.l.b16 %v5067
        %v6391 = vunpack.c.h.b16 %v5067
        %v6392 = vunpack.c.l.b16 %v5068
        %v6393 = vunpack.c.h.b16 %v5068
        %v6394 = vunpack.c.l.b16 %v5069
        %v6395 = vunpack.c.h.b16 %v5069
        %v6396 = vunpack.c.l.b16 %v5070
        %v6397 = vunpack.c.h.b16 %v5070
        %v6398 = vunpack.c.l.b16 %v5071
        %v6399 = vunpack.c.h.b16 %v5071
        %v6400 = vunpack.c.l.b16 %v5072
        %v6401 = vunpack.c.h.b16 %v5072
        %v6402 = vunpack.c.l.b16 %v5073
        %v6403 = vunpack.c.h.b16 %v5073
        %v6404 = vunpack.c.l.b16 %v5074
        %v6405 = vunpack.c.h.b16 %v5074
        %v6406 = vunpack.c.l.b16 %v5075
        %v6407 = vunpack.c.h.b16 %v5075
        %v6408 = vunpack.c.l.b16 %v5076
        %v6409 = vunpack.c.h.b16 %v5076
        %v6410 = vunpack.c.l.b16 %v5077
        %v6411 = vunpack.c.h.b16 %v5077
        %v6412 = vunpack.c.l.b16 %v5078
        %v6413 = vunpack.c.h.b16 %v5078
        %v6414 = vunpack.c.l.b16 %v5079
        %v6415 = vunpack.c.h.b16 %v5079
        %v6416 = vunpack.c.l.b16 %v5080
        %v6417 = vunpack.c.h.b16 %v5080
        %v6418 = vunpack.c.l.b16 %v5081
        %v6419 = vunpack.c.h.b16 %v5081
        %v6420 = vunpack.c.l.b16 %v5082
        %v6421 = vunpack.c.h.b16 %v5082
        %v6422 = vunpack.c.l.b16 %v5083
        %v6423 = vunpack.c.h.b16 %v5083
        %v6424 = vunpack.c.l.b16 %v5084
        %v6425 = vunpack.c.h.b16 %v5084
        %v6426 = vunpack.c.l.b16 %v5085
        %v6427 = vunpack.c.h.b16 %v5085
        %v6428 = vunpack.c.l.b16 %v5086
        %v6429 = vunpack.c.h.b16 %v5086
        %v6430 = vunpack.c.l.b16 %v5087
        %v6431 = vunpack.c.h.b16 %v5087
        %v6432 = vunpack.c.l.b16 %v5088
        %v6433 = vunpack.c.h.b16 %v5088
        %v6434 = vunpack.c.l.b16 %v5089
        %v6435 = vunpack.c.h.b16 %v5089
        %v6436 = vunpack.c.l.b16 %v5090
        %v6437 = vunpack.c.h.b16 %v5090
        %v6438 = vunpack.c.l.b16 %v5091
        %v6439 = vunpack.c.h.b16 %v5091
        %v6440 = vunpack.c.l.b16 %v5092
        %v6441 = vunpack.c.h.b16 %v5092
        %v6442 = vunpack.c.l.b16 %v5093
        %v6443 = vunpack.c.h.b16 %v5093
        %v6444 = vunpack.c.l.b16 %v5094
        %v6445 = vunpack.c.h.b16 %v5094
        %v6446 = vunpack.c.l.b16 %v5095
        %v6447 = vunpack.c.h.b16 %v5095
        %v6448 = vunpack.c.l.b16 %v5096
        %v6449 = vunpack.c.h.b16 %v5096
        %v6450 = vunpack.c.l.b16 %v5097
        %v6451 = vunpack.c.h.b16 %v5097
        %v6452 = vunpack.c.l.b16 %v5098
        %v6453 = vunpack.c.h.b16 %v5098
        %v6454 = vunpack.c.l.b16 %v5099
        %v6455 = vunpack.c.h.b16 %v5099
        %v6456 = vunpack.c.l.b16 %v5100
        %v6457 = vunpack.c.h.b16 %v5100
        %v6458 = vunpack.c.l.b16 %v5101
        %v6459 = vunpack.c.h.b16 %v5101
        %v6460 = vunpack.c.l.b16 %v5102
        %v6461 = vunpack.c.h.b16 %v5102
        %v6462 = vunpack.c.l.b16 %v5103
        %v6463 = vunpack.c.h.b16 %v5103
        %v6464 = vunpack.c.l.b16 %v5104
        %v6465 = vunpack.c.h.b16 %v5104
        %v6466 = vunpack.c.l.b16 %v5105
        %v6467 = vunpack.c.h.b16 %v5105
        %v6468 = vunpack.c.l.b16 %v5106
        %v6469 = vunpack.c.h.b16 %v5106
        %v6470 = vunpack.c.l.b16 %v5107
        %v6471 = vunpack.c.h.b16 %v5107
        %v6472 = vunpack.c.l.b16 %v5108
        %v6473 = vunpack.c.h.b16 %v5108
        %v6474 = vunpack.c.l.b16 %v5109
        %v6475 = vunpack.c.h.b16 %v5109
        %v6476 = vunpack.c.l.b16 %v5110
        %v6477 = vunpack.c.h.b16 %v5110
        %v6478 = vunpack.c.l.b16 %v5111
        %v6479 = vunpack.c.h.b16 %v5111
        %v6480 = vunpack.c.l.b16 %v5112
        %v6481 = vunpack.c.h.b16 %v5112
        %v6482 = vunpack.c.l.b16 %v5113
        %v6483 = vunpack.c.h.b16 %v5113
        %v6484 = vunpack.c.l.b16 %v5114
        %v6485 = vunpack.c.h.b16 %v5114
        %v6486 = vunpack.c.l.b16 %v5115
        %v6487 = vunpack.c.h.b16 %v5115
        %v6488 = vunpack.c.l.b16 %v5116
        %v6489 = vunpack.c.h.b16 %v5116
        %v6490 = vunpack.c.l.b16 %v5117
        %v6491 = vunpack.c.h.b16 %v5117
        %v6492 = vunpack.c.l.b16 %v5118
        %v6493 = vunpack.c.h.b16 %v5118
        %v6494 = vunpack.c.l.b16 %v5119
        %v6495 = vunpack.c.h.b16 %v5119
        %v6496 = vunpack.c.l.b16 %v5120
        %v6497 = vunpack.c.h.b16 %v5120
        %v6498 = vunpack.c.l.b16 %v5121
        %v6499 = vunpack.c.h.b16 %v5121
        %v6500 = vunpack.c.l.b16 %v5122
        %v6501 = vunpack.c.h.b16 %v5122
        %v6502 = vunpack.c.l.b16 %v5123
        %v6503 = vunpack.c.h.b16 %v5123
        %v6504 = vunpack.c.l.b16 %v5124
        %v6505 = vunpack.c.h.b16 %v5124
        %v6506 = vunpack.c.l.b16 %v5125
        %v6507 = vunpack.c.h.b16 %v5125
        %v6508 = vunpack.c.l.b16 %v5126
        %v6509 = vunpack.c.h.b16 %v5126
        %v6510 = vunpack.c.l.b16 %v5127
        %v6511 = vunpack.c.h.b16 %v5127
        %v6512 = vunpack.c.l.b16 %v5128
        %v6513 = vunpack.c.h.b16 %v5128
        %v6514 = vunpack.c.l.b16 %v5129
        %v6515 = vunpack.c.h.b16 %v5129
        %v6516 = vunpack.c.l.b16 %v5130
        %v6517 = vunpack.c.h.b16 %v5130
        %v6518 = vunpack.c.l.b16 %v5131
        %v6519 = vunpack.c.h.b16 %v5131
        %v6520 = vunpack.c.l.b16 %v5132
        %v6521 = vunpack.c.h.b16 %v5132
        %v6522 = vunpack.c.l.b16 %v5133
        %v6523 = vunpack.c.h.b16 %v5133
        %v6524 = vunpack.c.l.b16 %v5134
        %v6525 = vunpack.c.h.b16 %v5134
        %v6526 = vunpack.c.l.b16 %v5135
        %v6527 = vunpack.c.h.b16 %v5135
        %v6528 = vunpack.c.l.b16 %v5136
        %v6529 = vunpack.c.h.b16 %v5136
        %v6530 = vunpack.c.l.b16 %v5137
        %v6531 = vunpack.c.h.b16 %v5137
        %v6532 = vunpack.c.l.b16 %v5138
        %v6533 = vunpack.c.h.b16 %v5138
        %v6534 = vunpack.c.l.b16 %v5139
        %v6535 = vunpack.c.h.b16 %v5139
        %v6536 = vunpack.c.l.b16 %v5140
        %v6537 = vunpack.c.h.b16 %v5140
        %v6538 = vunpack.c.l.b16 %v5141
        %v6539 = vunpack.c.h.b16 %v5141
        %v6540 = vunpack.c.l.b16 %v5142
        %v6541 = vunpack.c.h.b16 %v5142
        %v6542 = vunpack.c.l.b16 %v5143
        %v6543 = vunpack.c.h.b16 %v5143
        %v6544 = vunpack.c.l.b16 %v5144
        %v6545 = vunpack.c.h.b16 %v5144
        %v6546 = vunpack.c.l.b16 %v5145
        %v6547 = vunpack.c.h.b16 %v5145
        %v6548 = vunpack.c.l.b16 %v5146
        %v6549 = vunpack.c.h.b16 %v5146
        %v6550 = vunpack.c.l.b16 %v5147
        %v6551 = vunpack.c.h.b16 %v5147
        %v6552 = vunpack.c.l.b16 %v5148
        %v6553 = vunpack.c.h.b16 %v5148
        %v6554 = vunpack.c.l.b16 %v5149
        %v6555 = vunpack.c.h.b16 %v5149
        %v6556 = vunpack.c.l.b16 %v5150
        %v6557 = vunpack.c.h.b16 %v5150
        %v6558 = vunpack.c.l.b16 %v5151
        %v6559 = vunpack.c.h.b16 %v5151
        %v6560 = vunpack.c.l.b16 %v5152
        %v6561 = vunpack.c.h.b16 %v5152
        %v6562 = vunpack.c.l.b16 %v5153
        %v6563 = vunpack.c.h.b16 %v5153
        %v6564 = vunpack.c.l.b16 %v5154
        %v6565 = vunpack.c.h.b16 %v5154
        %v6566 = vunpack.c.l.b16 %v5155
        %v6567 = vunpack.c.h.b16 %v5155
        %v6568 = vunpack.c.l.b16 %v5156
        %v6569 = vunpack.c.h.b16 %v5156
        %v6570 = vunpack.c.l.b16 %v5157
        %v6571 = vunpack.c.h.b16 %v5157
        %v6572 = vunpack.c.l.b16 %v5158
        %v6573 = vunpack.c.h.b16 %v5158
        %v6574 = vunpack.c.l.b16 %v5159
        %v6575 = vunpack.c.h.b16 %v5159
        %v6576 = vunpack.c.l.b16 %v5160
        %v6577 = vunpack.c.h.b16 %v5160
        %v6578 = vunpack.c.l.b16 %v5161
        %v6579 = vunpack.c.h.b16 %v5161
        %v6580 = vunpack.c.l.b16 %v5162
        %v6581 = vunpack.c.h.b16 %v5162
        %v6582 = vunpack.c.l.b16 %v5163
        %v6583 = vunpack.c.h.b16 %v5163
        %v6584 = vunpack.c.l.b16 %v5164
        %v6585 = vunpack.c.h.b16 %v5164
        %v6586 = vunpack.c.l.b16 %v5165
        %v6587 = vunpack.c.h.b16 %v5165
        %v6588 = vunpack.c.l.b16 %v5166
        %v6589 = vunpack.c.h.b16 %v5166
        %v6590 = vunpack.c.l.b16 %v5167
        %v6591 = vunpack.c.h.b16 %v5167
        %v6592 = vunpack.c.l.b16 %v5168
        %v6593 = vunpack.c.h.b16 %v5168
        %v6594 = vunpack.c.l.b16 %v5169
        %v6595 = vunpack.c.h.b16 %v5169
        %v6596 = vunpack.c.l.b16 %v5170
        %v6597 = vunpack.c.h.b16 %v5170
        %v6598 = vunpack.c.l.b16 %v5171
        %v6599 = vunpack.c.h.b16 %v5171
        %v6600 = vunpack.c.l.b16 %v5172
        %v6601 = vunpack.c.h.b16 %v5172
        %v6602 = vunpack.c.l.b16 %v5173
        %v6603 = vunpack.c.h.b16 %v5173
        %v6604 = vunpack.c.l.b16 %v5174
        %v6605 = vunpack.c.h.b16 %v5174
        %v6606 = vunpack.c.l.b16 %v5175
        %v6607 = vunpack.c.h.b16 %v5175
        %v6608 = vunpack.c.l.b16 %v5176
        %v6609 = vunpack.c.h.b16 %v5176
        %v6610 = vunpack.c.l.b16 %v5177
        %v6611 = vunpack.c.h.b16 %v5177
        %v6612 = vunpack.c.l.b16 %v5178
        %v6613 = vunpack.c.h.b16 %v5178
        %v6614 = vunpack.c.l.b16 %v5179
        %v6615 = vunpack.c.h.b16 %v5179
        %v6616 = vunpack.c.l.b16 %v5180
        %v6617 = vunpack.c.h.b16 %v5180
        %v6618 = vunpack.c.l.b16 %v5181
        %v6619 = vunpack.c.h.b16 %v5181
        %v6620 = vunpack.c.l.b16 %v5182
        %v6621 = vunpack.c.h.b16 %v5182
        %v6622 = vunpack.c.l.b16 %v5183
        %v6623 = vunpack.c.h.b16 %v5183
        %v6624 = vunpack.c.l.b16 %v5184
        %v6625 = vunpack.c.h.b16 %v5184
        %v6626 = vunpack.c.l.b16 %v5185
        %v6627 = vunpack.c.h.b16 %v5185
        %v6628 = vunpack.c.l.b16 %v5186
        %v6629 = vunpack.c.h.b16 %v5186
        %v6630 = vunpack.c.l.b16 %v5187
        %v6631 = vunpack.c.h.b16 %v5187
        %v6632 = vunpack.c.l.b16 %v5188
        %v6633 = vunpack.c.h.b16 %v5188
        %v6634 = vunpack.c.l.b16 %v5189
        %v6635 = vunpack.c.h.b16 %v5189
        %v6636 = vunpack.c.l.b16 %v5190
        %v6637 = vunpack.c.h.b16 %v5190
        %v6638 = vunpack.c.l.b16 %v5191
        %v6639 = vunpack.c.h.b16 %v5191
        %v6640 = vunpack.c.l.b16 %v5192
        %v6641 = vunpack.c.h.b16 %v5192
        %v6642 = vunpack.c.l.b16 %v5193
        %v6643 = vunpack.c.h.b16 %v5193
        %v6644 = vunpack.c.l.b16 %v5194
        %v6645 = vunpack.c.h.b16 %v5194
        %v6646 = vunpack.c.l.b16 %v5195
        %v6647 = vunpack.c.h.b16 %v5195
        %v6648 = vunpack.c.l.b16 %v5196
        %v6649 = vunpack.c.h.b16 %v5196
        %v6650 = vunpack.c.l.b16 %v5197
        %v6651 = vunpack.c.h.b16 %v5197
        %v6652 = vunpack.c.l.b16 %v5198
        %v6653 = vunpack.c.h.b16 %v5198
        %v6654 = vunpack.c.l.b16 %v5199
        %v6655 = vunpack.c.h.b16 %v5199
        %v6656 = vunpack.c.l.b16 %v5200
        %v6657 = vunpack.c.h.b16 %v5200
        %v6658 = vunpack.c.l.b16 %v5201
        %v6659 = vunpack.c.h.b16 %v5201
        %v6660 = vunpack.c.l.b16 %v5202
        %v6661 = vunpack.c.h.b16 %v5202
        %v6662 = vunpack.c.l.b16 %v5203
        %v6663 = vunpack.c.h.b16 %v5203
        %v6664 = vunpack.c.l.b16 %v5204
        %v6665 = vunpack.c.h.b16 %v5204
        %v6666 = vunpack.c.l.b16 %v5205
        %v6667 = vunpack.c.h.b16 %v5205
        %v6668 = vunpack.c.l.b16 %v5206
        %v6669 = vunpack.c.h.b16 %v5206
        %v6670 = vunpack.c.l.b16 %v5207
        %v6671 = vunpack.c.h.b16 %v5207
        %v6672 = vunpack.c.l.b16 %v5208
        %v6673 = vunpack.c.h.b16 %v5208
        %v6674 = vunpack.c.l.b16 %v5209
        %v6675 = vunpack.c.h.b16 %v5209
        %v6676 = vunpack.c.l.b16 %v5210
        %v6677 = vunpack.c.h.b16 %v5210
        %v6678 = vunpack.c.l.b16 %v5211
        %v6679 = vunpack.c.h.b16 %v5211
        %v6680 = vunpack.c.l.b16 %v5212
        %v6681 = vunpack.c.h.b16 %v5212
        %v6682 = vunpack.c.l.b16 %v5213
        %v6683 = vunpack.c.h.b16 %v5213
        %v6684 = vunpack.c.l.b16 %v5214
        %v6685 = vunpack.c.h.b16 %v5214
        %v6686 = vunpack.c.l.b16 %v5215
        %v6687 = vunpack.c.h.b16 %v5215
        %v6688 = vunpack.c.l.b16 %v5216
        %v6689 = vunpack.c.h.b16 %v5216
        %v6690 = vunpack.c.l.b16 %v5217
        %v6691 = vunpack.c.h.b16 %v5217
        %v6692 = vunpack.c.l.b16 %v5218
        %v6693 = vunpack.c.h.b16 %v5218
        %v6694 = vunpack.c.l.b16 %v5219
        %v6695 = vunpack.c.h.b16 %v5219
        %v6696 = vunpack.c.l.b16 %v5220
        %v6697 = vunpack.c.h.b16 %v5220
        %v6698 = vunpack.c.l.b16 %v5221
        %v6699 = vunpack.c.h.b16 %v5221
        %v6700 = vunpack.c.l.b16 %v5222
        %v6701 = vunpack.c.h.b16 %v5222
        %v6702 = vunpack.c.l.b16 %v5223
        %v6703 = vunpack.c.h.b16 %v5223
        %v6704 = vunpack.c.l.b16 %v5224
        %v6705 = vunpack.c.h.b16 %v5224
        %v6706 = vunpack.c.l.b16 %v5225
        %v6707 = vunpack.c.h.b16 %v5225
        %v6708 = vunpack.c.l.b16 %v5226
        %v6709 = vunpack.c.h.b16 %v5226
        %v6710 = vunpack.c.l.b16 %v5227
        %v6711 = vunpack.c.h.b16 %v5227
        %v6712 = vunpack.c.l.b16 %v5228
        %v6713 = vunpack.c.h.b16 %v5228
        %v6714 = vunpack.c.l.b16 %v5229
        %v6715 = vunpack.c.h.b16 %v5229
        %v6716 = vunpack.c.l.b16 %v5230
        %v6717 = vunpack.c.h.b16 %v5230
        %v6718 = vunpack.c.l.b16 %v5231
        %v6719 = vunpack.c.h.b16 %v5231
        %v6720 = vunpack.c.l.b16 %v5232
        %v6721 = vunpack.c.h.b16 %v5232
        %v6722 = vunpack.c.l.b16 %v5233
        %v6723 = vunpack.c.h.b16 %v5233
        %v6724 = vunpack.c.l.b16 %v5234
        %v6725 = vunpack.c.h.b16 %v5234
        %v6726 = vunpack.c.l.b16 %v5235
        %v6727 = vunpack.c.h.b16 %v5235
        %v6728 = vunpack.c.l.b16 %v5236
        %v6729 = vunpack.c.h.b16 %v5236
        %v6730 = vunpack.c.l.b16 %v5237
        %v6731 = vunpack.c.h.b16 %v5237
        %v6732 = vunpack.c.l.b16 %v5238
        %v6733 = vunpack.c.h.b16 %v5238
        %v6734 = vunpack.c.l.b16 %v5239
        %v6735 = vunpack.c.h.b16 %v5239
        %v6736 = vunpack.c.l.b16 %v5240
        %v6737 = vunpack.c.h.b16 %v5240
        %v6738 = vunpack.c.l.b16 %v5241
        %v6739 = vunpack.c.h.b16 %v5241
        %v6740 = vunpack.c.l.b16 %v5242
        %v6741 = vunpack.c.h.b16 %v5242
        %v6742 = vunpack.c.l.b16 %v5243
        %v6743 = vunpack.c.h.b16 %v5243
        %v6744 = vunpack.c.l.b16 %v5244
        %v6745 = vunpack.c.h.b16 %v5244
        %v6746 = vunpack.c.l.b16 %v5245
        %v6747 = vunpack.c.h.b16 %v5245
        %v6748 = vunpack.c.l.b16 %v5246
        %v6749 = vunpack.c.h.b16 %v5246
        %v6750 = vunpack.c.l.b16 %v5247
        %v6751 = vunpack.c.h.b16 %v5247
        %v6752 = vunpack.c.l.b16 %v5248
        %v6753 = vunpack.c.h.b16 %v5248
        %v6754 = vunpack.c.l.b16 %v5249
        %v6755 = vunpack.c.h.b16 %v5249
        %v6756 = vunpack.c.l.b16 %v5250
        %v6757 = vunpack.c.h.b16 %v5250
        %v6758 = vunpack.c.l.b16 %v5251
        %v6759 = vunpack.c.h.b16 %v5251
        %v6760 = vunpack.c.l.b16 %v5252
        %v6761 = vunpack.c.h.b16 %v5252
        %v6762 = vunpack.c.l.b16 %v5253
        %v6763 = vunpack.c.h.b16 %v5253
        %v6764 = vunpack.c.l.b16 %v5254
        %v6765 = vunpack.c.h.b16 %v5254
        %v6766 = vunpack.c.l.b16 %v5255
        %v6767 = vunpack.c.h.b16 %v5255
        %v6768 = vunpack.c.l.b16 %v5256
        %v6769 = vunpack.c.h.b16 %v5256
        %v6770 = vunpack.c.l.b16 %v5257
        %v6771 = vunpack.c.h.b16 %v5257
        %v6772 = vunpack.c.l.b16 %v5258
        %v6773 = vunpack.c.h.b16 %v5258
        %v6774 = vunpack.c.l.b16 %v5259
        %v6775 = vunpack.c.h.b16 %v5259
        %v6776 = vunpack.c.l.b16 %v5260
        %v6777 = vunpack.c.h.b16 %v5260
        %v6778 = vunpack.c.l.b16 %v5261
        %v6779 = vunpack.c.h.b16 %v5261
        %v6780 = vunpack.c.l.b16 %v5262
        %v6781 = vunpack.c.h.b16 %v5262
        %v6782 = vunpack.c.l.b16 %v5263
        %v6783 = vunpack.c.h.b16 %v5263
        %v6784 = vunpack.c.l.b16 %v5264
        %v6785 = vunpack.c.h.b16 %v5264
        %v6786 = vunpack.c.l.b16 %v5265
        %v6787 = vunpack.c.h.b16 %v5265
        %v6788 = vunpack.c.l.b16 %v5266
        %v6789 = vunpack.c.h.b16 %v5266
        %v6790 = vunpack.c.l.b16 %v5267
        %v6791 = vunpack.c.h.b16 %v5267
        %v6792 = vunpack.c.l.b16 %v5268
        %v6793 = vunpack.c.h.b16 %v5268
        %v6794 = vunpack.c.l.b16 %v5269
        %v6795 = vunpack.c.h.b16 %v5269
        %v6796 = vunpack.c.l.b16 %v5270
        %v6797 = vunpack.c.h.b16 %v5270
        %v6798 = vunpack.c.l.b16 %v5271
        %v6799 = vunpack.c.h.b16 %v5271
        %v6800 = vunpack.c.l.b16 %v5272
        %v6801 = vunpack.c.h.b16 %v5272
        %v6802 = vunpack.c.l.b16 %v5273
        %v6803 = vunpack.c.h.b16 %v5273
        %v6804 = vunpack.c.l.b16 %v5274
        %v6805 = vunpack.c.h.b16 %v5274
        %v6806 = vunpack.c.l.b16 %v5275
        %v6807 = vunpack.c.h.b16 %v5275
        %v6808 = vunpack.c.l.b16 %v5276
        %v6809 = vunpack.c.h.b16 %v5276
        %v6810 = vunpack.c.l.b16 %v5277
        %v6811 = vunpack.c.h.b16 %v5277
        %v6812 = vunpack.c.l.b16 %v5278
        %v6813 = vunpack.c.h.b16 %v5278
        %v6814 = vunpack.c.l.b16 %v5279
        %v6815 = vunpack.c.h.b16 %v5279
        %v6816 = vunpack.c.l.b16 %v5280
        %v6817 = vunpack.c.h.b16 %v5280
        %v6818 = vunpack.c.l.b16 %v5281
        %v6819 = vunpack.c.h.b16 %v5281
        %v6820 = vunpack.c.l.b16 %v5282
        %v6821 = vunpack.c.h.b16 %v5282
        %v6822 = vunpack.c.l.b16 %v5283
        %v6823 = vunpack.c.h.b16 %v5283
        %v6824 = vunpack.c.l.b16 %v5284
        %v6825 = vunpack.c.h.b16 %v5284
        %v6826 = vunpack.c.l.b16 %v5285
        %v6827 = vunpack.c.h.b16 %v5285
        %v6828 = vunpack.c.l.b16 %v5286
        %v6829 = vunpack.c.h.b16 %v5286
        %v6830 = vunpack.c.l.b16 %v5287
        %v6831 = vunpack.c.h.b16 %v5287
        %v6832 = vunpack.c.l.b16 %v5288
        %v6833 = vunpack.c.h.b16 %v5288
        %v6834 = vunpack.c.l.b16 %v5289
        %v6835 = vunpack.c.h.b16 %v5289
        %v6836 = vunpack.c.l.b16 %v5290
        %v6837 = vunpack.c.h.b16 %v5290
        %v6838 = vunpack.c.l.b16 %v5291
        %v6839 = vunpack.c.h.b16 %v5291
        %v6840 = vunpack.c.l.b16 %v5292
        %v6841 = vunpack.c.h.b16 %v5292
        %v6842 = vunpack.c.l.b16 %v5293
        %v6843 = vunpack.c.h.b16 %v5293
        %v6844 = vunpack.c.l.b16 %v5294
        %v6845 = vunpack.c.h.b16 %v5294
        %v6846 = vunpack.c.l.b16 %v5295
        %v6847 = vunpack.c.h.b16 %v5295
        %v6848 = vunpack.c.l.b16 %v5296
        %v6849 = vunpack.c.h.b16 %v5296
        %v6850 = vunpack.c.l.b16 %v5297
        %v6851 = vunpack.c.h.b16 %v5297
        %v6852 = vunpack.c.l.b16 %v5298
        %v6853 = vunpack.c.h.b16 %v5298
        %v6854 = vunpack.c.l.b16 %v5299
        %v6855 = vunpack.c.h.b16 %v5299
        %v6856 = vunpack.c.l.b16 %v5300
        %v6857 = vunpack.c.h.b16 %v5300
        %v6858 = vunpack.c.l.b16 %v5301
        %v6859 = vunpack.c.h.b16 %v5301
        %v6860 = vunpack.c.l.b16 %v5302
        %v6861 = vunpack.c.h.b16 %v5302
        %v6862 = vunpack.c.l.b16 %v5303
        %v6863 = vunpack.c.h.b16 %v5303
        %v6864 = vunpack.c.l.b16 %v5304
        %v6865 = vunpack.c.h.b16 %v5304
        %v6866 = vunpack.c.l.b16 %v5305
        %v6867 = vunpack.c.h.b16 %v5305
        %v6868 = vunpack.c.l.b16 %v5306
        %v6869 = vunpack.c.h.b16 %v5306
        %v6870 = vunpack.c.l.b16 %v5307
        %v6871 = vunpack.c.h.b16 %v5307
        %v6872 = vunpack.c.l.b16 %v5308
        %v6873 = vunpack.c.h.b16 %v5308
        %v6874 = vunpack.c.l.b16 %v5309
        %v6875 = vunpack.c.h.b16 %v5309
        %v6876 = vunpack.c.l.b16 %v5310
        %v6877 = vunpack.c.h.b16 %v5310
        %v6878 = vunpack.c.l.b16 %v5311
        %v6879 = vunpack.c.h.b16 %v5311
        %v6880 = vunpack.c.l.b16 %v5312
        %v6881 = vunpack.c.h.b16 %v5312
        %v6882 = vunpack.c.l.b16 %v5313
        %v6883 = vunpack.c.h.b16 %v5313
        %v6884 = vunpack.c.l.b16 %v5314
        %v6885 = vunpack.c.h.b16 %v5314
        %v6886 = vunpack.c.l.b16 %v5315
        %v6887 = vunpack.c.h.b16 %v5315
        %v6888 = vunpack.c.l.b16 %v5316
        %v6889 = vunpack.c.h.b16 %v5316
        %v6890 = vunpack.c.l.b16 %v5317
        %v6891 = vunpack.c.h.b16 %v5317
        %v6892 = vunpack.c.l.b16 %v5318
        %v6893 = vunpack.c.h.b16 %v5318
        %v6894 = vunpack.c.l.b16 %v5319
        %v6895 = vunpack.c.h.b16 %v5319
        %v6896 = vunpack.c.l.b16 %v5320
        %v6897 = vunpack.c.h.b16 %v5320
        %v6898 = vunpack.c.l.b16 %v5321
        %v6899 = vunpack.c.h.b16 %v5321
        %v6900 = vunpack.c.l.b16 %v5322
        %v6901 = vunpack.c.h.b16 %v5322
        %v6902 = vunpack.c.l.b16 %v5323
        %v6903 = vunpack.c.h.b16 %v5323
        %v6904 = vunpack.c.l.b16 %v5324
        %v6905 = vunpack.c.h.b16 %v5324
        %v6906 = vunpack.c.l.b16 %v5325
        %v6907 = vunpack.c.h.b16 %v5325
        %v6908 = vunpack.c.l.b16 %v5326
        %v6909 = vunpack.c.h.b16 %v5326
        %v6910 = vunpack.c.l.b16 %v5327
        %v6911 = vunpack.c.h.b16 %v5327
        %v6912 = vunpack.c.l.b16 %v5328
        %v6913 = vunpack.c.h.b16 %v5328
        %v6914 = vunpack.c.l.b16 %v5329
        %v6915 = vunpack.c.h.b16 %v5329
        %v6916 = vunpack.c.l.b16 %v5330
        %v6917 = vunpack.c.h.b16 %v5330
        %v6918 = vunpack.c.l.b16 %v5331
        %v6919 = vunpack.c.h.b16 %v5331
        %v6920 = vunpack.c.l.b16 %v5332
        %v6921 = vunpack.c.h.b16 %v5332
        %v6922 = vunpack.c.l.b16 %v5333
        %v6923 = vunpack.c.h.b16 %v5333
        %v6924 = vunpack.c.l.b16 %v5334
        %v6925 = vunpack.c.h.b16 %v5334
        %v6926 = vunpack.c.l.b16 %v5335
        %v6927 = vunpack.c.h.b16 %v5335
        %v6928 = vunpack.c.l.b16 %v5336
        %v6929 = vunpack.c.h.b16 %v5336
        %v6930 = vunpack.c.l.b16 %v5337
        %v6931 = vunpack.c.h.b16 %v5337
        %v6932 = vunpack.c.l.b16 %v5338
        %v6933 = vunpack.c.h.b16 %v5338
        %v6934 = vunpack.c.l.b16 %v5339
        %v6935 = vunpack.c.h.b16 %v5339
        %v6936 = vunpack.c.l.b16 %v5340
        %v6937 = vunpack.c.h.b16 %v5340
        %v6938 = vunpack.c.l.b16 %v5341
        %v6939 = vunpack.c.h.b16 %v5341
        %v6940 = vunpack.c.l.b16 %v5342
        %v6941 = vunpack.c.h.b16 %v5342
        %v6942 = vunpack.c.l.b16 %v5343
        %v6943 = vunpack.c.h.b16 %v5343
        %v6944 = vunpack.c.l.b16 %v5344
        %v6945 = vunpack.c.h.b16 %v5344
        %v6946 = vunpack.c.l.b16 %v5345
        %v6947 = vunpack.c.h.b16 %v5345
        %v6948 = vunpack.c.l.b16 %v5346
        %v6949 = vunpack.c.h.b16 %v5346
        %v6950 = vunpack.c.l.b16 %v5347
        %v6951 = vunpack.c.h.b16 %v5347
        %v6952 = vunpack.c.l.b16 %v5348
        %v6953 = vunpack.c.h.b16 %v5348
        %v6954 = vunpack.c.l.b16 %v5349
        %v6955 = vunpack.c.h.b16 %v5349
        %v6956 = vunpack.c.l.b16 %v5350
        %v6957 = vunpack.c.h.b16 %v5350
        %v6958 = vunpack.c.l.b16 %v5351
        %v6959 = vunpack.c.h.b16 %v5351
        %v6960 = vunpack.c.l.b16 %v5352
        %v6961 = vunpack.c.h.b16 %v5352
        %v6962 = vunpack.c.l.b16 %v5353
        %v6963 = vunpack.c.h.b16 %v5353
        %v6964 = vunpack.c.l.b16 %v5354
        %v6965 = vunpack.c.h.b16 %v5354
        %v6966 = vunpack.c.l.b16 %v5355
        %v6967 = vunpack.c.h.b16 %v5355
        %v6968 = vunpack.c.l.b16 %v5356
        %v6969 = vunpack.c.h.b16 %v5356
        %v6970 = vunpack.c.l.b16 %v5357
        %v6971 = vunpack.c.h.b16 %v5357
        %v6972 = vunpack.c.l.b16 %v5358
        %v6973 = vunpack.c.h.b16 %v5358
        %v6974 = vunpack.c.l.b16 %v5359
        %v6975 = vunpack.c.h.b16 %v5359
        %v6976 = vunpack.c.l.b16 %v5360
        %v6977 = vunpack.c.h.b16 %v5360
        %v6978 = vunpack.c.l.b16 %v5361
        %v6979 = vunpack.c.h.b16 %v5361
        %v6980 = vunpack.c.l.b16 %v5362
        %v6981 = vunpack.c.h.b16 %v5362
        %v6982 = vunpack.c.l.b16 %v5363
        %v6983 = vunpack.c.h.b16 %v5363
        %v6984 = vunpack.c.l.b16 %v5364
        %v6985 = vunpack.c.h.b16 %v5364
        %v6986 = vunpack.c.l.b16 %v5365
        %v6987 = vunpack.c.h.b16 %v5365
        %v6988 = vunpack.c.l.b16 %v5366
        %v6989 = vunpack.c.h.b16 %v5366
        %v6990 = vunpack.c.l.b16 %v5367
        %v6991 = vunpack.c.h.b16 %v5367
        %v6992 = vunpack.c.l.b16 %v5368
        %v6993 = vunpack.c.h.b16 %v5368
        %v6994 = vunpack.c.l.b16 %v5369
        %v6995 = vunpack.c.h.b16 %v5369
        %v6996 = vunpack.c.l.b16 %v5370
        %v6997 = vunpack.c.h.b16 %v5370
        %v6998 = vunpack.c.l.b16 %v5371
        %v6999 = vunpack.c.h.b16 %v5371
        %v7000 = vunpack.c.l.b16 %v5372
        %v7001 = vunpack.c.h.b16 %v5372
        %v7002 = vunpack.c.l.b16 %v5373
        %v7003 = vunpack.c.h.b16 %v5373
        %v7004 = vunpack.c.l.b16 %v5374
        %v7005 = vunpack.c.h.b16 %v5374
        %v7006 = vunpack.c.l.b16 %v5375
        %v7007 = vunpack.c.h.b16 %v5375
        %v7008 = vunpack.c.l.b16 %v5376
        %v7009 = vunpack.c.h.b16 %v5376
        %v7010 = vunpack.c.l.b16 %v5377
        %v7011 = vunpack.c.h.b16 %v5377
        %v7012 = vunpack.c.l.b16 %v5378
        %v7013 = vunpack.c.h.b16 %v5378
        %v7014 = vunpack.c.l.b16 %v5379
        %v7015 = vunpack.c.h.b16 %v5379
        %v7016 = vunpack.c.l.b16 %v5380
        %v7017 = vunpack.c.h.b16 %v5380
        %v7018 = vunpack.c.l.b16 %v5381
        %v7019 = vunpack.c.h.b16 %v5381
        %v7020 = vunpack.c.l.b16 %v5382
        %v7021 = vunpack.c.h.b16 %v5382
        %v7022 = vunpack.c.l.b16 %v5383
        %v7023 = vunpack.c.h.b16 %v5383
        %v7024 = vunpack.c.l.b16 %v5384
        %v7025 = vunpack.c.h.b16 %v5384
        %v7026 = vunpack.c.l.b16 %v5385
        %v7027 = vunpack.c.h.b16 %v5385
        %v7028 = vunpack.c.l.b16 %v5386
        %v7029 = vunpack.c.h.b16 %v5386
        %v7030 = vunpack.c.l.b16 %v5387
        %v7031 = vunpack.c.h.b16 %v5387
        %v7032 = vunpack.c.l.b16 %v5388
        %v7033 = vunpack.c.h.b16 %v5388
        %v7034 = vunpack.c.l.b16 %v5389
        %v7035 = vunpack.c.h.b16 %v5389
        %v7036 = vunpack.c.l.b16 %v5390
        %v7037 = vunpack.c.h.b16 %v5390
        %v7038 = vunpack.c.l.b16 %v5391
        %v7039 = vunpack.c.h.b16 %v5391
        %v7040 = vunpack.c.l.b16 %v5392
        %v7041 = vunpack.c.h.b16 %v5392
        %v7042 = vunpack.c.l.b16 %v5393
        %v7043 = vunpack.c.h.b16 %v5393
        %v7044 = vunpack.c.l.b16 %v5394
        %v7045 = vunpack.c.h.b16 %v5394
        %v7046 = vunpack.c.l.b16 %v5395
        %v7047 = vunpack.c.h.b16 %v5395
        %v7048 = vunpack.c.l.b16 %v5396
        %v7049 = vunpack.c.h.b16 %v5396
        %v7050 = vunpack.c.l.b16 %v5397
        %v7051 = vunpack.c.h.b16 %v5397
        %v7052 = vunpack.c.l.b16 %v5398
        %v7053 = vunpack.c.h.b16 %v5398
        %v7054 = vunpack.c.l.b16 %v5399
        %v7055 = vunpack.c.h.b16 %v5399
        %v7056 = vunpack.c.l.b16 %v5400
        %v7057 = vunpack.c.h.b16 %v5400
        %v7058 = vunpack.c.l.b16 %v5401
        %v7059 = vunpack.c.h.b16 %v5401
        %v7060 = vunpack.c.l.b16 %v5402
        %v7061 = vunpack.c.h.b16 %v5402
        %v7062 = vunpack.c.l.b16 %v5403
        %v7063 = vunpack.c.h.b16 %v5403
        %v7064 = vunpack.c.l.b16 %v5404
        %v7065 = vunpack.c.h.b16 %v5404
        %v7066 = vunpack.c.l.b16 %v5405
        %v7067 = vunpack.c.h.b16 %v5405
        %v7068 = vunpack.c.l.b16 %v5406
        %v7069 = vunpack.c.h.b16 %v5406
        %v7070 = vunpack.c.l.b16 %v5407
        %v7071 = vunpack.c.h.b16 %v5407
        %v7072 = vunpack.c.l.b16 %v5408
        %v7073 = vunpack.c.h.b16 %v5408
        %v7074 = vunpack.c.l.b16 %v5409
        %v7075 = vunpack.c.h.b16 %v5409
        %v7076 = vunpack.c.l.b16 %v5410
        %v7077 = vunpack.c.h.b16 %v5410
        %v7078 = vunpack.c.l.b16 %v5411
        %v7079 = vunpack.c.h.b16 %v5411
        %v7080 = vunpack.c.l.b16 %v5412
        %v7081 = vunpack.c.h.b16 %v5412
        %v7082 = vunpack.c.l.b16 %v5413
        %v7083 = vunpack.c.h.b16 %v5413
        %v7084 = vunpack.c.l.b16 %v5414
        %v7085 = vunpack.c.h.b16 %v5414
        %v7086 = vunpack.c.l.b16 %v5415
        %v7087 = vunpack.c.h.b16 %v5415
        %v7088 = vunpack.c.l.b16 %v5416
        %v7089 = vunpack.c.h.b16 %v5416
        %v7090 = vunpack.c.l.b16 %v5417
        %v7091 = vunpack.c.h.b16 %v5417
        %v7092 = vunpack.c.l.b16 %v5418
        %v7093 = vunpack.c.h.b16 %v5418
        %v7094 = vunpack.c.l.b16 %v5419
        %v7095 = vunpack.c.h.b16 %v5419
        %v7096 = vunpack.c.l.b16 %v5420
        %v7097 = vunpack.c.h.b16 %v5420
        %v7098 = vunpack.c.l.b16 %v5421
        %v7099 = vunpack.c.h.b16 %v5421
        %v7100 = vunpack.c.l.b16 %v5422
        %v7101 = vunpack.c.h.b16 %v5422
        %v7102 = vunpack.c.l.b16 %v5423
        %v7103 = vunpack.c.h.b16 %v5423
        %v7104 = vunpack.c.l.b16 %v5424
        %v7105 = vunpack.c.h.b16 %v5424
        %v7106 = vunpack.c.l.b16 %v5425
        %v7107 = vunpack.c.h.b16 %v5425
        %v7108 = vunpack.c.l.b16 %v5426
        %v7109 = vunpack.c.h.b16 %v5426
        %v7110 = vunpack.c.l.b16 %v5427
        %v7111 = vunpack.c.h.b16 %v5427
        %v7112 = vunpack.c.l.b16 %v5428
        %v7113 = vunpack.c.h.b16 %v5428
        %v7114 = vunpack.c.l.b16 %v5429
        %v7115 = vunpack.c.h.b16 %v5429
        %v7116 = vunpack.c.l.b16 %v5430
        %v7117 = vunpack.c.h.b16 %v5430
        %v7118 = vunpack.c.l.b16 %v5431
        %v7119 = vunpack.c.h.b16 %v5431
        %v7120 = vunpack.c.l.b16 %v5432
        %v7121 = vunpack.c.h.b16 %v5432
        %v7122 = vunpack.c.l.b16 %v5433
        %v7123 = vunpack.c.h.b16 %v5433
        %v7124 = vunpack.c.l.b16 %v5434
        %v7125 = vunpack.c.h.b16 %v5434
        %v7126 = vunpack.c.l.b16 %v5435
        %v7127 = vunpack.c.h.b16 %v5435
        %v7128 = vunpack.c.l.b16 %v5436
        %v7129 = vunpack.c.h.b16 %v5436
        %v7130 = vunpack.c.l.b16 %v5437
        %v7131 = vunpack.c.h.b16 %v5437
        %v7132 = vunpack.c.l.b16 %v5438
        %v7133 = vunpack.c.h.b16 %v5438
        %v7134 = vunpack.c.l.b16 %v5439
        %v7135 = vunpack.c.h.b16 %v5439
        %v7136 = vunpack.c.l.b16 %v5440
        %v7137 = vunpack.c.h.b16 %v5440
        %v7138 = vunpack.c.l.b16 %v5441
        %v7139 = vunpack.c.h.b16 %v5441
        %v7140 = vunpack.c.l.b16 %v5442
        %v7141 = vunpack.c.h.b16 %v5442
        %v7142 = vunpack.c.l.b16 %v5443
        %v7143 = vunpack.c.h.b16 %v5443
        %v7144 = vunpack.c.l.b16 %v5444
        %v7145 = vunpack.c.h.b16 %v5444
        %v7146 = vunpack.c.l.b16 %v5445
        %v7147 = vunpack.c.h.b16 %v5445
        %v7148 = vunpack.c.l.b16 %v5446
        %v7149 = vunpack.c.h.b16 %v5446
        %v7150 = vunpack.c.l.b16 %v5447
        %v7151 = vunpack.c.h.b16 %v5447
        %v7152 = vunpack.c.l.b16 %v5448
        %v7153 = vunpack.c.h.b16 %v5448
        %v7154 = vunpack.c.l.b16 %v5449
        %v7155 = vunpack.c.h.b16 %v5449
        %v7156 = vunpack.c.l.b16 %v5450
        %v7157 = vunpack.c.h.b16 %v5450
        %v7158 = vunpack.c.l.b16 %v5451
        %v7159 = vunpack.c.h.b16 %v5451
        %v7160 = vunpack.c.l.b16 %v5452
        %v7161 = vunpack.c.h.b16 %v5452
        %v7162 = vunpack.c.l.b16 %v5453
        %v7163 = vunpack.c.h.b16 %v5453
        %v7164 = vunpack.c.l.b16 %v5454
        %v7165 = vunpack.c.h.b16 %v5454
        %v7166 = vunpack.c.l.b16 %v5455
        %v7167 = vunpack.c.h.b16 %v5455
        %v7168 = vunpack.c.l.b16 %v5456
        %v7169 = vunpack.c.h.b16 %v5456
        %v7170 = vunpack.c.l.b16 %v5457
        %v7171 = vunpack.c.h.b16 %v5457
        %v7172 = vunpack.c.l.b16 %v5458
        %v7173 = vunpack.c.h.b16 %v5458
        %v7174 = vunpack.c.l.b16 %v5459
        %v7175 = vunpack.c.h.b16 %v5459
        %v7176 = vunpack.c.l.b16 %v5460
        %v7177 = vunpack.c.h.b16 %v5460
        %v7178 = vunpack.c.l.b16 %v5461
        %v7179 = vunpack.c.h.b16 %v5461
        %v7180 = vunpack.c.l.b16 %v5462
        %v7181 = vunpack.c.h.b16 %v5462
        %v7182 = vunpack.c.l.b16 %v5463
        %v7183 = vunpack.c.h.b16 %v5463
        %v7184 = vunpack.c.l.b16 %v5464
        %v7185 = vunpack.c.h.b16 %v5464
        %v7186 = vunpack.c.l.b16 %v5465
        %v7187 = vunpack.c.h.b16 %v5465
        %v7188 = vunpack.c.l.b16 %v5466
        %v7189 = vunpack.c.h.b16 %v5466
        %v7190 = vunpack.c.l.b16 %v5467
        %v7191 = vunpack.c.h.b16 %v5467
        %v7192 = vunpack.c.l.b16 %v5468
        %v7193 = vunpack.c.h.b16 %v5468
        %v7194 = vunpack.c.l.b16 %v5469
        %v7195 = vunpack.c.h.b16 %v5469
        %v7196 = vunpack.c.l.b16 %v5470
        %v7197 = vunpack.c.h.b16 %v5470
        %v7198 = vunpack.c.l.b16 %v5471
        %v7199 = vunpack.c.h.b16 %v5471
        %v7200 = vunpack.c.l.b16 %v5472
        %v7201 = vunpack.c.h.b16 %v5472
        %v7202 = vunpack.c.l.b16 %v5473
        %v7203 = vunpack.c.h.b16 %v5473
        %v7204 = vunpack.c.l.b16 %v5474
        %v7205 = vunpack.c.h.b16 %v5474
        %v7206 = vunpack.c.l.b16 %v5475
        %v7207 = vunpack.c.h.b16 %v5475
        %v7208 = vunpack.c.l.b16 %v5476
        %v7209 = vunpack.c.h.b16 %v5476
        %v7210 = vunpack.c.l.b16 %v5477
        %v7211 = vunpack.c.h.b16 %v5477
        %v7212 = vunpack.c.l.b16 %v5478
        %v7213 = vunpack.c.h.b16 %v5478
        %v7214 = vunpack.c.l.b16 %v5479
        %v7215 = vunpack.c.h.b16 %v5479
        %v7216 = vunpack.c.l.b16 %v5480
        %v7217 = vunpack.c.h.b16 %v5480
        %v7218 = vunpack.c.l.b16 %v5481
        %v7219 = vunpack.c.h.b16 %v5481
        %v7220 = vunpack.c.l.b16 %v5482
        %v7221 = vunpack.c.h.b16 %v5482
        %v7222 = vunpack.c.l.b16 %v5483
        %v7223 = vunpack.c.h.b16 %v5483
        %v7224 = vunpack.c.l.b16 %v5484
        %v7225 = vunpack.c.h.b16 %v5484
        %v7226 = vunpack.c.l.b16 %v5485
        %v7227 = vunpack.c.h.b16 %v5485
        %v7228 = vunpack.c.l.b16 %v5486
        %v7229 = vunpack.c.h.b16 %v5486
        %v7230 = vunpack.c.l.b16 %v5487
        %v7231 = vunpack.c.h.b16 %v5487
        %v7232 = vunpack.c.l.b16 %v5488
        %v7233 = vunpack.c.h.b16 %v5488
        %v7234 = vunpack.c.l.b16 %v5489
        %v7235 = vunpack.c.h.b16 %v5489
        %v7236 = vunpack.c.l.b16 %v5490
        %v7237 = vunpack.c.h.b16 %v5490
        %v7238 = vunpack.c.l.b16 %v5491
        %v7239 = vunpack.c.h.b16 %v5491
        %v7240 = vunpack.c.l.b16 %v5492
        %v7241 = vunpack.c.h.b16 %v5492
        %v7242 = vunpack.c.l.b16 %v5493
        %v7243 = vunpack.c.h.b16 %v5493
        %v7244 = vunpack.c.l.b16 %v5494
        %v7245 = vunpack.c.h.b16 %v5494
        %v7246 = vunpack.c.l.b16 %v5495
        %v7247 = vunpack.c.h.b16 %v5495
        %v7248 = vunpack.c.l.b16 %v5496
        %v7249 = vunpack.c.h.b16 %v5496
        %v7250 = vunpack.c.l.b16 %v5497
        %v7251 = vunpack.c.h.b16 %v5497
        %v7252 = vunpack.c.l.b16 %v5498
        %v7253 = vunpack.c.h.b16 %v5498
        %v7254 = vunpack.c.l.b16 %v5499
        %v7255 = vunpack.c.h.b16 %v5499
        %v7256 = vunpack.c.l.b16 %v5500
        %v7257 = vunpack.c.h.b16 %v5500
        %v7258 = vunpack.c.l.b16 %v5501
        %v7259 = vunpack.c.h.b16 %v5501
        %v7260 = vunpack.c.l.b16 %v5502
        %v7261 = vunpack.c.h.b16 %v5502
        %v7262 = vunpack.c.l.b16 %v5503
        %v7263 = vunpack.c.h.b16 %v5503
        %v7264 = vunpack.c.l.b16 %v5504
        %v7265 = vunpack.c.h.b16 %v5504
        %v7266 = vunpack.c.l.b16 %v5505
        %v7267 = vunpack.c.h.b16 %v5505
        %v7268 = vunpack.c.l.b16 %v5506
        %v7269 = vunpack.c.h.b16 %v5506
        %v7270 = vunpack.c.l.b16 %v5507
        %v7271 = vunpack.c.h.b16 %v5507
        %v7272 = vunpack.c.l.b16 %v5508
        %v7273 = vunpack.c.h.b16 %v5508
        %v7274 = vunpack.c.l.b16 %v5509
        %v7275 = vunpack.c.h.b16 %v5509
        %v7276 = vunpack.c.l.b16 %v5510
        %v7277 = vunpack.c.h.b16 %v5510
        %v7278 = vunpack.c.l.b16 %v5511
        %v7279 = vunpack.c.h.b16 %v5511
        %v7280 = vunpack.c.l.b16 %v5512
        %v7281 = vunpack.c.h.b16 %v5512
        %v7282 = vunpack.c.l.b16 %v5513
        %v7283 = vunpack.c.h.b16 %v5513
        %v7284 = vunpack.c.l.b16 %v5514
        %v7285 = vunpack.c.h.b16 %v5514
        %v7286 = vunpack.c.l.b16 %v5515
        %v7287 = vunpack.c.h.b16 %v5515
        %v7288 = vunpack.c.l.b16 %v5516
        %v7289 = vunpack.c.h.b16 %v5516
        %v7290 = vunpack.c.l.b16 %v5517
        %v7291 = vunpack.c.h.b16 %v5517
        %v7292 = vunpack.c.l.b16 %v5518
        %v7293 = vunpack.c.h.b16 %v5518
        %v7294 = vunpack.c.l.b16 %v5519
        %v7295 = vunpack.c.h.b16 %v5519
        %v7296 = vunpack.c.l.b16 %v5520
        %v7297 = vunpack.c.h.b16 %v5520
        %v7298 = vunpack.c.l.b16 %v5521
        %v7299 = vunpack.c.h.b16 %v5521
        %v7300 = vunpack.c.l.b16 %v5522
        %v7301 = vunpack.c.h.b16 %v5522
        %v7302 = vunpack.c.l.b16 %v5523
        %v7303 = vunpack.c.h.b16 %v5523
        %v7304 = vunpack.c.l.b16 %v5524
        %v7305 = vunpack.c.h.b16 %v5524
        %v7306 = vunpack.c.l.b16 %v5525
        %v7307 = vunpack.c.h.b16 %v5525
        %v7308 = vunpack.c.l.b16 %v5526
        %v7309 = vunpack.c.h.b16 %v5526
        %v7310 = vunpack.c.l.b16 %v5527
        %v7311 = vunpack.c.h.b16 %v5527
        %v7312 = vunpack.c.l.b16 %v5528
        %v7313 = vunpack.c.h.b16 %v5528
        %v7314 = vunpack.c.l.b16 %v5529
        %v7315 = vunpack.c.h.b16 %v5529
        %v7316 = vunpack.c.l.b16 %v5530
        %v7317 = vunpack.c.h.b16 %v5530
        %v7318 = vunpack.c.l.b16 %v5531
        %v7319 = vunpack.c.h.b16 %v5531
        %v7320 = vunpack.c.l.b16 %v5532
        %v7321 = vunpack.c.h.b16 %v5532
        %v7322 = vunpack.c.l.b16 %v5533
        %v7323 = vunpack.c.h.b16 %v5533
        %v7324 = vunpack.c.l.b16 %v5534
        %v7325 = vunpack.c.h.b16 %v5534
        %v7326 = vunpack.c.l.b16 %v5535
        %v7327 = vunpack.c.h.b16 %v5535
        %v7328 = vunpack.c.l.b16 %v5536
        %v7329 = vunpack.c.h.b16 %v5536
        %v7330 = vunpack.c.l.b16 %v5537
        %v7331 = vunpack.c.h.b16 %v5537
        %v7332 = vunpack.c.l.b16 %v5538
        %v7333 = vunpack.c.h.b16 %v5538
        %v7334 = vunpack.c.l.b16 %v5539
        %v7335 = vunpack.c.h.b16 %v5539
        %v7336 = vunpack.c.l.b16 %v5540
        %v7337 = vunpack.c.h.b16 %v5540
        %v7338 = vunpack.c.l.b16 %v5541
        %v7339 = vunpack.c.h.b16 %v5541
        %v7340 = vunpack.c.l.b16 %v5542
        %v7341 = vunpack.c.h.b16 %v5542
        %v7342 = vunpack.c.l.b16 %v5543
        %v7343 = vunpack.c.h.b16 %v5543
        %v7344 = vunpack.c.l.b16 %v5544
        %v7345 = vunpack.c.h.b16 %v5544
        %v7346 = vunpack.c.l.b16 %v5545
        %v7347 = vunpack.c.h.b16 %v5545
        %v7348 = vunpack.c.l.b16 %v5546
        %v7349 = vunpack.c.h.b16 %v5546
        %v7350 = vunpack.c.l.b16 %v5547
        %v7351 = vunpack.c.h.b16 %v5547
        %v7352 = vunpack.c.l.b16 %v5548
        %v7353 = vunpack.c.h.b16 %v5548
        %v7354 = vunpack.c.l.b16 %v5549
        %v7355 = vunpack.c.h.b16 %v5549
        %v7356 = vunpack.c.l.b16 %v5550
        %v7357 = vunpack.c.h.b16 %v5550
        %v7358 = vunpack.c.l.b16 %v5551
        %v7359 = vunpack.c.h.b16 %v5551
        %v7360 = vunpack.c.l.b16 %v5552
        %v7361 = vunpack.c.h.b16 %v5552
        %v7362 = vunpack.c.l.b16 %v5553
        %v7363 = vunpack.c.h.b16 %v5553
        %v7364 = vunpack.c.l.b16 %v5554
        %v7365 = vunpack.c.h.b16 %v5554
        %v7366 = vunpack.c.l.b16 %v5555
        %v7367 = vunpack.c.h.b16 %v5555
        %v7368 = vunpack.c.l.b16 %v5556
        %v7369 = vunpack.c.h.b16 %v5556
        %v7370 = vunpack.c.l.b16 %v5557
        %v7371 = vunpack.c.h.b16 %v5557
        %v7372 = vunpack.c.l.b16 %v5558
        %v7373 = vunpack.c.h.b16 %v5558
        %v7374 = vunpack.c.l.b16 %v5559
        %v7375 = vunpack.c.h.b16 %v5559
        %v7376 = vunpack.c.l.b16 %v5560
        %v7377 = vunpack.c.h.b16 %v5560
        %v7378 = vunpack.c.l.b16 %v5561
        %v7379 = vunpack.c.h.b16 %v5561
        %v7380 = vunpack.c.l.b16 %v5562
        %v7381 = vunpack.c.h.b16 %v5562
        %v7382 = vunpack.c.l.b16 %v5563
        %v7383 = vunpack.c.h.b16 %v5563
        %v7384 = vunpack.c.l.b16 %v5564
        %v7385 = vunpack.c.h.b16 %v5564
        %v7386 = vunpack.c.l.b16 %v5565
        %v7387 = vunpack.c.h.b16 %v5565
        %v7388 = vunpack.c.l.b16 %v5566
        %v7389 = vunpack.c.h.b16 %v5566
        %v7390 = vunpack.c.l.b16 %v5567
        %v7391 = vunpack.c.h.b16 %v5567
        %v7392 = vunpack.c.l.b16 %v5568
        %v7393 = vunpack.c.h.b16 %v5568
        %v7394 = vunpack.c.l.b16 %v5569
        %v7395 = vunpack.c.h.b16 %v5569
        %v7396 = vunpack.c.l.b16 %v5570
        %v7397 = vunpack.c.h.b16 %v5570
        %v7398 = vunpack.c.l.b16 %v5571
        %v7399 = vunpack.c.h.b16 %v5571
        %v7400 = vunpack.c.l.b16 %v5572
        %v7401 = vunpack.c.h.b16 %v5572
        %v7402 = vunpack.c.l.b16 %v5573
        %v7403 = vunpack.c.h.b16 %v5573
        %v7404 = vunpack.c.l.b16 %v5574
        %v7405 = vunpack.c.h.b16 %v5574
        %v7406 = vunpack.c.l.b16 %v5575
        %v7407 = vunpack.c.h.b16 %v5575
        %v7408 = vunpack.c.l.b16 %v5576
        %v7409 = vunpack.c.h.b16 %v5576
        %v7410 = vunpack.c.l.b16 %v5577
        %v7411 = vunpack.c.h.b16 %v5577
        %v7412 = vunpack.c.l.b16 %v5578
        %v7413 = vunpack.c.h.b16 %v5578
        %v7414 = vunpack.c.l.b16 %v5579
        %v7415 = vunpack.c.h.b16 %v5579
        %v7416 = vunpack.c.l.b16 %v5580
        %v7417 = vunpack.c.h.b16 %v5580
        %v7418 = vunpack.c.l.b16 %v5581
        %v7419 = vunpack.c.h.b16 %v5581
        %v7420 = vunpack.c.l.b16 %v5582
        %v7421 = vunpack.c.h.b16 %v5582
        %v7422 = vunpack.c.l.b16 %v5583
        %v7423 = vunpack.c.h.b16 %v5583
        %v7424 = vunpack.c.l.b16 %v5584
        %v7425 = vunpack.c.h.b16 %v5584
        %v7426 = vunpack.c.l.b16 %v5585
        %v7427 = vunpack.c.h.b16 %v5585
        %v7428 = vunpack.c.l.b16 %v5586
        %v7429 = vunpack.c.h.b16 %v5586
        %v7430 = vunpack.c.l.b16 %v5587
        %v7431 = vunpack.c.h.b16 %v5587
        %v7432 = vunpack.c.l.b16 %v5588
        %v7433 = vunpack.c.h.b16 %v5588
        %v7434 = vunpack.c.l.b16 %v5589
        %v7435 = vunpack.c.h.b16 %v5589
        %v7436 = vunpack.c.l.b16 %v5590
        %v7437 = vunpack.c.h.b16 %v5590
        %v7438 = vunpack.c.l.b16 %v5591
        %v7439 = vunpack.c.h.b16 %v5591
        %v7440 = vunpack.c.l.b16 %v5592
        %v7441 = vunpack.c.h.b16 %v5592
        %v7442 = vunpack.c.l.b16 %v5593
        %v7443 = vunpack.c.h.b16 %v5593
        %v7444 = vunpack.c.l.b16 %v5594
        %v7445 = vunpack.c.h.b16 %v5594
        %v7446 = vunpack.c.l.b16 %v5595
        %v7447 = vunpack.c.h.b16 %v5595
        %v7448 = vunpack.c.l.b16 %v5596
        %v7449 = vunpack.c.h.b16 %v5596
        %v7450 = vunpack.c.l.b16 %v5597
        %v7451 = vunpack.c.h.b16 %v5597
        %v7452 = vunpack.c.l.b16 %v5598
        %v7453 = vunpack.c.h.b16 %v5598
        %v7454 = vunpack.c.l.b16 %v5599
        %v7455 = vunpack.c.h.b16 %v5599
        %v7456 = vunpack.c.l.b16 %v5600
        %v7457 = vunpack.c.h.b16 %v5600
        %v7458 = vunpack.c.l.b16 %v5601
        %v7459 = vunpack.c.h.b16 %v5601
        %v7460 = vunpack.c.l.b16 %v5602
        %v7461 = vunpack.c.h.b16 %v5602
        %v7462 = vunpack.c.l.b16 %v5603
        %v7463 = vunpack.c.h.b16 %v5603
        %v7464 = vunpack.c.l.b16 %v5604
        %v7465 = vunpack.c.h.b16 %v5604
        %v7466 = vunpack.c.l.b16 %v5605
        %v7467 = vunpack.c.h.b16 %v5605
        %v7468 = vunpack.c.l.b16 %v5606
        %v7469 = vunpack.c.h.b16 %v5606
        %v7470 = vunpack.c.l.b16 %v5607
        %v7471 = vunpack.c.h.b16 %v5607
        %v7472 = vunpack.c.l.b16 %v5608
        %v7473 = vunpack.c.h.b16 %v5608
        %v7474 = vunpack.c.l.b16 %v5609
        %v7475 = vunpack.c.h.b16 %v5609
        %v7476 = vunpack.c.l.b16 %v5610
        %v7477 = vunpack.c.h.b16 %v5610
        %v7478 = vunpack.c.l.b16 %v5611
        %v7479 = vunpack.c.h.b16 %v5611
        %v7480 = vunpack.c.l.b16 %v5612
        %v7481 = vunpack.c.h.b16 %v5612
        %v7482 = vunpack.c.l.b16 %v5613
        %v7483 = vunpack.c.h.b16 %v5613
        %v7484 = vunpack.c.l.b16 %v5614
        %v7485 = vunpack.c.h.b16 %v5614
        %v7486 = vunpack.c.l.b16 %v5615
        %v7487 = vunpack.c.h.b16 %v5615
        %v7488 = vunpack.c.l.b16 %v5616
        %v7489 = vunpack.c.h.b16 %v5616
        %v7490 = vunpack.c.l.b16 %v5617
        %v7491 = vunpack.c.h.b16 %v5617
        %v7492 = vunpack.c.l.b16 %v5618
        %v7493 = vunpack.c.h.b16 %v5618
        %v7494 = vunpack.c.l.b16 %v5619
        %v7495 = vunpack.c.h.b16 %v5619
        %v7496 = vunpack.c.l.b16 %v5620
        %v7497 = vunpack.c.h.b16 %v5620
        %v7498 = vunpack.c.l.b16 %v5621
        %v7499 = vunpack.c.h.b16 %v5621
        %v7500 = vunpack.c.l.b16 %v5622
        %v7501 = vunpack.c.h.b16 %v5622
        %v7502 = vunpack.c.l.b16 %v5623
        %v7503 = vunpack.c.h.b16 %v5623
        %v7504 = vunpack.c.l.b16 %v5624
        %v7505 = vunpack.c.h.b16 %v5624
        %v7506 = vunpack.c.l.b16 %v5625
        %v7507 = vunpack.c.h.b16 %v5625
        %v7508 = vunpack.c.l.b16 %v5626
        %v7509 = vunpack.c.h.b16 %v5626
        %v7510 = vunpack.c.l.b16 %v5627
        %v7511 = vunpack.c.h.b16 %v5627
        %v7512 = vunpack.c.l.b16 %v5628
        %v7513 = vunpack.c.h.b16 %v5628
        %v7514 = vunpack.c.l.b16 %v5629
        %v7515 = vunpack.c.h.b16 %v5629
        %v7516 = vunpack.c.l.b16 %v5630
        %v7517 = vunpack.c.h.b16 %v5630
        %v7518 = vunpack.c.l.b16 %v5631
        %v7519 = vunpack.c.h.b16 %v5631
        %v7520 = vunpack.c.l.b16 %v5632
        %v7521 = vunpack.c.h.b16 %v5632
        %v7522 = vunpack.c.l.b16 %v5633
        %v7523 = vunpack.c.h.b16 %v5633
        %v7524 = vunpack.c.l.b16 %v5634
        %v7525 = vunpack.c.h.b16 %v5634
        %v7526 = vunpack.c.l.b16 %v5635
        %v7527 = vunpack.c.h.b16 %v5635
        %v7528 = vunpack.c.l.b16 %v5636
        %v7529 = vunpack.c.h.b16 %v5636
        %v7530 = vunpack.c.l.b16 %v5637
        %v7531 = vunpack.c.h.b16 %v5637
        %v7532 = vunpack.c.l.b16 %v5638
        %v7533 = vunpack.c.h.b16 %v5638
        %v7534 = vunpack.c.l.b16 %v5639
        %v7535 = vunpack.c.h.b16 %v5639
        %v7536 = vunpack.c.l.b16 %v5640
        %v7537 = vunpack.c.h.b16 %v5640
        %v7538 = vunpack.c.l.b16 %v5641
        %v7539 = vunpack.c.h.b16 %v5641
        %v7540 = vunpack.c.l.b16 %v5642
        %v7541 = vunpack.c.h.b16 %v5642
        %v7542 = vunpack.c.l.b16 %v5643
        %v7543 = vunpack.c.h.b16 %v5643
        %v7544 = vunpack.c.l.b16 %v5644
        %v7545 = vunpack.c.h.b16 %v5644
        %v7546 = vunpack.c.l.b16 %v5645
        %v7547 = vunpack.c.h.b16 %v5645
        %v7548 = vunpack.c.l.b16 %v5646
        %v7549 = vunpack.c.h.b16 %v5646
        %v7550 = vunpack.c.l.b16 %v5647
        %v7551 = vunpack.c.h.b16 %v5647
        %v7552 = vunpack.c.l.b16 %v5648
        %v7553 = vunpack.c.h.b16 %v5648
        %v7554 = vunpack.c.l.b16 %v5649
        %v7555 = vunpack.c.h.b16 %v5649
        %v7556 = vunpack.c.l.b16 %v5650
        %v7557 = vunpack.c.h.b16 %v5650
        %v7558 = vunpack.c.l.b16 %v5651
        %v7559 = vunpack.c.h.b16 %v5651
        %v7560 = vunpack.c.l.b16 %v5652
        %v7561 = vunpack.c.h.b16 %v5652
        %v7562 = vunpack.c.l.b16 %v5653
        %v7563 = vunpack.c.h.b16 %v5653
        %v7564 = vunpack.c.l.b16 %v5654
        %v7565 = vunpack.c.h.b16 %v5654
        %v7566 = vunpack.c.l.b16 %v5655
        %v7567 = vunpack.c.h.b16 %v5655
        %v7568 = vunpack.c.l.b16 %v5656
        %v7569 = vunpack.c.h.b16 %v5656
        %v7570 = vunpack.c.l.b16 %v5657
        %v7571 = vunpack.c.h.b16 %v5657
        %v7572 = vunpack.c.l.b16 %v5658
        %v7573 = vunpack.c.h.b16 %v5658
        %v7574 = vunpack.c.l.b16 %v5659
        %v7575 = vunpack.c.h.b16 %v5659
        %v7576 = vunpack.c.l.b16 %v5660
        %v7577 = vunpack.c.h.b16 %v5660
        %v7578 = vunpack.c.l.b16 %v5661
        %v7579 = vunpack.c.h.b16 %v5661
        %v7580 = vunpack.c.l.b16 %v5662
        %v7581 = vunpack.c.h.b16 %v5662
        %v7582 = vunpack.c.l.b16 %v5663
        %v7583 = vunpack.c.h.b16 %v5663
        %v7584 = vunpack.c.l.b16 %v5664
        %v7585 = vunpack.c.h.b16 %v5664
        %v7586 = vpack.c.b16 %v6310, %v6306
        %v7587 = vpack.c.b16 %v6311, %v6307
        %v7588 = vpack.c.b16 %v6312, %v6308
        %v7589 = vpack.c.b16 %v6313, %v6309
        %v7590 = vpack.c.b16 %v6318, %v6314
        %v7591 = vpack.c.b16 %v6319, %v6315
        %v7592 = vpack.c.b16 %v6320, %v6316
        %v7593 = vpack.c.b16 %v6321, %v6317
        %v7594 = vpack.c.b16 %v6326, %v6322
        %v7595 = vpack.c.b16 %v6327, %v6323
        %v7596 = vpack.c.b16 %v6328, %v6324
        %v7597 = vpack.c.b16 %v6329, %v6325
        %v7598 = vpack.c.b16 %v6334, %v6330
        %v7599 = vpack.c.b16 %v6335, %v6331
        %v7600 = vpack.c.b16 %v6336, %v6332
        %v7601 = vpack.c.b16 %v6337, %v6333
        %v7602 = vpack.c.b16 %v6342, %v6338
        %v7603 = vpack.c.b16 %v6343, %v6339
        %v7604 = vpack.c.b16 %v6344, %v6340
        %v7605 = vpack.c.b16 %v6345, %v6341
        %v7606 = vpack.c.b16 %v6350, %v6346
        %v7607 = vpack.c.b16 %v6351, %v6347
        %v7608 = vpack.c.b16 %v6352, %v6348
        %v7609 = vpack.c.b16 %v6353, %v6349
        %v7610 = vpack.c.b16 %v6358, %v6354
        %v7611 = vpack.c.b16 %v6359, %v6355
        %v7612 = vpack.c.b16 %v6360, %v6356
        %v7613 = vpack.c.b16 %v6361, %v6357
        %v7614 = vpack.c.b16 %v6366, %v6362
        %v7615 = vpack.c.b16 %v6367, %v6363
        %v7616 = vpack.c.b16 %v6368, %v6364
        %v7617 = vpack.c.b16 %v6369, %v6365
        %v7618 = vpack.c.b16 %v6374, %v6370
        %v7619 = vpack.c.b16 %v6375, %v6371
        %v7620 = vpack.c.b16 %v6376, %v6372
        %v7621 = vpack.c.b16 %v6377, %v6373
        %v7622 = vpack.c.b16 %v6382, %v6378
        %v7623 = vpack.c.b16 %v6383, %v6379
        %v7624 = vpack.c.b16 %v6384, %v6380
        %v7625 = vpack.c.b16 %v6385, %v6381
        %v7626 = vpack.c.b16 %v6390, %v6386
        %v7627 = vpack.c.b16 %v6391, %v6387
        %v7628 = vpack.c.b16 %v6392, %v6388
        %v7629 = vpack.c.b16 %v6393, %v6389
        %v7630 = vpack.c.b16 %v6398, %v6394
        %v7631 = vpack.c.b16 %v6399, %v6395
        %v7632 = vpack.c.b16 %v6400, %v6396
        %v7633 = vpack.c.b16 %v6401, %v6397
        %v7634 = vpack.c.b16 %v6406, %v6402
        %v7635 = vpack.c.b16 %v6407, %v6403
        %v7636 = vpack.c.b16 %v6408, %v6404
        %v7637 = vpack.c.b16 %v6409, %v6405
        %v7638 = vpack.c.b16 %v6414, %v6410
        %v7639 = vpack.c.b16 %v6415, %v6411
        %v7640 = vpack.c.b16 %v6416, %v6412
        %v7641 = vpack.c.b16 %v6417, %v6413
        %v7642 = vpack.c.b16 %v6422, %v6418
        %v7643 = vpack.c.b16 %v6423, %v6419
        %v7644 = vpack.c.b16 %v6424, %v6420
        %v7645 = vpack.c.b16 %v6425, %v6421
        %v7646 = vpack.c.b16 %v6430, %v6426
        %v7647 = vpack.c.b16 %v6431, %v6427
        %v7648 = vpack.c.b16 %v6432, %v6428
        %v7649 = vpack.c.b16 %v6433, %v6429
        %v7650 = vpack.c.b16 %v6438, %v6434
        %v7651 = vpack.c.b16 %v6439, %v6435
        %v7652 = vpack.c.b16 %v6440, %v6436
        %v7653 = vpack.c.b16 %v6441, %v6437
        %v7654 = vpack.c.b16 %v6446, %v6442
        %v7655 = vpack.c.b16 %v6447, %v6443
        %v7656 = vpack.c.b16 %v6448, %v6444
        %v7657 = vpack.c.b16 %v6449, %v6445
        %v7658 = vpack.c.b16 %v6454, %v6450
        %v7659 = vpack.c.b16 %v6455, %v6451
        %v7660 = vpack.c.b16 %v6456, %v6452
        %v7661 = vpack.c.b16 %v6457, %v6453
        %v7662 = vpack.c.b16 %v6462, %v6458
        %v7663 = vpack.c.b16 %v6463, %v6459
        %v7664 = vpack.c.b16 %v6464, %v6460
        %v7665 = vpack.c.b16 %v6465, %v6461
        %v7666 = vpack.c.b16 %v6470, %v6466
        %v7667 = vpack.c.b16 %v6471, %v6467
        %v7668 = vpack.c.b16 %v6472, %v6468
        %v7669 = vpack.c.b16 %v6473, %v6469
        %v7670 = vpack.c.b16 %v6478, %v6474
        %v7671 = vpack.c.b16 %v6479, %v6475
        %v7672 = vpack.c.b16 %v6480, %v6476
        %v7673 = vpack.c.b16 %v6481, %v6477
        %v7674 = vpack.c.b16 %v6486, %v6482
        %v7675 = vpack.c.b16 %v6487, %v6483
        %v7676 = vpack.c.b16 %v6488, %v6484
        %v7677 = vpack.c.b16 %v6489, %v6485
        %v7678 = vpack.c.b16 %v6494, %v6490
        %v7679 = vpack.c.b16 %v6495, %v6491
        %v7680 = vpack.c.b16 %v6496, %v6492
        %v7681 = vpack.c.b16 %v6497, %v6493
        %v7682 = vpack.c.b16 %v6502, %v6498
        %v7683 = vpack.c.b16 %v6503, %v6499
        %v7684 = vpack.c.b16 %v6504, %v6500
        %v7685 = vpack.c.b16 %v6505, %v6501
        %v7686 = vpack.c.b16 %v6510, %v6506
        %v7687 = vpack.c.b16 %v6511, %v6507
        %v7688 = vpack.c.b16 %v6512, %v6508
        %v7689 = vpack.c.b16 %v6513, %v6509
        %v7690 = vpack.c.b16 %v6518, %v6514
        %v7691 = vpack.c.b16 %v6519, %v6515
        %v7692 = vpack.c.b16 %v6520, %v6516
        %v7693 = vpack.c.b16 %v6521, %v6517
        %v7694 = vpack.c.b16 %v6526, %v6522
        %v7695 = vpack.c.b16 %v6527, %v6523
        %v7696 = vpack.c.b16 %v6528, %v6524
        %v7697 = vpack.c.b16 %v6529, %v6525
        %v7698 = vpack.c.b16 %v6534, %v6530
        %v7699 = vpack.c.b16 %v6535, %v6531
        %v7700 = vpack.c.b16 %v6536, %v6532
        %v7701 = vpack.c.b16 %v6537, %v6533
        %v7702 = vpack.c.b16 %v6542, %v6538
        %v7703 = vpack.c.b16 %v6543, %v6539
        %v7704 = vpack.c.b16 %v6544, %v6540
        %v7705 = vpack.c.b16 %v6545, %v6541
        %v7706 = vpack.c.b16 %v6550, %v6546
        %v7707 = vpack.c.b16 %v6551, %v6547
        %v7708 = vpack.c.b16 %v6552, %v6548
        %v7709 = vpack.c.b16 %v6553, %v6549
        %v7710 = vpack.c.b16 %v6558, %v6554
        %v7711 = vpack.c.b16 %v6559, %v6555
        %v7712 = vpack.c.b16 %v6560, %v6556
        %v7713 = vpack.c.b16 %v6561, %v6557
        %v7714 = vpack.c.b16 %v6566, %v6562
        %v7715 = vpack.c.b16 %v6567, %v6563
        %v7716 = vpack.c.b16 %v6568, %v6564
        %v7717 = vpack.c.b16 %v6569, %v6565
        %v7718 = vpack.c.b16 %v6574, %v6570
        %v7719 = vpack.c.b16 %v6575, %v6571
        %v7720 = vpack.c.b16 %v6576, %v6572
        %v7721 = vpack.c.b16 %v6577, %v6573
        %v7722 = vpack.c.b16 %v6582, %v6578
        %v7723 = vpack.c.b16 %v6583, %v6579
        %v7724 = vpack.c.b16 %v6584, %v6580
        %v7725 = vpack.c.b16 %v6585, %v6581
        %v7726 = vpack.c.b16 %v6590, %v6586
        %v7727 = vpack.c.b16 %v6591, %v6587
        %v7728 = vpack.c.b16 %v6592, %v6588
        %v7729 = vpack.c.b16 %v6593, %v6589
        %v7730 = vpack.c.b16 %v6598, %v6594
        %v7731 = vpack.c.b16 %v6599, %v6595
        %v7732 = vpack.c.b16 %v6600, %v6596
        %v7733 = vpack.c.b16 %v6601, %v6597
        %v7734 = vpack.c.b16 %v6606, %v6602
        %v7735 = vpack.c.b16 %v6607, %v6603
        %v7736 = vpack.c.b16 %v6608, %v6604
        %v7737 = vpack.c.b16 %v6609, %v6605
        %v7738 = vpack.c.b16 %v6614, %v6610
        %v7739 = vpack.c.b16 %v6615, %v6611
        %v7740 = vpack.c.b16 %v6616, %v6612
        %v7741 = vpack.c.b16 %v6617, %v6613
        %v7742 = vpack.c.b16 %v6622, %v6618
        %v7743 = vpack.c.b16 %v6623, %v6619
        %v7744 = vpack.c.b16 %v6624, %v6620
        %v7745 = vpack.c.b16 %v6625, %v6621
        %v7746 = vpack.c.b16 %v6630, %v6626
        %v7747 = vpack.c.b16 %v6631, %v6627
        %v7748 = vpack.c.b16 %v6632, %v6628
        %v7749 = vpack.c.b16 %v6633, %v6629
        %v7750 = vpack.c.b16 %v6638, %v6634
        %v7751 = vpack.c.b16 %v6639, %v6635
        %v7752 = vpack.c.b16 %v6640, %v6636
        %v7753 = vpack.c.b16 %v6641, %v6637
        %v7754 = vpack.c.b16 %v6646, %v6642
        %v7755 = vpack.c.b16 %v6647, %v6643
        %v7756 = vpack.c.b16 %v6648, %v6644
        %v7757 = vpack.c.b16 %v6649, %v6645
        %v7758 = vpack.c.b16 %v6654, %v6650
        %v7759 = vpack.c.b16 %v6655, %v6651
        %v7760 = vpack.c.b16 %v6656, %v6652
        %v7761 = vpack.c.b16 %v6657, %v6653
        %v7762 = vpack.c.b16 %v6662, %v6658
        %v7763 = vpack.c.b16 %v6663, %v6659
        %v7764 = vpack.c.b16 %v6664, %v6660
        %v7765 = vpack.c.b16 %v6665, %v6661
        %v7766 = vpack.c.b16 %v6670, %v6666
        %v7767 = vpack.c.b16 %v6671, %v6667
        %v7768 = vpack.c.b16 %v6672, %v6668
        %v7769 = vpack.c.b16 %v6673, %v6669
        %v7770 = vpack.c.b16 %v6678, %v6674
        %v7771 = vpack.c.b16 %v6679, %v6675
        %v7772 = vpack.c.b16 %v6680, %v6676
        %v7773 = vpack.c.b16 %v6681, %v6677
        %v7774 = vpack.c.b16 %v6686, %v6682
        %v7775 = vpack.c.b16 %v6687, %v6683
        %v7776 = vpack.c.b16 %v6688, %v6684
        %v7777 = vpack.c.b16 %v6689, %v6685
        %v7778 = vpack.c.b16 %v6694, %v6690
        %v7779 = vpack.c.b16 %v6695, %v6691
        %v7780 = vpack.c.b16 %v6696, %v6692
        %v7781 = vpack.c.b16 %v6697, %v6693
        %v7782 = vpack.c.b16 %v6702, %v6698
        %v7783 = vpack.c.b16 %v6703, %v6699
        %v7784 = vpack.c.b16 %v6704, %v6700
        %v7785 = vpack.c.b16 %v6705, %v6701
        %v7786 = vpack.c.b16 %v6710, %v6706
        %v7787 = vpack.c.b16 %v6711, %v6707
        %v7788 = vpack.c.b16 %v6712, %v6708
        %v7789 = vpack.c.b16 %v6713, %v6709
        %v7790 = vpack.c.b16 %v6718, %v6714
        %v7791 = vpack.c.b16 %v6719, %v6715
        %v7792 = vpack.c.b16 %v6720, %v6716
        %v7793 = vpack.c.b16 %v6721, %v6717
        %v7794 = vpack.c.b16 %v6726, %v6722
        %v7795 = vpack.c.b16 %v6727, %v6723
        %v7796 = vpack.c.b16 %v6728, %v6724
        %v7797 = vpack.c.b16 %v6729, %v6725
        %v7798 = vpack.c.b16 %v6734, %v6730
        %v7799 = vpack.c.b16 %v6735, %v6731
        %v7800 = vpack.c.b16 %v6736, %v6732
        %v7801 = vpack.c.b16 %v6737, %v6733
        %v7802 = vpack.c.b16 %v6742, %v6738
        %v7803 = vpack.c.b16 %v6743, %v6739
        %v7804 = vpack.c.b16 %v6744, %v6740
        %v7805 = vpack.c.b16 %v6745, %v6741
        %v7806 = vpack.c.b16 %v6750, %v6746
        %v7807 = vpack.c.b16 %v6751, %v6747
        %v7808 = vpack.c.b16 %v6752, %v6748
        %v7809 = vpack.c.b16 %v6753, %v6749
        %v7810 = vpack.c.b16 %v6758, %v6754
        %v7811 = vpack.c.b16 %v6759, %v6755
        %v7812 = vpack.c.b16 %v6760, %v6756
        %v7813 = vpack.c.b16 %v6761, %v6757
        %v7814 = vpack.c.b16 %v6766, %v6762
        %v7815 = vpack.c.b16 %v6767, %v6763
        %v7816 = vpack.c.b16 %v6768, %v6764
        %v7817 = vpack.c.b16 %v6769, %v6765
        %v7818 = vpack.c.b16 %v6774, %v6770
        %v7819 = vpack.c.b16 %v6775, %v6771
        %v7820 = vpack.c.b16 %v6776, %v6772
        %v7821 = vpack.c.b16 %v6777, %v6773
        %v7822 = vpack.c.b16 %v6782, %v6778
        %v7823 = vpack.c.b16 %v6783, %v6779
        %v7824 = vpack.c.b16 %v6784, %v6780
        %v7825 = vpack.c.b16 %v6785, %v6781
        %v7826 = vpack.c.b16 %v6790, %v6786
        %v7827 = vpack.c.b16 %v6791, %v6787
        %v7828 = vpack.c.b16 %v6792, %v6788
        %v7829 = vpack.c.b16 %v6793, %v6789
        %v7830 = vpack.c.b16 %v6798, %v6794
        %v7831 = vpack.c.b16 %v6799, %v6795
        %v7832 = vpack.c.b16 %v6800, %v6796
        %v7833 = vpack.c.b16 %v6801, %v6797
        %v7834 = vpack.c.b16 %v6806, %v6802
        %v7835 = vpack.c.b16 %v6807, %v6803
        %v7836 = vpack.c.b16 %v6808, %v6804
        %v7837 = vpack.c.b16 %v6809, %v6805
        %v7838 = vpack.c.b16 %v6814, %v6810
        %v7839 = vpack.c.b16 %v6815, %v6811
        %v7840 = vpack.c.b16 %v6816, %v6812
        %v7841 = vpack.c.b16 %v6817, %v6813
        %v7842 = vpack.c.b16 %v6822, %v6818
        %v7843 = vpack.c.b16 %v6823, %v6819
        %v7844 = vpack.c.b16 %v6824, %v6820
        %v7845 = vpack.c.b16 %v6825, %v6821
        %v7846 = vpack.c.b16 %v6830, %v6826
        %v7847 = vpack.c.b16 %v6831, %v6827
        %v7848 = vpack.c.b16 %v6832, %v6828
        %v7849 = vpack.c.b16 %v6833, %v6829
        %v7850 = vpack.c.b16 %v6838, %v6834
        %v7851 = vpack.c.b16 %v6839, %v6835
        %v7852 = vpack.c.b16 %v6840, %v6836
        %v7853 = vpack.c.b16 %v6841, %v6837
        %v7854 = vpack.c.b16 %v6846, %v6842
        %v7855 = vpack.c.b16 %v6847, %v6843
        %v7856 = vpack.c.b16 %v6848, %v6844
        %v7857 = vpack.c.b16 %v6849, %v6845
        %v7858 = vpack.c.b16 %v6854, %v6850
        %v7859 = vpack.c.b16 %v6855, %v6851
        %v7860 = vpack.c.b16 %v6856, %v6852
        %v7861 = vpack.c.b16 %v6857, %v6853
        %v7862 = vpack.c.b16 %v6862, %v6858
        %v7863 = vpack.c.b16 %v6863, %v6859
        %v7864 = vpack.c.b16 %v6864, %v6860
        %v7865 = vpack.c.b16 %v6865, %v6861
        %v7866 = vpack.c.b16 %v6870, %v6866
        %v7867 = vpack.c.b16 %v6871, %v6867
        %v7868 = vpack.c.b16 %v6872, %v6868
        %v7869 = vpack.c.b16 %v6873, %v6869
        %v7870 = vpack.c.b16 %v6878, %v6874
        %v7871 = vpack.c.b16 %v6879, %v6875
        %v7872 = vpack.c.b16 %v6880, %v6876
        %v7873 = vpack.c.b16 %v6881, %v6877
        %v7874 = vpack.c.b16 %v6886, %v6882
        %v7875 = vpack.c.b16 %v6887, %v6883
        %v7876 = vpack.c.b16 %v6888, %v6884
        %v7877 = vpack.c.b16 %v6889, %v6885
        %v7878 = vpack.c.b16 %v6894, %v6890
        %v7879 = vpack.c.b16 %v6895, %v6891
        %v7880 = vpack.c.b16 %v6896, %v6892
        %v7881 = vpack.c.b16 %v6897, %v6893
        %v7882 = vpack.c.b16 %v6902, %v6898
        %v7883 = vpack.c.b16 %v6903, %v6899
        %v7884 = vpack.c.b16 %v6904, %v6900
        %v7885 = vpack.c.b16 %v6905, %v6901
        %v7886 = vpack.c.b16 %v6910, %v6906
        %v7887 = vpack.c.b16 %v6911, %v6907
        %v7888 = vpack.c.b16 %v6912, %v6908
        %v7889 = vpack.c.b16 %v6913, %v6909
        %v7890 = vpack.c.b16 %v6918, %v6914
        %v7891 = vpack.c.b16 %v6919, %v6915
        %v7892 = vpack.c.b16 %v6920, %v6916
        %v7893 = vpack.c.b16 %v6921, %v6917
        %v7894 = vpack.c.b16 %v6926, %v6922
        %v7895 = vpack.c.b16 %v6927, %v6923
        %v7896 = vpack.c.b16 %v6928, %v6924
        %v7897 = vpack.c.b16 %v6929, %v6925
        %v7898 = vpack.c.b16 %v6934, %v6930
        %v7899 = vpack.c.b16 %v6935, %v6931
        %v7900 = vpack.c.b16 %v6936, %v6932
        %v7901 = vpack.c.b16 %v6937, %v6933
        %v7902 = vpack.c.b16 %v6942, %v6938
        %v7903 = vpack.c.b16 %v6943, %v6939
        %v7904 = vpack.c.b16 %v6944, %v6940
        %v7905 = vpack.c.b16 %v6945, %v6941
        %v7906 = vpack.c.b16 %v6950, %v6946
        %v7907 = vpack.c.b16 %v6951, %v6947
        %v7908 = vpack.c.b16 %v6952, %v6948
        %v7909 = vpack.c.b16 %v6953, %v6949
        %v7910 = vpack.c.b16 %v6958, %v6954
        %v7911 = vpack.c.b16 %v6959, %v6955
        %v7912 = vpack.c.b16 %v6960, %v6956
        %v7913 = vpack.c.b16 %v6961, %v6957
        %v7914 = vpack.c.b16 %v6966, %v6962
        %v7915 = vpack.c.b16 %v6967, %v6963
        %v7916 = vpack.c.b16 %v6968, %v6964
        %v7917 = vpack.c.b16 %v6969, %v6965
        %v7918 = vpack.c.b16 %v6974, %v6970
        %v7919 = vpack.c.b16 %v6975, %v6971
        %v7920 = vpack.c.b16 %v6976, %v6972
        %v7921 = vpack.c.b16 %v6977, %v6973
        %v7922 = vpack.c.b16 %v6982, %v6978
        %v7923 = vpack.c.b16 %v6983, %v6979
        %v7924 = vpack.c.b16 %v6984, %v6980
        %v7925 = vpack.c.b16 %v6985, %v6981
        %v7926 = vpack.c.b16 %v6990, %v6986
        %v7927 = vpack.c.b16 %v6991, %v6987
        %v7928 = vpack.c.b16 %v6992, %v6988
        %v7929 = vpack.c.b16 %v6993, %v6989
        %v7930 = vpack.c.b16 %v6998, %v6994
        %v7931 = vpack.c.b16 %v6999, %v6995
        %v7932 = vpack.c.b16 %v7000, %v6996
        %v7933 = vpack.c.b16 %v7001, %v6997
        %v7934 = vpack.c.b16 %v7006, %v7002
        %v7935 = vpack.c.b16 %v7007, %v7003
        %v7936 = vpack.c.b16 %v7008, %v7004
        %v7937 = vpack.c.b16 %v7009, %v7005
        %v7938 = vpack.c.b16 %v7014, %v7010
        %v7939 = vpack.c.b16 %v7015, %v7011
        %v7940 = vpack.c.b16 %v7016, %v7012
        %v7941 = vpack.c.b16 %v7017, %v7013
        %v7942 = vpack.c.b16 %v7022, %v7018
        %v7943 = vpack.c.b16 %v7023, %v7019
        %v7944 = vpack.c.b16 %v7024, %v7020
        %v7945 = vpack.c.b16 %v7025, %v7021
        %v7946 = vpack.c.b16 %v7030, %v7026
        %v7947 = vpack.c.b16 %v7031, %v7027
        %v7948 = vpack.c.b16 %v7032, %v7028
        %v7949 = vpack.c.b16 %v7033, %v7029
        %v7950 = vpack.c.b16 %v7038, %v7034
        %v7951 = vpack.c.b16 %v7039, %v7035
        %v7952 = vpack.c.b16 %v7040, %v7036
        %v7953 = vpack.c.b16 %v7041, %v7037
        %v7954 = vpack.c.b16 %v7046, %v7042
        %v7955 = vpack.c.b16 %v7047, %v7043
        %v7956 = vpack.c.b16 %v7048, %v7044
        %v7957 = vpack.c.b16 %v7049, %v7045
        %v7958 = vpack.c.b16 %v7054, %v7050
        %v7959 = vpack.c.b16 %v7055, %v7051
        %v7960 = vpack.c.b16 %v7056, %v7052
        %v7961 = vpack.c.b16 %v7057, %v7053
        %v7962 = vpack.c.b16 %v7062, %v7058
        %v7963 = vpack.c.b16 %v7063, %v7059
        %v7964 = vpack.c.b16 %v7064, %v7060
        %v7965 = vpack.c.b16 %v7065, %v7061
        %v7966 = vpack.c.b16 %v7070, %v7066
        %v7967 = vpack.c.b16 %v7071, %v7067
        %v7968 = vpack.c.b16 %v7072, %v7068
        %v7969 = vpack.c.b16 %v7073, %v7069
        %v7970 = vpack.c.b16 %v7078, %v7074
        %v7971 = vpack.c.b16 %v7079, %v7075
        %v7972 = vpack.c.b16 %v7080, %v7076
        %v7973 = vpack.c.b16 %v7081, %v7077
        %v7974 = vpack.c.b16 %v7086, %v7082
        %v7975 = vpack.c.b16 %v7087, %v7083
        %v7976 = vpack.c.b16 %v7088, %v7084
        %v7977 = vpack.c.b16 %v7089, %v7085
        %v7978 = vpack.c.b16 %v7094, %v7090
        %v7979 = vpack.c.b16 %v7095, %v7091
        %v7980 = vpack.c.b16 %v7096, %v7092
        %v7981 = vpack.c.b16 %v7097, %v7093
        %v7982 = vpack.c.b16 %v7102, %v7098
        %v7983 = vpack.c.b16 %v7103, %v7099
        %v7984 = vpack.c.b16 %v7104, %v7100
        %v7985 = vpack.c.b16 %v7105, %v7101
        %v7986 = vpack.c.b16 %v7110, %v7106
        %v7987 = vpack.c.b16 %v7111, %v7107
        %v7988 = vpack.c.b16 %v7112, %v7108
        %v7989 = vpack.c.b16 %v7113, %v7109
        %v7990 = vpack.c.b16 %v7118, %v7114
        %v7991 = vpack.c.b16 %v7119, %v7115
        %v7992 = vpack.c.b16 %v7120, %v7116
        %v7993 = vpack.c.b16 %v7121, %v7117
        %v7994 = vpack.c.b16 %v7126, %v7122
        %v7995 = vpack.c.b16 %v7127, %v7123
        %v7996 = vpack.c.b16 %v7128, %v7124
        %v7997 = vpack.c.b16 %v7129, %v7125
        %v7998 = vpack.c.b16 %v7134, %v7130
        %v7999 = vpack.c.b16 %v7135, %v7131
        %v8000 = vpack.c.b16 %v7136, %v7132
        %v8001 = vpack.c.b16 %v7137, %v7133
        %v8002 = vpack.c.b16 %v7142, %v7138
        %v8003 = vpack.c.b16 %v7143, %v7139
        %v8004 = vpack.c.b16 %v7144, %v7140
        %v8005 = vpack.c.b16 %v7145, %v7141
        %v8006 = vpack.c.b16 %v7150, %v7146
        %v8007 = vpack.c.b16 %v7151, %v7147
        %v8008 = vpack.c.b16 %v7152, %v7148
        %v8009 = vpack.c.b16 %v7153, %v7149
        %v8010 = vpack.c.b16 %v7158, %v7154
        %v8011 = vpack.c.b16 %v7159, %v7155
        %v8012 = vpack.c.b16 %v7160, %v7156
        %v8013 = vpack.c.b16 %v7161, %v7157
        %v8014 = vpack.c.b16 %v7166, %v7162
        %v8015 = vpack.c.b16 %v7167, %v7163
        %v8016 = vpack.c.b16 %v7168, %v7164
        %v8017 = vpack.c.b16 %v7169, %v7165
        %v8018 = vpack.c.b16 %v7174, %v7170
        %v8019 = vpack.c.b16 %v7175, %v7171
        %v8020 = vpack.c.b16 %v7176, %v7172
        %v8021 = vpack.c.b16 %v7177, %v7173
        %v8022 = vpack.c.b16 %v7182, %v7178
        %v8023 = vpack.c.b16 %v7183, %v7179
        %v8024 = vpack.c.b16 %v7184, %v7180
        %v8025 = vpack.c.b16 %v7185, %v7181
        %v8026 = vpack.c.b16 %v7190, %v7186
        %v8027 = vpack.c.b16 %v7191, %v7187
        %v8028 = vpack.c.b16 %v7192, %v7188
        %v8029 = vpack.c.b16 %v7193, %v7189
        %v8030 = vpack.c.b16 %v7198, %v7194
        %v8031 = vpack.c.b16 %v7199, %v7195
        %v8032 = vpack.c.b16 %v7200, %v7196
        %v8033 = vpack.c.b16 %v7201, %v7197
        %v8034 = vpack.c.b16 %v7206, %v7202
        %v8035 = vpack.c.b16 %v7207, %v7203
        %v8036 = vpack.c.b16 %v7208, %v7204
        %v8037 = vpack.c.b16 %v7209, %v7205
        %v8038 = vpack.c.b16 %v7214, %v7210
        %v8039 = vpack.c.b16 %v7215, %v7211
        %v8040 = vpack.c.b16 %v7216, %v7212
        %v8041 = vpack.c.b16 %v7217, %v7213
        %v8042 = vpack.c.b16 %v7222, %v7218
        %v8043 = vpack.c.b16 %v7223, %v7219
        %v8044 = vpack.c.b16 %v7224, %v7220
        %v8045 = vpack.c.b16 %v7225, %v7221
        %v8046 = vpack.c.b16 %v7230, %v7226
        %v8047 = vpack.c.b16 %v7231, %v7227
        %v8048 = vpack.c.b16 %v7232, %v7228
        %v8049 = vpack.c.b16 %v7233, %v7229
        %v8050 = vpack.c.b16 %v7238, %v7234
        %v8051 = vpack.c.b16 %v7239, %v7235
        %v8052 = vpack.c.b16 %v7240, %v7236
        %v8053 = vpack.c.b16 %v7241, %v7237
        %v8054 = vpack.c.b16 %v7246, %v7242
        %v8055 = vpack.c.b16 %v7247, %v7243
        %v8056 = vpack.c.b16 %v7248, %v7244
        %v8057 = vpack.c.b16 %v7249, %v7245
        %v8058 = vpack.c.b16 %v7254, %v7250
        %v8059 = vpack.c.b16 %v7255, %v7251
        %v8060 = vpack.c.b16 %v7256, %v7252
        %v8061 = vpack.c.b16 %v7257, %v7253
        %v8062 = vpack.c.b16 %v7262, %v7258
        %v8063 = vpack.c.b16 %v7263, %v7259
        %v8064 = vpack.c.b16 %v7264, %v7260
        %v8065 = vpack.c.b16 %v7265, %v7261
        %v8066 = vpack.c.b16 %v7270, %v7266
        %v8067 = vpack.c.b16 %v7271, %v7267
        %v8068 = vpack.c.b16 %v7272, %v7268
        %v8069 = vpack.c.b16 %v7273, %v7269
        %v8070 = vpack.c.b16 %v7278, %v7274
        %v8071 = vpack.c.b16 %v7279, %v7275
        %v8072 = vpack.c.b16 %v7280, %v7276
        %v8073 = vpack.c.b16 %v7281, %v7277
        %v8074 = vpack.c.b16 %v7286, %v7282
        %v8075 = vpack.c.b16 %v7287, %v7283
        %v8076 = vpack.c.b16 %v7288, %v7284
        %v8077 = vpack.c.b16 %v7289, %v7285
        %v8078 = vpack.c.b16 %v7294, %v7290
        %v8079 = vpack.c.b16 %v7295, %v7291
        %v8080 = vpack.c.b16 %v7296, %v7292
        %v8081 = vpack.c.b16 %v7297, %v7293
        %v8082 = vpack.c.b16 %v7302, %v7298
        %v8083 = vpack.c.b16 %v7303, %v7299
        %v8084 = vpack.c.b16 %v7304, %v7300
        %v8085 = vpack.c.b16 %v7305, %v7301
        %v8086 = vpack.c.b16 %v7310, %v7306
        %v8087 = vpack.c.b16 %v7311, %v7307
        %v8088 = vpack.c.b16 %v7312, %v7308
        %v8089 = vpack.c.b16 %v7313, %v7309
        %v8090 = vpack.c.b16 %v7318, %v7314
        %v8091 = vpack.c.b16 %v7319, %v7315
        %v8092 = vpack.c.b16 %v7320, %v7316
        %v8093 = vpack.c.b16 %v7321, %v7317
        %v8094 = vpack.c.b16 %v7326, %v7322
        %v8095 = vpack.c.b16 %v7327, %v7323
        %v8096 = vpack.c.b16 %v7328, %v7324
        %v8097 = vpack.c.b16 %v7329, %v7325
        %v8098 = vpack.c.b16 %v7334, %v7330
        %v8099 = vpack.c.b16 %v7335, %v7331
        %v8100 = vpack.c.b16 %v7336, %v7332
        %v8101 = vpack.c.b16 %v7337, %v7333
        %v8102 = vpack.c.b16 %v7342, %v7338
        %v8103 = vpack.c.b16 %v7343, %v7339
        %v8104 = vpack.c.b16 %v7344, %v7340
        %v8105 = vpack.c.b16 %v7345, %v7341
        %v8106 = vpack.c.b16 %v7350, %v7346
        %v8107 = vpack.c.b16 %v7351, %v7347
        %v8108 = vpack.c.b16 %v7352, %v7348
        %v8109 = vpack.c.b16 %v7353, %v7349
        %v8110 = vpack.c.b16 %v7358, %v7354
        %v8111 = vpack.c.b16 %v7359, %v7355
        %v8112 = vpack.c.b16 %v7360, %v7356
        %v8113 = vpack.c.b16 %v7361, %v7357
        %v8114 = vpack.c.b16 %v7366, %v7362
        %v8115 = vpack.c.b16 %v7367, %v7363
        %v8116 = vpack.c.b16 %v7368, %v7364
        %v8117 = vpack.c.b16 %v7369, %v7365
        %v8118 = vpack.c.b16 %v7374, %v7370
        %v8119 = vpack.c.b16 %v7375, %v7371
        %v8120 = vpack.c.b16 %v7376, %v7372
        %v8121 = vpack.c.b16 %v7377, %v7373
        %v8122 = vpack.c.b16 %v7382, %v7378
        %v8123 = vpack.c.b16 %v7383, %v7379
        %v8124 = vpack.c.b16 %v7384, %v7380
        %v8125 = vpack.c.b16 %v7385, %v7381
        %v8126 = vpack.c.b16 %v7390, %v7386
        %v8127 = vpack.c.b16 %v7391, %v7387
        %v8128 = vpack.c.b16 %v7392, %v7388
        %v8129 = vpack.c.b16 %v7393, %v7389
        %v8130 = vpack.c.b16 %v7398, %v7394
        %v8131 = vpack.c.b16 %v7399, %v7395
        %v8132 = vpack.c.b16 %v7400, %v7396
        %v8133 = vpack.c.b16 %v7401, %v7397
        %v8134 = vpack.c.b16 %v7406, %v7402
        %v8135 = vpack.c.b16 %v7407, %v7403
        %v8136 = vpack.c.b16 %v7408, %v7404
        %v8137 = vpack.c.b16 %v7409, %v7405
        %v8138 = vpack.c.b16 %v7414, %v7410
        %v8139 = vpack.c.b16 %v7415, %v7411
        %v8140 = vpack.c.b16 %v7416, %v7412
        %v8141 = vpack.c.b16 %v7417, %v7413
        %v8142 = vpack.c.b16 %v7422, %v7418
        %v8143 = vpack.c.b16 %v7423, %v7419
        %v8144 = vpack.c.b16 %v7424, %v7420
        %v8145 = vpack.c.b16 %v7425, %v7421
        %v8146 = vpack.c.b16 %v7430, %v7426
        %v8147 = vpack.c.b16 %v7431, %v7427
        %v8148 = vpack.c.b16 %v7432, %v7428
        %v8149 = vpack.c.b16 %v7433, %v7429
        %v8150 = vpack.c.b16 %v7438, %v7434
        %v8151 = vpack.c.b16 %v7439, %v7435
        %v8152 = vpack.c.b16 %v7440, %v7436
        %v8153 = vpack.c.b16 %v7441, %v7437
        %v8154 = vpack.c.b16 %v7446, %v7442
        %v8155 = vpack.c.b16 %v7447, %v7443
        %v8156 = vpack.c.b16 %v7448, %v7444
        %v8157 = vpack.c.b16 %v7449, %v7445
        %v8158 = vpack.c.b16 %v7454, %v7450
        %v8159 = vpack.c.b16 %v7455, %v7451
        %v8160 = vpack.c.b16 %v7456, %v7452
        %v8161 = vpack.c.b16 %v7457, %v7453
        %v8162 = vpack.c.b16 %v7462, %v7458
        %v8163 = vpack.c.b16 %v7463, %v7459
        %v8164 = vpack.c.b16 %v7464, %v7460
        %v8165 = vpack.c.b16 %v7465, %v7461
        %v8166 = vpack.c.b16 %v7470, %v7466
        %v8167 = vpack.c.b16 %v7471, %v7467
        %v8168 = vpack.c.b16 %v7472, %v7468
        %v8169 = vpack.c.b16 %v7473, %v7469
        %v8170 = vpack.c.b16 %v7478, %v7474
        %v8171 = vpack.c.b16 %v7479, %v7475
        %v8172 = vpack.c.b16 %v7480, %v7476
        %v8173 = vpack.c.b16 %v7481, %v7477
        %v8174 = vpack.c.b16 %v7486, %v7482
        %v8175 = vpack.c.b16 %v7487, %v7483
        %v8176 = vpack.c.b16 %v7488, %v7484
        %v8177 = vpack.c.b16 %v7489, %v7485
        %v8178 = vpack.c.b16 %v7494, %v7490
        %v8179 = vpack.c.b16 %v7495, %v7491
        %v8180 = vpack.c.b16 %v7496, %v7492
        %v8181 = vpack.c.b16 %v7497, %v7493
        %v8182 = vpack.c.b16 %v7502, %v7498
        %v8183 = vpack.c.b16 %v7503, %v7499
        %v8184 = vpack.c.b16 %v7504, %v7500
        %v8185 = vpack.c.b16 %v7505, %v7501
        %v8186 = vpack.c.b16 %v7510, %v7506
        %v8187 = vpack.c.b16 %v7511, %v7507
        %v8188 = vpack.c.b16 %v7512, %v7508
        %v8189 = vpack.c.b16 %v7513, %v7509
        %v8190 = vpack.c.b16 %v7518, %v7514
        %v8191 = vpack.c.b16 %v7519, %v7515
        %v8192 = vpack.c.b16 %v7520, %v7516
        %v8193 = vpack.c.b16 %v7521, %v7517
        %v8194 = vpack.c.b16 %v7526, %v7522
        %v8195 = vpack.c.b16 %v7527, %v7523
        %v8196 = vpack.c.b16 %v7528, %v7524
        %v8197 = vpack.c.b16 %v7529, %v7525
        %v8198 = vpack.c.b16 %v7534, %v7530
        %v8199 = vpack.c.b16 %v7535, %v7531
        %v8200 = vpack.c.b16 %v7536, %v7532
        %v8201 = vpack.c.b16 %v7537, %v7533
        %v8202 = vpack.c.b16 %v7542, %v7538
        %v8203 = vpack.c.b16 %v7543, %v7539
        %v8204 = vpack.c.b16 %v7544, %v7540
        %v8205 = vpack.c.b16 %v7545, %v7541
        %v8206 = vpack.c.b16 %v7550, %v7546
        %v8207 = vpack.c.b16 %v7551, %v7547
        %v8208 = vpack.c.b16 %v7552, %v7548
        %v8209 = vpack.c.b16 %v7553, %v7549
        %v8210 = vpack.c.b16 %v7558, %v7554
        %v8211 = vpack.c.b16 %v7559, %v7555
        %v8212 = vpack.c.b16 %v7560, %v7556
        %v8213 = vpack.c.b16 %v7561, %v7557
        %v8214 = vpack.c.b16 %v7566, %v7562
        %v8215 = vpack.c.b16 %v7567, %v7563
        %v8216 = vpack.c.b16 %v7568, %v7564
        %v8217 = vpack.c.b16 %v7569, %v7565
        %v8218 = vpack.c.b16 %v7574, %v7570
        %v8219 = vpack.c.b16 %v7575, %v7571
        %v8220 = vpack.c.b16 %v7576, %v7572
        %v8221 = vpack.c.b16 %v7577, %v7573
        %v8222 = vpack.c.b16 %v7582, %v7578
        %v8223 = vpack.c.b16 %v7583, %v7579
        %v8224 = vpack.c.b16 %v7584, %v7580
        %v8225 = vpack.c.b16 %v7585, %v7581
        %v8867 = vlaneseq
        %v8868 = vshrl.u32 %v8867, 7
        %v8869 = vsub.s32 0, %v8868
        %v8870 = vrot.slane %v5665, %v8869
        %v8871 = vlaneseq
        %v8872 = vshrl.u32 %v8871, 7
        %v8873 = vsub.s32 1, %v8872
        %v8874 = vrot.slane %v5665, %v8873
        %v8875 = vlaneseq
        %v8876 = vshrl.u32 %v8875, 7
        %v8877 = vsub.s32 2, %v8876
        %v8878 = vrot.slane %v5665, %v8877
        %v8879 = vlaneseq
        %v8880 = vshrl.u32 %v8879, 7
        %v8881 = vsub.s32 3, %v8880
        %v8882 = vrot.slane %v5665, %v8881
        %8887 = vmatprep.subr.bf16.mxu0 %v7615
        %8888 = vmatpush1.bf16.msra.mxu0 %v7614
        %8889 = vmatprep.subr.bf16.mxu0 %v7611
        %8890 = vmatpush1.bf16.msra.mxu0 %v7610
        %8891 = vmatprep.subr.bf16.mxu0 %v7607
        %8892 = vmatpush1.bf16.msra.mxu0 %v7606
        %8893 = vmatprep.subr.bf16.mxu0 %v7603
        %8894 = vmatpush1.bf16.msra.mxu0 %v7602
        %8895 = vmatprep.subr.bf16.mxu0 %v7599
        %8896 = vmatpush1.bf16.msra.mxu0 %v7598
        %8897 = vmatprep.subr.bf16.mxu0 %v7595
        %8898 = vmatpush1.bf16.msra.mxu0 %v7594
        %8899 = vmatprep.subr.bf16.mxu0 %v7591
        %8900 = vmatpush1.bf16.msra.mxu0 %v7590
        %8901 = vmatprep.subr.bf16.mxu0 %v7587
        %8902 = vmatpush1.bf16.msra.mxu0 %v7586
        %8903 = vmatprep.subr.bf16.mxu0 %v7647
        %8904 = vmatpush2.bf16.msra.mxu0 %v7646
        %8905 = vmatprep.subr.bf16.mxu0 %v7643
        %8906 = vmatpush2.bf16.msra.mxu0 %v7642
        %8907 = vmatprep.subr.bf16.mxu0 %v7639
        %8908 = vmatpush2.bf16.msra.mxu0 %v7638
        %8909 = vmatprep.subr.bf16.mxu0 %v7635
        %8910 = vmatpush2.bf16.msra.mxu0 %v7634
        %8911 = vmatprep.subr.bf16.mxu0 %v7631
        %8912 = vmatpush2.bf16.msra.mxu0 %v7630
        %8913 = vmatprep.subr.bf16.mxu0 %v7627
        %8914 = vmatpush2.bf16.msra.mxu0 %v7626
        %8915 = vmatprep.subr.bf16.mxu0 %v7623
        %8916 = vmatpush2.bf16.msra.mxu0 %v7622
        %8917 = vmatprep.subr.bf16.mxu0 %v7619
        %8918 = vmatpush2.bf16.msra.mxu0 %v7618
        %8919 = vmatprep.mubr.bf16.mxu0 %v5006
        %8920 = vmatmul.mubr.bf16.gmra.mxu0 %v5005
        %v8921 = vpop.f32.mrf.mxu0
        %v8922 = vadd.f32 %v8870, %v8921
        %v8923 = vpop.f32.mrf.mxu0
        %v8924 = vadd.f32 %v8874, %v8923
        %v8925 = vpop.f32.mrf.mxu0
        %v8926 = vpop.f32.mrf.mxu0
        %8927 = vdwg.mxu0
        %8928 = vmatprep.subr.bf16.mxu0 %v7679
        %8929 = vmatpush1.bf16.msra.mxu0 %v7678
        %8930 = vmatprep.subr.bf16.mxu0 %v7675
        %8931 = vmatpush1.bf16.msra.mxu0 %v7674
        %8932 = vmatprep.subr.bf16.mxu0 %v7671
        %8933 = vmatpush1.bf16.msra.mxu0 %v7670
        %8934 = vmatprep.subr.bf16.mxu0 %v7667
        %8935 = vmatpush1.bf16.msra.mxu0 %v7666
        %8936 = vmatprep.subr.bf16.mxu0 %v7663
        %8937 = vmatpush1.bf16.msra.mxu0 %v7662
        %8938 = vmatprep.subr.bf16.mxu0 %v7659
        %8939 = vmatpush1.bf16.msra.mxu0 %v7658
        %8940 = vmatprep.subr.bf16.mxu0 %v7655
        %8941 = vmatpush1.bf16.msra.mxu0 %v7654
        %8942 = vmatprep.subr.bf16.mxu0 %v7651
        %8943 = vmatpush1.bf16.msra.mxu0 %v7650
        %8944 = vmatprep.subr.bf16.mxu0 %v7711
        %8945 = vmatpush2.bf16.msra.mxu0 %v7710
        %8946 = vmatprep.subr.bf16.mxu0 %v7707
        %8947 = vmatpush2.bf16.msra.mxu0 %v7706
        %8948 = vmatprep.subr.bf16.mxu0 %v7703
        %8949 = vmatpush2.bf16.msra.mxu0 %v7702
        %8950 = vmatprep.subr.bf16.mxu0 %v7699
        %8951 = vmatpush2.bf16.msra.mxu0 %v7698
        %8952 = vmatprep.subr.bf16.mxu0 %v7695
        %8953 = vmatpush2.bf16.msra.mxu0 %v7694
        %8954 = vmatprep.subr.bf16.mxu0 %v7691
        %8955 = vmatpush2.bf16.msra.mxu0 %v7690
        %8956 = vmatprep.subr.bf16.mxu0 %v7687
        %8957 = vmatpush2.bf16.msra.mxu0 %v7686
        %8958 = vmatprep.subr.bf16.mxu0 %v7683
        %8959 = vmatpush2.bf16.msra.mxu0 %v7682
        %8960 = vmatprep.mubr.bf16.mxu0 %v5008
        %8961 = vmatmul.mubr.bf16.gmra.mxu0 %v5007
        %v8962 = vpop.f32.mrf.mxu0
        %v8963 = vadd.f32 %v8922, %v8962
        %v8964 = vpop.f32.mrf.mxu0
        %v8965 = vadd.f32 %v8924, %v8964
        %v8966 = vpop.f32.mrf.mxu0
        %v8967 = vpop.f32.mrf.mxu0
        %8968 = vdwg.mxu0
        %8969 = vmatprep.subr.bf16.mxu0 %v7743
        %8970 = vmatpush1.bf16.msra.mxu0 %v7742
        %8971 = vmatprep.subr.bf16.mxu0 %v7739
        %8972 = vmatpush1.bf16.msra.mxu0 %v7738
        %8973 = vmatprep.subr.bf16.mxu0 %v7735
        %8974 = vmatpush1.bf16.msra.mxu0 %v7734
        %8975 = vmatprep.subr.bf16.mxu0 %v7731
        %8976 = vmatpush1.bf16.msra.mxu0 %v7730
        %8977 = vmatprep.subr.bf16.mxu0 %v7727
        %8978 = vmatpush1.bf16.msra.mxu0 %v7726
        %8979 = vmatprep.subr.bf16.mxu0 %v7723
        %8980 = vmatpush1.bf16.msra.mxu0 %v7722
        %8981 = vmatprep.subr.bf16.mxu0 %v7719
        %8982 = vmatpush1.bf16.msra.mxu0 %v7718
        %8983 = vmatprep.subr.bf16.mxu0 %v7715
        %8984 = vmatpush1.bf16.msra.mxu0 %v7714
        %8985 = vmatprep.subr.bf16.mxu0 %v7775
        %8986 = vmatpush2.bf16.msra.mxu0 %v7774
        %8987 = vmatprep.subr.bf16.mxu0 %v7771
        %8988 = vmatpush2.bf16.msra.mxu0 %v7770
        %8989 = vmatprep.subr.bf16.mxu0 %v7767
        %8990 = vmatpush2.bf16.msra.mxu0 %v7766
        %8991 = vmatprep.subr.bf16.mxu0 %v7763
        %8992 = vmatpush2.bf16.msra.mxu0 %v7762
        %8993 = vmatprep.subr.bf16.mxu0 %v7759
        %8994 = vmatpush2.bf16.msra.mxu0 %v7758
        %8995 = vmatprep.subr.bf16.mxu0 %v7755
        %8996 = vmatpush2.bf16.msra.mxu0 %v7754
        %8997 = vmatprep.subr.bf16.mxu0 %v7751
        %8998 = vmatpush2.bf16.msra.mxu0 %v7750
        %8999 = vmatprep.subr.bf16.mxu0 %v7747
        %9000 = vmatpush2.bf16.msra.mxu0 %v7746
        %9001 = vmatprep.mubr.bf16.mxu0 %v5010
        %9002 = vmatmul.mubr.bf16.gmra.mxu0 %v5009
        %v9003 = vpop.f32.mrf.mxu0
        %v9004 = vadd.f32 %v8963, %v9003
        %v9005 = vpop.f32.mrf.mxu0
        %v9006 = vadd.f32 %v8965, %v9005
        %v9007 = vpop.f32.mrf.mxu0
        %v9008 = vpop.f32.mrf.mxu0
        %9009 = vdwg.mxu0
        %9010 = vmatprep.subr.bf16.mxu0 %v7807
        %9011 = vmatpush1.bf16.msra.mxu0 %v7806
        %9012 = vmatprep.subr.bf16.mxu0 %v7803
        %9013 = vmatpush1.bf16.msra.mxu0 %v7802
        %9014 = vmatprep.subr.bf16.mxu0 %v7799
        %9015 = vmatpush1.bf16.msra.mxu0 %v7798
        %9016 = vmatprep.subr.bf16.mxu0 %v7795
        %9017 = vmatpush1.bf16.msra.mxu0 %v7794
        %9018 = vmatprep.subr.bf16.mxu0 %v7791
        %9019 = vmatpush1.bf16.msra.mxu0 %v7790
        %9020 = vmatprep.subr.bf16.mxu0 %v7787
        %9021 = vmatpush1.bf16.msra.mxu0 %v7786
        %9022 = vmatprep.subr.bf16.mxu0 %v7783
        %9023 = vmatpush1.bf16.msra.mxu0 %v7782
        %9024 = vmatprep.subr.bf16.mxu0 %v7779
        %9025 = vmatpush1.bf16.msra.mxu0 %v7778
        %9026 = vmatprep.subr.bf16.mxu0 %v7839
        %9027 = vmatpush2.bf16.msra.mxu0 %v7838
        %9028 = vmatprep.subr.bf16.mxu0 %v7835
        %9029 = vmatpush2.bf16.msra.mxu0 %v7834
        %9030 = vmatprep.subr.bf16.mxu0 %v7831
        %9031 = vmatpush2.bf16.msra.mxu0 %v7830
        %9032 = vmatprep.subr.bf16.mxu0 %v7827
        %9033 = vmatpush2.bf16.msra.mxu0 %v7826
        %9034 = vmatprep.subr.bf16.mxu0 %v7823
        %9035 = vmatpush2.bf16.msra.mxu0 %v7822
        %9036 = vmatprep.subr.bf16.mxu0 %v7819
        %9037 = vmatpush2.bf16.msra.mxu0 %v7818
        %9038 = vmatprep.subr.bf16.mxu0 %v7815
        %9039 = vmatpush2.bf16.msra.mxu0 %v7814
        %9040 = vmatprep.subr.bf16.mxu0 %v7811
        %9041 = vmatpush2.bf16.msra.mxu0 %v7810
        %9042 = vmatprep.mubr.bf16.mxu0 %v5012
        %9043 = vmatmul.mubr.bf16.gmra.mxu0 %v5011
        %v9044 = vpop.f32.mrf.mxu0
        %v9045 = vadd.f32 %v9004, %v9044
        %v9046 = vpop.f32.mrf.mxu0
        %v9047 = vadd.f32 %v9006, %v9046
        %v9048 = vpop.f32.mrf.mxu0
        %v9049 = vpop.f32.mrf.mxu0
        %9050 = vdwg.mxu0
        %9051 = vmatprep.subr.bf16.mxu0 %v7871
        %9052 = vmatpush1.bf16.msra.mxu0 %v7870
        %9053 = vmatprep.subr.bf16.mxu0 %v7867
        %9054 = vmatpush1.bf16.msra.mxu0 %v7866
        %9055 = vmatprep.subr.bf16.mxu0 %v7863
        %9056 = vmatpush1.bf16.msra.mxu0 %v7862
        %9057 = vmatprep.subr.bf16.mxu0 %v7859
        %9058 = vmatpush1.bf16.msra.mxu0 %v7858
        %9059 = vmatprep.subr.bf16.mxu0 %v7855
        %9060 = vmatpush1.bf16.msra.mxu0 %v7854
        %9061 = vmatprep.subr.bf16.mxu0 %v7851
        %9062 = vmatpush1.bf16.msra.mxu0 %v7850
        %9063 = vmatprep.subr.bf16.mxu0 %v7847
        %9064 = vmatpush1.bf16.msra.mxu0 %v7846
        %9065 = vmatprep.subr.bf16.mxu0 %v7843
        %9066 = vmatpush1.bf16.msra.mxu0 %v7842
        %9067 = vmatprep.subr.bf16.mxu0 %v7903
        %9068 = vmatpush2.bf16.msra.mxu0 %v7902
        %9069 = vmatprep.subr.bf16.mxu0 %v7899
        %9070 = vmatpush2.bf16.msra.mxu0 %v7898
        %9071 = vmatprep.subr.bf16.mxu0 %v7895
        %9072 = vmatpush2.bf16.msra.mxu0 %v7894
        %9073 = vmatprep.subr.bf16.mxu0 %v7891
        %9074 = vmatpush2.bf16.msra.mxu0 %v7890
        %9075 = vmatprep.subr.bf16.mxu0 %v7887
        %9076 = vmatpush2.bf16.msra.mxu0 %v7886
        %9077 = vmatprep.subr.bf16.mxu0 %v7883
        %9078 = vmatpush2.bf16.msra.mxu0 %v7882
        %9079 = vmatprep.subr.bf16.mxu0 %v7879
        %9080 = vmatpush2.bf16.msra.mxu0 %v7878
        %9081 = vmatprep.subr.bf16.mxu0 %v7875
        %9082 = vmatpush2.bf16.msra.mxu0 %v7874
        %9083 = vmatprep.mubr.bf16.mxu0 %v5014
        %9084 = vmatmul.mubr.bf16.gmra.mxu0 %v5013
        %v9085 = vpop.f32.mrf.mxu0
        %v9086 = vadd.f32 %v9045, %v9085
        %v9087 = vpop.f32.mrf.mxu0
        %v9088 = vadd.f32 %v9047, %v9087
        %v9089 = vpop.f32.mrf.mxu0
        %v9090 = vpop.f32.mrf.mxu0
        %9091 = vdwg.mxu0
        %9092 = vmatprep.subr.bf16.mxu0 %v7935
        %9093 = vmatpush1.bf16.msra.mxu0 %v7934
        %9094 = vmatprep.subr.bf16.mxu0 %v7931
        %9095 = vmatpush1.bf16.msra.mxu0 %v7930
        %9096 = vmatprep.subr.bf16.mxu0 %v7927
        %9097 = vmatpush1.bf16.msra.mxu0 %v7926
        %9098 = vmatprep.subr.bf16.mxu0 %v7923
        %9099 = vmatpush1.bf16.msra.mxu0 %v7922
        %9100 = vmatprep.subr.bf16.mxu0 %v7919
        %9101 = vmatpush1.bf16.msra.mxu0 %v7918
        %9102 = vmatprep.subr.bf16.mxu0 %v7915
        %9103 = vmatpush1.bf16.msra.mxu0 %v7914
        %9104 = vmatprep.subr.bf16.mxu0 %v7911
        %9105 = vmatpush1.bf16.msra.mxu0 %v7910
        %9106 = vmatprep.subr.bf16.mxu0 %v7907
        %9107 = vmatpush1.bf16.msra.mxu0 %v7906
        %9108 = vmatprep.subr.bf16.mxu0 %v7967
        %9109 = vmatpush2.bf16.msra.mxu0 %v7966
        %9110 = vmatprep.subr.bf16.mxu0 %v7963
        %9111 = vmatpush2.bf16.msra.mxu0 %v7962
        %9112 = vmatprep.subr.bf16.mxu0 %v7959
        %9113 = vmatpush2.bf16.msra.mxu0 %v7958
        %9114 = vmatprep.subr.bf16.mxu0 %v7955
        %9115 = vmatpush2.bf16.msra.mxu0 %v7954
        %9116 = vmatprep.subr.bf16.mxu0 %v7951
        %9117 = vmatpush2.bf16.msra.mxu0 %v7950
        %9118 = vmatprep.subr.bf16.mxu0 %v7947
        %9119 = vmatpush2.bf16.msra.mxu0 %v7946
        %9120 = vmatprep.subr.bf16.mxu0 %v7943
        %9121 = vmatpush2.bf16.msra.mxu0 %v7942
        %9122 = vmatprep.subr.bf16.mxu0 %v7939
        %9123 = vmatpush2.bf16.msra.mxu0 %v7938
        %9124 = vmatprep.mubr.bf16.mxu0 %v5016
        %9125 = vmatmul.mubr.bf16.gmra.mxu0 %v5015
        %v9126 = vpop.f32.mrf.mxu0
        %v9127 = vadd.f32 %v9086, %v9126
        %v9128 = vpop.f32.mrf.mxu0
        %v9129 = vadd.f32 %v9088, %v9128
        %v9130 = vpop.f32.mrf.mxu0
        %v9131 = vpop.f32.mrf.mxu0
        %9132 = vdwg.mxu0
        %9133 = vmatprep.subr.bf16.mxu0 %v7999
        %9134 = vmatpush1.bf16.msra.mxu0 %v7998
        %9135 = vmatprep.subr.bf16.mxu0 %v7995
        %9136 = vmatpush1.bf16.msra.mxu0 %v7994
        %9137 = vmatprep.subr.bf16.mxu0 %v7991
        %9138 = vmatpush1.bf16.msra.mxu0 %v7990
        %9139 = vmatprep.subr.bf16.mxu0 %v7987
        %9140 = vmatpush1.bf16.msra.mxu0 %v7986
        %9141 = vmatprep.subr.bf16.mxu0 %v7983
        %9142 = vmatpush1.bf16.msra.mxu0 %v7982
        %9143 = vmatprep.subr.bf16.mxu0 %v7979
        %9144 = vmatpush1.bf16.msra.mxu0 %v7978
        %9145 = vmatprep.subr.bf16.mxu0 %v7975
        %9146 = vmatpush1.bf16.msra.mxu0 %v7974
        %9147 = vmatprep.subr.bf16.mxu0 %v7971
        %9148 = vmatpush1.bf16.msra.mxu0 %v7970
        %9149 = vmatprep.subr.bf16.mxu0 %v8031
        %9150 = vmatpush2.bf16.msra.mxu0 %v8030
        %9151 = vmatprep.subr.bf16.mxu0 %v8027
        %9152 = vmatpush2.bf16.msra.mxu0 %v8026
        %9153 = vmatprep.subr.bf16.mxu0 %v8023
        %9154 = vmatpush2.bf16.msra.mxu0 %v8022
        %9155 = vmatprep.subr.bf16.mxu0 %v8019
        %9156 = vmatpush2.bf16.msra.mxu0 %v8018
        %9157 = vmatprep.subr.bf16.mxu0 %v8015
        %9158 = vmatpush2.bf16.msra.mxu0 %v8014
        %9159 = vmatprep.subr.bf16.mxu0 %v8011
        %9160 = vmatpush2.bf16.msra.mxu0 %v8010
        %9161 = vmatprep.subr.bf16.mxu0 %v8007
        %9162 = vmatpush2.bf16.msra.mxu0 %v8006
        %9163 = vmatprep.subr.bf16.mxu0 %v8003
        %9164 = vmatpush2.bf16.msra.mxu0 %v8002
        %9165 = vmatprep.mubr.bf16.mxu0 %v5018
        %9166 = vmatmul.mubr.bf16.gmra.mxu0 %v5017
        %v9167 = vpop.f32.mrf.mxu0
        %v9168 = vadd.f32 %v9127, %v9167
        %v9169 = vpop.f32.mrf.mxu0
        %v9170 = vadd.f32 %v9129, %v9169
        %v9171 = vpop.f32.mrf.mxu0
        %v9172 = vpop.f32.mrf.mxu0
        %9173 = vdwg.mxu0
        %9174 = vmatprep.subr.bf16.mxu0 %v8063
        %9175 = vmatpush1.bf16.msra.mxu0 %v8062
        %9176 = vmatprep.subr.bf16.mxu0 %v8059
        %9177 = vmatpush1.bf16.msra.mxu0 %v8058
        %9178 = vmatprep.subr.bf16.mxu0 %v8055
        %9179 = vmatpush1.bf16.msra.mxu0 %v8054
        %9180 = vmatprep.subr.bf16.mxu0 %v8051
        %9181 = vmatpush1.bf16.msra.mxu0 %v8050
        %9182 = vmatprep.subr.bf16.mxu0 %v8047
        %9183 = vmatpush1.bf16.msra.mxu0 %v8046
        %9184 = vmatprep.subr.bf16.mxu0 %v8043
        %9185 = vmatpush1.bf16.msra.mxu0 %v8042
        %9186 = vmatprep.subr.bf16.mxu0 %v8039
        %9187 = vmatpush1.bf16.msra.mxu0 %v8038
        %9188 = vmatprep.subr.bf16.mxu0 %v8035
        %9189 = vmatpush1.bf16.msra.mxu0 %v8034
        %9190 = vmatprep.subr.bf16.mxu0 %v8095
        %9191 = vmatpush2.bf16.msra.mxu0 %v8094
        %9192 = vmatprep.subr.bf16.mxu0 %v8091
        %9193 = vmatpush2.bf16.msra.mxu0 %v8090
        %9194 = vmatprep.subr.bf16.mxu0 %v8087
        %9195 = vmatpush2.bf16.msra.mxu0 %v8086
        %9196 = vmatprep.subr.bf16.mxu0 %v8083
        %9197 = vmatpush2.bf16.msra.mxu0 %v8082
        %9198 = vmatprep.subr.bf16.mxu0 %v8079
        %9199 = vmatpush2.bf16.msra.mxu0 %v8078
        %9200 = vmatprep.subr.bf16.mxu0 %v8075
        %9201 = vmatpush2.bf16.msra.mxu0 %v8074
        %9202 = vmatprep.subr.bf16.mxu0 %v8071
        %9203 = vmatpush2.bf16.msra.mxu0 %v8070
        %9204 = vmatprep.subr.bf16.mxu0 %v8067
        %9205 = vmatpush2.bf16.msra.mxu0 %v8066
        %9206 = vmatprep.mubr.bf16.mxu0 %v5020
        %9207 = vmatmul.mubr.bf16.gmra.mxu0 %v5019
        %v9208 = vpop.f32.mrf.mxu0
        %v9209 = vadd.f32 %v9168, %v9208
        %v9210 = vpop.f32.mrf.mxu0
        %v9211 = vadd.f32 %v9170, %v9210
        %v9212 = vpop.f32.mrf.mxu0
        %v9213 = vpop.f32.mrf.mxu0
        %9214 = vdwg.mxu0
        %9215 = vmatprep.subr.bf16.mxu0 %v8127
        %9216 = vmatpush1.bf16.msra.mxu0 %v8126
        %9217 = vmatprep.subr.bf16.mxu0 %v8123
        %9218 = vmatpush1.bf16.msra.mxu0 %v8122
        %9219 = vmatprep.subr.bf16.mxu0 %v8119
        %9220 = vmatpush1.bf16.msra.mxu0 %v8118
        %9221 = vmatprep.subr.bf16.mxu0 %v8115
        %9222 = vmatpush1.bf16.msra.mxu0 %v8114
        %9223 = vmatprep.subr.bf16.mxu0 %v8111
        %9224 = vmatpush1.bf16.msra.mxu0 %v8110
        %9225 = vmatprep.subr.bf16.mxu0 %v8107
        %9226 = vmatpush1.bf16.msra.mxu0 %v8106
        %9227 = vmatprep.subr.bf16.mxu0 %v8103
        %9228 = vmatpush1.bf16.msra.mxu0 %v8102
        %9229 = vmatprep.subr.bf16.mxu0 %v8099
        %9230 = vmatpush1.bf16.msra.mxu0 %v8098
        %9231 = vmatprep.subr.bf16.mxu0 %v8159
        %9232 = vmatpush2.bf16.msra.mxu0 %v8158
        %9233 = vmatprep.subr.bf16.mxu0 %v8155
        %9234 = vmatpush2.bf16.msra.mxu0 %v8154
        %9235 = vmatprep.subr.bf16.mxu0 %v8151
        %9236 = vmatpush2.bf16.msra.mxu0 %v8150
        %9237 = vmatprep.subr.bf16.mxu0 %v8147
        %9238 = vmatpush2.bf16.msra.mxu0 %v8146
        %9239 = vmatprep.subr.bf16.mxu0 %v8143
        %9240 = vmatpush2.bf16.msra.mxu0 %v8142
        %9241 = vmatprep.subr.bf16.mxu0 %v8139
        %9242 = vmatpush2.bf16.msra.mxu0 %v8138
        %9243 = vmatprep.subr.bf16.mxu0 %v8135
        %9244 = vmatpush2.bf16.msra.mxu0 %v8134
        %9245 = vmatprep.subr.bf16.mxu0 %v8131
        %9246 = vmatpush2.bf16.msra.mxu0 %v8130
        %9247 = vmatprep.mubr.bf16.mxu0 %v5022
        %9248 = vmatmul.mubr.bf16.gmra.mxu0 %v5021
        %v9249 = vpop.f32.mrf.mxu0
        %v9250 = vadd.f32 %v9209, %v9249
        %v9251 = vpop.f32.mrf.mxu0
        %v9252 = vadd.f32 %v9211, %v9251
        %v9253 = vpop.f32.mrf.mxu0
        %v9254 = vpop.f32.mrf.mxu0
        %9255 = vdwg.mxu0
        %9256 = vmatprep.subr.bf16.mxu0 %v8191
        %9257 = vmatpush1.bf16.msra.mxu0 %v8190
        %9258 = vmatprep.subr.bf16.mxu0 %v8187
        %9259 = vmatpush1.bf16.msra.mxu0 %v8186
        %9260 = vmatprep.subr.bf16.mxu0 %v8183
        %9261 = vmatpush1.bf16.msra.mxu0 %v8182
        %9262 = vmatprep.subr.bf16.mxu0 %v8179
        %9263 = vmatpush1.bf16.msra.mxu0 %v8178
        %9264 = vmatprep.subr.bf16.mxu0 %v8175
        %9265 = vmatpush1.bf16.msra.mxu0 %v8174
        %9266 = vmatprep.subr.bf16.mxu0 %v8171
        %9267 = vmatpush1.bf16.msra.mxu0 %v8170
        %9268 = vmatprep.subr.bf16.mxu0 %v8167
        %9269 = vmatpush1.bf16.msra.mxu0 %v8166
        %9270 = vmatprep.subr.bf16.mxu0 %v8163
        %9271 = vmatpush1.bf16.msra.mxu0 %v8162
        %9272 = vmatprep.subr.bf16.mxu0 %v8223
        %9273 = vmatpush2.bf16.msra.mxu0 %v8222
        %9274 = vmatprep.subr.bf16.mxu0 %v8219
        %9275 = vmatpush2.bf16.msra.mxu0 %v8218
        %9276 = vmatprep.subr.bf16.mxu0 %v8215
        %9277 = vmatpush2.bf16.msra.mxu0 %v8214
        %9278 = vmatprep.subr.bf16.mxu0 %v8211
        %9279 = vmatpush2.bf16.msra.mxu0 %v8210
        %9280 = vmatprep.subr.bf16.mxu0 %v8207
        %9281 = vmatpush2.bf16.msra.mxu0 %v8206
        %9282 = vmatprep.subr.bf16.mxu0 %v8203
        %9283 = vmatpush2.bf16.msra.mxu0 %v8202
        %9284 = vmatprep.subr.bf16.mxu0 %v8199
        %9285 = vmatpush2.bf16.msra.mxu0 %v8198
        %9286 = vmatprep.subr.bf16.mxu0 %v8195
        %9287 = vmatpush2.bf16.msra.mxu0 %v8194
        %9288 = vmatprep.mubr.bf16.mxu0 %v5024
        %9289 = vmatmul.mubr.bf16.gmra.mxu0 %v5023
        %v9290 = vpop.f32.mrf.mxu0
        %v9291 = vadd.f32 %v9250, %v9290
        %v9292 = vpop.f32.mrf.mxu0
        %v9293 = vadd.f32 %v9252, %v9292
        %v9294 = vpop.f32.mrf.mxu0
        %v9295 = vpop.f32.mrf.mxu0
        %9296 = vdwg.mxu0
        %9297 = vmatprep.subr.bf16.mxu0 %v7617
        %9298 = vmatpush1.bf16.msra.mxu0 %v7616
        %9299 = vmatprep.subr.bf16.mxu0 %v7613
        %9300 = vmatpush1.bf16.msra.mxu0 %v7612
        %9301 = vmatprep.subr.bf16.mxu0 %v7609
        %9302 = vmatpush1.bf16.msra.mxu0 %v7608
        %9303 = vmatprep.subr.bf16.mxu0 %v7605
        %9304 = vmatpush1.bf16.msra.mxu0 %v7604
        %9305 = vmatprep.subr.bf16.mxu0 %v7601
        %9306 = vmatpush1.bf16.msra.mxu0 %v7600
        %9307 = vmatprep.subr.bf16.mxu0 %v7597
        %9308 = vmatpush1.bf16.msra.mxu0 %v7596
        %9309 = vmatprep.subr.bf16.mxu0 %v7593
        %9310 = vmatpush1.bf16.msra.mxu0 %v7592
        %9311 = vmatprep.subr.bf16.mxu0 %v7589
        %9312 = vmatpush1.bf16.msra.mxu0 %v7588
        %9313 = vmatprep.subr.bf16.mxu0 %v7649
        %9314 = vmatpush2.bf16.msra.mxu0 %v7648
        %9315 = vmatprep.subr.bf16.mxu0 %v7645
        %9316 = vmatpush2.bf16.msra.mxu0 %v7644
        %9317 = vmatprep.subr.bf16.mxu0 %v7641
        %9318 = vmatpush2.bf16.msra.mxu0 %v7640
        %9319 = vmatprep.subr.bf16.mxu0 %v7637
        %9320 = vmatpush2.bf16.msra.mxu0 %v7636
        %9321 = vmatprep.subr.bf16.mxu0 %v7633
        %9322 = vmatpush2.bf16.msra.mxu0 %v7632
        %9323 = vmatprep.subr.bf16.mxu0 %v7629
        %9324 = vmatpush2.bf16.msra.mxu0 %v7628
        %9325 = vmatprep.subr.bf16.mxu0 %v7625
        %9326 = vmatpush2.bf16.msra.mxu0 %v7624
        %9327 = vmatprep.subr.bf16.mxu0 %v7621
        %9328 = vmatpush2.bf16.msra.mxu0 %v7620
        %9329 = vmatprep.mubr.bf16.mxu0 %v5006
        %9330 = vmatmul.mubr.bf16.gmra.mxu0 %v5005
        %v9331 = vpop.f32.mrf.mxu0
        %v9332 = vadd.f32 %v8878, %v9331
        %v9333 = vpop.f32.mrf.mxu0
        %v9334 = vadd.f32 %v8882, %v9333
        %v9335 = vpop.f32.mrf.mxu0
        %v9336 = vpop.f32.mrf.mxu0
        %9337 = vdwg.mxu0
        %9338 = vmatprep.subr.bf16.mxu0 %v7681
        %9339 = vmatpush1.bf16.msra.mxu0 %v7680
        %9340 = vmatprep.subr.bf16.mxu0 %v7677
        %9341 = vmatpush1.bf16.msra.mxu0 %v7676
        %9342 = vmatprep.subr.bf16.mxu0 %v7673
        %9343 = vmatpush1.bf16.msra.mxu0 %v7672
        %9344 = vmatprep.subr.bf16.mxu0 %v7669
        %9345 = vmatpush1.bf16.msra.mxu0 %v7668
        %9346 = vmatprep.subr.bf16.mxu0 %v7665
        %9347 = vmatpush1.bf16.msra.mxu0 %v7664
        %9348 = vmatprep.subr.bf16.mxu0 %v7661
        %9349 = vmatpush1.bf16.msra.mxu0 %v7660
        %9350 = vmatprep.subr.bf16.mxu0 %v7657
        %9351 = vmatpush1.bf16.msra.mxu0 %v7656
        %9352 = vmatprep.subr.bf16.mxu0 %v7653
        %9353 = vmatpush1.bf16.msra.mxu0 %v7652
        %9354 = vmatprep.subr.bf16.mxu0 %v7713
        %9355 = vmatpush2.bf16.msra.mxu0 %v7712
        %9356 = vmatprep.subr.bf16.mxu0 %v7709
        %9357 = vmatpush2.bf16.msra.mxu0 %v7708
        %9358 = vmatprep.subr.bf16.mxu0 %v7705
        %9359 = vmatpush2.bf16.msra.mxu0 %v7704
        %9360 = vmatprep.subr.bf16.mxu0 %v7701
        %9361 = vmatpush2.bf16.msra.mxu0 %v7700
        %9362 = vmatprep.subr.bf16.mxu0 %v7697
        %9363 = vmatpush2.bf16.msra.mxu0 %v7696
        %9364 = vmatprep.subr.bf16.mxu0 %v7693
        %9365 = vmatpush2.bf16.msra.mxu0 %v7692
        %9366 = vmatprep.subr.bf16.mxu0 %v7689
        %9367 = vmatpush2.bf16.msra.mxu0 %v7688
        %9368 = vmatprep.subr.bf16.mxu0 %v7685
        %9369 = vmatpush2.bf16.msra.mxu0 %v7684
        %9370 = vmatprep.mubr.bf16.mxu0 %v5008
        %9371 = vmatmul.mubr.bf16.gmra.mxu0 %v5007
        %v9372 = vpop.f32.mrf.mxu0
        %v9373 = vadd.f32 %v9332, %v9372
        %v9374 = vpop.f32.mrf.mxu0
        %v9375 = vadd.f32 %v9334, %v9374
        %v9376 = vpop.f32.mrf.mxu0
        %v9377 = vpop.f32.mrf.mxu0
        %9378 = vdwg.mxu0
        %9379 = vmatprep.subr.bf16.mxu0 %v7745
        %9380 = vmatpush1.bf16.msra.mxu0 %v7744
        %9381 = vmatprep.subr.bf16.mxu0 %v7741
        %9382 = vmatpush1.bf16.msra.mxu0 %v7740
        %9383 = vmatprep.subr.bf16.mxu0 %v7737
        %9384 = vmatpush1.bf16.msra.mxu0 %v7736
        %9385 = vmatprep.subr.bf16.mxu0 %v7733
        %9386 = vmatpush1.bf16.msra.mxu0 %v7732
        %9387 = vmatprep.subr.bf16.mxu0 %v7729
        %9388 = vmatpush1.bf16.msra.mxu0 %v7728
        %9389 = vmatprep.subr.bf16.mxu0 %v7725
        %9390 = vmatpush1.bf16.msra.mxu0 %v7724
        %9391 = vmatprep.subr.bf16.mxu0 %v7721
        %9392 = vmatpush1.bf16.msra.mxu0 %v7720
        %9393 = vmatprep.subr.bf16.mxu0 %v7717
        %9394 = vmatpush1.bf16.msra.mxu0 %v7716
        %9395 = vmatprep.subr.bf16.mxu0 %v7777
        %9396 = vmatpush2.bf16.msra.mxu0 %v7776
        %9397 = vmatprep.subr.bf16.mxu0 %v7773
        %9398 = vmatpush2.bf16.msra.mxu0 %v7772
        %9399 = vmatprep.subr.bf16.mxu0 %v7769
        %9400 = vmatpush2.bf16.msra.mxu0 %v7768
        %9401 = vmatprep.subr.bf16.mxu0 %v7765
        %9402 = vmatpush2.bf16.msra.mxu0 %v7764
        %9403 = vmatprep.subr.bf16.mxu0 %v7761
        %9404 = vmatpush2.bf16.msra.mxu0 %v7760
        %9405 = vmatprep.subr.bf16.mxu0 %v7757
        %9406 = vmatpush2.bf16.msra.mxu0 %v7756
        %9407 = vmatprep.subr.bf16.mxu0 %v7753
        %9408 = vmatpush2.bf16.msra.mxu0 %v7752
        %9409 = vmatprep.subr.bf16.mxu0 %v7749
        %9410 = vmatpush2.bf16.msra.mxu0 %v7748
        %9411 = vmatprep.mubr.bf16.mxu0 %v5010
        %9412 = vmatmul.mubr.bf16.gmra.mxu0 %v5009
        %v9413 = vpop.f32.mrf.mxu0
        %v9414 = vadd.f32 %v9373, %v9413
        %v9415 = vpop.f32.mrf.mxu0
        %v9416 = vadd.f32 %v9375, %v9415
        %v9417 = vpop.f32.mrf.mxu0
        %v9418 = vpop.f32.mrf.mxu0
        %9419 = vdwg.mxu0
        %9420 = vmatprep.subr.bf16.mxu0 %v7809
        %9421 = vmatpush1.bf16.msra.mxu0 %v7808
        %9422 = vmatprep.subr.bf16.mxu0 %v7805
        %9423 = vmatpush1.bf16.msra.mxu0 %v7804
        %9424 = vmatprep.subr.bf16.mxu0 %v7801
        %9425 = vmatpush1.bf16.msra.mxu0 %v7800
        %9426 = vmatprep.subr.bf16.mxu0 %v7797
        %9427 = vmatpush1.bf16.msra.mxu0 %v7796
        %9428 = vmatprep.subr.bf16.mxu0 %v7793
        %9429 = vmatpush1.bf16.msra.mxu0 %v7792
        %9430 = vmatprep.subr.bf16.mxu0 %v7789
        %9431 = vmatpush1.bf16.msra.mxu0 %v7788
        %9432 = vmatprep.subr.bf16.mxu0 %v7785
        %9433 = vmatpush1.bf16.msra.mxu0 %v7784
        %9434 = vmatprep.subr.bf16.mxu0 %v7781
        %9435 = vmatpush1.bf16.msra.mxu0 %v7780
        %9436 = vmatprep.subr.bf16.mxu0 %v7841
        %9437 = vmatpush2.bf16.msra.mxu0 %v7840
        %9438 = vmatprep.subr.bf16.mxu0 %v7837
        %9439 = vmatpush2.bf16.msra.mxu0 %v7836
        %9440 = vmatprep.subr.bf16.mxu0 %v7833
        %9441 = vmatpush2.bf16.msra.mxu0 %v7832
        %9442 = vmatprep.subr.bf16.mxu0 %v7829
        %9443 = vmatpush2.bf16.msra.mxu0 %v7828
        %9444 = vmatprep.subr.bf16.mxu0 %v7825
        %9445 = vmatpush2.bf16.msra.mxu0 %v7824
        %9446 = vmatprep.subr.bf16.mxu0 %v7821
        %9447 = vmatpush2.bf16.msra.mxu0 %v7820
        %9448 = vmatprep.subr.bf16.mxu0 %v7817
        %9449 = vmatpush2.bf16.msra.mxu0 %v7816
        %9450 = vmatprep.subr.bf16.mxu0 %v7813
        %9451 = vmatpush2.bf16.msra.mxu0 %v7812
        %9452 = vmatprep.mubr.bf16.mxu0 %v5012
        %9453 = vmatmul.mubr.bf16.gmra.mxu0 %v5011
        %v9454 = vpop.f32.mrf.mxu0
        %v9455 = vadd.f32 %v9414, %v9454
        %v9456 = vpop.f32.mrf.mxu0
        %v9457 = vadd.f32 %v9416, %v9456
        %v9458 = vpop.f32.mrf.mxu0
        %v9459 = vpop.f32.mrf.mxu0
        %9460 = vdwg.mxu0
        %9461 = vmatprep.subr.bf16.mxu0 %v7873
        %9462 = vmatpush1.bf16.msra.mxu0 %v7872
        %9463 = vmatprep.subr.bf16.mxu0 %v7869
        %9464 = vmatpush1.bf16.msra.mxu0 %v7868
        %9465 = vmatprep.subr.bf16.mxu0 %v7865
        %9466 = vmatpush1.bf16.msra.mxu0 %v7864
        %9467 = vmatprep.subr.bf16.mxu0 %v7861
        %9468 = vmatpush1.bf16.msra.mxu0 %v7860
        %9469 = vmatprep.subr.bf16.mxu0 %v7857
        %9470 = vmatpush1.bf16.msra.mxu0 %v7856
        %9471 = vmatprep.subr.bf16.mxu0 %v7853
        %9472 = vmatpush1.bf16.msra.mxu0 %v7852
        %9473 = vmatprep.subr.bf16.mxu0 %v7849
        %9474 = vmatpush1.bf16.msra.mxu0 %v7848
        %9475 = vmatprep.subr.bf16.mxu0 %v7845
        %9476 = vmatpush1.bf16.msra.mxu0 %v7844
        %9477 = vmatprep.subr.bf16.mxu0 %v7905
        %9478 = vmatpush2.bf16.msra.mxu0 %v7904
        %9479 = vmatprep.subr.bf16.mxu0 %v7901
        %9480 = vmatpush2.bf16.msra.mxu0 %v7900
        %9481 = vmatprep.subr.bf16.mxu0 %v7897
        %9482 = vmatpush2.bf16.msra.mxu0 %v7896
        %9483 = vmatprep.subr.bf16.mxu0 %v7893
        %9484 = vmatpush2.bf16.msra.mxu0 %v7892
        %9485 = vmatprep.subr.bf16.mxu0 %v7889
        %9486 = vmatpush2.bf16.msra.mxu0 %v7888
        %9487 = vmatprep.subr.bf16.mxu0 %v7885
        %9488 = vmatpush2.bf16.msra.mxu0 %v7884
        %9489 = vmatprep.subr.bf16.mxu0 %v7881
        %9490 = vmatpush2.bf16.msra.mxu0 %v7880
        %9491 = vmatprep.subr.bf16.mxu0 %v7877
        %9492 = vmatpush2.bf16.msra.mxu0 %v7876
        %9493 = vmatprep.mubr.bf16.mxu0 %v5014
        %9494 = vmatmul.mubr.bf16.gmra.mxu0 %v5013
        %v9495 = vpop.f32.mrf.mxu0
        %v9496 = vadd.f32 %v9455, %v9495
        %v9497 = vpop.f32.mrf.mxu0
        %v9498 = vadd.f32 %v9457, %v9497
        %v9499 = vpop.f32.mrf.mxu0
        %v9500 = vpop.f32.mrf.mxu0
        %9501 = vdwg.mxu0
        %9502 = vmatprep.subr.bf16.mxu0 %v7937
        %9503 = vmatpush1.bf16.msra.mxu0 %v7936
        %9504 = vmatprep.subr.bf16.mxu0 %v7933
        %9505 = vmatpush1.bf16.msra.mxu0 %v7932
        %9506 = vmatprep.subr.bf16.mxu0 %v7929
        %9507 = vmatpush1.bf16.msra.mxu0 %v7928
        %9508 = vmatprep.subr.bf16.mxu0 %v7925
        %9509 = vmatpush1.bf16.msra.mxu0 %v7924
        %9510 = vmatprep.subr.bf16.mxu0 %v7921
        %9511 = vmatpush1.bf16.msra.mxu0 %v7920
        %9512 = vmatprep.subr.bf16.mxu0 %v7917
        %9513 = vmatpush1.bf16.msra.mxu0 %v7916
        %9514 = vmatprep.subr.bf16.mxu0 %v7913
        %9515 = vmatpush1.bf16.msra.mxu0 %v7912
        %9516 = vmatprep.subr.bf16.mxu0 %v7909
        %9517 = vmatpush1.bf16.msra.mxu0 %v7908
        %9518 = vmatprep.subr.bf16.mxu0 %v7969
        %9519 = vmatpush2.bf16.msra.mxu0 %v7968
        %9520 = vmatprep.subr.bf16.mxu0 %v7965
        %9521 = vmatpush2.bf16.msra.mxu0 %v7964
        %9522 = vmatprep.subr.bf16.mxu0 %v7961
        %9523 = vmatpush2.bf16.msra.mxu0 %v7960
        %9524 = vmatprep.subr.bf16.mxu0 %v7957
        %9525 = vmatpush2.bf16.msra.mxu0 %v7956
        %9526 = vmatprep.subr.bf16.mxu0 %v7953
        %9527 = vmatpush2.bf16.msra.mxu0 %v7952
        %9528 = vmatprep.subr.bf16.mxu0 %v7949
        %9529 = vmatpush2.bf16.msra.mxu0 %v7948
        %9530 = vmatprep.subr.bf16.mxu0 %v7945
        %9531 = vmatpush2.bf16.msra.mxu0 %v7944
        %9532 = vmatprep.subr.bf16.mxu0 %v7941
        %9533 = vmatpush2.bf16.msra.mxu0 %v7940
        %9534 = vmatprep.mubr.bf16.mxu0 %v5016
        %9535 = vmatmul.mubr.bf16.gmra.mxu0 %v5015
        %v9536 = vpop.f32.mrf.mxu0
        %v9537 = vadd.f32 %v9496, %v9536
        %v9538 = vpop.f32.mrf.mxu0
        %v9539 = vadd.f32 %v9498, %v9538
        %v9540 = vpop.f32.mrf.mxu0
        %v9541 = vpop.f32.mrf.mxu0
        %9542 = vdwg.mxu0
        %9543 = vmatprep.subr.bf16.mxu0 %v8001
        %9544 = vmatpush1.bf16.msra.mxu0 %v8000
        %9545 = vmatprep.subr.bf16.mxu0 %v7997
        %9546 = vmatpush1.bf16.msra.mxu0 %v7996
        %9547 = vmatprep.subr.bf16.mxu0 %v7993
        %9548 = vmatpush1.bf16.msra.mxu0 %v7992
        %9549 = vmatprep.subr.bf16.mxu0 %v7989
        %9550 = vmatpush1.bf16.msra.mxu0 %v7988
        %9551 = vmatprep.subr.bf16.mxu0 %v7985
        %9552 = vmatpush1.bf16.msra.mxu0 %v7984
        %9553 = vmatprep.subr.bf16.mxu0 %v7981
        %9554 = vmatpush1.bf16.msra.mxu0 %v7980
        %9555 = vmatprep.subr.bf16.mxu0 %v7977
        %9556 = vmatpush1.bf16.msra.mxu0 %v7976
        %9557 = vmatprep.subr.bf16.mxu0 %v7973
        %9558 = vmatpush1.bf16.msra.mxu0 %v7972
        %9559 = vmatprep.subr.bf16.mxu0 %v8033
        %9560 = vmatpush2.bf16.msra.mxu0 %v8032
        %9561 = vmatprep.subr.bf16.mxu0 %v8029
        %9562 = vmatpush2.bf16.msra.mxu0 %v8028
        %9563 = vmatprep.subr.bf16.mxu0 %v8025
        %9564 = vmatpush2.bf16.msra.mxu0 %v8024
        %9565 = vmatprep.subr.bf16.mxu0 %v8021
        %9566 = vmatpush2.bf16.msra.mxu0 %v8020
        %9567 = vmatprep.subr.bf16.mxu0 %v8017
        %9568 = vmatpush2.bf16.msra.mxu0 %v8016
        %9569 = vmatprep.subr.bf16.mxu0 %v8013
        %9570 = vmatpush2.bf16.msra.mxu0 %v8012
        %9571 = vmatprep.subr.bf16.mxu0 %v8009
        %9572 = vmatpush2.bf16.msra.mxu0 %v8008
        %9573 = vmatprep.subr.bf16.mxu0 %v8005
        %9574 = vmatpush2.bf16.msra.mxu0 %v8004
        %9575 = vmatprep.mubr.bf16.mxu0 %v5018
        %9576 = vmatmul.mubr.bf16.gmra.mxu0 %v5017
        %v9577 = vpop.f32.mrf.mxu0
        %v9578 = vadd.f32 %v9537, %v9577
        %v9579 = vpop.f32.mrf.mxu0
        %v9580 = vadd.f32 %v9539, %v9579
        %v9581 = vpop.f32.mrf.mxu0
        %v9582 = vpop.f32.mrf.mxu0
        %9583 = vdwg.mxu0
        %9584 = vmatprep.subr.bf16.mxu0 %v8065
        %9585 = vmatpush1.bf16.msra.mxu0 %v8064
        %9586 = vmatprep.subr.bf16.mxu0 %v8061
        %9587 = vmatpush1.bf16.msra.mxu0 %v8060
        %9588 = vmatprep.subr.bf16.mxu0 %v8057
        %9589 = vmatpush1.bf16.msra.mxu0 %v8056
        %9590 = vmatprep.subr.bf16.mxu0 %v8053
        %9591 = vmatpush1.bf16.msra.mxu0 %v8052
        %9592 = vmatprep.subr.bf16.mxu0 %v8049
        %9593 = vmatpush1.bf16.msra.mxu0 %v8048
        %9594 = vmatprep.subr.bf16.mxu0 %v8045
        %9595 = vmatpush1.bf16.msra.mxu0 %v8044
        %9596 = vmatprep.subr.bf16.mxu0 %v8041
        %9597 = vmatpush1.bf16.msra.mxu0 %v8040
        %9598 = vmatprep.subr.bf16.mxu0 %v8037
        %9599 = vmatpush1.bf16.msra.mxu0 %v8036
        %9600 = vmatprep.subr.bf16.mxu0 %v8097
        %9601 = vmatpush2.bf16.msra.mxu0 %v8096
        %9602 = vmatprep.subr.bf16.mxu0 %v8093
        %9603 = vmatpush2.bf16.msra.mxu0 %v8092
        %9604 = vmatprep.subr.bf16.mxu0 %v8089
        %9605 = vmatpush2.bf16.msra.mxu0 %v8088
        %9606 = vmatprep.subr.bf16.mxu0 %v8085
        %9607 = vmatpush2.bf16.msra.mxu0 %v8084
        %9608 = vmatprep.subr.bf16.mxu0 %v8081
        %9609 = vmatpush2.bf16.msra.mxu0 %v8080
        %9610 = vmatprep.subr.bf16.mxu0 %v8077
        %9611 = vmatpush2.bf16.msra.mxu0 %v8076
        %9612 = vmatprep.subr.bf16.mxu0 %v8073
        %9613 = vmatpush2.bf16.msra.mxu0 %v8072
        %9614 = vmatprep.subr.bf16.mxu0 %v8069
        %9615 = vmatpush2.bf16.msra.mxu0 %v8068
        %9616 = vmatprep.mubr.bf16.mxu0 %v5020
        %9617 = vmatmul.mubr.bf16.gmra.mxu0 %v5019
        %v9618 = vpop.f32.mrf.mxu0
        %v9619 = vadd.f32 %v9578, %v9618
        %v9620 = vpop.f32.mrf.mxu0
        %v9621 = vadd.f32 %v9580, %v9620
        %v9622 = vpop.f32.mrf.mxu0
        %v9623 = vpop.f32.mrf.mxu0
        %9624 = vdwg.mxu0
        %9625 = vmatprep.subr.bf16.mxu0 %v8129
        %9626 = vmatpush1.bf16.msra.mxu0 %v8128
        %9627 = vmatprep.subr.bf16.mxu0 %v8125
        %9628 = vmatpush1.bf16.msra.mxu0 %v8124
        %9629 = vmatprep.subr.bf16.mxu0 %v8121
        %9630 = vmatpush1.bf16.msra.mxu0 %v8120
        %9631 = vmatprep.subr.bf16.mxu0 %v8117
        %9632 = vmatpush1.bf16.msra.mxu0 %v8116
        %9633 = vmatprep.subr.bf16.mxu0 %v8113
        %9634 = vmatpush1.bf16.msra.mxu0 %v8112
        %9635 = vmatprep.subr.bf16.mxu0 %v8109
        %9636 = vmatpush1.bf16.msra.mxu0 %v8108
        %9637 = vmatprep.subr.bf16.mxu0 %v8105
        %9638 = vmatpush1.bf16.msra.mxu0 %v8104
        %9639 = vmatprep.subr.bf16.mxu0 %v8101
        %9640 = vmatpush1.bf16.msra.mxu0 %v8100
        %9641 = vmatprep.subr.bf16.mxu0 %v8161
        %9642 = vmatpush2.bf16.msra.mxu0 %v8160
        %9643 = vmatprep.subr.bf16.mxu0 %v8157
        %9644 = vmatpush2.bf16.msra.mxu0 %v8156
        %9645 = vmatprep.subr.bf16.mxu0 %v8153
        %9646 = vmatpush2.bf16.msra.mxu0 %v8152
        %9647 = vmatprep.subr.bf16.mxu0 %v8149
        %9648 = vmatpush2.bf16.msra.mxu0 %v8148
        %9649 = vmatprep.subr.bf16.mxu0 %v8145
        %9650 = vmatpush2.bf16.msra.mxu0 %v8144
        %9651 = vmatprep.subr.bf16.mxu0 %v8141
        %9652 = vmatpush2.bf16.msra.mxu0 %v8140
        %9653 = vmatprep.subr.bf16.mxu0 %v8137
        %9654 = vmatpush2.bf16.msra.mxu0 %v8136
        %9655 = vmatprep.subr.bf16.mxu0 %v8133
        %9656 = vmatpush2.bf16.msra.mxu0 %v8132
        %9657 = vmatprep.mubr.bf16.mxu0 %v5022
        %9658 = vmatmul.mubr.bf16.gmra.mxu0 %v5021
        %v9659 = vpop.f32.mrf.mxu0
        %v9660 = vadd.f32 %v9619, %v9659
        %v9661 = vpop.f32.mrf.mxu0
        %v9662 = vadd.f32 %v9621, %v9661
        %v9663 = vpop.f32.mrf.mxu0
        %v9664 = vpop.f32.mrf.mxu0
        %9665 = vdwg.mxu0
        %9666 = vmatprep.subr.bf16.mxu0 %v8193
        %9667 = vmatpush1.bf16.msra.mxu0 %v8192
        %9668 = vmatprep.subr.bf16.mxu0 %v8189
        %9669 = vmatpush1.bf16.msra.mxu0 %v8188
        %9670 = vmatprep.subr.bf16.mxu0 %v8185
        %9671 = vmatpush1.bf16.msra.mxu0 %v8184
        %9672 = vmatprep.subr.bf16.mxu0 %v8181
        %9673 = vmatpush1.bf16.msra.mxu0 %v8180
        %9674 = vmatprep.subr.bf16.mxu0 %v8177
        %9675 = vmatpush1.bf16.msra.mxu0 %v8176
        %9676 = vmatprep.subr.bf16.mxu0 %v8173
        %9677 = vmatpush1.bf16.msra.mxu0 %v8172
        %9678 = vmatprep.subr.bf16.mxu0 %v8169
        %9679 = vmatpush1.bf16.msra.mxu0 %v8168
        %9680 = vmatprep.subr.bf16.mxu0 %v8165
        %9681 = vmatpush1.bf16.msra.mxu0 %v8164
        %9682 = vmatprep.subr.bf16.mxu0 %v8225
        %9683 = vmatpush2.bf16.msra.mxu0 %v8224
        %9684 = vmatprep.subr.bf16.mxu0 %v8221
        %9685 = vmatpush2.bf16.msra.mxu0 %v8220
        %9686 = vmatprep.subr.bf16.mxu0 %v8217
        %9687 = vmatpush2.bf16.msra.mxu0 %v8216
        %9688 = vmatprep.subr.bf16.mxu0 %v8213
        %9689 = vmatpush2.bf16.msra.mxu0 %v8212
        %9690 = vmatprep.subr.bf16.mxu0 %v8209
        %9691 = vmatpush2.bf16.msra.mxu0 %v8208
        %9692 = vmatprep.subr.bf16.mxu0 %v8205
        %9693 = vmatpush2.bf16.msra.mxu0 %v8204
        %9694 = vmatprep.subr.bf16.mxu0 %v8201
        %9695 = vmatpush2.bf16.msra.mxu0 %v8200
        %9696 = vmatprep.subr.bf16.mxu0 %v8197
        %9697 = vmatpush2.bf16.msra.mxu0 %v8196
        %9698 = vmatprep.mubr.bf16.mxu0 %v5024
        %9699 = vmatmul.mubr.bf16.gmra.mxu0 %v5023
        %v9700 = vpop.f32.mrf.mxu0
        %v9701 = vadd.f32 %v9660, %v9700
        %v9702 = vpop.f32.mrf.mxu0
        %v9703 = vadd.f32 %v9662, %v9702
        %v9704 = vpop.f32.mrf.mxu0
        %v9705 = vpop.f32.mrf.mxu0
        %9706 = vdwg.mxu0
        %v9707 = vmax.f32 %v9291, 0.0
        %v9708 = vmax.f32 %v9293, 0.0
        %v9709 = vmax.f32 %v9701, 0.0
        %v9710 = vmax.f32 %v9703, 0.0
        %v9711 = vpack.c.bf16 %v9707, %v9707
        %v9712 = vpack.c.bf16 %v9708, %v9708
        %v9713 = vpack.c.bf16 %v9709, %v9709
        %v9714 = vpack.c.bf16 %v9710, %v9710
        %v9715 = vld [vmem:[%s9] sm:$0xf]
        %v9716 = vld [vmem:[%s9 + $0x4] sm:$0xf]
        %v9717 = vld [vmem:[%s9 + $0x8] sm:$0xf]
        %v9718 = vld [vmem:[%s9 + $0xc] sm:$0xf]
        %v9719 = vld [vmem:[%s9 + $0x10] sm:$0xf]
        %v9720 = vld [vmem:[%s9 + $0x14] sm:$0xf]
        %v9721 = vld [vmem:[%s9 + $0x18] sm:$0xf]
        %v9722 = vld [vmem:[%s9 + $0x1c] sm:$0xf]
        %v9723 = vld [vmem:[%s9 + $0x20] sm:$0xf]
        %v9724 = vld [vmem:[%s9 + $0x24] sm:$0xf]
        %v9725 = vld [vmem:[%s9 + $0x28] sm:$0xf]
        %v9726 = vld [vmem:[%s9 + $0x2c] sm:$0xf]
        %v9727 = vld [vmem:[%s9 + $0x30] sm:$0xf]
        %v9728 = vld [vmem:[%s9 + $0x34] sm:$0xf]
        %v9729 = vld [vmem:[%s9 + $0x38] sm:$0xf]
        %v9730 = vld [vmem:[%s9 + $0x3c] sm:$0xf]
        %v9731 = vld [vmem:[%s9 + $0x40] sm:$0xf]
        %v9732 = vld [vmem:[%s9 + $0x44] sm:$0xf]
        %v9733 = vld [vmem:[%s9 + $0x48] sm:$0xf]
        %v9734 = vld [vmem:[%s9 + $0x4c] sm:$0xf]
        %v9735 = vld [vmem:[%s9 + $0x50] sm:$0xf]
        %v9736 = vld [vmem:[%s9 + $0x54] sm:$0xf]
        %v9737 = vld [vmem:[%s9 + $0x58] sm:$0xf]
        %v9738 = vld [vmem:[%s9 + $0x5c] sm:$0xf]
        %v9739 = vld [vmem:[%s9 + $0x60] sm:$0xf]
        %v9740 = vld [vmem:[%s9 + $0x64] sm:$0xf]
        %v9741 = vld [vmem:[%s9 + $0x68] sm:$0xf]
        %v9742 = vld [vmem:[%s9 + $0x6c] sm:$0xf]
        %v9743 = vld [vmem:[%s9 + $0x70] sm:$0xf]
        %v9744 = vld [vmem:[%s9 + $0x74] sm:$0xf]
        %v9745 = vld [vmem:[%s9 + $0x78] sm:$0xf]
        %v9746 = vld [vmem:[%s9 + $0x7c] sm:$0xf]
        %v9747 = vld [vmem:[%s9 + $0x80] sm:$0xf]
        %v9748 = vld [vmem:[%s9 + $0x84] sm:$0xf]
        %v9749 = vld [vmem:[%s9 + $0x88] sm:$0xf]
        %v9750 = vld [vmem:[%s9 + $0x8c] sm:$0xf]
        %v9751 = vld [vmem:[%s9 + $0x90] sm:$0xf]
        %v9752 = vld [vmem:[%s9 + $0x94] sm:$0xf]
        %v9753 = vld [vmem:[%s9 + $0x98] sm:$0xf]
        %v9754 = vld [vmem:[%s9 + $0x9c] sm:$0xf]
        %v9755 = vld [vmem:[%s9 + $0xa0] sm:$0xf]
        %v9756 = vld [vmem:[%s9 + $0xa4] sm:$0xf]
        %v9757 = vld [vmem:[%s9 + $0xa8] sm:$0xf]
        %v9758 = vld [vmem:[%s9 + $0xac] sm:$0xf]
        %v9759 = vld [vmem:[%s9 + $0xb0] sm:$0xf]
        %v9760 = vld [vmem:[%s9 + $0xb4] sm:$0xf]
        %v9761 = vld [vmem:[%s9 + $0xb8] sm:$0xf]
        %v9762 = vld [vmem:[%s9 + $0xbc] sm:$0xf]
        %v9763 = vld [vmem:[%s9 + $0xc0] sm:$0xf]
        %v9764 = vld [vmem:[%s9 + $0xc4] sm:$0xf]
        %v9765 = vld [vmem:[%s9 + $0xc8] sm:$0xf]
        %v9766 = vld [vmem:[%s9 + $0xcc] sm:$0xf]
        %v9767 = vld [vmem:[%s9 + $0xd0] sm:$0xf]
        %v9768 = vld [vmem:[%s9 + $0xd4] sm:$0xf]
        %v9769 = vld [vmem:[%s9 + $0xd8] sm:$0xf]
        %v9770 = vld [vmem:[%s9 + $0xdc] sm:$0xf]
        %v9771 = vld [vmem:[%s9 + $0xe0] sm:$0xf]
        %v9772 = vld [vmem:[%s9 + $0xe4] sm:$0xf]
        %v9773 = vld [vmem:[%s9 + $0xe8] sm:$0xf]
        %v9774 = vld [vmem:[%s9 + $0xec] sm:$0xf]
        %v9775 = vld [vmem:[%s9 + $0xf0] sm:$0xf]
        %v9776 = vld [vmem:[%s9 + $0xf4] sm:$0xf]
        %v9777 = vld [vmem:[%s9 + $0xf8] sm:$0xf]
        %v9778 = vld [vmem:[%s9 + $0xfc] sm:$0xf]
        %v9779 = vld [vmem:[%s10] sm:$0x1]
        %v9844 = vunpack.c.l.b16 %v9715
        %v9845 = vunpack.c.l.b16 %v9716
        %v9846 = vunpack.c.l.b16 %v9717
        %v9847 = vunpack.c.l.b16 %v9718
        %v9848 = vunpack.c.l.b16 %v9719
        %v9849 = vunpack.c.l.b16 %v9720
        %v9850 = vunpack.c.l.b16 %v9721
        %v9851 = vunpack.c.l.b16 %v9722
        %v9852 = vunpack.c.l.b16 %v9723
        %v9853 = vunpack.c.l.b16 %v9724
        %v9854 = vunpack.c.l.b16 %v9725
        %v9855 = vunpack.c.l.b16 %v9726
        %v9856 = vunpack.c.l.b16 %v9727
        %v9857 = vunpack.c.l.b16 %v9728
        %v9858 = vunpack.c.l.b16 %v9729
        %v9859 = vunpack.c.l.b16 %v9730
        %v9860 = vunpack.c.l.b16 %v9731
        %v9861 = vunpack.c.l.b16 %v9732
        %v9862 = vunpack.c.l.b16 %v9733
        %v9863 = vunpack.c.l.b16 %v9734
        %v9864 = vunpack.c.l.b16 %v9735
        %v9865 = vunpack.c.l.b16 %v9736
        %v9866 = vunpack.c.l.b16 %v9737
        %v9867 = vunpack.c.l.b16 %v9738
        %v9868 = vunpack.c.l.b16 %v9739
        %v9869 = vunpack.c.l.b16 %v9740
        %v9870 = vunpack.c.l.b16 %v9741
        %v9871 = vunpack.c.l.b16 %v9742
        %v9872 = vunpack.c.l.b16 %v9743
        %v9873 = vunpack.c.l.b16 %v9744
        %v9874 = vunpack.c.l.b16 %v9745
        %v9875 = vunpack.c.l.b16 %v9746
        %v9876 = vunpack.c.l.b16 %v9747
        %v9877 = vunpack.c.l.b16 %v9748
        %v9878 = vunpack.c.l.b16 %v9749
        %v9879 = vunpack.c.l.b16 %v9750
        %v9880 = vunpack.c.l.b16 %v9751
        %v9881 = vunpack.c.l.b16 %v9752
        %v9882 = vunpack.c.l.b16 %v9753
        %v9883 = vunpack.c.l.b16 %v9754
        %v9884 = vunpack.c.l.b16 %v9755
        %v9885 = vunpack.c.l.b16 %v9756
        %v9886 = vunpack.c.l.b16 %v9757
        %v9887 = vunpack.c.l.b16 %v9758
        %v9888 = vunpack.c.l.b16 %v9759
        %v9889 = vunpack.c.l.b16 %v9760
        %v9890 = vunpack.c.l.b16 %v9761
        %v9891 = vunpack.c.l.b16 %v9762
        %v9892 = vunpack.c.l.b16 %v9763
        %v9893 = vunpack.c.l.b16 %v9764
        %v9894 = vunpack.c.l.b16 %v9765
        %v9895 = vunpack.c.l.b16 %v9766
        %v9896 = vunpack.c.l.b16 %v9767
        %v9897 = vunpack.c.l.b16 %v9768
        %v9898 = vunpack.c.l.b16 %v9769
        %v9899 = vunpack.c.l.b16 %v9770
        %v9900 = vunpack.c.l.b16 %v9771
        %v9901 = vunpack.c.l.b16 %v9772
        %v9902 = vunpack.c.l.b16 %v9773
        %v9903 = vunpack.c.l.b16 %v9774
        %v9904 = vunpack.c.l.b16 %v9775
        %v9905 = vunpack.c.l.b16 %v9776
        %v9906 = vunpack.c.l.b16 %v9777
        %v9907 = vunpack.c.l.b16 %v9778
        %v9908 = vpack.c.b16 %v9845, %v9844
        %v9909 = vpack.c.b16 %v9847, %v9846
        %v9910 = vpack.c.b16 %v9849, %v9848
        %v9911 = vpack.c.b16 %v9851, %v9850
        %v9912 = vpack.c.b16 %v9853, %v9852
        %v9913 = vpack.c.b16 %v9855, %v9854
        %v9914 = vpack.c.b16 %v9857, %v9856
        %v9915 = vpack.c.b16 %v9859, %v9858
        %v9916 = vpack.c.b16 %v9861, %v9860
        %v9917 = vpack.c.b16 %v9863, %v9862
        %v9918 = vpack.c.b16 %v9865, %v9864
        %v9919 = vpack.c.b16 %v9867, %v9866
        %v9920 = vpack.c.b16 %v9869, %v9868
        %v9921 = vpack.c.b16 %v9871, %v9870
        %v9922 = vpack.c.b16 %v9873, %v9872
        %v9923 = vpack.c.b16 %v9875, %v9874
        %v9924 = vpack.c.b16 %v9877, %v9876
        %v9925 = vpack.c.b16 %v9879, %v9878
        %v9926 = vpack.c.b16 %v9881, %v9880
        %v9927 = vpack.c.b16 %v9883, %v9882
        %v9928 = vpack.c.b16 %v9885, %v9884
        %v9929 = vpack.c.b16 %v9887, %v9886
        %v9930 = vpack.c.b16 %v9889, %v9888
        %v9931 = vpack.c.b16 %v9891, %v9890
        %v9932 = vpack.c.b16 %v9893, %v9892
        %v9933 = vpack.c.b16 %v9895, %v9894
        %v9934 = vpack.c.b16 %v9897, %v9896
        %v9935 = vpack.c.b16 %v9899, %v9898
        %v9936 = vpack.c.b16 %v9901, %v9900
        %v9937 = vpack.c.b16 %v9903, %v9902
        %v9938 = vpack.c.b16 %v9905, %v9904
        %v9939 = vpack.c.b16 %v9907, %v9906
        %9972 = vmatprep.subr.bf16.mxu0 0
        %9973 = vmatpush1.bf16.msra.mxu0 %v9915
        %9974 = vmatprep.subr.bf16.mxu0 0
        %9975 = vmatpush1.bf16.msra.mxu0 %v9914
        %9976 = vmatprep.subr.bf16.mxu0 0
        %9977 = vmatpush1.bf16.msra.mxu0 %v9913
        %9978 = vmatprep.subr.bf16.mxu0 0
        %9979 = vmatpush1.bf16.msra.mxu0 %v9912
        %9980 = vmatprep.subr.bf16.mxu0 0
        %9981 = vmatpush1.bf16.msra.mxu0 %v9911
        %9982 = vmatprep.subr.bf16.mxu0 0
        %9983 = vmatpush1.bf16.msra.mxu0 %v9910
        %9984 = vmatprep.subr.bf16.mxu0 0
        %9985 = vmatpush1.bf16.msra.mxu0 %v9909
        %9986 = vmatprep.subr.bf16.mxu0 0
        %9987 = vmatpush1.bf16.msra.mxu0 %v9908
        %9988 = vmatprep.subr.bf16.mxu0 0
        %9989 = vmatpush2.bf16.msra.mxu0 %v9923
        %9990 = vmatprep.subr.bf16.mxu0 0
        %9991 = vmatpush2.bf16.msra.mxu0 %v9922
        %9992 = vmatprep.subr.bf16.mxu0 0
        %9993 = vmatpush2.bf16.msra.mxu0 %v9921
        %9994 = vmatprep.subr.bf16.mxu0 0
        %9995 = vmatpush2.bf16.msra.mxu0 %v9920
        %9996 = vmatprep.subr.bf16.mxu0 0
        %9997 = vmatpush2.bf16.msra.mxu0 %v9919
        %9998 = vmatprep.subr.bf16.mxu0 0
        %9999 = vmatpush2.bf16.msra.mxu0 %v9918
        %10000 = vmatprep.subr.bf16.mxu0 0
        %10001 = vmatpush2.bf16.msra.mxu0 %v9917
        %10002 = vmatprep.subr.bf16.mxu0 0
        %10003 = vmatpush2.bf16.msra.mxu0 %v9916
        %10004 = vmatprep.mubr.bf16.mxu0 %v9712
        %10005 = vmatmul.mubr.bf16.gmra.mxu0 %v9711
        %v10006 = vpop.f32.mrf.mxu0
        %v10007 = vadd.f32 %v9779, %v10006
        %v10008 = vpop.f32.mrf.mxu0
        %v10009 = vpop.f32.mrf.mxu0
        %v10010 = vpop.f32.mrf.mxu0
        %10011 = vdwg.mxu0
        %10012 = vmatprep.subr.bf16.mxu0 0
        %10013 = vmatpush1.bf16.msra.mxu0 %v9931
        %10014 = vmatprep.subr.bf16.mxu0 0
        %10015 = vmatpush1.bf16.msra.mxu0 %v9930
        %10016 = vmatprep.subr.bf16.mxu0 0
        %10017 = vmatpush1.bf16.msra.mxu0 %v9929
        %10018 = vmatprep.subr.bf16.mxu0 0
        %10019 = vmatpush1.bf16.msra.mxu0 %v9928
        %10020 = vmatprep.subr.bf16.mxu0 0
        %10021 = vmatpush1.bf16.msra.mxu0 %v9927
        %10022 = vmatprep.subr.bf16.mxu0 0
        %10023 = vmatpush1.bf16.msra.mxu0 %v9926
        %10024 = vmatprep.subr.bf16.mxu0 0
        %10025 = vmatpush1.bf16.msra.mxu0 %v9925
        %10026 = vmatprep.subr.bf16.mxu0 0
        %10027 = vmatpush1.bf16.msra.mxu0 %v9924
        %10028 = vmatprep.subr.bf16.mxu0 0
        %10029 = vmatpush2.bf16.msra.mxu0 %v9939
        %10030 = vmatprep.subr.bf16.mxu0 0
        %10031 = vmatpush2.bf16.msra.mxu0 %v9938
        %10032 = vmatprep.subr.bf16.mxu0 0
        %10033 = vmatpush2.bf16.msra.mxu0 %v9937
        %10034 = vmatprep.subr.bf16.mxu0 0
        %10035 = vmatpush2.bf16.msra.mxu0 %v9936
        %10036 = vmatprep.subr.bf16.mxu0 0
        %10037 = vmatpush2.bf16.msra.mxu0 %v9935
        %10038 = vmatprep.subr.bf16.mxu0 0
        %10039 = vmatpush2.bf16.msra.mxu0 %v9934
        %10040 = vmatprep.subr.bf16.mxu0 0
        %10041 = vmatpush2.bf16.msra.mxu0 %v9933
        %10042 = vmatprep.subr.bf16.mxu0 0
        %10043 = vmatpush2.bf16.msra.mxu0 %v9932
        %10044 = vmatprep.mubr.bf16.mxu0 %v9714
        %10045 = vmatmul.mubr.bf16.gmra.mxu0 %v9713
        %v10046 = vpop.f32.mrf.mxu0
        %v10047 = vadd.f32 %v10007, %v10046
        %v10048 = vpop.f32.mrf.mxu0
        %v10049 = vpop.f32.mrf.mxu0
        %v10050 = vpop.f32.mrf.mxu0
        %10051 = vdwg.mxu0
        %10052 = vst [vmem:[%s378] sm:$0x1] %v10047
        %s10053 = sand.u32 %s269, 1
        %s10054 = scalar_lea.sflag [#allocation3], %s10053
        %s10055 = sand.u32 %s269, 1
        %s10056 = scalar_lea.vmem [#allocation2], %s10055
        // Predicated region
        $region65: #{_lambda_.1} parent=63 // pred_check
          %p10057 = pneg %p279
        $region66: #{_lambda_.1} parent=63 // pred_check_branch
          %10059 = sbr.rel (%p10057) target = $region68
        $region67: #{_lambda_.1} parent=63 // pred_region
          %s10061 = ssub.s32 16, 16
          %10062 = vsyncadd %s10054, %s10061
          %s10063 = smul.addr %s25, 16
          %s10064 = scalar_lea.hbm %s11, %s10063
          %s10066 = sshll.u32 %s10056, 4
          %s10067 = int_to_ptr.vmem [resolvable:$true] %s10066
          %10069 = dma.vmem_to_hbm [thread:$0]  %s10067, 16, %s10064, %s10054
        $region68: #{_lambda_.1} parent=63 // pred_fallthru
          _
      $region64: #{_lambda_.1} parent=5 // pred_fallthru
        _
      %p10070 = scmp.le.s32.totalorder 2, %s20
      // Predicated region
      $region69: #{_lambda_.1} parent=5 // pred_check
        %p10071 = pneg %p10070
      $region70: #{_lambda_.1} parent=5 // pred_check_branch
        %10073 = sbr.rel (%p10071) target = $region72
      $region71: #{_lambda_.1} parent=5 // pred_region
        %s10074 = ssub.s32 %s20, 2
        // Predicated region
        $region73: #{_lambda_.1} parent=71 // pred_check
          %p10075 = pneg %p285
        $region74: #{_lambda_.1} parent=71 // pred_check_branch
          %10077 = sbr.rel (%p10075) target = $region76
        $region75: #{_lambda_.1} parent=71 // pred_region
          %s10078 = sand.u32 %s270, 1
          %s10079 = scalar_lea.sflag [#allocation3], %s10078
          %s10080 = sand.u32 %s270, 1
          %s10081 = scalar_lea.vmem [#allocation2], %s10080
          %10082 = dma.done %s10079, 16
        $region76: #{_lambda_.1} parent=71 // pred_fallthru
          _
      $region72: #{_lambda_.1} parent=5 // pred_fallthru
        _
    $region6: #{_lambda_.1} parent=1 // loop_footer
      %s24 = sadd.s32 1, %s20
    $region7: #{_lambda_.1} parent=1 // loop_footer_branch
      %19 = sbr.rel target = $region3
    $region8: #{_lambda_.1} parent=1 // loop_exit
      _
    %10083 = vsyncpa [#allocation3], 1
    %s10084 = scalar_lea.sflag [#allocation3], 1
    %10085 = vsyncpa %s10084, 1

</llo_original>
